<compile_context>
chip_gen: v6e
topology: v6e:2x2x1
jax: 0.10.0
libtpu: 0.0.40
codegen_flags: <defaults>
</compile_context>

<pallas_src>
import functools

import numpy as np
import jax
import jax.numpy as jnp
from jax.experimental import pallas as pl
from jax.experimental.pallas import tpu as pltpu


NEG_INF = -1e30
LN_EPS = 1e-5          # torch.nn.LayerNorm default eps


# ----------------------------- in-kernel building blocks -----------------------------

def _layernorm(z, g, b):
    """LayerNorm over the last dim (eps = 1e-5). Used both in-kernel and in the reference."""
    mu = jnp.mean(z, axis=-1, keepdims=True)
    c = z - mu
    var = jnp.mean(c * c, axis=-1, keepdims=True)
    return c * jax.lax.rsqrt(var + LN_EPS) * g + b


def _softmax_rows(s):
    s = s - jnp.max(s, axis=-1, keepdims=True)
    e = jnp.exp(s)
    return e / jnp.sum(e, axis=-1, keepdims=True)


def _mha(x_q, x_kv, wqkv, bq, bk, bv, wo, bo, mask, *, num_heads, self_attn):
    """Multi-head attention for ONE batch element; activations are (S, D).

    Fused QKV projection, per-head (S,S) score tiles, no concatenates: the output
    projection is accumulated per head via row-slices of W_O (linearity of matmul).
    """
    D = x_q.shape[-1]
    dh = D // num_heads
    scale = 1.0 / float(np.sqrt(dh))

    if self_attn:
        qkv = jnp.dot(x_q, wqkv, preferred_element_type=jnp.float32)
        q = qkv[:, :D] + bq
        k = qkv[:, D:2 * D] + bk
        v = qkv[:, 2 * D:] + bv
    else:
        q = jnp.dot(x_q, wqkv[:, :D], preferred_element_type=jnp.float32) + bq
        kv = jnp.dot(x_kv, wqkv[:, D:], preferred_element_type=jnp.float32)
        k = kv[:, :D] + bk
        v = kv[:, D:] + bv

    acc = None
    for h in range(num_heads):
        lo, hi = h * dh, (h + 1) * dh
        qh = q[:, lo:hi] * scale
        kh = k[:, lo:hi]
        vh = v[:, lo:hi]
        s = jnp.dot(qh, kh.T, preferred_element_type=jnp.float32) + mask     # (S, S)
        p = _softmax_rows(s)
        ctx = jnp.dot(p, vh, preferred_element_type=jnp.float32)             # (S, dh)
        contrib = jnp.dot(ctx, wo[lo:hi, :], preferred_element_type=jnp.float32)
        acc = contrib if acc is None else acc + contrib
    return acc + bo


def _ffn(x, w1, b1, w2, b2):
    h = jnp.maximum(jnp.dot(x, w1, preferred_element_type=jnp.float32) + b1, 0.0)
    return jnp.dot(h, w2, preferred_element_type=jnp.float32) + b2


# ----------------------------- fully fused SAINT kernel -----------------------------

def _saint_kernel(in_ex_ref, in_cat_ref, in_in_ref, pos_ref,
                  embd_ex_ref, embd_cat_ref, embd_in_ref,
                  enc_w_ref, enc_b_ref, dec_w_ref, dec_b_ref,
                  head_w_ref, head_b_ref,
                  pred_ref,
                  *, dim_model, heads_en, heads_de, num_en, num_de, seq_len):
    D = dim_model
    S = seq_len

    def embed(idx, table_ref):
        """Exact embedding gather as a one-hot MXU matmul (tables are tiny)."""
        n = table_ref.shape[0]
        cols = jax.lax.broadcasted_iota(jnp.int32, (S, n), 1)
        onehot = (cols == idx).astype(jnp.float32)                           # (S, n)
        return jnp.dot(onehot, table_ref[...], preferred_element_type=jnp.float32)

    # Causal mask built ONCE per kernel invocation (no mask operand / DMA).
    row = jax.lax.broadcasted_iota(jnp.int32, (S, S), 0)
    col = jax.lax.broadcasted_iota(jnp.int32, (S, S), 1)
    mask = jnp.where(col > row, NEG_INF, 0.0).astype(jnp.float32)

    pos = pos_ref[...]                                                       # (S, D)

    # -------------------- encoder stack --------------------
    x = embed(in_ex_ref[...], embd_ex_ref) + embed(in_cat_ref[...], embd_cat_ref) + pos
    for i in range(num_en):
        w = enc_w_ref[i]                                                     # (D, 6D)
        b = enc_b_ref[i]                                                     # (10, D)
        a = _mha(x, x, w[:, :3 * D], b[0:1], b[1:2], b[2:3], w[:, 3 * D:4 * D], b[3:4],
                 mask, num_heads=heads_en, self_attn=True)
        x = _layernorm(a + x, b[6:7], b[7:8])
        f = _ffn(x, w[:, 4 * D:5 * D], b[4:5], w[:, 5 * D:6 * D], b[5:6])
        x = _layernorm(f + x, b[8:9], b[9:10])

    # -------------------- decoder stack --------------------
    out = embed(in_in_ref[...], embd_in_ref) + pos
    for i in range(num_de):
        w = dec_w_ref[i]                                                     # (D, 10D)
        b = dec_b_ref[i]                                                     # (14, D)
        # self-attention + residual + LN1
        a1 = _mha(out, out, w[:, :3 * D], b[0:1], b[1:2], b[2:3], w[:, 3 * D:4 * D],
                  b[3:4], mask, num_heads=heads_de, self_attn=True)
        out = _layernorm(a1 + out, b[10:11], b[11:12])
        # cross-attention + residual.  The reference applies the causal mask here too;
        # its layer_norm2 output (computed on en_out) is discarded -> no LN on this branch.
        a2 = _mha(out, x, w[:, 4 * D:7 * D], b[4:5], b[5:6], b[6:7], w[:, 7 * D:8 * D],
                  b[7:8], mask, num_heads=heads_de, self_attn=False)
        out = a2 + out
        # FFN + residual + LN3
        f = _ffn(out, w[:, 8 * D:9 * D], b[8:9], w[:, 9 * D:10 * D], b[9:10])
        out = _layernorm(f + out, b[12:13], b[13:14])

    # -------------------- sigmoid head (lane-dense store; real pred in lane 0) --------
    y = jnp.dot(out, head_w_ref[...], preferred_element_type=jnp.float32) + head_b_ref[...]
    pred_ref[...] = 1.0 / (1.0 + jnp.exp(-y))


# ----------------------------- host-side packing & wrapper -----------------------------

def _stack_encoder(enc_p, D):
    w = jnp.stack([jnp.concatenate([p["wqkv"], p["wo"], p["w1"], p["w2"]], axis=1)
                   for p in enc_p])                                          # (L, D, 6D)
    b = jnp.stack([jnp.concatenate(
        [p["bqkv"].reshape(3, D), p["bo"], p["b1"], p["b2"],
         p["ln1_g"], p["ln1_b"], p["ln2_g"], p["ln2_b"]], axis=0)
        for p in enc_p])                                                     # (L, 10, D)
    return w, b


def _stack_decoder(dec_p, D):
    w = jnp.stack([jnp.concatenate(
        [p["a1_wqkv"], p["a1_wo"], p["a2_wqkv"], p["a2_wo"], p["w1"], p["w2"]], axis=1)
        for p in dec_p])                                                     # (L, D, 10D)
    b = jnp.stack([jnp.concatenate(
        [p["a1_bqkv"].reshape(3, D), p["a1_bo"],
         p["a2_bqkv"].reshape(3, D), p["a2_bo"],
         p["b1"], p["b2"], p["ln1_g"], p["ln1_b"], p["ln3_g"], p["ln3_b"]], axis=0)
        for p in dec_p])                                                     # (L, 14, D)
    return w, b


def _whole_spec(arr):
    zeros = (0,) * arr.ndim
    return pl.BlockSpec(arr.shape, lambda b: zeros)


def _batch_spec(shape):
    return pl.BlockSpec(shape, lambda b: (b, 0))


def position_embedding_host(bs, seq_len, dim_model):
    """Matches the reference numpy position_encoding exactly (incl. the 2*i exponent)."""
    pe = np.zeros((seq_len, dim_model), dtype=np.float64)
    for pos in range(seq_len):
        for i in range(0, dim_model, 2):
            pe[pos, i] = np.sin(pos / 10000 ** (2 * i / dim_model))
            pe[pos, i + 1] = np.cos(pos / 10000 ** (2 * i / dim_model))
    return jnp.asarray(np.broadcast_to(pe[None], (bs, seq_len, dim_model)),
                       dtype=jnp.float32)


def saint_forward_pallas(params, in_ex, in_cat, in_in, *, heads_en, heads_de,
                         seq_len, dim_model):
    bs = in_ex.shape[0]
    D, S = dim_model, seq_len
    num_en, num_de = len(params["enc"]), len(params["dec"])

    pos2d = position_embedding_host(bs, S, D).reshape(bs * S, D)
    enc_w, enc_b = _stack_encoder(params["enc"], D)
    dec_w, dec_b = _stack_decoder(params["dec"], D)
    head_w = jnp.pad(params["w_out"], ((0, 0), (0, 127)))                    # (D, 128)
    head_b = jnp.pad(params["b_out"], ((0, 0), (0, 127)))                    # (1, 128)

    ex2d = in_ex.reshape(bs * S, 1).astype(jnp.int32)
    cat2d = in_cat.reshape(bs * S, 1).astype(jnp.int32)
    in2d = in_in.reshape(bs * S, 1).astype(jnp.int32)

    embd_ex = params["enc"][0]["embd_ex"]
    embd_cat = params["enc"][0]["embd_cat"]
    embd_in = params["dec"][0]["embd_in"]

    kern = functools.partial(_saint_kernel, dim_model=D, heads_en=heads_en,
                             heads_de=heads_de, num_en=num_en, num_de=num_de,
                             seq_len=S)

    pred = pl.pallas_call(
        kern,
        grid=(bs,),
        out_shape=jax.ShapeDtypeStruct((bs * S, 128), jnp.float32),
        in_specs=[
            _batch_spec((S, 1)), _batch_spec((S, 1)), _batch_spec((S, 1)),
            _batch_spec((S, D)),
            _whole_spec(embd_ex), _whole_spec(embd_cat), _whole_spec(embd_in),
            _whole_spec(enc_w), _whole_spec(enc_b),
            _whole_spec(dec_w), _whole_spec(dec_b),
            _whole_spec(head_w), _whole_spec(head_b),
        ],
        out_specs=pl.BlockSpec((S, 128), lambda b: (b, 0)),
        compiler_params=pltpu.CompilerParams(dimension_semantics=("parallel",)),
    )(ex2d, cat2d, in2d, pos2d, embd_ex, embd_cat, embd_in,
      enc_w, enc_b, dec_w, dec_b, head_w, head_b)

    return pred[:, :1].reshape(bs, S, 1)


# ----------------------------- pure-JAX reference (for validation) -----------------------------

def _mha_ref(x_q, x_kv, wqkv, bqkv, wo, bo, mask, num_heads):
    D = x_q.shape[-1]
    dh = D // num_heads
    q = x_q @ wqkv[:, :D] + bqkv[:, :D]
    k = x_kv @ wqkv[:, D:2 * D] + bqkv[:, D:2 * D]
    v = x_kv @ wqkv[:, 2 * D:] + bqkv[:, 2 * D:]
    B, Sq, _ = q.shape
    Sk = k.shape[1]

    def split(t, S):
        return t.reshape(B, S, num_heads, dh).transpose(0, 2, 1, 3)

    qh = split(q, Sq) * (1.0 / np.sqrt(dh))
    kh = split(k, Sk)
    vh = split(v, Sk)
    s = jnp.einsum("bhqd,bhkd->bhqk", qh, kh) + mask
    p = jax.nn.softmax(s, axis=-1)
    o = jnp.einsum("bhqk,bhkd->bhqd", p, vh).transpose(0, 2, 1, 3).reshape(B, Sq, D)
    return o @ wo + bo


def saint_forward_ref(params, in_ex, in_cat, in_in, *, heads_en, heads_de,
                      seq_len, dim_model):
    bs = in_ex.shape[0]
    pos = position_embedding_host(bs, seq_len, dim_model)
    mask = jnp.asarray(np.triu(np.ones((seq_len, seq_len), np.float32), k=1) * NEG_INF)
    enc_p, dec_p = params["enc"], params["dec"]

    x = enc_p[0]["embd_ex"][in_ex] + enc_p[0]["embd_cat"][in_cat] + pos
    for p in enc_p:
        a = _mha_ref(x, x, p["wqkv"], p["bqkv"], p["wo"], p["bo"], mask, heads_en)
        x = _layernorm(a + x, p["ln1_g"], p["ln1_b"])
        f = jnp.maximum(x @ p["w1"] + p["b1"], 0.0) @ p["w2"] + p["b2"]
        x = _layernorm(f + x, p["ln2_g"], p["ln2_b"])

    d = dec_p[0]["embd_in"][in_in] + pos
    for p in dec_p:
        a = _mha_ref(d, d, p["a1_wqkv"], p["a1_bqkv"], p["a1_wo"], p["a1_bo"], mask, heads_de)
        d = _layernorm(a + d, p["ln1_g"], p["ln1_b"])
        a = _mha_ref(d, x, p["a2_wqkv"], p["a2_bqkv"], p["a2_wo"], p["a2_bo"], mask, heads_de)
        d = a + d
        f = jnp.maximum(d @ p["w1"] + p["b1"], 0.0) @ p["w2"] + p["b2"]
        d = _layernorm(f + d, p["ln3_g"], p["ln3_b"])
    return jax.nn.sigmoid(d @ params["w_out"] + params["b_out"])


# ----------------------------- deterministic parameter init -----------------------------

def _uniform(key, shape, scale):
    return jax.random.uniform(key, shape, jnp.float32, -scale, scale)


def init_attn_params(key, D, prefix=""):
    ks = jax.random.split(key, 4)
    s = 1.0 / np.sqrt(D)
    return {prefix + "wqkv": _uniform(ks[0], (D, 3 * D), s),
            prefix + "bqkv": _uniform(ks[1], (1, 3 * D), s),
            prefix + "wo": _uniform(ks[2], (D, D), s),
            prefix + "bo": _uniform(ks[3], (1, D), s)}


def init_ffn_params(key, D):
    ks = jax.random.split(key, 4)
    s = 1.0 / np.sqrt(D)
    return dict(w1=_uniform(ks[0], (D, D), s), b1=_uniform(ks[1], (1, D), s),
                w2=_uniform(ks[2], (D, D), s), b2=_uniform(ks[3], (1, D), s))


def init_encoder_params(key, D, total_ex, total_cat):
    ks = jax.random.split(key, 4)
    p = dict(embd_ex=jax.random.normal(ks[0], (total_ex, D), jnp.float32),
             embd_cat=jax.random.normal(ks[1], (total_cat, D), jnp.float32),
             ln1_g=jnp.ones((1, D), jnp.float32), ln1_b=jnp.zeros((1, D), jnp.float32),
             ln2_g=jnp.ones((1, D), jnp.float32), ln2_b=jnp.zeros((1, D), jnp.float32))
    p.update(init_attn_params(ks[2], D))
    p.update(init_ffn_params(ks[3], D))
    return p


def init_decoder_params(key, D, total_in):
    ks = jax.random.split(key, 4)
    # TODO(synk): layer_norm2 params exist in the PyTorch module but its output is unused.
    p = dict(embd_in=jax.random.normal(ks[0], (total_in, D), jnp.float32),
             ln1_g=jnp.ones((1, D), jnp.float32), ln1_b=jnp.zeros((1, D), jnp.float32),
             ln3_g=jnp.ones((1, D), jnp.float32), ln3_b=jnp.zeros((1, D), jnp.float32))
    p.update(init_attn_params(ks[1], D, prefix="a1_"))
    p.update(init_attn_params(ks[2], D, prefix="a2_"))
    p.update(init_ffn_params(ks[3], D))
    return p


def init_saint_params(key, D, num_en, num_de, total_ex, total_cat, total_in):
    keys = jax.random.split(key, num_en + num_de + 2)
    enc = [init_encoder_params(keys[i], D, total_ex, total_cat) for i in range(num_en)]
    dec = [init_decoder_params(keys[num_en + i], D, total_in) for i in range(num_de)]
    s = 1.0 / np.sqrt(D)
    return dict(enc=enc, dec=dec,
                w_out=_uniform(keys[-2], (D, 1), s),
                b_out=_uniform(keys[-1], (1, 1), s))


# ----------------------------- main -----------------------------

if __name__ == "__main__":
    dim_model = 32
    num_en = 2
    num_de = 2
    heads_en = 4
    heads_de = 4
    total_ex = 20
    total_cat = 12
    total_in = 10
    seq_len = 8
    bs = 2

    root = jax.random.PRNGKey(0)
    kparam, kex, kcat, kin = jax.random.split(root, 4)
    params = init_saint_params(kparam, dim_model, num_en, num_de,
                               total_ex, total_cat, total_in)
    in_ex = jax.random.randint(kex, (bs, seq_len), 0, total_ex, dtype=jnp.int32)
    in_cat = jax.random.randint(kcat, (bs, seq_len), 0, total_cat, dtype=jnp.int32)
    in_in = jax.random.randint(kin, (bs, seq_len), 0, total_in, dtype=jnp.int32)

    out = saint_forward_pallas(params, in_ex, in_cat, in_in,
                               heads_en=heads_en, heads_de=heads_de,
                               seq_len=seq_len, dim_model=dim_model)
    out = jax.block_until_ready(out)

    ref = saint_forward_ref(params, in_ex, in_cat, in_in,
                            heads_en=heads_en, heads_de=heads_de,
                            seq_len=seq_len, dim_model=dim_model)
    ref = jax.block_until_ready(ref)

    assert out.shape == (bs, seq_len, 1), out.shape
    assert bool(jnp.all(jnp.isfinite(out)))
    np.testing.assert_allclose(np.asarray(out), np.asarray(ref), rtol=1e-3, atol=1e-3)
    print("KERNEL_OK")
</pallas_src>

<mosaic_0001>
module attributes {stable_mosaic.version = 11 : i64} {
  func.func @_saint_kernel(%arg0: i32, %arg1: memref<8x1xi32, #tpu.memory_space<vmem>>, %arg2: memref<8x1xi32, #tpu.memory_space<vmem>>, %arg3: memref<8x1xi32, #tpu.memory_space<vmem>>, %arg4: memref<8x32xf32, #tpu.memory_space<vmem>>, %arg5: memref<20x32xf32, #tpu.memory_space<vmem>>, %arg6: memref<12x32xf32, #tpu.memory_space<vmem>>, %arg7: memref<10x32xf32, #tpu.memory_space<vmem>>, %arg8: memref<2x32x192xf32, #tpu.memory_space<vmem>>, %arg9: memref<2x10x32xf32, #tpu.memory_space<vmem>>, %arg10: memref<2x32x320xf32, #tpu.memory_space<vmem>>, %arg11: memref<2x14x32xf32, #tpu.memory_space<vmem>>, %arg12: memref<32x128xf32, #tpu.memory_space<vmem>>, %arg13: memref<1x128xf32, #tpu.memory_space<vmem>>, %arg14: memref<8x128xf32, #tpu.memory_space<vmem>>) attributes {dimension_semantics = [#tpu.dimension_semantics<parallel>], iteration_bounds = array<i64: 2>, scalar_prefetch = 0 : i64, scratch_operands = 0 : i64, tpu.core_type = #tpu.core_type<tc>, window_params = [{transform_indices = @transform_0, window_bounds = array<i64: 8, 1>}, {transform_indices = @transform_1, window_bounds = array<i64: 8, 1>}, {transform_indices = @transform_2, window_bounds = array<i64: 8, 1>}, {transform_indices = @transform_3, window_bounds = array<i64: 8, 32>}, {pipeline_mode = #tpu.pipeline_mode<synchronous>, transform_indices = @transform_4, window_bounds = array<i64: 20, 32>}, {pipeline_mode = #tpu.pipeline_mode<synchronous>, transform_indices = @transform_5, window_bounds = array<i64: 12, 32>}, {pipeline_mode = #tpu.pipeline_mode<synchronous>, transform_indices = @transform_6, window_bounds = array<i64: 10, 32>}, {pipeline_mode = #tpu.pipeline_mode<synchronous>, transform_indices = @transform_7, window_bounds = array<i64: 2, 32, 192>}, {pipeline_mode = #tpu.pipeline_mode<synchronous>, transform_indices = @transform_8, window_bounds = array<i64: 2, 10, 32>}, {pipeline_mode = #tpu.pipeline_mode<synchronous>, transform_indices = @transform_9, window_bounds = array<i64: 2, 32, 320>}, {pipeline_mode = #tpu.pipeline_mode<synchronous>, transform_indices = @transform_10, window_bounds = array<i64: 2, 14, 32>}, {pipeline_mode = #tpu.pipeline_mode<synchronous>, transform_indices = @transform_11, window_bounds = array<i64: 32, 128>}, {pipeline_mode = #tpu.pipeline_mode<synchronous>, transform_indices = @transform_12, window_bounds = array<i64: 1, 128>}, {transform_indices = @transform_13, window_bounds = array<i64: 8, 128>}]} {
    %0 = tpu.iota {dimensions = array<i32: 0>} : vector<8x8xi32>
    %1 = tpu.iota {dimensions = array<i32: 1>} : vector<8x8xi32>
    %2 = arith.cmpi sgt, %1, %0 : vector<8x8xi32>
    %cst = arith.constant -1.000000e+30 : f32
    %cst_0 = arith.constant 0.000000e+00 : f32
    %3 = vector.broadcast %cst : f32 to vector<8x8xf32>
    %4 = vector.broadcast %cst_0 : f32 to vector<8x8xf32>
    %5 = arith.select %2, %3, %4 : vector<8x8xi1>, vector<8x8xf32>
    %c0 = arith.constant 0 : index
    %c0_1 = arith.constant 0 : index
    %6 = vector.load %arg4[%c0, %c0_1] : memref<8x32xf32, #tpu.memory_space<vmem>>, vector<8x32xf32>
    %c0_2 = arith.constant 0 : index
    %c0_3 = arith.constant 0 : index
    %7 = vector.load %arg1[%c0_2, %c0_3] : memref<8x1xi32, #tpu.memory_space<vmem>>, vector<8x1xi32>
    %8 = tpu.iota {dimensions = array<i32: 1>} : vector<8x20xi32>
    %9 = vector.broadcast %7 : vector<8x1xi32> to vector<8x20xi32>
    %10 = arith.cmpi eq, %8, %9 : vector<8x20xi32>
    %11 = arith.extui %10 : vector<8x20xi1> to vector<8x20xi32>
    %12 = arith.sitofp %11 : vector<8x20xi32> to vector<8x20xf32>
    %c0_4 = arith.constant 0 : index
    %c0_5 = arith.constant 0 : index
    %13 = vector.load %arg5[%c0_4, %c0_5] : memref<20x32xf32, #tpu.memory_space<vmem>>, vector<20x32xf32>
    %cst_6 = arith.constant dense<0.000000e+00> : vector<8x32xf32>
    %14 = tpu.matmul %12, %13, %cst_6 {dimension_numbers = #tpu.dot_dimension_numbers<[1], [0], [0], [1], [0, 0, 1, 1], [], []>} : vector<8x20xf32>, vector<20x32xf32>, vector<8x32xf32> -> vector<8x32xf32>
    %c0_7 = arith.constant 0 : index
    %c0_8 = arith.constant 0 : index
    %15 = vector.load %arg2[%c0_7, %c0_8] : memref<8x1xi32, #tpu.memory_space<vmem>>, vector<8x1xi32>
    %16 = tpu.iota {dimensions = array<i32: 1>} : vector<8x12xi32>
    %17 = vector.broadcast %15 : vector<8x1xi32> to vector<8x12xi32>
    %18 = arith.cmpi eq, %16, %17 : vector<8x12xi32>
    %19 = arith.extui %18 : vector<8x12xi1> to vector<8x12xi32>
    %20 = arith.sitofp %19 : vector<8x12xi32> to vector<8x12xf32>
    %c0_9 = arith.constant 0 : index
    %c0_10 = arith.constant 0 : index
    %21 = vector.load %arg6[%c0_9, %c0_10] : memref<12x32xf32, #tpu.memory_space<vmem>>, vector<12x32xf32>
    %cst_11 = arith.constant dense<0.000000e+00> : vector<8x32xf32>
    %22 = tpu.matmul %20, %21, %cst_11 {dimension_numbers = #tpu.dot_dimension_numbers<[1], [0], [0], [1], [0, 0, 1, 1], [], []>} : vector<8x12xf32>, vector<12x32xf32>, vector<8x32xf32> -> vector<8x32xf32>
    %23 = arith.addf %14, %22 : vector<8x32xf32>
    %24 = arith.addf %23, %6 : vector<8x32xf32>
    %c0_12 = arith.constant 0 : index
    %c0_13 = arith.constant 0 : index
    %c0_14 = arith.constant 0 : index
    %25 = vector.load %arg8[%c0_12, %c0_13, %c0_14] : memref<2x32x192xf32, #tpu.memory_space<vmem>>, vector<1x32x192xf32>
    %26 = vector.shape_cast %25 : vector<1x32x192xf32> to vector<32x192xf32>
    %c0_15 = arith.constant 0 : index
    %c0_16 = arith.constant 0 : index
    %c0_17 = arith.constant 0 : index
    %27 = vector.load %arg9[%c0_15, %c0_16, %c0_17] : memref<2x10x32xf32, #tpu.memory_space<vmem>>, vector<1x10x32xf32>
    %28 = vector.shape_cast %27 : vector<1x10x32xf32> to vector<10x32xf32>
    %29 = vector.extract_strided_slice %26 {offsets = [0, 0], sizes = [32, 96], strides = [1, 1]} : vector<32x192xf32> to vector<32x96xf32>
    %30 = vector.extract_strided_slice %28 {offsets = [0, 0], sizes = [1, 32], strides = [1, 1]} : vector<10x32xf32> to vector<1x32xf32>
    %31 = vector.extract_strided_slice %28 {offsets = [1, 0], sizes = [1, 32], strides = [1, 1]} : vector<10x32xf32> to vector<1x32xf32>
    %32 = vector.extract_strided_slice %28 {offsets = [2, 0], sizes = [1, 32], strides = [1, 1]} : vector<10x32xf32> to vector<1x32xf32>
    %33 = vector.extract_strided_slice %26 {offsets = [0, 96], sizes = [32, 32], strides = [1, 1]} : vector<32x192xf32> to vector<32x32xf32>
    %34 = vector.extract_strided_slice %28 {offsets = [3, 0], sizes = [1, 32], strides = [1, 1]} : vector<10x32xf32> to vector<1x32xf32>
    %cst_18 = arith.constant dense<0.000000e+00> : vector<8x96xf32>
    %35 = tpu.matmul %24, %29, %cst_18 {dimension_numbers = #tpu.dot_dimension_numbers<[1], [0], [0], [1], [0, 0, 1, 1], [], []>} : vector<8x32xf32>, vector<32x96xf32>, vector<8x96xf32> -> vector<8x96xf32>
    %36 = vector.extract_strided_slice %35 {offsets = [0, 0], sizes = [8, 32], strides = [1, 1]} : vector<8x96xf32> to vector<8x32xf32>
    %37 = vector.broadcast %30 : vector<1x32xf32> to vector<8x32xf32>
    %38 = arith.addf %36, %37 : vector<8x32xf32>
    %39 = vector.extract_strided_slice %35 {offsets = [0, 32], sizes = [8, 32], strides = [1, 1]} : vector<8x96xf32> to vector<8x32xf32>
    %40 = vector.broadcast %31 : vector<1x32xf32> to vector<8x32xf32>
    %41 = arith.addf %39, %40 : vector<8x32xf32>
    %42 = vector.extract_strided_slice %35 {offsets = [0, 64], sizes = [8, 32], strides = [1, 1]} : vector<8x96xf32> to vector<8x32xf32>
    %43 = vector.broadcast %32 : vector<1x32xf32> to vector<8x32xf32>
    %44 = arith.addf %42, %43 : vector<8x32xf32>
    %45 = vector.extract_strided_slice %38 {offsets = [0, 0], sizes = [8, 8], strides = [1, 1]} : vector<8x32xf32> to vector<8x8xf32>
    %cst_19 = arith.constant 0.353553385 : f32
    %46 = vector.broadcast %cst_19 : f32 to vector<8x8xf32>
    %47 = arith.mulf %45, %46 : vector<8x8xf32>
    %48 = vector.extract_strided_slice %41 {offsets = [0, 0], sizes = [8, 8], strides = [1, 1]} : vector<8x32xf32> to vector<8x8xf32>
    %49 = vector.extract_strided_slice %44 {offsets = [0, 0], sizes = [8, 8], strides = [1, 1]} : vector<8x32xf32> to vector<8x8xf32>
    %50 = tpu.transpose %48, [1, 0] : vector<8x8xf32> -> vector<8x8xf32>
    %cst_20 = arith.constant dense<0.000000e+00> : vector<8x8xf32>
    %51 = tpu.matmul %47, %50, %cst_20 {dimension_numbers = #tpu.dot_dimension_numbers<[1], [0], [0], [1], [0, 0, 1, 1], [], []>} : vector<8x8xf32>, vector<8x8xf32>, vector<8x8xf32> -> vector<8x8xf32>
    %52 = arith.addf %51, %5 : vector<8x8xf32>
    %cst_21 = arith.constant dense<0xFF800000> : vector<8xf32>
    %53 = vector.multi_reduction <maximumf>, %52, %cst_21 [1] : vector<8x8xf32> to vector<8xf32>
    %54 = vector.shape_cast %53 : vector<8xf32> to vector<8x1xf32>
    %55 = vector.broadcast %54 : vector<8x1xf32> to vector<8x8xf32>
    %56 = arith.subf %52, %55 : vector<8x8xf32>
    %57 = math.exp %56 : vector<8x8xf32>
    %cst_22 = arith.constant dense<0.000000e+00> : vector<8xf32>
    %58 = vector.multi_reduction <add>, %57, %cst_22 [1] : vector<8x8xf32> to vector<8xf32>
    %59 = vector.shape_cast %58 : vector<8xf32> to vector<8x1xf32>
    %60 = vector.broadcast %59 : vector<8x1xf32> to vector<8x8xf32>
    %61 = arith.divf %57, %60 : vector<8x8xf32>
    %cst_23 = arith.constant dense<0.000000e+00> : vector<8x8xf32>
    %62 = tpu.matmul %61, %49, %cst_23 {dimension_numbers = #tpu.dot_dimension_numbers<[1], [0], [0], [1], [0, 0, 1, 1], [], []>} : vector<8x8xf32>, vector<8x8xf32>, vector<8x8xf32> -> vector<8x8xf32>
    %63 = vector.extract_strided_slice %33 {offsets = [0, 0], sizes = [8, 32], strides = [1, 1]} : vector<32x32xf32> to vector<8x32xf32>
    %cst_24 = arith.constant dense<0.000000e+00> : vector<8x32xf32>
    %64 = tpu.matmul %62, %63, %cst_24 {dimension_numbers = #tpu.dot_dimension_numbers<[1], [0], [0], [1], [0, 0, 1, 1], [], []>} : vector<8x8xf32>, vector<8x32xf32>, vector<8x32xf32> -> vector<8x32xf32>
    %65 = vector.extract_strided_slice %38 {offsets = [0, 8], sizes = [8, 8], strides = [1, 1]} : vector<8x32xf32> to vector<8x8xf32>
    %cst_25 = arith.constant 0.353553385 : f32
    %66 = vector.broadcast %cst_25 : f32 to vector<8x8xf32>
    %67 = arith.mulf %65, %66 : vector<8x8xf32>
    %68 = vector.extract_strided_slice %41 {offsets = [0, 8], sizes = [8, 8], strides = [1, 1]} : vector<8x32xf32> to vector<8x8xf32>
    %69 = vector.extract_strided_slice %44 {offsets = [0, 8], sizes = [8, 8], strides = [1, 1]} : vector<8x32xf32> to vector<8x8xf32>
    %70 = tpu.transpose %68, [1, 0] : vector<8x8xf32> -> vector<8x8xf32>
    %cst_26 = arith.constant dense<0.000000e+00> : vector<8x8xf32>
    %71 = tpu.matmul %67, %70, %cst_26 {dimension_numbers = #tpu.dot_dimension_numbers<[1], [0], [0], [1], [0, 0, 1, 1], [], []>} : vector<8x8xf32>, vector<8x8xf32>, vector<8x8xf32> -> vector<8x8xf32>
    %72 = arith.addf %71, %5 : vector<8x8xf32>
    %cst_27 = arith.constant dense<0xFF800000> : vector<8xf32>
    %73 = vector.multi_reduction <maximumf>, %72, %cst_27 [1] : vector<8x8xf32> to vector<8xf32>
    %74 = vector.shape_cast %73 : vector<8xf32> to vector<8x1xf32>
    %75 = vector.broadcast %74 : vector<8x1xf32> to vector<8x8xf32>
    %76 = arith.subf %72, %75 : vector<8x8xf32>
    %77 = math.exp %76 : vector<8x8xf32>
    %cst_28 = arith.constant dense<0.000000e+00> : vector<8xf32>
    %78 = vector.multi_reduction <add>, %77, %cst_28 [1] : vector<8x8xf32> to vector<8xf32>
    %79 = vector.shape_cast %78 : vector<8xf32> to vector<8x1xf32>
    %80 = vector.broadcast %79 : vector<8x1xf32> to vector<8x8xf32>
    %81 = arith.divf %77, %80 : vector<8x8xf32>
    %cst_29 = arith.constant dense<0.000000e+00> : vector<8x8xf32>
    %82 = tpu.matmul %81, %69, %cst_29 {dimension_numbers = #tpu.dot_dimension_numbers<[1], [0], [0], [1], [0, 0, 1, 1], [], []>} : vector<8x8xf32>, vector<8x8xf32>, vector<8x8xf32> -> vector<8x8xf32>
    %83 = vector.extract_strided_slice %33 {offsets = [8, 0], sizes = [8, 32], strides = [1, 1]} : vector<32x32xf32> to vector<8x32xf32>
    %cst_30 = arith.constant dense<0.000000e+00> : vector<8x32xf32>
    %84 = tpu.matmul %82, %83, %cst_30 {dimension_numbers = #tpu.dot_dimension_numbers<[1], [0], [0], [1], [0, 0, 1, 1], [], []>} : vector<8x8xf32>, vector<8x32xf32>, vector<8x32xf32> -> vector<8x32xf32>
    %85 = arith.addf %64, %84 : vector<8x32xf32>
    %86 = vector.extract_strided_slice %38 {offsets = [0, 16], sizes = [8, 8], strides = [1, 1]} : vector<8x32xf32> to vector<8x8xf32>
    %cst_31 = arith.constant 0.353553385 : f32
    %87 = vector.broadcast %cst_31 : f32 to vector<8x8xf32>
    %88 = arith.mulf %86, %87 : vector<8x8xf32>
    %89 = vector.extract_strided_slice %41 {offsets = [0, 16], sizes = [8, 8], strides = [1, 1]} : vector<8x32xf32> to vector<8x8xf32>
    %90 = vector.extract_strided_slice %44 {offsets = [0, 16], sizes = [8, 8], strides = [1, 1]} : vector<8x32xf32> to vector<8x8xf32>
    %91 = tpu.transpose %89, [1, 0] : vector<8x8xf32> -> vector<8x8xf32>
    %cst_32 = arith.constant dense<0.000000e+00> : vector<8x8xf32>
    %92 = tpu.matmul %88, %91, %cst_32 {dimension_numbers = #tpu.dot_dimension_numbers<[1], [0], [0], [1], [0, 0, 1, 1], [], []>} : vector<8x8xf32>, vector<8x8xf32>, vector<8x8xf32> -> vector<8x8xf32>
    %93 = arith.addf %92, %5 : vector<8x8xf32>
    %cst_33 = arith.constant dense<0xFF800000> : vector<8xf32>
    %94 = vector.multi_reduction <maximumf>, %93, %cst_33 [1] : vector<8x8xf32> to vector<8xf32>
    %95 = vector.shape_cast %94 : vector<8xf32> to vector<8x1xf32>
    %96 = vector.broadcast %95 : vector<8x1xf32> to vector<8x8xf32>
    %97 = arith.subf %93, %96 : vector<8x8xf32>
    %98 = math.exp %97 : vector<8x8xf32>
    %cst_34 = arith.constant dense<0.000000e+00> : vector<8xf32>
    %99 = vector.multi_reduction <add>, %98, %cst_34 [1] : vector<8x8xf32> to vector<8xf32>
    %100 = vector.shape_cast %99 : vector<8xf32> to vector<8x1xf32>
    %101 = vector.broadcast %100 : vector<8x1xf32> to vector<8x8xf32>
    %102 = arith.divf %98, %101 : vector<8x8xf32>
    %cst_35 = arith.constant dense<0.000000e+00> : vector<8x8xf32>
    %103 = tpu.matmul %102, %90, %cst_35 {dimension_numbers = #tpu.dot_dimension_numbers<[1], [0], [0], [1], [0, 0, 1, 1], [], []>} : vector<8x8xf32>, vector<8x8xf32>, vector<8x8xf32> -> vector<8x8xf32>
    %104 = vector.extract_strided_slice %33 {offsets = [16, 0], sizes = [8, 32], strides = [1, 1]} : vector<32x32xf32> to vector<8x32xf32>
    %cst_36 = arith.constant dense<0.000000e+00> : vector<8x32xf32>
    %105 = tpu.matmul %103, %104, %cst_36 {dimension_numbers = #tpu.dot_dimension_numbers<[1], [0], [0], [1], [0, 0, 1, 1], [], []>} : vector<8x8xf32>, vector<8x32xf32>, vector<8x32xf32> -> vector<8x32xf32>
    %106 = arith.addf %85, %105 : vector<8x32xf32>
    %107 = vector.extract_strided_slice %38 {offsets = [0, 24], sizes = [8, 8], strides = [1, 1]} : vector<8x32xf32> to vector<8x8xf32>
    %cst_37 = arith.constant 0.353553385 : f32
    %108 = vector.broadcast %cst_37 : f32 to vector<8x8xf32>
    %109 = arith.mulf %107, %108 : vector<8x8xf32>
    %110 = vector.extract_strided_slice %41 {offsets = [0, 24], sizes = [8, 8], strides = [1, 1]} : vector<8x32xf32> to vector<8x8xf32>
    %111 = vector.extract_strided_slice %44 {offsets = [0, 24], sizes = [8, 8], strides = [1, 1]} : vector<8x32xf32> to vector<8x8xf32>
    %112 = tpu.transpose %110, [1, 0] : vector<8x8xf32> -> vector<8x8xf32>
    %cst_38 = arith.constant dense<0.000000e+00> : vector<8x8xf32>
    %113 = tpu.matmul %109, %112, %cst_38 {dimension_numbers = #tpu.dot_dimension_numbers<[1], [0], [0], [1], [0, 0, 1, 1], [], []>} : vector<8x8xf32>, vector<8x8xf32>, vector<8x8xf32> -> vector<8x8xf32>
    %114 = arith.addf %113, %5 : vector<8x8xf32>
    %cst_39 = arith.constant dense<0xFF800000> : vector<8xf32>
    %115 = vector.multi_reduction <maximumf>, %114, %cst_39 [1] : vector<8x8xf32> to vector<8xf32>
    %116 = vector.shape_cast %115 : vector<8xf32> to vector<8x1xf32>
    %117 = vector.broadcast %116 : vector<8x1xf32> to vector<8x8xf32>
    %118 = arith.subf %114, %117 : vector<8x8xf32>
    %119 = math.exp %118 : vector<8x8xf32>
    %cst_40 = arith.constant dense<0.000000e+00> : vector<8xf32>
    %120 = vector.multi_reduction <add>, %119, %cst_40 [1] : vector<8x8xf32> to vector<8xf32>
    %121 = vector.shape_cast %120 : vector<8xf32> to vector<8x1xf32>
    %122 = vector.broadcast %121 : vector<8x1xf32> to vector<8x8xf32>
    %123 = arith.divf %119, %122 : vector<8x8xf32>
    %cst_41 = arith.constant dense<0.000000e+00> : vector<8x8xf32>
    %124 = tpu.matmul %123, %111, %cst_41 {dimension_numbers = #tpu.dot_dimension_numbers<[1], [0], [0], [1], [0, 0, 1, 1], [], []>} : vector<8x8xf32>, vector<8x8xf32>, vector<8x8xf32> -> vector<8x8xf32>
    %125 = vector.extract_strided_slice %33 {offsets = [24, 0], sizes = [8, 32], strides = [1, 1]} : vector<32x32xf32> to vector<8x32xf32>
    %cst_42 = arith.constant dense<0.000000e+00> : vector<8x32xf32>
    %126 = tpu.matmul %124, %125, %cst_42 {dimension_numbers = #tpu.dot_dimension_numbers<[1], [0], [0], [1], [0, 0, 1, 1], [], []>} : vector<8x8xf32>, vector<8x32xf32>, vector<8x32xf32> -> vector<8x32xf32>
    %127 = arith.addf %106, %126 : vector<8x32xf32>
    %128 = vector.broadcast %34 : vector<1x32xf32> to vector<8x32xf32>
    %129 = arith.addf %127, %128 : vector<8x32xf32>
    %130 = arith.addf %129, %24 : vector<8x32xf32>
    %131 = vector.extract_strided_slice %28 {offsets = [6, 0], sizes = [1, 32], strides = [1, 1]} : vector<10x32xf32> to vector<1x32xf32>
    %132 = vector.extract_strided_slice %28 {offsets = [7, 0], sizes = [1, 32], strides = [1, 1]} : vector<10x32xf32> to vector<1x32xf32>
    %cst_43 = arith.constant dense<0.000000e+00> : vector<8xf32>
    %133 = vector.multi_reduction <add>, %130, %cst_43 [1] : vector<8x32xf32> to vector<8xf32>
    %134 = vector.shape_cast %133 : vector<8xf32> to vector<8x1xf32>
    %cst_44 = arith.constant 3.200000e+01 : f32
    %135 = vector.broadcast %cst_44 : f32 to vector<8x1xf32>
    %136 = arith.divf %134, %135 : vector<8x1xf32>
    %137 = vector.broadcast %136 : vector<8x1xf32> to vector<8x32xf32>
    %138 = arith.subf %130, %137 : vector<8x32xf32>
    %139 = arith.mulf %138, %138 : vector<8x32xf32>
    %cst_45 = arith.constant dense<0.000000e+00> : vector<8xf32>
    %140 = vector.multi_reduction <add>, %139, %cst_45 [1] : vector<8x32xf32> to vector<8xf32>
    %141 = vector.shape_cast %140 : vector<8xf32> to vector<8x1xf32>
    %cst_46 = arith.constant 3.200000e+01 : f32
    %142 = vector.broadcast %cst_46 : f32 to vector<8x1xf32>
    %143 = arith.divf %141, %142 : vector<8x1xf32>
    %cst_47 = arith.constant 9.99999974E-6 : f32
    %144 = vector.broadcast %cst_47 : f32 to vector<8x1xf32>
    %145 = arith.addf %143, %144 : vector<8x1xf32>
    %146 = math.rsqrt %145 : vector<8x1xf32>
    %147 = vector.broadcast %146 : vector<8x1xf32> to vector<8x32xf32>
    %148 = arith.mulf %138, %147 : vector<8x32xf32>
    %149 = vector.broadcast %131 : vector<1x32xf32> to vector<8x32xf32>
    %150 = arith.mulf %148, %149 : vector<8x32xf32>
    %151 = vector.broadcast %132 : vector<1x32xf32> to vector<8x32xf32>
    %152 = arith.addf %150, %151 : vector<8x32xf32>
    %153 = vector.extract_strided_slice %26 {offsets = [0, 128], sizes = [32, 32], strides = [1, 1]} : vector<32x192xf32> to vector<32x32xf32>
    %154 = vector.extract_strided_slice %28 {offsets = [4, 0], sizes = [1, 32], strides = [1, 1]} : vector<10x32xf32> to vector<1x32xf32>
    %155 = vector.extract_strided_slice %26 {offsets = [0, 160], sizes = [32, 32], strides = [1, 1]} : vector<32x192xf32> to vector<32x32xf32>
    %156 = vector.extract_strided_slice %28 {offsets = [5, 0], sizes = [1, 32], strides = [1, 1]} : vector<10x32xf32> to vector<1x32xf32>
    %cst_48 = arith.constant dense<0.000000e+00> : vector<8x32xf32>
    %157 = tpu.matmul %152, %153, %cst_48 {dimension_numbers = #tpu.dot_dimension_numbers<[1], [0], [0], [1], [0, 0, 1, 1], [], []>} : vector<8x32xf32>, vector<32x32xf32>, vector<8x32xf32> -> vector<8x32xf32>
    %158 = vector.broadcast %154 : vector<1x32xf32> to vector<8x32xf32>
    %159 = arith.addf %157, %158 : vector<8x32xf32>
    %cst_49 = arith.constant 0.000000e+00 : f32
    %160 = vector.broadcast %cst_49 : f32 to vector<8x32xf32>
    %161 = arith.maximumf %159, %160 : vector<8x32xf32>
    %cst_50 = arith.constant dense<0.000000e+00> : vector<8x32xf32>
    %162 = tpu.matmul %161, %155, %cst_50 {dimension_numbers = #tpu.dot_dimension_numbers<[1], [0], [0], [1], [0, 0, 1, 1], [], []>} : vector<8x32xf32>, vector<32x32xf32>, vector<8x32xf32> -> vector<8x32xf32>
    %163 = vector.broadcast %156 : vector<1x32xf32> to vector<8x32xf32>
    %164 = arith.addf %162, %163 : vector<8x32xf32>
    %165 = arith.addf %164, %152 : vector<8x32xf32>
    %166 = vector.extract_strided_slice %28 {offsets = [8, 0], sizes = [1, 32], strides = [1, 1]} : vector<10x32xf32> to vector<1x32xf32>
    %167 = vector.extract_strided_slice %28 {offsets = [9, 0], sizes = [1, 32], strides = [1, 1]} : vector<10x32xf32> to vector<1x32xf32>
    %cst_51 = arith.constant dense<0.000000e+00> : vector<8xf32>
    %168 = vector.multi_reduction <add>, %165, %cst_51 [1] : vector<8x32xf32> to vector<8xf32>
    %169 = vector.shape_cast %168 : vector<8xf32> to vector<8x1xf32>
    %cst_52 = arith.constant 3.200000e+01 : f32
    %170 = vector.broadcast %cst_52 : f32 to vector<8x1xf32>
    %171 = arith.divf %169, %170 : vector<8x1xf32>
    %172 = vector.broadcast %171 : vector<8x1xf32> to vector<8x32xf32>
    %173 = arith.subf %165, %172 : vector<8x32xf32>
    %174 = arith.mulf %173, %173 : vector<8x32xf32>
    %cst_53 = arith.constant dense<0.000000e+00> : vector<8xf32>
    %175 = vector.multi_reduction <add>, %174, %cst_53 [1] : vector<8x32xf32> to vector<8xf32>
    %176 = vector.shape_cast %175 : vector<8xf32> to vector<8x1xf32>
    %cst_54 = arith.constant 3.200000e+01 : f32
    %177 = vector.broadcast %cst_54 : f32 to vector<8x1xf32>
    %178 = arith.divf %176, %177 : vector<8x1xf32>
    %cst_55 = arith.constant 9.99999974E-6 : f32
    %179 = vector.broadcast %cst_55 : f32 to vector<8x1xf32>
    %180 = arith.addf %178, %179 : vector<8x1xf32>
    %181 = math.rsqrt %180 : vector<8x1xf32>
    %182 = vector.broadcast %181 : vector<8x1xf32> to vector<8x32xf32>
    %183 = arith.mulf %173, %182 : vector<8x32xf32>
    %184 = vector.broadcast %166 : vector<1x32xf32> to vector<8x32xf32>
    %185 = arith.mulf %183, %184 : vector<8x32xf32>
    %186 = vector.broadcast %167 : vector<1x32xf32> to vector<8x32xf32>
    %187 = arith.addf %185, %186 : vector<8x32xf32>
    %c1 = arith.constant 1 : index
    %c0_56 = arith.constant 0 : index
    %c0_57 = arith.constant 0 : index
    %188 = vector.load %arg8[%c1, %c0_56, %c0_57] : memref<2x32x192xf32, #tpu.memory_space<vmem>>, vector<1x32x192xf32>
    %189 = vector.shape_cast %188 : vector<1x32x192xf32> to vector<32x192xf32>
    %c1_58 = arith.constant 1 : index
    %c0_59 = arith.constant 0 : index
    %c0_60 = arith.constant 0 : index
    %190 = vector.load %arg9[%c1_58, %c0_59, %c0_60] : memref<2x10x32xf32, #tpu.memory_space<vmem>>, vector<1x10x32xf32>
    %191 = vector.shape_cast %190 : vector<1x10x32xf32> to vector<10x32xf32>
    %192 = vector.extract_strided_slice %189 {offsets = [0, 0], sizes = [32, 96], strides = [1, 1]} : vector<32x192xf32> to vector<32x96xf32>
    %193 = vector.extract_strided_slice %191 {offsets = [0, 0], sizes = [1, 32], strides = [1, 1]} : vector<10x32xf32> to vector<1x32xf32>
    %194 = vector.extract_strided_slice %191 {offsets = [1, 0], sizes = [1, 32], strides = [1, 1]} : vector<10x32xf32> to vector<1x32xf32>
    %195 = vector.extract_strided_slice %191 {offsets = [2, 0], sizes = [1, 32], strides = [1, 1]} : vector<10x32xf32> to vector<1x32xf32>
    %196 = vector.extract_strided_slice %189 {offsets = [0, 96], sizes = [32, 32], strides = [1, 1]} : vector<32x192xf32> to vector<32x32xf32>
    %197 = vector.extract_strided_slice %191 {offsets = [3, 0], sizes = [1, 32], strides = [1, 1]} : vector<10x32xf32> to vector<1x32xf32>
    %cst_61 = arith.constant dense<0.000000e+00> : vector<8x96xf32>
    %198 = tpu.matmul %187, %192, %cst_61 {dimension_numbers = #tpu.dot_dimension_numbers<[1], [0], [0], [1], [0, 0, 1, 1], [], []>} : vector<8x32xf32>, vector<32x96xf32>, vector<8x96xf32> -> vector<8x96xf32>
    %199 = vector.extract_strided_slice %198 {offsets = [0, 0], sizes = [8, 32], strides = [1, 1]} : vector<8x96xf32> to vector<8x32xf32>
    %200 = vector.broadcast %193 : vector<1x32xf32> to vector<8x32xf32>
    %201 = arith.addf %199, %200 : vector<8x32xf32>
    %202 = vector.extract_strided_slice %198 {offsets = [0, 32], sizes = [8, 32], strides = [1, 1]} : vector<8x96xf32> to vector<8x32xf32>
    %203 = vector.broadcast %194 : vector<1x32xf32> to vector<8x32xf32>
    %204 = arith.addf %202, %203 : vector<8x32xf32>
    %205 = vector.extract_strided_slice %198 {offsets = [0, 64], sizes = [8, 32], strides = [1, 1]} : vector<8x96xf32> to vector<8x32xf32>
    %206 = vector.broadcast %195 : vector<1x32xf32> to vector<8x32xf32>
    %207 = arith.addf %205, %206 : vector<8x32xf32>
    %208 = vector.extract_strided_slice %201 {offsets = [0, 0], sizes = [8, 8], strides = [1, 1]} : vector<8x32xf32> to vector<8x8xf32>
    %cst_62 = arith.constant 0.353553385 : f32
    %209 = vector.broadcast %cst_62 : f32 to vector<8x8xf32>
    %210 = arith.mulf %208, %209 : vector<8x8xf32>
    %211 = vector.extract_strided_slice %204 {offsets = [0, 0], sizes = [8, 8], strides = [1, 1]} : vector<8x32xf32> to vector<8x8xf32>
    %212 = vector.extract_strided_slice %207 {offsets = [0, 0], sizes = [8, 8], strides = [1, 1]} : vector<8x32xf32> to vector<8x8xf32>
    %213 = tpu.transpose %211, [1, 0] : vector<8x8xf32> -> vector<8x8xf32>
    %cst_63 = arith.constant dense<0.000000e+00> : vector<8x8xf32>
    %214 = tpu.matmul %210, %213, %cst_63 {dimension_numbers = #tpu.dot_dimension_numbers<[1], [0], [0], [1], [0, 0, 1, 1], [], []>} : vector<8x8xf32>, vector<8x8xf32>, vector<8x8xf32> -> vector<8x8xf32>
    %215 = arith.addf %214, %5 : vector<8x8xf32>
    %cst_64 = arith.constant dense<0xFF800000> : vector<8xf32>
    %216 = vector.multi_reduction <maximumf>, %215, %cst_64 [1] : vector<8x8xf32> to vector<8xf32>
    %217 = vector.shape_cast %216 : vector<8xf32> to vector<8x1xf32>
    %218 = vector.broadcast %217 : vector<8x1xf32> to vector<8x8xf32>
    %219 = arith.subf %215, %218 : vector<8x8xf32>
    %220 = math.exp %219 : vector<8x8xf32>
    %cst_65 = arith.constant dense<0.000000e+00> : vector<8xf32>
    %221 = vector.multi_reduction <add>, %220, %cst_65 [1] : vector<8x8xf32> to vector<8xf32>
    %222 = vector.shape_cast %221 : vector<8xf32> to vector<8x1xf32>
    %223 = vector.broadcast %222 : vector<8x1xf32> to vector<8x8xf32>
    %224 = arith.divf %220, %223 : vector<8x8xf32>
    %cst_66 = arith.constant dense<0.000000e+00> : vector<8x8xf32>
    %225 = tpu.matmul %224, %212, %cst_66 {dimension_numbers = #tpu.dot_dimension_numbers<[1], [0], [0], [1], [0, 0, 1, 1], [], []>} : vector<8x8xf32>, vector<8x8xf32>, vector<8x8xf32> -> vector<8x8xf32>
    %226 = vector.extract_strided_slice %196 {offsets = [0, 0], sizes = [8, 32], strides = [1, 1]} : vector<32x32xf32> to vector<8x32xf32>
    %cst_67 = arith.constant dense<0.000000e+00> : vector<8x32xf32>
    %227 = tpu.matmul %225, %226, %cst_67 {dimension_numbers = #tpu.dot_dimension_numbers<[1], [0], [0], [1], [0, 0, 1, 1], [], []>} : vector<8x8xf32>, vector<8x32xf32>, vector<8x32xf32> -> vector<8x32xf32>
    %228 = vector.extract_strided_slice %201 {offsets = [0, 8], sizes = [8, 8], strides = [1, 1]} : vector<8x32xf32> to vector<8x8xf32>
    %cst_68 = arith.constant 0.353553385 : f32
    %229 = vector.broadcast %cst_68 : f32 to vector<8x8xf32>
    %230 = arith.mulf %228, %229 : vector<8x8xf32>
    %231 = vector.extract_strided_slice %204 {offsets = [0, 8], sizes = [8, 8], strides = [1, 1]} : vector<8x32xf32> to vector<8x8xf32>
    %232 = vector.extract_strided_slice %207 {offsets = [0, 8], sizes = [8, 8], strides = [1, 1]} : vector<8x32xf32> to vector<8x8xf32>
    %233 = tpu.transpose %231, [1, 0] : vector<8x8xf32> -> vector<8x8xf32>
    %cst_69 = arith.constant dense<0.000000e+00> : vector<8x8xf32>
    %234 = tpu.matmul %230, %233, %cst_69 {dimension_numbers = #tpu.dot_dimension_numbers<[1], [0], [0], [1], [0, 0, 1, 1], [], []>} : vector<8x8xf32>, vector<8x8xf32>, vector<8x8xf32> -> vector<8x8xf32>
    %235 = arith.addf %234, %5 : vector<8x8xf32>
    %cst_70 = arith.constant dense<0xFF800000> : vector<8xf32>
    %236 = vector.multi_reduction <maximumf>, %235, %cst_70 [1] : vector<8x8xf32> to vector<8xf32>
    %237 = vector.shape_cast %236 : vector<8xf32> to vector<8x1xf32>
    %238 = vector.broadcast %237 : vector<8x1xf32> to vector<8x8xf32>
    %239 = arith.subf %235, %238 : vector<8x8xf32>
    %240 = math.exp %239 : vector<8x8xf32>
    %cst_71 = arith.constant dense<0.000000e+00> : vector<8xf32>
    %241 = vector.multi_reduction <add>, %240, %cst_71 [1] : vector<8x8xf32> to vector<8xf32>
    %242 = vector.shape_cast %241 : vector<8xf32> to vector<8x1xf32>
    %243 = vector.broadcast %242 : vector<8x1xf32> to vector<8x8xf32>
    %244 = arith.divf %240, %243 : vector<8x8xf32>
    %cst_72 = arith.constant dense<0.000000e+00> : vector<8x8xf32>
    %245 = tpu.matmul %244, %232, %cst_72 {dimension_numbers = #tpu.dot_dimension_numbers<[1], [0], [0], [1], [0, 0, 1, 1], [], []>} : vector<8x8xf32>, vector<8x8xf32>, vector<8x8xf32> -> vector<8x8xf32>
    %246 = vector.extract_strided_slice %196 {offsets = [8, 0], sizes = [8, 32], strides = [1, 1]} : vector<32x32xf32> to vector<8x32xf32>
    %cst_73 = arith.constant dense<0.000000e+00> : vector<8x32xf32>
    %247 = tpu.matmul %245, %246, %cst_73 {dimension_numbers = #tpu.dot_dimension_numbers<[1], [0], [0], [1], [0, 0, 1, 1], [], []>} : vector<8x8xf32>, vector<8x32xf32>, vector<8x32xf32> -> vector<8x32xf32>
    %248 = arith.addf %227, %247 : vector<8x32xf32>
    %249 = vector.extract_strided_slice %201 {offsets = [0, 16], sizes = [8, 8], strides = [1, 1]} : vector<8x32xf32> to vector<8x8xf32>
    %cst_74 = arith.constant 0.353553385 : f32
    %250 = vector.broadcast %cst_74 : f32 to vector<8x8xf32>
    %251 = arith.mulf %249, %250 : vector<8x8xf32>
    %252 = vector.extract_strided_slice %204 {offsets = [0, 16], sizes = [8, 8], strides = [1, 1]} : vector<8x32xf32> to vector<8x8xf32>
    %253 = vector.extract_strided_slice %207 {offsets = [0, 16], sizes = [8, 8], strides = [1, 1]} : vector<8x32xf32> to vector<8x8xf32>
    %254 = tpu.transpose %252, [1, 0] : vector<8x8xf32> -> vector<8x8xf32>
    %cst_75 = arith.constant dense<0.000000e+00> : vector<8x8xf32>
    %255 = tpu.matmul %251, %254, %cst_75 {dimension_numbers = #tpu.dot_dimension_numbers<[1], [0], [0], [1], [0, 0, 1, 1], [], []>} : vector<8x8xf32>, vector<8x8xf32>, vector<8x8xf32> -> vector<8x8xf32>
    %256 = arith.addf %255, %5 : vector<8x8xf32>
    %cst_76 = arith.constant dense<0xFF800000> : vector<8xf32>
    %257 = vector.multi_reduction <maximumf>, %256, %cst_76 [1] : vector<8x8xf32> to vector<8xf32>
    %258 = vector.shape_cast %257 : vector<8xf32> to vector<8x1xf32>
    %259 = vector.broadcast %258 : vector<8x1xf32> to vector<8x8xf32>
    %260 = arith.subf %256, %259 : vector<8x8xf32>
    %261 = math.exp %260 : vector<8x8xf32>
    %cst_77 = arith.constant dense<0.000000e+00> : vector<8xf32>
    %262 = vector.multi_reduction <add>, %261, %cst_77 [1] : vector<8x8xf32> to vector<8xf32>
    %263 = vector.shape_cast %262 : vector<8xf32> to vector<8x1xf32>
    %264 = vector.broadcast %263 : vector<8x1xf32> to vector<8x8xf32>
    %265 = arith.divf %261, %264 : vector<8x8xf32>
    %cst_78 = arith.constant dense<0.000000e+00> : vector<8x8xf32>
    %266 = tpu.matmul %265, %253, %cst_78 {dimension_numbers = #tpu.dot_dimension_numbers<[1], [0], [0], [1], [0, 0, 1, 1], [], []>} : vector<8x8xf32>, vector<8x8xf32>, vector<8x8xf32> -> vector<8x8xf32>
    %267 = vector.extract_strided_slice %196 {offsets = [16, 0], sizes = [8, 32], strides = [1, 1]} : vector<32x32xf32> to vector<8x32xf32>
    %cst_79 = arith.constant dense<0.000000e+00> : vector<8x32xf32>
    %268 = tpu.matmul %266, %267, %cst_79 {dimension_numbers = #tpu.dot_dimension_numbers<[1], [0], [0], [1], [0, 0, 1, 1], [], []>} : vector<8x8xf32>, vector<8x32xf32>, vector<8x32xf32> -> vector<8x32xf32>
    %269 = arith.addf %248, %268 : vector<8x32xf32>
    %270 = vector.extract_strided_slice %201 {offsets = [0, 24], sizes = [8, 8], strides = [1, 1]} : vector<8x32xf32> to vector<8x8xf32>
    %cst_80 = arith.constant 0.353553385 : f32
    %271 = vector.broadcast %cst_80 : f32 to vector<8x8xf32>
    %272 = arith.mulf %270, %271 : vector<8x8xf32>
    %273 = vector.extract_strided_slice %204 {offsets = [0, 24], sizes = [8, 8], strides = [1, 1]} : vector<8x32xf32> to vector<8x8xf32>
    %274 = vector.extract_strided_slice %207 {offsets = [0, 24], sizes = [8, 8], strides = [1, 1]} : vector<8x32xf32> to vector<8x8xf32>
    %275 = tpu.transpose %273, [1, 0] : vector<8x8xf32> -> vector<8x8xf32>
    %cst_81 = arith.constant dense<0.000000e+00> : vector<8x8xf32>
    %276 = tpu.matmul %272, %275, %cst_81 {dimension_numbers = #tpu.dot_dimension_numbers<[1], [0], [0], [1], [0, 0, 1, 1], [], []>} : vector<8x8xf32>, vector<8x8xf32>, vector<8x8xf32> -> vector<8x8xf32>
    %277 = arith.addf %276, %5 : vector<8x8xf32>
    %cst_82 = arith.constant dense<0xFF800000> : vector<8xf32>
    %278 = vector.multi_reduction <maximumf>, %277, %cst_82 [1] : vector<8x8xf32> to vector<8xf32>
    %279 = vector.shape_cast %278 : vector<8xf32> to vector<8x1xf32>
    %280 = vector.broadcast %279 : vector<8x1xf32> to vector<8x8xf32>
    %281 = arith.subf %277, %280 : vector<8x8xf32>
    %282 = math.exp %281 : vector<8x8xf32>
    %cst_83 = arith.constant dense<0.000000e+00> : vector<8xf32>
    %283 = vector.multi_reduction <add>, %282, %cst_83 [1] : vector<8x8xf32> to vector<8xf32>
    %284 = vector.shape_cast %283 : vector<8xf32> to vector<8x1xf32>
    %285 = vector.broadcast %284 : vector<8x1xf32> to vector<8x8xf32>
    %286 = arith.divf %282, %285 : vector<8x8xf32>
    %cst_84 = arith.constant dense<0.000000e+00> : vector<8x8xf32>
    %287 = tpu.matmul %286, %274, %cst_84 {dimension_numbers = #tpu.dot_dimension_numbers<[1], [0], [0], [1], [0, 0, 1, 1], [], []>} : vector<8x8xf32>, vector<8x8xf32>, vector<8x8xf32> -> vector<8x8xf32>
    %288 = vector.extract_strided_slice %196 {offsets = [24, 0], sizes = [8, 32], strides = [1, 1]} : vector<32x32xf32> to vector<8x32xf32>
    %cst_85 = arith.constant dense<0.000000e+00> : vector<8x32xf32>
    %289 = tpu.matmul %287, %288, %cst_85 {dimension_numbers = #tpu.dot_dimension_numbers<[1], [0], [0], [1], [0, 0, 1, 1], [], []>} : vector<8x8xf32>, vector<8x32xf32>, vector<8x32xf32> -> vector<8x32xf32>
    %290 = arith.addf %269, %289 : vector<8x32xf32>
    %291 = vector.broadcast %197 : vector<1x32xf32> to vector<8x32xf32>
    %292 = arith.addf %290, %291 : vector<8x32xf32>
    %293 = arith.addf %292, %187 : vector<8x32xf32>
    %294 = vector.extract_strided_slice %191 {offsets = [6, 0], sizes = [1, 32], strides = [1, 1]} : vector<10x32xf32> to vector<1x32xf32>
    %295 = vector.extract_strided_slice %191 {offsets = [7, 0], sizes = [1, 32], strides = [1, 1]} : vector<10x32xf32> to vector<1x32xf32>
    %cst_86 = arith.constant dense<0.000000e+00> : vector<8xf32>
    %296 = vector.multi_reduction <add>, %293, %cst_86 [1] : vector<8x32xf32> to vector<8xf32>
    %297 = vector.shape_cast %296 : vector<8xf32> to vector<8x1xf32>
    %cst_87 = arith.constant 3.200000e+01 : f32
    %298 = vector.broadcast %cst_87 : f32 to vector<8x1xf32>
    %299 = arith.divf %297, %298 : vector<8x1xf32>
    %300 = vector.broadcast %299 : vector<8x1xf32> to vector<8x32xf32>
    %301 = arith.subf %293, %300 : vector<8x32xf32>
    %302 = arith.mulf %301, %301 : vector<8x32xf32>
    %cst_88 = arith.constant dense<0.000000e+00> : vector<8xf32>
    %303 = vector.multi_reduction <add>, %302, %cst_88 [1] : vector<8x32xf32> to vector<8xf32>
    %304 = vector.shape_cast %303 : vector<8xf32> to vector<8x1xf32>
    %cst_89 = arith.constant 3.200000e+01 : f32
    %305 = vector.broadcast %cst_89 : f32 to vector<8x1xf32>
    %306 = arith.divf %304, %305 : vector<8x1xf32>
    %cst_90 = arith.constant 9.99999974E-6 : f32
    %307 = vector.broadcast %cst_90 : f32 to vector<8x1xf32>
    %308 = arith.addf %306, %307 : vector<8x1xf32>
    %309 = math.rsqrt %308 : vector<8x1xf32>
    %310 = vector.broadcast %309 : vector<8x1xf32> to vector<8x32xf32>
    %311 = arith.mulf %301, %310 : vector<8x32xf32>
    %312 = vector.broadcast %294 : vector<1x32xf32> to vector<8x32xf32>
    %313 = arith.mulf %311, %312 : vector<8x32xf32>
    %314 = vector.broadcast %295 : vector<1x32xf32> to vector<8x32xf32>
    %315 = arith.addf %313, %314 : vector<8x32xf32>
    %316 = vector.extract_strided_slice %189 {offsets = [0, 128], sizes = [32, 32], strides = [1, 1]} : vector<32x192xf32> to vector<32x32xf32>
    %317 = vector.extract_strided_slice %191 {offsets = [4, 0], sizes = [1, 32], strides = [1, 1]} : vector<10x32xf32> to vector<1x32xf32>
    %318 = vector.extract_strided_slice %189 {offsets = [0, 160], sizes = [32, 32], strides = [1, 1]} : vector<32x192xf32> to vector<32x32xf32>
    %319 = vector.extract_strided_slice %191 {offsets = [5, 0], sizes = [1, 32], strides = [1, 1]} : vector<10x32xf32> to vector<1x32xf32>
    %cst_91 = arith.constant dense<0.000000e+00> : vector<8x32xf32>
    %320 = tpu.matmul %315, %316, %cst_91 {dimension_numbers = #tpu.dot_dimension_numbers<[1], [0], [0], [1], [0, 0, 1, 1], [], []>} : vector<8x32xf32>, vector<32x32xf32>, vector<8x32xf32> -> vector<8x32xf32>
    %321 = vector.broadcast %317 : vector<1x32xf32> to vector<8x32xf32>
    %322 = arith.addf %320, %321 : vector<8x32xf32>
    %cst_92 = arith.constant 0.000000e+00 : f32
    %323 = vector.broadcast %cst_92 : f32 to vector<8x32xf32>
    %324 = arith.maximumf %322, %323 : vector<8x32xf32>
    %cst_93 = arith.constant dense<0.000000e+00> : vector<8x32xf32>
    %325 = tpu.matmul %324, %318, %cst_93 {dimension_numbers = #tpu.dot_dimension_numbers<[1], [0], [0], [1], [0, 0, 1, 1], [], []>} : vector<8x32xf32>, vector<32x32xf32>, vector<8x32xf32> -> vector<8x32xf32>
    %326 = vector.broadcast %319 : vector<1x32xf32> to vector<8x32xf32>
    %327 = arith.addf %325, %326 : vector<8x32xf32>
    %328 = arith.addf %327, %315 : vector<8x32xf32>
    %329 = vector.extract_strided_slice %191 {offsets = [8, 0], sizes = [1, 32], strides = [1, 1]} : vector<10x32xf32> to vector<1x32xf32>
    %330 = vector.extract_strided_slice %191 {offsets = [9, 0], sizes = [1, 32], strides = [1, 1]} : vector<10x32xf32> to vector<1x32xf32>
    %cst_94 = arith.constant dense<0.000000e+00> : vector<8xf32>
    %331 = vector.multi_reduction <add>, %328, %cst_94 [1] : vector<8x32xf32> to vector<8xf32>
    %332 = vector.shape_cast %331 : vector<8xf32> to vector<8x1xf32>
    %cst_95 = arith.constant 3.200000e+01 : f32
    %333 = vector.broadcast %cst_95 : f32 to vector<8x1xf32>
    %334 = arith.divf %332, %333 : vector<8x1xf32>
    %335 = vector.broadcast %334 : vector<8x1xf32> to vector<8x32xf32>
    %336 = arith.subf %328, %335 : vector<8x32xf32>
    %337 = arith.mulf %336, %336 : vector<8x32xf32>
    %cst_96 = arith.constant dense<0.000000e+00> : vector<8xf32>
    %338 = vector.multi_reduction <add>, %337, %cst_96 [1] : vector<8x32xf32> to vector<8xf32>
    %339 = vector.shape_cast %338 : vector<8xf32> to vector<8x1xf32>
    %cst_97 = arith.constant 3.200000e+01 : f32
    %340 = vector.broadcast %cst_97 : f32 to vector<8x1xf32>
    %341 = arith.divf %339, %340 : vector<8x1xf32>
    %cst_98 = arith.constant 9.99999974E-6 : f32
    %342 = vector.broadcast %cst_98 : f32 to vector<8x1xf32>
    %343 = arith.addf %341, %342 : vector<8x1xf32>
    %344 = math.rsqrt %343 : vector<8x1xf32>
    %345 = vector.broadcast %344 : vector<8x1xf32> to vector<8x32xf32>
    %346 = arith.mulf %336, %345 : vector<8x32xf32>
    %347 = vector.broadcast %329 : vector<1x32xf32> to vector<8x32xf32>
    %348 = arith.mulf %346, %347 : vector<8x32xf32>
    %349 = vector.broadcast %330 : vector<1x32xf32> to vector<8x32xf32>
    %350 = arith.addf %348, %349 : vector<8x32xf32>
    %c0_99 = arith.constant 0 : index
    %c0_100 = arith.constant 0 : index
    %351 = vector.load %arg3[%c0_99, %c0_100] : memref<8x1xi32, #tpu.memory_space<vmem>>, vector<8x1xi32>
    %352 = tpu.iota {dimensions = array<i32: 1>} : vector<8x10xi32>
    %353 = vector.broadcast %351 : vector<8x1xi32> to vector<8x10xi32>
    %354 = arith.cmpi eq, %352, %353 : vector<8x10xi32>
    %355 = arith.extui %354 : vector<8x10xi1> to vector<8x10xi32>
    %356 = arith.sitofp %355 : vector<8x10xi32> to vector<8x10xf32>
    %c0_101 = arith.constant 0 : index
    %c0_102 = arith.constant 0 : index
    %357 = vector.load %arg7[%c0_101, %c0_102] : memref<10x32xf32, #tpu.memory_space<vmem>>, vector<10x32xf32>
    %cst_103 = arith.constant dense<0.000000e+00> : vector<8x32xf32>
    %358 = tpu.matmul %356, %357, %cst_103 {dimension_numbers = #tpu.dot_dimension_numbers<[1], [0], [0], [1], [0, 0, 1, 1], [], []>} : vector<8x10xf32>, vector<10x32xf32>, vector<8x32xf32> -> vector<8x32xf32>
    %359 = arith.addf %358, %6 : vector<8x32xf32>
    %c0_104 = arith.constant 0 : index
    %c0_105 = arith.constant 0 : index
    %c0_106 = arith.constant 0 : index
    %360 = vector.load %arg10[%c0_104, %c0_105, %c0_106] : memref<2x32x320xf32, #tpu.memory_space<vmem>>, vector<1x32x320xf32>
    %361 = vector.shape_cast %360 : vector<1x32x320xf32> to vector<32x320xf32>
    %c0_107 = arith.constant 0 : index
    %c0_108 = arith.constant 0 : index
    %c0_109 = arith.constant 0 : index
    %362 = vector.load %arg11[%c0_107, %c0_108, %c0_109] : memref<2x14x32xf32, #tpu.memory_space<vmem>>, vector<1x14x32xf32>
    %363 = vector.shape_cast %362 : vector<1x14x32xf32> to vector<14x32xf32>
    %364 = vector.extract_strided_slice %361 {offsets = [0, 0], sizes = [32, 96], strides = [1, 1]} : vector<32x320xf32> to vector<32x96xf32>
    %365 = vector.extract_strided_slice %363 {offsets = [0, 0], sizes = [1, 32], strides = [1, 1]} : vector<14x32xf32> to vector<1x32xf32>
    %366 = vector.extract_strided_slice %363 {offsets = [1, 0], sizes = [1, 32], strides = [1, 1]} : vector<14x32xf32> to vector<1x32xf32>
    %367 = vector.extract_strided_slice %363 {offsets = [2, 0], sizes = [1, 32], strides = [1, 1]} : vector<14x32xf32> to vector<1x32xf32>
    %368 = vector.extract_strided_slice %361 {offsets = [0, 96], sizes = [32, 32], strides = [1, 1]} : vector<32x320xf32> to vector<32x32xf32>
    %369 = vector.extract_strided_slice %363 {offsets = [3, 0], sizes = [1, 32], strides = [1, 1]} : vector<14x32xf32> to vector<1x32xf32>
    %cst_110 = arith.constant dense<0.000000e+00> : vector<8x96xf32>
    %370 = tpu.matmul %359, %364, %cst_110 {dimension_numbers = #tpu.dot_dimension_numbers<[1], [0], [0], [1], [0, 0, 1, 1], [], []>} : vector<8x32xf32>, vector<32x96xf32>, vector<8x96xf32> -> vector<8x96xf32>
    %371 = vector.extract_strided_slice %370 {offsets = [0, 0], sizes = [8, 32], strides = [1, 1]} : vector<8x96xf32> to vector<8x32xf32>
    %372 = vector.broadcast %365 : vector<1x32xf32> to vector<8x32xf32>
    %373 = arith.addf %371, %372 : vector<8x32xf32>
    %374 = vector.extract_strided_slice %370 {offsets = [0, 32], sizes = [8, 32], strides = [1, 1]} : vector<8x96xf32> to vector<8x32xf32>
    %375 = vector.broadcast %366 : vector<1x32xf32> to vector<8x32xf32>
    %376 = arith.addf %374, %375 : vector<8x32xf32>
    %377 = vector.extract_strided_slice %370 {offsets = [0, 64], sizes = [8, 32], strides = [1, 1]} : vector<8x96xf32> to vector<8x32xf32>
    %378 = vector.broadcast %367 : vector<1x32xf32> to vector<8x32xf32>
    %379 = arith.addf %377, %378 : vector<8x32xf32>
    %380 = vector.extract_strided_slice %373 {offsets = [0, 0], sizes = [8, 8], strides = [1, 1]} : vector<8x32xf32> to vector<8x8xf32>
    %cst_111 = arith.constant 0.353553385 : f32
    %381 = vector.broadcast %cst_111 : f32 to vector<8x8xf32>
    %382 = arith.mulf %380, %381 : vector<8x8xf32>
    %383 = vector.extract_strided_slice %376 {offsets = [0, 0], sizes = [8, 8], strides = [1, 1]} : vector<8x32xf32> to vector<8x8xf32>
    %384 = vector.extract_strided_slice %379 {offsets = [0, 0], sizes = [8, 8], strides = [1, 1]} : vector<8x32xf32> to vector<8x8xf32>
    %385 = tpu.transpose %383, [1, 0] : vector<8x8xf32> -> vector<8x8xf32>
    %cst_112 = arith.constant dense<0.000000e+00> : vector<8x8xf32>
    %386 = tpu.matmul %382, %385, %cst_112 {dimension_numbers = #tpu.dot_dimension_numbers<[1], [0], [0], [1], [0, 0, 1, 1], [], []>} : vector<8x8xf32>, vector<8x8xf32>, vector<8x8xf32> -> vector<8x8xf32>
    %387 = arith.addf %386, %5 : vector<8x8xf32>
    %cst_113 = arith.constant dense<0xFF800000> : vector<8xf32>
    %388 = vector.multi_reduction <maximumf>, %387, %cst_113 [1] : vector<8x8xf32> to vector<8xf32>
    %389 = vector.shape_cast %388 : vector<8xf32> to vector<8x1xf32>
    %390 = vector.broadcast %389 : vector<8x1xf32> to vector<8x8xf32>
    %391 = arith.subf %387, %390 : vector<8x8xf32>
    %392 = math.exp %391 : vector<8x8xf32>
    %cst_114 = arith.constant dense<0.000000e+00> : vector<8xf32>
    %393 = vector.multi_reduction <add>, %392, %cst_114 [1] : vector<8x8xf32> to vector<8xf32>
    %394 = vector.shape_cast %393 : vector<8xf32> to vector<8x1xf32>
    %395 = vector.broadcast %394 : vector<8x1xf32> to vector<8x8xf32>
    %396 = arith.divf %392, %395 : vector<8x8xf32>
    %cst_115 = arith.constant dense<0.000000e+00> : vector<8x8xf32>
    %397 = tpu.matmul %396, %384, %cst_115 {dimension_numbers = #tpu.dot_dimension_numbers<[1], [0], [0], [1], [0, 0, 1, 1], [], []>} : vector<8x8xf32>, vector<8x8xf32>, vector<8x8xf32> -> vector<8x8xf32>
    %398 = vector.extract_strided_slice %368 {offsets = [0, 0], sizes = [8, 32], strides = [1, 1]} : vector<32x32xf32> to vector<8x32xf32>
    %cst_116 = arith.constant dense<0.000000e+00> : vector<8x32xf32>
    %399 = tpu.matmul %397, %398, %cst_116 {dimension_numbers = #tpu.dot_dimension_numbers<[1], [0], [0], [1], [0, 0, 1, 1], [], []>} : vector<8x8xf32>, vector<8x32xf32>, vector<8x32xf32> -> vector<8x32xf32>
    %400 = vector.extract_strided_slice %373 {offsets = [0, 8], sizes = [8, 8], strides = [1, 1]} : vector<8x32xf32> to vector<8x8xf32>
    %cst_117 = arith.constant 0.353553385 : f32
    %401 = vector.broadcast %cst_117 : f32 to vector<8x8xf32>
    %402 = arith.mulf %400, %401 : vector<8x8xf32>
    %403 = vector.extract_strided_slice %376 {offsets = [0, 8], sizes = [8, 8], strides = [1, 1]} : vector<8x32xf32> to vector<8x8xf32>
    %404 = vector.extract_strided_slice %379 {offsets = [0, 8], sizes = [8, 8], strides = [1, 1]} : vector<8x32xf32> to vector<8x8xf32>
    %405 = tpu.transpose %403, [1, 0] : vector<8x8xf32> -> vector<8x8xf32>
    %cst_118 = arith.constant dense<0.000000e+00> : vector<8x8xf32>
    %406 = tpu.matmul %402, %405, %cst_118 {dimension_numbers = #tpu.dot_dimension_numbers<[1], [0], [0], [1], [0, 0, 1, 1], [], []>} : vector<8x8xf32>, vector<8x8xf32>, vector<8x8xf32> -> vector<8x8xf32>
    %407 = arith.addf %406, %5 : vector<8x8xf32>
    %cst_119 = arith.constant dense<0xFF800000> : vector<8xf32>
    %408 = vector.multi_reduction <maximumf>, %407, %cst_119 [1] : vector<8x8xf32> to vector<8xf32>
    %409 = vector.shape_cast %408 : vector<8xf32> to vector<8x1xf32>
    %410 = vector.broadcast %409 : vector<8x1xf32> to vector<8x8xf32>
    %411 = arith.subf %407, %410 : vector<8x8xf32>
    %412 = math.exp %411 : vector<8x8xf32>
    %cst_120 = arith.constant dense<0.000000e+00> : vector<8xf32>
    %413 = vector.multi_reduction <add>, %412, %cst_120 [1] : vector<8x8xf32> to vector<8xf32>
    %414 = vector.shape_cast %413 : vector<8xf32> to vector<8x1xf32>
    %415 = vector.broadcast %414 : vector<8x1xf32> to vector<8x8xf32>
    %416 = arith.divf %412, %415 : vector<8x8xf32>
    %cst_121 = arith.constant dense<0.000000e+00> : vector<8x8xf32>
    %417 = tpu.matmul %416, %404, %cst_121 {dimension_numbers = #tpu.dot_dimension_numbers<[1], [0], [0], [1], [0, 0, 1, 1], [], []>} : vector<8x8xf32>, vector<8x8xf32>, vector<8x8xf32> -> vector<8x8xf32>
    %418 = vector.extract_strided_slice %368 {offsets = [8, 0], sizes = [8, 32], strides = [1, 1]} : vector<32x32xf32> to vector<8x32xf32>
    %cst_122 = arith.constant dense<0.000000e+00> : vector<8x32xf32>
    %419 = tpu.matmul %417, %418, %cst_122 {dimension_numbers = #tpu.dot_dimension_numbers<[1], [0], [0], [1], [0, 0, 1, 1], [], []>} : vector<8x8xf32>, vector<8x32xf32>, vector<8x32xf32> -> vector<8x32xf32>
    %420 = arith.addf %399, %419 : vector<8x32xf32>
    %421 = vector.extract_strided_slice %373 {offsets = [0, 16], sizes = [8, 8], strides = [1, 1]} : vector<8x32xf32> to vector<8x8xf32>
    %cst_123 = arith.constant 0.353553385 : f32
    %422 = vector.broadcast %cst_123 : f32 to vector<8x8xf32>
    %423 = arith.mulf %421, %422 : vector<8x8xf32>
    %424 = vector.extract_strided_slice %376 {offsets = [0, 16], sizes = [8, 8], strides = [1, 1]} : vector<8x32xf32> to vector<8x8xf32>
    %425 = vector.extract_strided_slice %379 {offsets = [0, 16], sizes = [8, 8], strides = [1, 1]} : vector<8x32xf32> to vector<8x8xf32>
    %426 = tpu.transpose %424, [1, 0] : vector<8x8xf32> -> vector<8x8xf32>
    %cst_124 = arith.constant dense<0.000000e+00> : vector<8x8xf32>
    %427 = tpu.matmul %423, %426, %cst_124 {dimension_numbers = #tpu.dot_dimension_numbers<[1], [0], [0], [1], [0, 0, 1, 1], [], []>} : vector<8x8xf32>, vector<8x8xf32>, vector<8x8xf32> -> vector<8x8xf32>
    %428 = arith.addf %427, %5 : vector<8x8xf32>
    %cst_125 = arith.constant dense<0xFF800000> : vector<8xf32>
    %429 = vector.multi_reduction <maximumf>, %428, %cst_125 [1] : vector<8x8xf32> to vector<8xf32>
    %430 = vector.shape_cast %429 : vector<8xf32> to vector<8x1xf32>
    %431 = vector.broadcast %430 : vector<8x1xf32> to vector<8x8xf32>
    %432 = arith.subf %428, %431 : vector<8x8xf32>
    %433 = math.exp %432 : vector<8x8xf32>
    %cst_126 = arith.constant dense<0.000000e+00> : vector<8xf32>
    %434 = vector.multi_reduction <add>, %433, %cst_126 [1] : vector<8x8xf32> to vector<8xf32>
    %435 = vector.shape_cast %434 : vector<8xf32> to vector<8x1xf32>
    %436 = vector.broadcast %435 : vector<8x1xf32> to vector<8x8xf32>
    %437 = arith.divf %433, %436 : vector<8x8xf32>
    %cst_127 = arith.constant dense<0.000000e+00> : vector<8x8xf32>
    %438 = tpu.matmul %437, %425, %cst_127 {dimension_numbers = #tpu.dot_dimension_numbers<[1], [0], [0], [1], [0, 0, 1, 1], [], []>} : vector<8x8xf32>, vector<8x8xf32>, vector<8x8xf32> -> vector<8x8xf32>
    %439 = vector.extract_strided_slice %368 {offsets = [16, 0], sizes = [8, 32], strides = [1, 1]} : vector<32x32xf32> to vector<8x32xf32>
    %cst_128 = arith.constant dense<0.000000e+00> : vector<8x32xf32>
    %440 = tpu.matmul %438, %439, %cst_128 {dimension_numbers = #tpu.dot_dimension_numbers<[1], [0], [0], [1], [0, 0, 1, 1], [], []>} : vector<8x8xf32>, vector<8x32xf32>, vector<8x32xf32> -> vector<8x32xf32>
    %441 = arith.addf %420, %440 : vector<8x32xf32>
    %442 = vector.extract_strided_slice %373 {offsets = [0, 24], sizes = [8, 8], strides = [1, 1]} : vector<8x32xf32> to vector<8x8xf32>
    %cst_129 = arith.constant 0.353553385 : f32
    %443 = vector.broadcast %cst_129 : f32 to vector<8x8xf32>
    %444 = arith.mulf %442, %443 : vector<8x8xf32>
    %445 = vector.extract_strided_slice %376 {offsets = [0, 24], sizes = [8, 8], strides = [1, 1]} : vector<8x32xf32> to vector<8x8xf32>
    %446 = vector.extract_strided_slice %379 {offsets = [0, 24], sizes = [8, 8], strides = [1, 1]} : vector<8x32xf32> to vector<8x8xf32>
    %447 = tpu.transpose %445, [1, 0] : vector<8x8xf32> -> vector<8x8xf32>
    %cst_130 = arith.constant dense<0.000000e+00> : vector<8x8xf32>
    %448 = tpu.matmul %444, %447, %cst_130 {dimension_numbers = #tpu.dot_dimension_numbers<[1], [0], [0], [1], [0, 0, 1, 1], [], []>} : vector<8x8xf32>, vector<8x8xf32>, vector<8x8xf32> -> vector<8x8xf32>
    %449 = arith.addf %448, %5 : vector<8x8xf32>
    %cst_131 = arith.constant dense<0xFF800000> : vector<8xf32>
    %450 = vector.multi_reduction <maximumf>, %449, %cst_131 [1] : vector<8x8xf32> to vector<8xf32>
    %451 = vector.shape_cast %450 : vector<8xf32> to vector<8x1xf32>
    %452 = vector.broadcast %451 : vector<8x1xf32> to vector<8x8xf32>
    %453 = arith.subf %449, %452 : vector<8x8xf32>
    %454 = math.exp %453 : vector<8x8xf32>
    %cst_132 = arith.constant dense<0.000000e+00> : vector<8xf32>
    %455 = vector.multi_reduction <add>, %454, %cst_132 [1] : vector<8x8xf32> to vector<8xf32>
    %456 = vector.shape_cast %455 : vector<8xf32> to vector<8x1xf32>
    %457 = vector.broadcast %456 : vector<8x1xf32> to vector<8x8xf32>
    %458 = arith.divf %454, %457 : vector<8x8xf32>
    %cst_133 = arith.constant dense<0.000000e+00> : vector<8x8xf32>
    %459 = tpu.matmul %458, %446, %cst_133 {dimension_numbers = #tpu.dot_dimension_numbers<[1], [0], [0], [1], [0, 0, 1, 1], [], []>} : vector<8x8xf32>, vector<8x8xf32>, vector<8x8xf32> -> vector<8x8xf32>
    %460 = vector.extract_strided_slice %368 {offsets = [24, 0], sizes = [8, 32], strides = [1, 1]} : vector<32x32xf32> to vector<8x32xf32>
    %cst_134 = arith.constant dense<0.000000e+00> : vector<8x32xf32>
    %461 = tpu.matmul %459, %460, %cst_134 {dimension_numbers = #tpu.dot_dimension_numbers<[1], [0], [0], [1], [0, 0, 1, 1], [], []>} : vector<8x8xf32>, vector<8x32xf32>, vector<8x32xf32> -> vector<8x32xf32>
    %462 = arith.addf %441, %461 : vector<8x32xf32>
    %463 = vector.broadcast %369 : vector<1x32xf32> to vector<8x32xf32>
    %464 = arith.addf %462, %463 : vector<8x32xf32>
    %465 = arith.addf %464, %359 : vector<8x32xf32>
    %466 = vector.extract_strided_slice %363 {offsets = [10, 0], sizes = [1, 32], strides = [1, 1]} : vector<14x32xf32> to vector<1x32xf32>
    %467 = vector.extract_strided_slice %363 {offsets = [11, 0], sizes = [1, 32], strides = [1, 1]} : vector<14x32xf32> to vector<1x32xf32>
    %cst_135 = arith.constant dense<0.000000e+00> : vector<8xf32>
    %468 = vector.multi_reduction <add>, %465, %cst_135 [1] : vector<8x32xf32> to vector<8xf32>
    %469 = vector.shape_cast %468 : vector<8xf32> to vector<8x1xf32>
    %cst_136 = arith.constant 3.200000e+01 : f32
    %470 = vector.broadcast %cst_136 : f32 to vector<8x1xf32>
    %471 = arith.divf %469, %470 : vector<8x1xf32>
    %472 = vector.broadcast %471 : vector<8x1xf32> to vector<8x32xf32>
    %473 = arith.subf %465, %472 : vector<8x32xf32>
    %474 = arith.mulf %473, %473 : vector<8x32xf32>
    %cst_137 = arith.constant dense<0.000000e+00> : vector<8xf32>
    %475 = vector.multi_reduction <add>, %474, %cst_137 [1] : vector<8x32xf32> to vector<8xf32>
    %476 = vector.shape_cast %475 : vector<8xf32> to vector<8x1xf32>
    %cst_138 = arith.constant 3.200000e+01 : f32
    %477 = vector.broadcast %cst_138 : f32 to vector<8x1xf32>
    %478 = arith.divf %476, %477 : vector<8x1xf32>
    %cst_139 = arith.constant 9.99999974E-6 : f32
    %479 = vector.broadcast %cst_139 : f32 to vector<8x1xf32>
    %480 = arith.addf %478, %479 : vector<8x1xf32>
    %481 = math.rsqrt %480 : vector<8x1xf32>
    %482 = vector.broadcast %481 : vector<8x1xf32> to vector<8x32xf32>
    %483 = arith.mulf %473, %482 : vector<8x32xf32>
    %484 = vector.broadcast %466 : vector<1x32xf32> to vector<8x32xf32>
    %485 = arith.mulf %483, %484 : vector<8x32xf32>
    %486 = vector.broadcast %467 : vector<1x32xf32> to vector<8x32xf32>
    %487 = arith.addf %485, %486 : vector<8x32xf32>
    %488 = vector.extract_strided_slice %361 {offsets = [0, 128], sizes = [32, 96], strides = [1, 1]} : vector<32x320xf32> to vector<32x96xf32>
    %489 = vector.extract_strided_slice %363 {offsets = [4, 0], sizes = [1, 32], strides = [1, 1]} : vector<14x32xf32> to vector<1x32xf32>
    %490 = vector.extract_strided_slice %363 {offsets = [5, 0], sizes = [1, 32], strides = [1, 1]} : vector<14x32xf32> to vector<1x32xf32>
    %491 = vector.extract_strided_slice %363 {offsets = [6, 0], sizes = [1, 32], strides = [1, 1]} : vector<14x32xf32> to vector<1x32xf32>
    %492 = vector.extract_strided_slice %361 {offsets = [0, 224], sizes = [32, 32], strides = [1, 1]} : vector<32x320xf32> to vector<32x32xf32>
    %493 = vector.extract_strided_slice %363 {offsets = [7, 0], sizes = [1, 32], strides = [1, 1]} : vector<14x32xf32> to vector<1x32xf32>
    %494 = vector.extract_strided_slice %488 {offsets = [0, 0], sizes = [32, 32], strides = [1, 1]} : vector<32x96xf32> to vector<32x32xf32>
    %cst_140 = arith.constant dense<0.000000e+00> : vector<8x32xf32>
    %495 = tpu.matmul %487, %494, %cst_140 {dimension_numbers = #tpu.dot_dimension_numbers<[1], [0], [0], [1], [0, 0, 1, 1], [], []>} : vector<8x32xf32>, vector<32x32xf32>, vector<8x32xf32> -> vector<8x32xf32>
    %496 = vector.broadcast %489 : vector<1x32xf32> to vector<8x32xf32>
    %497 = arith.addf %495, %496 : vector<8x32xf32>
    %498 = vector.extract_strided_slice %488 {offsets = [0, 32], sizes = [32, 64], strides = [1, 1]} : vector<32x96xf32> to vector<32x64xf32>
    %cst_141 = arith.constant dense<0.000000e+00> : vector<8x64xf32>
    %499 = tpu.matmul %350, %498, %cst_141 {dimension_numbers = #tpu.dot_dimension_numbers<[1], [0], [0], [1], [0, 0, 1, 1], [], []>} : vector<8x32xf32>, vector<32x64xf32>, vector<8x64xf32> -> vector<8x64xf32>
    %500 = vector.extract_strided_slice %499 {offsets = [0, 0], sizes = [8, 32], strides = [1, 1]} : vector<8x64xf32> to vector<8x32xf32>
    %501 = vector.broadcast %490 : vector<1x32xf32> to vector<8x32xf32>
    %502 = arith.addf %500, %501 : vector<8x32xf32>
    %503 = vector.extract_strided_slice %499 {offsets = [0, 32], sizes = [8, 32], strides = [1, 1]} : vector<8x64xf32> to vector<8x32xf32>
    %504 = vector.broadcast %491 : vector<1x32xf32> to vector<8x32xf32>
    %505 = arith.addf %503, %504 : vector<8x32xf32>
    %506 = vector.extract_strided_slice %497 {offsets = [0, 0], sizes = [8, 8], strides = [1, 1]} : vector<8x32xf32> to vector<8x8xf32>
    %cst_142 = arith.constant 0.353553385 : f32
    %507 = vector.broadcast %cst_142 : f32 to vector<8x8xf32>
    %508 = arith.mulf %506, %507 : vector<8x8xf32>
    %509 = vector.extract_strided_slice %502 {offsets = [0, 0], sizes = [8, 8], strides = [1, 1]} : vector<8x32xf32> to vector<8x8xf32>
    %510 = vector.extract_strided_slice %505 {offsets = [0, 0], sizes = [8, 8], strides = [1, 1]} : vector<8x32xf32> to vector<8x8xf32>
    %511 = tpu.transpose %509, [1, 0] : vector<8x8xf32> -> vector<8x8xf32>
    %cst_143 = arith.constant dense<0.000000e+00> : vector<8x8xf32>
    %512 = tpu.matmul %508, %511, %cst_143 {dimension_numbers = #tpu.dot_dimension_numbers<[1], [0], [0], [1], [0, 0, 1, 1], [], []>} : vector<8x8xf32>, vector<8x8xf32>, vector<8x8xf32> -> vector<8x8xf32>
    %513 = arith.addf %512, %5 : vector<8x8xf32>
    %cst_144 = arith.constant dense<0xFF800000> : vector<8xf32>
    %514 = vector.multi_reduction <maximumf>, %513, %cst_144 [1] : vector<8x8xf32> to vector<8xf32>
    %515 = vector.shape_cast %514 : vector<8xf32> to vector<8x1xf32>
    %516 = vector.broadcast %515 : vector<8x1xf32> to vector<8x8xf32>
    %517 = arith.subf %513, %516 : vector<8x8xf32>
    %518 = math.exp %517 : vector<8x8xf32>
    %cst_145 = arith.constant dense<0.000000e+00> : vector<8xf32>
    %519 = vector.multi_reduction <add>, %518, %cst_145 [1] : vector<8x8xf32> to vector<8xf32>
    %520 = vector.shape_cast %519 : vector<8xf32> to vector<8x1xf32>
    %521 = vector.broadcast %520 : vector<8x1xf32> to vector<8x8xf32>
    %522 = arith.divf %518, %521 : vector<8x8xf32>
    %cst_146 = arith.constant dense<0.000000e+00> : vector<8x8xf32>
    %523 = tpu.matmul %522, %510, %cst_146 {dimension_numbers = #tpu.dot_dimension_numbers<[1], [0], [0], [1], [0, 0, 1, 1], [], []>} : vector<8x8xf32>, vector<8x8xf32>, vector<8x8xf32> -> vector<8x8xf32>
    %524 = vector.extract_strided_slice %492 {offsets = [0, 0], sizes = [8, 32], strides = [1, 1]} : vector<32x32xf32> to vector<8x32xf32>
    %cst_147 = arith.constant dense<0.000000e+00> : vector<8x32xf32>
    %525 = tpu.matmul %523, %524, %cst_147 {dimension_numbers = #tpu.dot_dimension_numbers<[1], [0], [0], [1], [0, 0, 1, 1], [], []>} : vector<8x8xf32>, vector<8x32xf32>, vector<8x32xf32> -> vector<8x32xf32>
    %526 = vector.extract_strided_slice %497 {offsets = [0, 8], sizes = [8, 8], strides = [1, 1]} : vector<8x32xf32> to vector<8x8xf32>
    %cst_148 = arith.constant 0.353553385 : f32
    %527 = vector.broadcast %cst_148 : f32 to vector<8x8xf32>
    %528 = arith.mulf %526, %527 : vector<8x8xf32>
    %529 = vector.extract_strided_slice %502 {offsets = [0, 8], sizes = [8, 8], strides = [1, 1]} : vector<8x32xf32> to vector<8x8xf32>
    %530 = vector.extract_strided_slice %505 {offsets = [0, 8], sizes = [8, 8], strides = [1, 1]} : vector<8x32xf32> to vector<8x8xf32>
    %531 = tpu.transpose %529, [1, 0] : vector<8x8xf32> -> vector<8x8xf32>
    %cst_149 = arith.constant dense<0.000000e+00> : vector<8x8xf32>
    %532 = tpu.matmul %528, %531, %cst_149 {dimension_numbers = #tpu.dot_dimension_numbers<[1], [0], [0], [1], [0, 0, 1, 1], [], []>} : vector<8x8xf32>, vector<8x8xf32>, vector<8x8xf32> -> vector<8x8xf32>
    %533 = arith.addf %532, %5 : vector<8x8xf32>
    %cst_150 = arith.constant dense<0xFF800000> : vector<8xf32>
    %534 = vector.multi_reduction <maximumf>, %533, %cst_150 [1] : vector<8x8xf32> to vector<8xf32>
    %535 = vector.shape_cast %534 : vector<8xf32> to vector<8x1xf32>
    %536 = vector.broadcast %535 : vector<8x1xf32> to vector<8x8xf32>
    %537 = arith.subf %533, %536 : vector<8x8xf32>
    %538 = math.exp %537 : vector<8x8xf32>
    %cst_151 = arith.constant dense<0.000000e+00> : vector<8xf32>
    %539 = vector.multi_reduction <add>, %538, %cst_151 [1] : vector<8x8xf32> to vector<8xf32>
    %540 = vector.shape_cast %539 : vector<8xf32> to vector<8x1xf32>
    %541 = vector.broadcast %540 : vector<8x1xf32> to vector<8x8xf32>
    %542 = arith.divf %538, %541 : vector<8x8xf32>
    %cst_152 = arith.constant dense<0.000000e+00> : vector<8x8xf32>
    %543 = tpu.matmul %542, %530, %cst_152 {dimension_numbers = #tpu.dot_dimension_numbers<[1], [0], [0], [1], [0, 0, 1, 1], [], []>} : vector<8x8xf32>, vector<8x8xf32>, vector<8x8xf32> -> vector<8x8xf32>
    %544 = vector.extract_strided_slice %492 {offsets = [8, 0], sizes = [8, 32], strides = [1, 1]} : vector<32x32xf32> to vector<8x32xf32>
    %cst_153 = arith.constant dense<0.000000e+00> : vector<8x32xf32>
    %545 = tpu.matmul %543, %544, %cst_153 {dimension_numbers = #tpu.dot_dimension_numbers<[1], [0], [0], [1], [0, 0, 1, 1], [], []>} : vector<8x8xf32>, vector<8x32xf32>, vector<8x32xf32> -> vector<8x32xf32>
    %546 = arith.addf %525, %545 : vector<8x32xf32>
    %547 = vector.extract_strided_slice %497 {offsets = [0, 16], sizes = [8, 8], strides = [1, 1]} : vector<8x32xf32> to vector<8x8xf32>
    %cst_154 = arith.constant 0.353553385 : f32
    %548 = vector.broadcast %cst_154 : f32 to vector<8x8xf32>
    %549 = arith.mulf %547, %548 : vector<8x8xf32>
    %550 = vector.extract_strided_slice %502 {offsets = [0, 16], sizes = [8, 8], strides = [1, 1]} : vector<8x32xf32> to vector<8x8xf32>
    %551 = vector.extract_strided_slice %505 {offsets = [0, 16], sizes = [8, 8], strides = [1, 1]} : vector<8x32xf32> to vector<8x8xf32>
    %552 = tpu.transpose %550, [1, 0] : vector<8x8xf32> -> vector<8x8xf32>
    %cst_155 = arith.constant dense<0.000000e+00> : vector<8x8xf32>
    %553 = tpu.matmul %549, %552, %cst_155 {dimension_numbers = #tpu.dot_dimension_numbers<[1], [0], [0], [1], [0, 0, 1, 1], [], []>} : vector<8x8xf32>, vector<8x8xf32>, vector<8x8xf32> -> vector<8x8xf32>
    %554 = arith.addf %553, %5 : vector<8x8xf32>
    %cst_156 = arith.constant dense<0xFF800000> : vector<8xf32>
    %555 = vector.multi_reduction <maximumf>, %554, %cst_156 [1] : vector<8x8xf32> to vector<8xf32>
    %556 = vector.shape_cast %555 : vector<8xf32> to vector<8x1xf32>
    %557 = vector.broadcast %556 : vector<8x1xf32> to vector<8x8xf32>
    %558 = arith.subf %554, %557 : vector<8x8xf32>
    %559 = math.exp %558 : vector<8x8xf32>
    %cst_157 = arith.constant dense<0.000000e+00> : vector<8xf32>
    %560 = vector.multi_reduction <add>, %559, %cst_157 [1] : vector<8x8xf32> to vector<8xf32>
    %561 = vector.shape_cast %560 : vector<8xf32> to vector<8x1xf32>
    %562 = vector.broadcast %561 : vector<8x1xf32> to vector<8x8xf32>
    %563 = arith.divf %559, %562 : vector<8x8xf32>
    %cst_158 = arith.constant dense<0.000000e+00> : vector<8x8xf32>
    %564 = tpu.matmul %563, %551, %cst_158 {dimension_numbers = #tpu.dot_dimension_numbers<[1], [0], [0], [1], [0, 0, 1, 1], [], []>} : vector<8x8xf32>, vector<8x8xf32>, vector<8x8xf32> -> vector<8x8xf32>
    %565 = vector.extract_strided_slice %492 {offsets = [16, 0], sizes = [8, 32], strides = [1, 1]} : vector<32x32xf32> to vector<8x32xf32>
    %cst_159 = arith.constant dense<0.000000e+00> : vector<8x32xf32>
    %566 = tpu.matmul %564, %565, %cst_159 {dimension_numbers = #tpu.dot_dimension_numbers<[1], [0], [0], [1], [0, 0, 1, 1], [], []>} : vector<8x8xf32>, vector<8x32xf32>, vector<8x32xf32> -> vector<8x32xf32>
    %567 = arith.addf %546, %566 : vector<8x32xf32>
    %568 = vector.extract_strided_slice %497 {offsets = [0, 24], sizes = [8, 8], strides = [1, 1]} : vector<8x32xf32> to vector<8x8xf32>
    %cst_160 = arith.constant 0.353553385 : f32
    %569 = vector.broadcast %cst_160 : f32 to vector<8x8xf32>
    %570 = arith.mulf %568, %569 : vector<8x8xf32>
    %571 = vector.extract_strided_slice %502 {offsets = [0, 24], sizes = [8, 8], strides = [1, 1]} : vector<8x32xf32> to vector<8x8xf32>
    %572 = vector.extract_strided_slice %505 {offsets = [0, 24], sizes = [8, 8], strides = [1, 1]} : vector<8x32xf32> to vector<8x8xf32>
    %573 = tpu.transpose %571, [1, 0] : vector<8x8xf32> -> vector<8x8xf32>
    %cst_161 = arith.constant dense<0.000000e+00> : vector<8x8xf32>
    %574 = tpu.matmul %570, %573, %cst_161 {dimension_numbers = #tpu.dot_dimension_numbers<[1], [0], [0], [1], [0, 0, 1, 1], [], []>} : vector<8x8xf32>, vector<8x8xf32>, vector<8x8xf32> -> vector<8x8xf32>
    %575 = arith.addf %574, %5 : vector<8x8xf32>
    %cst_162 = arith.constant dense<0xFF800000> : vector<8xf32>
    %576 = vector.multi_reduction <maximumf>, %575, %cst_162 [1] : vector<8x8xf32> to vector<8xf32>
    %577 = vector.shape_cast %576 : vector<8xf32> to vector<8x1xf32>
    %578 = vector.broadcast %577 : vector<8x1xf32> to vector<8x8xf32>
    %579 = arith.subf %575, %578 : vector<8x8xf32>
    %580 = math.exp %579 : vector<8x8xf32>
    %cst_163 = arith.constant dense<0.000000e+00> : vector<8xf32>
    %581 = vector.multi_reduction <add>, %580, %cst_163 [1] : vector<8x8xf32> to vector<8xf32>
    %582 = vector.shape_cast %581 : vector<8xf32> to vector<8x1xf32>
    %583 = vector.broadcast %582 : vector<8x1xf32> to vector<8x8xf32>
    %584 = arith.divf %580, %583 : vector<8x8xf32>
    %cst_164 = arith.constant dense<0.000000e+00> : vector<8x8xf32>
    %585 = tpu.matmul %584, %572, %cst_164 {dimension_numbers = #tpu.dot_dimension_numbers<[1], [0], [0], [1], [0, 0, 1, 1], [], []>} : vector<8x8xf32>, vector<8x8xf32>, vector<8x8xf32> -> vector<8x8xf32>
    %586 = vector.extract_strided_slice %492 {offsets = [24, 0], sizes = [8, 32], strides = [1, 1]} : vector<32x32xf32> to vector<8x32xf32>
    %cst_165 = arith.constant dense<0.000000e+00> : vector<8x32xf32>
    %587 = tpu.matmul %585, %586, %cst_165 {dimension_numbers = #tpu.dot_dimension_numbers<[1], [0], [0], [1], [0, 0, 1, 1], [], []>} : vector<8x8xf32>, vector<8x32xf32>, vector<8x32xf32> -> vector<8x32xf32>
    %588 = arith.addf %567, %587 : vector<8x32xf32>
    %589 = vector.broadcast %493 : vector<1x32xf32> to vector<8x32xf32>
    %590 = arith.addf %588, %589 : vector<8x32xf32>
    %591 = arith.addf %590, %487 : vector<8x32xf32>
    %592 = vector.extract_strided_slice %361 {offsets = [0, 256], sizes = [32, 32], strides = [1, 1]} : vector<32x320xf32> to vector<32x32xf32>
    %593 = vector.extract_strided_slice %363 {offsets = [8, 0], sizes = [1, 32], strides = [1, 1]} : vector<14x32xf32> to vector<1x32xf32>
    %594 = vector.extract_strided_slice %361 {offsets = [0, 288], sizes = [32, 32], strides = [1, 1]} : vector<32x320xf32> to vector<32x32xf32>
    %595 = vector.extract_strided_slice %363 {offsets = [9, 0], sizes = [1, 32], strides = [1, 1]} : vector<14x32xf32> to vector<1x32xf32>
    %cst_166 = arith.constant dense<0.000000e+00> : vector<8x32xf32>
    %596 = tpu.matmul %591, %592, %cst_166 {dimension_numbers = #tpu.dot_dimension_numbers<[1], [0], [0], [1], [0, 0, 1, 1], [], []>} : vector<8x32xf32>, vector<32x32xf32>, vector<8x32xf32> -> vector<8x32xf32>
    %597 = vector.broadcast %593 : vector<1x32xf32> to vector<8x32xf32>
    %598 = arith.addf %596, %597 : vector<8x32xf32>
    %cst_167 = arith.constant 0.000000e+00 : f32
    %599 = vector.broadcast %cst_167 : f32 to vector<8x32xf32>
    %600 = arith.maximumf %598, %599 : vector<8x32xf32>
    %cst_168 = arith.constant dense<0.000000e+00> : vector<8x32xf32>
    %601 = tpu.matmul %600, %594, %cst_168 {dimension_numbers = #tpu.dot_dimension_numbers<[1], [0], [0], [1], [0, 0, 1, 1], [], []>} : vector<8x32xf32>, vector<32x32xf32>, vector<8x32xf32> -> vector<8x32xf32>
    %602 = vector.broadcast %595 : vector<1x32xf32> to vector<8x32xf32>
    %603 = arith.addf %601, %602 : vector<8x32xf32>
    %604 = arith.addf %603, %591 : vector<8x32xf32>
    %605 = vector.extract_strided_slice %363 {offsets = [12, 0], sizes = [1, 32], strides = [1, 1]} : vector<14x32xf32> to vector<1x32xf32>
    %606 = vector.extract_strided_slice %363 {offsets = [13, 0], sizes = [1, 32], strides = [1, 1]} : vector<14x32xf32> to vector<1x32xf32>
    %cst_169 = arith.constant dense<0.000000e+00> : vector<8xf32>
    %607 = vector.multi_reduction <add>, %604, %cst_169 [1] : vector<8x32xf32> to vector<8xf32>
    %608 = vector.shape_cast %607 : vector<8xf32> to vector<8x1xf32>
    %cst_170 = arith.constant 3.200000e+01 : f32
    %609 = vector.broadcast %cst_170 : f32 to vector<8x1xf32>
    %610 = arith.divf %608, %609 : vector<8x1xf32>
    %611 = vector.broadcast %610 : vector<8x1xf32> to vector<8x32xf32>
    %612 = arith.subf %604, %611 : vector<8x32xf32>
    %613 = arith.mulf %612, %612 : vector<8x32xf32>
    %cst_171 = arith.constant dense<0.000000e+00> : vector<8xf32>
    %614 = vector.multi_reduction <add>, %613, %cst_171 [1] : vector<8x32xf32> to vector<8xf32>
    %615 = vector.shape_cast %614 : vector<8xf32> to vector<8x1xf32>
    %cst_172 = arith.constant 3.200000e+01 : f32
    %616 = vector.broadcast %cst_172 : f32 to vector<8x1xf32>
    %617 = arith.divf %615, %616 : vector<8x1xf32>
    %cst_173 = arith.constant 9.99999974E-6 : f32
    %618 = vector.broadcast %cst_173 : f32 to vector<8x1xf32>
    %619 = arith.addf %617, %618 : vector<8x1xf32>
    %620 = math.rsqrt %619 : vector<8x1xf32>
    %621 = vector.broadcast %620 : vector<8x1xf32> to vector<8x32xf32>
    %622 = arith.mulf %612, %621 : vector<8x32xf32>
    %623 = vector.broadcast %605 : vector<1x32xf32> to vector<8x32xf32>
    %624 = arith.mulf %622, %623 : vector<8x32xf32>
    %625 = vector.broadcast %606 : vector<1x32xf32> to vector<8x32xf32>
    %626 = arith.addf %624, %625 : vector<8x32xf32>
    %c1_174 = arith.constant 1 : index
    %c0_175 = arith.constant 0 : index
    %c0_176 = arith.constant 0 : index
    %627 = vector.load %arg10[%c1_174, %c0_175, %c0_176] : memref<2x32x320xf32, #tpu.memory_space<vmem>>, vector<1x32x320xf32>
    %628 = vector.shape_cast %627 : vector<1x32x320xf32> to vector<32x320xf32>
    %c1_177 = arith.constant 1 : index
    %c0_178 = arith.constant 0 : index
    %c0_179 = arith.constant 0 : index
    %629 = vector.load %arg11[%c1_177, %c0_178, %c0_179] : memref<2x14x32xf32, #tpu.memory_space<vmem>>, vector<1x14x32xf32>
    %630 = vector.shape_cast %629 : vector<1x14x32xf32> to vector<14x32xf32>
    %631 = vector.extract_strided_slice %628 {offsets = [0, 0], sizes = [32, 96], strides = [1, 1]} : vector<32x320xf32> to vector<32x96xf32>
    %632 = vector.extract_strided_slice %630 {offsets = [0, 0], sizes = [1, 32], strides = [1, 1]} : vector<14x32xf32> to vector<1x32xf32>
    %633 = vector.extract_strided_slice %630 {offsets = [1, 0], sizes = [1, 32], strides = [1, 1]} : vector<14x32xf32> to vector<1x32xf32>
    %634 = vector.extract_strided_slice %630 {offsets = [2, 0], sizes = [1, 32], strides = [1, 1]} : vector<14x32xf32> to vector<1x32xf32>
    %635 = vector.extract_strided_slice %628 {offsets = [0, 96], sizes = [32, 32], strides = [1, 1]} : vector<32x320xf32> to vector<32x32xf32>
    %636 = vector.extract_strided_slice %630 {offsets = [3, 0], sizes = [1, 32], strides = [1, 1]} : vector<14x32xf32> to vector<1x32xf32>
    %cst_180 = arith.constant dense<0.000000e+00> : vector<8x96xf32>
    %637 = tpu.matmul %626, %631, %cst_180 {dimension_numbers = #tpu.dot_dimension_numbers<[1], [0], [0], [1], [0, 0, 1, 1], [], []>} : vector<8x32xf32>, vector<32x96xf32>, vector<8x96xf32> -> vector<8x96xf32>
    %638 = vector.extract_strided_slice %637 {offsets = [0, 0], sizes = [8, 32], strides = [1, 1]} : vector<8x96xf32> to vector<8x32xf32>
    %639 = vector.broadcast %632 : vector<1x32xf32> to vector<8x32xf32>
    %640 = arith.addf %638, %639 : vector<8x32xf32>
    %641 = vector.extract_strided_slice %637 {offsets = [0, 32], sizes = [8, 32], strides = [1, 1]} : vector<8x96xf32> to vector<8x32xf32>
    %642 = vector.broadcast %633 : vector<1x32xf32> to vector<8x32xf32>
    %643 = arith.addf %641, %642 : vector<8x32xf32>
    %644 = vector.extract_strided_slice %637 {offsets = [0, 64], sizes = [8, 32], strides = [1, 1]} : vector<8x96xf32> to vector<8x32xf32>
    %645 = vector.broadcast %634 : vector<1x32xf32> to vector<8x32xf32>
    %646 = arith.addf %644, %645 : vector<8x32xf32>
    %647 = vector.extract_strided_slice %640 {offsets = [0, 0], sizes = [8, 8], strides = [1, 1]} : vector<8x32xf32> to vector<8x8xf32>
    %cst_181 = arith.constant 0.353553385 : f32
    %648 = vector.broadcast %cst_181 : f32 to vector<8x8xf32>
    %649 = arith.mulf %647, %648 : vector<8x8xf32>
    %650 = vector.extract_strided_slice %643 {offsets = [0, 0], sizes = [8, 8], strides = [1, 1]} : vector<8x32xf32> to vector<8x8xf32>
    %651 = vector.extract_strided_slice %646 {offsets = [0, 0], sizes = [8, 8], strides = [1, 1]} : vector<8x32xf32> to vector<8x8xf32>
    %652 = tpu.transpose %650, [1, 0] : vector<8x8xf32> -> vector<8x8xf32>
    %cst_182 = arith.constant dense<0.000000e+00> : vector<8x8xf32>
    %653 = tpu.matmul %649, %652, %cst_182 {dimension_numbers = #tpu.dot_dimension_numbers<[1], [0], [0], [1], [0, 0, 1, 1], [], []>} : vector<8x8xf32>, vector<8x8xf32>, vector<8x8xf32> -> vector<8x8xf32>
    %654 = arith.addf %653, %5 : vector<8x8xf32>
    %cst_183 = arith.constant dense<0xFF800000> : vector<8xf32>
    %655 = vector.multi_reduction <maximumf>, %654, %cst_183 [1] : vector<8x8xf32> to vector<8xf32>
    %656 = vector.shape_cast %655 : vector<8xf32> to vector<8x1xf32>
    %657 = vector.broadcast %656 : vector<8x1xf32> to vector<8x8xf32>
    %658 = arith.subf %654, %657 : vector<8x8xf32>
    %659 = math.exp %658 : vector<8x8xf32>
    %cst_184 = arith.constant dense<0.000000e+00> : vector<8xf32>
    %660 = vector.multi_reduction <add>, %659, %cst_184 [1] : vector<8x8xf32> to vector<8xf32>
    %661 = vector.shape_cast %660 : vector<8xf32> to vector<8x1xf32>
    %662 = vector.broadcast %661 : vector<8x1xf32> to vector<8x8xf32>
    %663 = arith.divf %659, %662 : vector<8x8xf32>
    %cst_185 = arith.constant dense<0.000000e+00> : vector<8x8xf32>
    %664 = tpu.matmul %663, %651, %cst_185 {dimension_numbers = #tpu.dot_dimension_numbers<[1], [0], [0], [1], [0, 0, 1, 1], [], []>} : vector<8x8xf32>, vector<8x8xf32>, vector<8x8xf32> -> vector<8x8xf32>
    %665 = vector.extract_strided_slice %635 {offsets = [0, 0], sizes = [8, 32], strides = [1, 1]} : vector<32x32xf32> to vector<8x32xf32>
    %cst_186 = arith.constant dense<0.000000e+00> : vector<8x32xf32>
    %666 = tpu.matmul %664, %665, %cst_186 {dimension_numbers = #tpu.dot_dimension_numbers<[1], [0], [0], [1], [0, 0, 1, 1], [], []>} : vector<8x8xf32>, vector<8x32xf32>, vector<8x32xf32> -> vector<8x32xf32>
    %667 = vector.extract_strided_slice %640 {offsets = [0, 8], sizes = [8, 8], strides = [1, 1]} : vector<8x32xf32> to vector<8x8xf32>
    %cst_187 = arith.constant 0.353553385 : f32
    %668 = vector.broadcast %cst_187 : f32 to vector<8x8xf32>
    %669 = arith.mulf %667, %668 : vector<8x8xf32>
    %670 = vector.extract_strided_slice %643 {offsets = [0, 8], sizes = [8, 8], strides = [1, 1]} : vector<8x32xf32> to vector<8x8xf32>
    %671 = vector.extract_strided_slice %646 {offsets = [0, 8], sizes = [8, 8], strides = [1, 1]} : vector<8x32xf32> to vector<8x8xf32>
    %672 = tpu.transpose %670, [1, 0] : vector<8x8xf32> -> vector<8x8xf32>
    %cst_188 = arith.constant dense<0.000000e+00> : vector<8x8xf32>
    %673 = tpu.matmul %669, %672, %cst_188 {dimension_numbers = #tpu.dot_dimension_numbers<[1], [0], [0], [1], [0, 0, 1, 1], [], []>} : vector<8x8xf32>, vector<8x8xf32>, vector<8x8xf32> -> vector<8x8xf32>
    %674 = arith.addf %673, %5 : vector<8x8xf32>
    %cst_189 = arith.constant dense<0xFF800000> : vector<8xf32>
    %675 = vector.multi_reduction <maximumf>, %674, %cst_189 [1] : vector<8x8xf32> to vector<8xf32>
    %676 = vector.shape_cast %675 : vector<8xf32> to vector<8x1xf32>
    %677 = vector.broadcast %676 : vector<8x1xf32> to vector<8x8xf32>
    %678 = arith.subf %674, %677 : vector<8x8xf32>
    %679 = math.exp %678 : vector<8x8xf32>
    %cst_190 = arith.constant dense<0.000000e+00> : vector<8xf32>
    %680 = vector.multi_reduction <add>, %679, %cst_190 [1] : vector<8x8xf32> to vector<8xf32>
    %681 = vector.shape_cast %680 : vector<8xf32> to vector<8x1xf32>
    %682 = vector.broadcast %681 : vector<8x1xf32> to vector<8x8xf32>
    %683 = arith.divf %679, %682 : vector<8x8xf32>
    %cst_191 = arith.constant dense<0.000000e+00> : vector<8x8xf32>
    %684 = tpu.matmul %683, %671, %cst_191 {dimension_numbers = #tpu.dot_dimension_numbers<[1], [0], [0], [1], [0, 0, 1, 1], [], []>} : vector<8x8xf32>, vector<8x8xf32>, vector<8x8xf32> -> vector<8x8xf32>
    %685 = vector.extract_strided_slice %635 {offsets = [8, 0], sizes = [8, 32], strides = [1, 1]} : vector<32x32xf32> to vector<8x32xf32>
    %cst_192 = arith.constant dense<0.000000e+00> : vector<8x32xf32>
    %686 = tpu.matmul %684, %685, %cst_192 {dimension_numbers = #tpu.dot_dimension_numbers<[1], [0], [0], [1], [0, 0, 1, 1], [], []>} : vector<8x8xf32>, vector<8x32xf32>, vector<8x32xf32> -> vector<8x32xf32>
    %687 = arith.addf %666, %686 : vector<8x32xf32>
    %688 = vector.extract_strided_slice %640 {offsets = [0, 16], sizes = [8, 8], strides = [1, 1]} : vector<8x32xf32> to vector<8x8xf32>
    %cst_193 = arith.constant 0.353553385 : f32
    %689 = vector.broadcast %cst_193 : f32 to vector<8x8xf32>
    %690 = arith.mulf %688, %689 : vector<8x8xf32>
    %691 = vector.extract_strided_slice %643 {offsets = [0, 16], sizes = [8, 8], strides = [1, 1]} : vector<8x32xf32> to vector<8x8xf32>
    %692 = vector.extract_strided_slice %646 {offsets = [0, 16], sizes = [8, 8], strides = [1, 1]} : vector<8x32xf32> to vector<8x8xf32>
    %693 = tpu.transpose %691, [1, 0] : vector<8x8xf32> -> vector<8x8xf32>
    %cst_194 = arith.constant dense<0.000000e+00> : vector<8x8xf32>
    %694 = tpu.matmul %690, %693, %cst_194 {dimension_numbers = #tpu.dot_dimension_numbers<[1], [0], [0], [1], [0, 0, 1, 1], [], []>} : vector<8x8xf32>, vector<8x8xf32>, vector<8x8xf32> -> vector<8x8xf32>
    %695 = arith.addf %694, %5 : vector<8x8xf32>
    %cst_195 = arith.constant dense<0xFF800000> : vector<8xf32>
    %696 = vector.multi_reduction <maximumf>, %695, %cst_195 [1] : vector<8x8xf32> to vector<8xf32>
    %697 = vector.shape_cast %696 : vector<8xf32> to vector<8x1xf32>
    %698 = vector.broadcast %697 : vector<8x1xf32> to vector<8x8xf32>
    %699 = arith.subf %695, %698 : vector<8x8xf32>
    %700 = math.exp %699 : vector<8x8xf32>
    %cst_196 = arith.constant dense<0.000000e+00> : vector<8xf32>
    %701 = vector.multi_reduction <add>, %700, %cst_196 [1] : vector<8x8xf32> to vector<8xf32>
    %702 = vector.shape_cast %701 : vector<8xf32> to vector<8x1xf32>
    %703 = vector.broadcast %702 : vector<8x1xf32> to vector<8x8xf32>
    %704 = arith.divf %700, %703 : vector<8x8xf32>
    %cst_197 = arith.constant dense<0.000000e+00> : vector<8x8xf32>
    %705 = tpu.matmul %704, %692, %cst_197 {dimension_numbers = #tpu.dot_dimension_numbers<[1], [0], [0], [1], [0, 0, 1, 1], [], []>} : vector<8x8xf32>, vector<8x8xf32>, vector<8x8xf32> -> vector<8x8xf32>
    %706 = vector.extract_strided_slice %635 {offsets = [16, 0], sizes = [8, 32], strides = [1, 1]} : vector<32x32xf32> to vector<8x32xf32>
    %cst_198 = arith.constant dense<0.000000e+00> : vector<8x32xf32>
    %707 = tpu.matmul %705, %706, %cst_198 {dimension_numbers = #tpu.dot_dimension_numbers<[1], [0], [0], [1], [0, 0, 1, 1], [], []>} : vector<8x8xf32>, vector<8x32xf32>, vector<8x32xf32> -> vector<8x32xf32>
    %708 = arith.addf %687, %707 : vector<8x32xf32>
    %709 = vector.extract_strided_slice %640 {offsets = [0, 24], sizes = [8, 8], strides = [1, 1]} : vector<8x32xf32> to vector<8x8xf32>
    %cst_199 = arith.constant 0.353553385 : f32
    %710 = vector.broadcast %cst_199 : f32 to vector<8x8xf32>
    %711 = arith.mulf %709, %710 : vector<8x8xf32>
    %712 = vector.extract_strided_slice %643 {offsets = [0, 24], sizes = [8, 8], strides = [1, 1]} : vector<8x32xf32> to vector<8x8xf32>
    %713 = vector.extract_strided_slice %646 {offsets = [0, 24], sizes = [8, 8], strides = [1, 1]} : vector<8x32xf32> to vector<8x8xf32>
    %714 = tpu.transpose %712, [1, 0] : vector<8x8xf32> -> vector<8x8xf32>
    %cst_200 = arith.constant dense<0.000000e+00> : vector<8x8xf32>
    %715 = tpu.matmul %711, %714, %cst_200 {dimension_numbers = #tpu.dot_dimension_numbers<[1], [0], [0], [1], [0, 0, 1, 1], [], []>} : vector<8x8xf32>, vector<8x8xf32>, vector<8x8xf32> -> vector<8x8xf32>
    %716 = arith.addf %715, %5 : vector<8x8xf32>
    %cst_201 = arith.constant dense<0xFF800000> : vector<8xf32>
    %717 = vector.multi_reduction <maximumf>, %716, %cst_201 [1] : vector<8x8xf32> to vector<8xf32>
    %718 = vector.shape_cast %717 : vector<8xf32> to vector<8x1xf32>
    %719 = vector.broadcast %718 : vector<8x1xf32> to vector<8x8xf32>
    %720 = arith.subf %716, %719 : vector<8x8xf32>
    %721 = math.exp %720 : vector<8x8xf32>
    %cst_202 = arith.constant dense<0.000000e+00> : vector<8xf32>
    %722 = vector.multi_reduction <add>, %721, %cst_202 [1] : vector<8x8xf32> to vector<8xf32>
    %723 = vector.shape_cast %722 : vector<8xf32> to vector<8x1xf32>
    %724 = vector.broadcast %723 : vector<8x1xf32> to vector<8x8xf32>
    %725 = arith.divf %721, %724 : vector<8x8xf32>
    %cst_203 = arith.constant dense<0.000000e+00> : vector<8x8xf32>
    %726 = tpu.matmul %725, %713, %cst_203 {dimension_numbers = #tpu.dot_dimension_numbers<[1], [0], [0], [1], [0, 0, 1, 1], [], []>} : vector<8x8xf32>, vector<8x8xf32>, vector<8x8xf32> -> vector<8x8xf32>
    %727 = vector.extract_strided_slice %635 {offsets = [24, 0], sizes = [8, 32], strides = [1, 1]} : vector<32x32xf32> to vector<8x32xf32>
    %cst_204 = arith.constant dense<0.000000e+00> : vector<8x32xf32>
    %728 = tpu.matmul %726, %727, %cst_204 {dimension_numbers = #tpu.dot_dimension_numbers<[1], [0], [0], [1], [0, 0, 1, 1], [], []>} : vector<8x8xf32>, vector<8x32xf32>, vector<8x32xf32> -> vector<8x32xf32>
    %729 = arith.addf %708, %728 : vector<8x32xf32>
    %730 = vector.broadcast %636 : vector<1x32xf32> to vector<8x32xf32>
    %731 = arith.addf %729, %730 : vector<8x32xf32>
    %732 = arith.addf %731, %626 : vector<8x32xf32>
    %733 = vector.extract_strided_slice %630 {offsets = [10, 0], sizes = [1, 32], strides = [1, 1]} : vector<14x32xf32> to vector<1x32xf32>
    %734 = vector.extract_strided_slice %630 {offsets = [11, 0], sizes = [1, 32], strides = [1, 1]} : vector<14x32xf32> to vector<1x32xf32>
    %cst_205 = arith.constant dense<0.000000e+00> : vector<8xf32>
    %735 = vector.multi_reduction <add>, %732, %cst_205 [1] : vector<8x32xf32> to vector<8xf32>
    %736 = vector.shape_cast %735 : vector<8xf32> to vector<8x1xf32>
    %cst_206 = arith.constant 3.200000e+01 : f32
    %737 = vector.broadcast %cst_206 : f32 to vector<8x1xf32>
    %738 = arith.divf %736, %737 : vector<8x1xf32>
    %739 = vector.broadcast %738 : vector<8x1xf32> to vector<8x32xf32>
    %740 = arith.subf %732, %739 : vector<8x32xf32>
    %741 = arith.mulf %740, %740 : vector<8x32xf32>
    %cst_207 = arith.constant dense<0.000000e+00> : vector<8xf32>
    %742 = vector.multi_reduction <add>, %741, %cst_207 [1] : vector<8x32xf32> to vector<8xf32>
    %743 = vector.shape_cast %742 : vector<8xf32> to vector<8x1xf32>
    %cst_208 = arith.constant 3.200000e+01 : f32
    %744 = vector.broadcast %cst_208 : f32 to vector<8x1xf32>
    %745 = arith.divf %743, %744 : vector<8x1xf32>
    %cst_209 = arith.constant 9.99999974E-6 : f32
    %746 = vector.broadcast %cst_209 : f32 to vector<8x1xf32>
    %747 = arith.addf %745, %746 : vector<8x1xf32>
    %748 = math.rsqrt %747 : vector<8x1xf32>
    %749 = vector.broadcast %748 : vector<8x1xf32> to vector<8x32xf32>
    %750 = arith.mulf %740, %749 : vector<8x32xf32>
    %751 = vector.broadcast %733 : vector<1x32xf32> to vector<8x32xf32>
    %752 = arith.mulf %750, %751 : vector<8x32xf32>
    %753 = vector.broadcast %734 : vector<1x32xf32> to vector<8x32xf32>
    %754 = arith.addf %752, %753 : vector<8x32xf32>
    %755 = vector.extract_strided_slice %628 {offsets = [0, 128], sizes = [32, 96], strides = [1, 1]} : vector<32x320xf32> to vector<32x96xf32>
    %756 = vector.extract_strided_slice %630 {offsets = [4, 0], sizes = [1, 32], strides = [1, 1]} : vector<14x32xf32> to vector<1x32xf32>
    %757 = vector.extract_strided_slice %630 {offsets = [5, 0], sizes = [1, 32], strides = [1, 1]} : vector<14x32xf32> to vector<1x32xf32>
    %758 = vector.extract_strided_slice %630 {offsets = [6, 0], sizes = [1, 32], strides = [1, 1]} : vector<14x32xf32> to vector<1x32xf32>
    %759 = vector.extract_strided_slice %628 {offsets = [0, 224], sizes = [32, 32], strides = [1, 1]} : vector<32x320xf32> to vector<32x32xf32>
    %760 = vector.extract_strided_slice %630 {offsets = [7, 0], sizes = [1, 32], strides = [1, 1]} : vector<14x32xf32> to vector<1x32xf32>
    %761 = vector.extract_strided_slice %755 {offsets = [0, 0], sizes = [32, 32], strides = [1, 1]} : vector<32x96xf32> to vector<32x32xf32>
    %cst_210 = arith.constant dense<0.000000e+00> : vector<8x32xf32>
    %762 = tpu.matmul %754, %761, %cst_210 {dimension_numbers = #tpu.dot_dimension_numbers<[1], [0], [0], [1], [0, 0, 1, 1], [], []>} : vector<8x32xf32>, vector<32x32xf32>, vector<8x32xf32> -> vector<8x32xf32>
    %763 = vector.broadcast %756 : vector<1x32xf32> to vector<8x32xf32>
    %764 = arith.addf %762, %763 : vector<8x32xf32>
    %765 = vector.extract_strided_slice %755 {offsets = [0, 32], sizes = [32, 64], strides = [1, 1]} : vector<32x96xf32> to vector<32x64xf32>
    %cst_211 = arith.constant dense<0.000000e+00> : vector<8x64xf32>
    %766 = tpu.matmul %350, %765, %cst_211 {dimension_numbers = #tpu.dot_dimension_numbers<[1], [0], [0], [1], [0, 0, 1, 1], [], []>} : vector<8x32xf32>, vector<32x64xf32>, vector<8x64xf32> -> vector<8x64xf32>
    %767 = vector.extract_strided_slice %766 {offsets = [0, 0], sizes = [8, 32], strides = [1, 1]} : vector<8x64xf32> to vector<8x32xf32>
    %768 = vector.broadcast %757 : vector<1x32xf32> to vector<8x32xf32>
    %769 = arith.addf %767, %768 : vector<8x32xf32>
    %770 = vector.extract_strided_slice %766 {offsets = [0, 32], sizes = [8, 32], strides = [1, 1]} : vector<8x64xf32> to vector<8x32xf32>
    %771 = vector.broadcast %758 : vector<1x32xf32> to vector<8x32xf32>
    %772 = arith.addf %770, %771 : vector<8x32xf32>
    %773 = vector.extract_strided_slice %764 {offsets = [0, 0], sizes = [8, 8], strides = [1, 1]} : vector<8x32xf32> to vector<8x8xf32>
    %cst_212 = arith.constant 0.353553385 : f32
    %774 = vector.broadcast %cst_212 : f32 to vector<8x8xf32>
    %775 = arith.mulf %773, %774 : vector<8x8xf32>
    %776 = vector.extract_strided_slice %769 {offsets = [0, 0], sizes = [8, 8], strides = [1, 1]} : vector<8x32xf32> to vector<8x8xf32>
    %777 = vector.extract_strided_slice %772 {offsets = [0, 0], sizes = [8, 8], strides = [1, 1]} : vector<8x32xf32> to vector<8x8xf32>
    %778 = tpu.transpose %776, [1, 0] : vector<8x8xf32> -> vector<8x8xf32>
    %cst_213 = arith.constant dense<0.000000e+00> : vector<8x8xf32>
    %779 = tpu.matmul %775, %778, %cst_213 {dimension_numbers = #tpu.dot_dimension_numbers<[1], [0], [0], [1], [0, 0, 1, 1], [], []>} : vector<8x8xf32>, vector<8x8xf32>, vector<8x8xf32> -> vector<8x8xf32>
    %780 = arith.addf %779, %5 : vector<8x8xf32>
    %cst_214 = arith.constant dense<0xFF800000> : vector<8xf32>
    %781 = vector.multi_reduction <maximumf>, %780, %cst_214 [1] : vector<8x8xf32> to vector<8xf32>
    %782 = vector.shape_cast %781 : vector<8xf32> to vector<8x1xf32>
    %783 = vector.broadcast %782 : vector<8x1xf32> to vector<8x8xf32>
    %784 = arith.subf %780, %783 : vector<8x8xf32>
    %785 = math.exp %784 : vector<8x8xf32>
    %cst_215 = arith.constant dense<0.000000e+00> : vector<8xf32>
    %786 = vector.multi_reduction <add>, %785, %cst_215 [1] : vector<8x8xf32> to vector<8xf32>
    %787 = vector.shape_cast %786 : vector<8xf32> to vector<8x1xf32>
    %788 = vector.broadcast %787 : vector<8x1xf32> to vector<8x8xf32>
    %789 = arith.divf %785, %788 : vector<8x8xf32>
    %cst_216 = arith.constant dense<0.000000e+00> : vector<8x8xf32>
    %790 = tpu.matmul %789, %777, %cst_216 {dimension_numbers = #tpu.dot_dimension_numbers<[1], [0], [0], [1], [0, 0, 1, 1], [], []>} : vector<8x8xf32>, vector<8x8xf32>, vector<8x8xf32> -> vector<8x8xf32>
    %791 = vector.extract_strided_slice %759 {offsets = [0, 0], sizes = [8, 32], strides = [1, 1]} : vector<32x32xf32> to vector<8x32xf32>
    %cst_217 = arith.constant dense<0.000000e+00> : vector<8x32xf32>
    %792 = tpu.matmul %790, %791, %cst_217 {dimension_numbers = #tpu.dot_dimension_numbers<[1], [0], [0], [1], [0, 0, 1, 1], [], []>} : vector<8x8xf32>, vector<8x32xf32>, vector<8x32xf32> -> vector<8x32xf32>
    %793 = vector.extract_strided_slice %764 {offsets = [0, 8], sizes = [8, 8], strides = [1, 1]} : vector<8x32xf32> to vector<8x8xf32>
    %cst_218 = arith.constant 0.353553385 : f32
    %794 = vector.broadcast %cst_218 : f32 to vector<8x8xf32>
    %795 = arith.mulf %793, %794 : vector<8x8xf32>
    %796 = vector.extract_strided_slice %769 {offsets = [0, 8], sizes = [8, 8], strides = [1, 1]} : vector<8x32xf32> to vector<8x8xf32>
    %797 = vector.extract_strided_slice %772 {offsets = [0, 8], sizes = [8, 8], strides = [1, 1]} : vector<8x32xf32> to vector<8x8xf32>
    %798 = tpu.transpose %796, [1, 0] : vector<8x8xf32> -> vector<8x8xf32>
    %cst_219 = arith.constant dense<0.000000e+00> : vector<8x8xf32>
    %799 = tpu.matmul %795, %798, %cst_219 {dimension_numbers = #tpu.dot_dimension_numbers<[1], [0], [0], [1], [0, 0, 1, 1], [], []>} : vector<8x8xf32>, vector<8x8xf32>, vector<8x8xf32> -> vector<8x8xf32>
    %800 = arith.addf %799, %5 : vector<8x8xf32>
    %cst_220 = arith.constant dense<0xFF800000> : vector<8xf32>
    %801 = vector.multi_reduction <maximumf>, %800, %cst_220 [1] : vector<8x8xf32> to vector<8xf32>
    %802 = vector.shape_cast %801 : vector<8xf32> to vector<8x1xf32>
    %803 = vector.broadcast %802 : vector<8x1xf32> to vector<8x8xf32>
    %804 = arith.subf %800, %803 : vector<8x8xf32>
    %805 = math.exp %804 : vector<8x8xf32>
    %cst_221 = arith.constant dense<0.000000e+00> : vector<8xf32>
    %806 = vector.multi_reduction <add>, %805, %cst_221 [1] : vector<8x8xf32> to vector<8xf32>
    %807 = vector.shape_cast %806 : vector<8xf32> to vector<8x1xf32>
    %808 = vector.broadcast %807 : vector<8x1xf32> to vector<8x8xf32>
    %809 = arith.divf %805, %808 : vector<8x8xf32>
    %cst_222 = arith.constant dense<0.000000e+00> : vector<8x8xf32>
    %810 = tpu.matmul %809, %797, %cst_222 {dimension_numbers = #tpu.dot_dimension_numbers<[1], [0], [0], [1], [0, 0, 1, 1], [], []>} : vector<8x8xf32>, vector<8x8xf32>, vector<8x8xf32> -> vector<8x8xf32>
    %811 = vector.extract_strided_slice %759 {offsets = [8, 0], sizes = [8, 32], strides = [1, 1]} : vector<32x32xf32> to vector<8x32xf32>
    %cst_223 = arith.constant dense<0.000000e+00> : vector<8x32xf32>
    %812 = tpu.matmul %810, %811, %cst_223 {dimension_numbers = #tpu.dot_dimension_numbers<[1], [0], [0], [1], [0, 0, 1, 1], [], []>} : vector<8x8xf32>, vector<8x32xf32>, vector<8x32xf32> -> vector<8x32xf32>
    %813 = arith.addf %792, %812 : vector<8x32xf32>
    %814 = vector.extract_strided_slice %764 {offsets = [0, 16], sizes = [8, 8], strides = [1, 1]} : vector<8x32xf32> to vector<8x8xf32>
    %cst_224 = arith.constant 0.353553385 : f32
    %815 = vector.broadcast %cst_224 : f32 to vector<8x8xf32>
    %816 = arith.mulf %814, %815 : vector<8x8xf32>
    %817 = vector.extract_strided_slice %769 {offsets = [0, 16], sizes = [8, 8], strides = [1, 1]} : vector<8x32xf32> to vector<8x8xf32>
    %818 = vector.extract_strided_slice %772 {offsets = [0, 16], sizes = [8, 8], strides = [1, 1]} : vector<8x32xf32> to vector<8x8xf32>
    %819 = tpu.transpose %817, [1, 0] : vector<8x8xf32> -> vector<8x8xf32>
    %cst_225 = arith.constant dense<0.000000e+00> : vector<8x8xf32>
    %820 = tpu.matmul %816, %819, %cst_225 {dimension_numbers = #tpu.dot_dimension_numbers<[1], [0], [0], [1], [0, 0, 1, 1], [], []>} : vector<8x8xf32>, vector<8x8xf32>, vector<8x8xf32> -> vector<8x8xf32>
    %821 = arith.addf %820, %5 : vector<8x8xf32>
    %cst_226 = arith.constant dense<0xFF800000> : vector<8xf32>
    %822 = vector.multi_reduction <maximumf>, %821, %cst_226 [1] : vector<8x8xf32> to vector<8xf32>
    %823 = vector.shape_cast %822 : vector<8xf32> to vector<8x1xf32>
    %824 = vector.broadcast %823 : vector<8x1xf32> to vector<8x8xf32>
    %825 = arith.subf %821, %824 : vector<8x8xf32>
    %826 = math.exp %825 : vector<8x8xf32>
    %cst_227 = arith.constant dense<0.000000e+00> : vector<8xf32>
    %827 = vector.multi_reduction <add>, %826, %cst_227 [1] : vector<8x8xf32> to vector<8xf32>
    %828 = vector.shape_cast %827 : vector<8xf32> to vector<8x1xf32>
    %829 = vector.broadcast %828 : vector<8x1xf32> to vector<8x8xf32>
    %830 = arith.divf %826, %829 : vector<8x8xf32>
    %cst_228 = arith.constant dense<0.000000e+00> : vector<8x8xf32>
    %831 = tpu.matmul %830, %818, %cst_228 {dimension_numbers = #tpu.dot_dimension_numbers<[1], [0], [0], [1], [0, 0, 1, 1], [], []>} : vector<8x8xf32>, vector<8x8xf32>, vector<8x8xf32> -> vector<8x8xf32>
    %832 = vector.extract_strided_slice %759 {offsets = [16, 0], sizes = [8, 32], strides = [1, 1]} : vector<32x32xf32> to vector<8x32xf32>
    %cst_229 = arith.constant dense<0.000000e+00> : vector<8x32xf32>
    %833 = tpu.matmul %831, %832, %cst_229 {dimension_numbers = #tpu.dot_dimension_numbers<[1], [0], [0], [1], [0, 0, 1, 1], [], []>} : vector<8x8xf32>, vector<8x32xf32>, vector<8x32xf32> -> vector<8x32xf32>
    %834 = arith.addf %813, %833 : vector<8x32xf32>
    %835 = vector.extract_strided_slice %764 {offsets = [0, 24], sizes = [8, 8], strides = [1, 1]} : vector<8x32xf32> to vector<8x8xf32>
    %cst_230 = arith.constant 0.353553385 : f32
    %836 = vector.broadcast %cst_230 : f32 to vector<8x8xf32>
    %837 = arith.mulf %835, %836 : vector<8x8xf32>
    %838 = vector.extract_strided_slice %769 {offsets = [0, 24], sizes = [8, 8], strides = [1, 1]} : vector<8x32xf32> to vector<8x8xf32>
    %839 = vector.extract_strided_slice %772 {offsets = [0, 24], sizes = [8, 8], strides = [1, 1]} : vector<8x32xf32> to vector<8x8xf32>
    %840 = tpu.transpose %838, [1, 0] : vector<8x8xf32> -> vector<8x8xf32>
    %cst_231 = arith.constant dense<0.000000e+00> : vector<8x8xf32>
    %841 = tpu.matmul %837, %840, %cst_231 {dimension_numbers = #tpu.dot_dimension_numbers<[1], [0], [0], [1], [0, 0, 1, 1], [], []>} : vector<8x8xf32>, vector<8x8xf32>, vector<8x8xf32> -> vector<8x8xf32>
    %842 = arith.addf %841, %5 : vector<8x8xf32>
    %cst_232 = arith.constant dense<0xFF800000> : vector<8xf32>
    %843 = vector.multi_reduction <maximumf>, %842, %cst_232 [1] : vector<8x8xf32> to vector<8xf32>
    %844 = vector.shape_cast %843 : vector<8xf32> to vector<8x1xf32>
    %845 = vector.broadcast %844 : vector<8x1xf32> to vector<8x8xf32>
    %846 = arith.subf %842, %845 : vector<8x8xf32>
    %847 = math.exp %846 : vector<8x8xf32>
    %cst_233 = arith.constant dense<0.000000e+00> : vector<8xf32>
    %848 = vector.multi_reduction <add>, %847, %cst_233 [1] : vector<8x8xf32> to vector<8xf32>
    %849 = vector.shape_cast %848 : vector<8xf32> to vector<8x1xf32>
    %850 = vector.broadcast %849 : vector<8x1xf32> to vector<8x8xf32>
    %851 = arith.divf %847, %850 : vector<8x8xf32>
    %cst_234 = arith.constant dense<0.000000e+00> : vector<8x8xf32>
    %852 = tpu.matmul %851, %839, %cst_234 {dimension_numbers = #tpu.dot_dimension_numbers<[1], [0], [0], [1], [0, 0, 1, 1], [], []>} : vector<8x8xf32>, vector<8x8xf32>, vector<8x8xf32> -> vector<8x8xf32>
    %853 = vector.extract_strided_slice %759 {offsets = [24, 0], sizes = [8, 32], strides = [1, 1]} : vector<32x32xf32> to vector<8x32xf32>
    %cst_235 = arith.constant dense<0.000000e+00> : vector<8x32xf32>
    %854 = tpu.matmul %852, %853, %cst_235 {dimension_numbers = #tpu.dot_dimension_numbers<[1], [0], [0], [1], [0, 0, 1, 1], [], []>} : vector<8x8xf32>, vector<8x32xf32>, vector<8x32xf32> -> vector<8x32xf32>
    %855 = arith.addf %834, %854 : vector<8x32xf32>
    %856 = vector.broadcast %760 : vector<1x32xf32> to vector<8x32xf32>
    %857 = arith.addf %855, %856 : vector<8x32xf32>
    %858 = arith.addf %857, %754 : vector<8x32xf32>
    %859 = vector.extract_strided_slice %628 {offsets = [0, 256], sizes = [32, 32], strides = [1, 1]} : vector<32x320xf32> to vector<32x32xf32>
    %860 = vector.extract_strided_slice %630 {offsets = [8, 0], sizes = [1, 32], strides = [1, 1]} : vector<14x32xf32> to vector<1x32xf32>
    %861 = vector.extract_strided_slice %628 {offsets = [0, 288], sizes = [32, 32], strides = [1, 1]} : vector<32x320xf32> to vector<32x32xf32>
    %862 = vector.extract_strided_slice %630 {offsets = [9, 0], sizes = [1, 32], strides = [1, 1]} : vector<14x32xf32> to vector<1x32xf32>
    %cst_236 = arith.constant dense<0.000000e+00> : vector<8x32xf32>
    %863 = tpu.matmul %858, %859, %cst_236 {dimension_numbers = #tpu.dot_dimension_numbers<[1], [0], [0], [1], [0, 0, 1, 1], [], []>} : vector<8x32xf32>, vector<32x32xf32>, vector<8x32xf32> -> vector<8x32xf32>
    %864 = vector.broadcast %860 : vector<1x32xf32> to vector<8x32xf32>
    %865 = arith.addf %863, %864 : vector<8x32xf32>
    %cst_237 = arith.constant 0.000000e+00 : f32
    %866 = vector.broadcast %cst_237 : f32 to vector<8x32xf32>
    %867 = arith.maximumf %865, %866 : vector<8x32xf32>
    %cst_238 = arith.constant dense<0.000000e+00> : vector<8x32xf32>
    %868 = tpu.matmul %867, %861, %cst_238 {dimension_numbers = #tpu.dot_dimension_numbers<[1], [0], [0], [1], [0, 0, 1, 1], [], []>} : vector<8x32xf32>, vector<32x32xf32>, vector<8x32xf32> -> vector<8x32xf32>
    %869 = vector.broadcast %862 : vector<1x32xf32> to vector<8x32xf32>
    %870 = arith.addf %868, %869 : vector<8x32xf32>
    %871 = arith.addf %870, %858 : vector<8x32xf32>
    %872 = vector.extract_strided_slice %630 {offsets = [12, 0], sizes = [1, 32], strides = [1, 1]} : vector<14x32xf32> to vector<1x32xf32>
    %873 = vector.extract_strided_slice %630 {offsets = [13, 0], sizes = [1, 32], strides = [1, 1]} : vector<14x32xf32> to vector<1x32xf32>
    %cst_239 = arith.constant dense<0.000000e+00> : vector<8xf32>
    %874 = vector.multi_reduction <add>, %871, %cst_239 [1] : vector<8x32xf32> to vector<8xf32>
    %875 = vector.shape_cast %874 : vector<8xf32> to vector<8x1xf32>
    %cst_240 = arith.constant 3.200000e+01 : f32
    %876 = vector.broadcast %cst_240 : f32 to vector<8x1xf32>
    %877 = arith.divf %875, %876 : vector<8x1xf32>
    %878 = vector.broadcast %877 : vector<8x1xf32> to vector<8x32xf32>
    %879 = arith.subf %871, %878 : vector<8x32xf32>
    %880 = arith.mulf %879, %879 : vector<8x32xf32>
    %cst_241 = arith.constant dense<0.000000e+00> : vector<8xf32>
    %881 = vector.multi_reduction <add>, %880, %cst_241 [1] : vector<8x32xf32> to vector<8xf32>
    %882 = vector.shape_cast %881 : vector<8xf32> to vector<8x1xf32>
    %cst_242 = arith.constant 3.200000e+01 : f32
    %883 = vector.broadcast %cst_242 : f32 to vector<8x1xf32>
    %884 = arith.divf %882, %883 : vector<8x1xf32>
    %cst_243 = arith.constant 9.99999974E-6 : f32
    %885 = vector.broadcast %cst_243 : f32 to vector<8x1xf32>
    %886 = arith.addf %884, %885 : vector<8x1xf32>
    %887 = math.rsqrt %886 : vector<8x1xf32>
    %888 = vector.broadcast %887 : vector<8x1xf32> to vector<8x32xf32>
    %889 = arith.mulf %879, %888 : vector<8x32xf32>
    %890 = vector.broadcast %872 : vector<1x32xf32> to vector<8x32xf32>
    %891 = arith.mulf %889, %890 : vector<8x32xf32>
    %892 = vector.broadcast %873 : vector<1x32xf32> to vector<8x32xf32>
    %893 = arith.addf %891, %892 : vector<8x32xf32>
    %c0_244 = arith.constant 0 : index
    %c0_245 = arith.constant 0 : index
    %894 = vector.load %arg12[%c0_244, %c0_245] : memref<32x128xf32, #tpu.memory_space<vmem>>, vector<32x128xf32>
    %cst_246 = arith.constant dense<0.000000e+00> : vector<8x128xf32>
    %895 = tpu.matmul %893, %894, %cst_246 {dimension_numbers = #tpu.dot_dimension_numbers<[1], [0], [0], [1], [0, 0, 1, 1], [], []>} : vector<8x32xf32>, vector<32x128xf32>, vector<8x128xf32> -> vector<8x128xf32>
    %c0_247 = arith.constant 0 : index
    %c0_248 = arith.constant 0 : index
    %896 = vector.load %arg13[%c0_247, %c0_248] : memref<1x128xf32, #tpu.memory_space<vmem>>, vector<1x128xf32>
    %897 = vector.broadcast %896 : vector<1x128xf32> to vector<8x128xf32>
    %898 = arith.addf %895, %897 : vector<8x128xf32>
    %cst_249 = arith.constant 0.000000e+00 : f32
    %899 = vector.broadcast %cst_249 : f32 to vector<8x128xf32>
    %900 = arith.subf %899, %898 : vector<8x128xf32>
    %901 = math.exp %900 : vector<8x128xf32>
    %cst_250 = arith.constant 1.000000e+00 : f32
    %902 = vector.broadcast %cst_250 : f32 to vector<8x128xf32>
    %903 = arith.addf %902, %901 : vector<8x128xf32>
    %cst_251 = arith.constant 1.000000e+00 : f32
    %904 = vector.broadcast %cst_251 : f32 to vector<8x128xf32>
    %905 = arith.divf %904, %903 : vector<8x128xf32>
    %c0_252 = arith.constant 0 : index
    %c0_253 = arith.constant 0 : index
    %906 = vector.load %arg14[%c0_252, %c0_253] : memref<8x128xf32, #tpu.memory_space<vmem>>, vector<8x128xf32>
    tpu.vector_store %arg14[%c0_252, %c0_253], %905 {strides = array<i32>} : memref<8x128xf32, #tpu.memory_space<vmem>>, vector<8x128xf32>,
    return
  }
  func.func @transform_0(%arg0: i32) -> (i32, i32) {
    %c0_i32 = arith.constant 0 : i32
    %c0_i32_0 = arith.constant 0 : i32
    return %arg0, %c0_i32 : i32, i32
  }
  func.func @transform_1(%arg0: i32) -> (i32, i32) {
    %c0_i32 = arith.constant 0 : i32
    %c0_i32_0 = arith.constant 0 : i32
    return %arg0, %c0_i32 : i32, i32
  }
  func.func @transform_2(%arg0: i32) -> (i32, i32) {
    %c0_i32 = arith.constant 0 : i32
    %c0_i32_0 = arith.constant 0 : i32
    return %arg0, %c0_i32 : i32, i32
  }
  func.func @transform_3(%arg0: i32) -> (i32, i32) {
    %c0_i32 = arith.constant 0 : i32
    %c0_i32_0 = arith.constant 0 : i32
    return %arg0, %c0_i32 : i32, i32
  }
  func.func @transform_4(%arg0: i32) -> (i32, i32) {
    %c0_i32 = arith.constant 0 : i32
    %c0_i32_0 = arith.constant 0 : i32
    %c0_i32_1 = arith.constant 0 : i32
    return %c0_i32, %c0_i32_0 : i32, i32
  }
  func.func @transform_5(%arg0: i32) -> (i32, i32) {
    %c0_i32 = arith.constant 0 : i32
    %c0_i32_0 = arith.constant 0 : i32
    %c0_i32_1 = arith.constant 0 : i32
    return %c0_i32, %c0_i32_0 : i32, i32
  }
  func.func @transform_6(%arg0: i32) -> (i32, i32) {
    %c0_i32 = arith.constant 0 : i32
    %c0_i32_0 = arith.constant 0 : i32
    %c0_i32_1 = arith.constant 0 : i32
    return %c0_i32, %c0_i32_0 : i32, i32
  }
  func.func @transform_7(%arg0: i32) -> (i32, i32, i32) {
    %c0_i32 = arith.constant 0 : i32
    %c0_i32_0 = arith.constant 0 : i32
    %c0_i32_1 = arith.constant 0 : i32
    %c0_i32_2 = arith.constant 0 : i32
    return %c0_i32, %c0_i32_0, %c0_i32_1 : i32, i32, i32
  }
  func.func @transform_8(%arg0: i32) -> (i32, i32, i32) {
    %c0_i32 = arith.constant 0 : i32
    %c0_i32_0 = arith.constant 0 : i32
    %c0_i32_1 = arith.constant 0 : i32
    %c0_i32_2 = arith.constant 0 : i32
    return %c0_i32, %c0_i32_0, %c0_i32_1 : i32, i32, i32
  }
  func.func @transform_9(%arg0: i32) -> (i32, i32, i32) {
    %c0_i32 = arith.constant 0 : i32
    %c0_i32_0 = arith.constant 0 : i32
    %c0_i32_1 = arith.constant 0 : i32
    %c0_i32_2 = arith.constant 0 : i32
    return %c0_i32, %c0_i32_0, %c0_i32_1 : i32, i32, i32
  }
  func.func @transform_10(%arg0: i32) -> (i32, i32, i32) {
    %c0_i32 = arith.constant 0 : i32
    %c0_i32_0 = arith.constant 0 : i32
    %c0_i32_1 = arith.constant 0 : i32
    %c0_i32_2 = arith.constant 0 : i32
    return %c0_i32, %c0_i32_0, %c0_i32_1 : i32, i32, i32
  }
  func.func @transform_11(%arg0: i32) -> (i32, i32) {
    %c0_i32 = arith.constant 0 : i32
    %c0_i32_0 = arith.constant 0 : i32
    %c0_i32_1 = arith.constant 0 : i32
    return %c0_i32, %c0_i32_0 : i32, i32
  }
  func.func @transform_12(%arg0: i32) -> (i32, i32) {
    %c0_i32 = arith.constant 0 : i32
    %c0_i32_0 = arith.constant 0 : i32
    %c0_i32_1 = arith.constant 0 : i32
    return %c0_i32, %c0_i32_0 : i32, i32
  }
  func.func @transform_13(%arg0: i32) -> (i32, i32) {
    %c0_i32 = arith.constant 0 : i32
    %c0_i32_0 = arith.constant 0 : i32
    return %arg0, %c0_i32 : i32, i32
  }
}

</mosaic_0001>

<llo_original>
// kernel: tpu_custom_call.1
$region0: #{tpu_custom_call.1}
  #allocation0 [shape = 'u32[]', space=smem, size = 0x4, offset = 0x4, fixed_abs, tag = 'smem constant byte address 0x4 - core index']
  #allocation1 [shape = 'u32[144,128]{1,0:T(1,128)}', space=vmem, size = 0x12000, scoped, tag = 'internal scratch']
  %s0 = inlined_call_operand.vmem [shape: s32[16,1], index: 0, kind: input, shape index: {}]
  %s1 = inlined_call_operand.vmem [shape: s32[16,1], index: 1, kind: input, shape index: {}]
  %s2 = inlined_call_operand.vmem [shape: s32[16,1], index: 2, kind: input, shape index: {}]
  %s3 = inlined_call_operand.hbm [shape: f32[16,32], index: 3, kind: input, shape index: {}]
  %s4 = inlined_call_operand.hbm [shape: f32[20,32], index: 4, kind: input, shape index: {}]
  %s5 = inlined_call_operand.hbm [shape: f32[12,32], index: 5, kind: input, shape index: {}]
  %s6 = inlined_call_operand.hbm [shape: f32[10,32], index: 6, kind: input, shape index: {}]
  %s7 = inlined_call_operand.vmem [shape: f32[2,32,192], index: 7, kind: input, shape index: {}]
  %s8 = inlined_call_operand.vmem [shape: f32[2,10,32], index: 8, kind: input, shape index: {}]
  %s9 = inlined_call_operand.hbm [shape: f32[2,32,320], index: 9, kind: input, shape index: {}]
  %s10 = inlined_call_operand.vmem [shape: f32[2,14,32], index: 10, kind: input, shape index: {}]
  %s11 = inlined_call_operand.vmem [shape: f32[32,128], index: 11, kind: input, shape index: {}]
  %s12 = inlined_call_operand.vmem [shape: f32[1,128], index: 12, kind: input, shape index: {}]
  %s13 = inlined_call_operand.hbm [shape: f32[16,128], index: 13, kind: output, shape index: {}]
  %s14 = sld [smem:[#allocation0]]
  $region105: #{tpu_custom_call.1} parent=0
    _
  %s16 = ssub.s32 1, %s14
  %s17 = scalar_select 0, %s16, %s14
  $region1: #{tpu_custom_call.1} parent=0
    #allocation2 [shape = 'u8[8192]{0}', space=vmem, size = 0x2000, scoped, tag = 'input window, operand 3']
    #allocation3 [shape = 's32[2]{0}', space=sflag, size = 0x8, scoped, tag = 'scoped memory for tpu_custom_call.1']
    #allocation4 [shape = 's32[2]{0}', space=sflag, size = 0x8, scoped, tag = 'scoped memory for tpu_custom_call.1']
    #allocation5 [shape = 'u8[12288]{0}', space=vmem, size = 0x3000, scoped, tag = 'input window, operand 4, single buffered']
    #allocation6 [shape = 's32[1]{0}', space=sflag, size = 0x4, scoped, tag = 'scoped memory for tpu_custom_call.1']
    #allocation7 [shape = 'u8[8192]{0}', space=vmem, size = 0x2000, scoped, tag = 'input window, operand 5, single buffered']
    #allocation8 [shape = 'u8[8192]{0}', space=vmem, size = 0x2000, scoped, tag = 'input window, operand 6, single buffered']
    #allocation9 [shape = 's32[1]{0}', space=sflag, size = 0x4, scoped, tag = 'scoped memory for tpu_custom_call.1']
    #allocation10 [shape = 'u8[98304]{0}', space=vmem, size = 0x18000, scoped, tag = 'input window, operand 9, single buffered']
    #allocation11 [shape = 'u8[8192]{0}', space=vmem, size = 0x2000, scoped, tag = 'output window, operand 0']
    %18 = vsyncpa [#allocation3], 0
    %s19 = scalar_lea.sflag [#allocation3], 1
    %20 = vsyncpa %s19, 0
    %21 = vsyncpa [#allocation6], 0
    %22 = vsyncpa [#allocation9], 0
    %23 = vsyncpa [#allocation4], 0
    %s24 = scalar_lea.sflag [#allocation4], 1
    %25 = vsyncpa %s24, 0
    loop: start=0, step=1, limit=4
    $region2: #{tpu_custom_call.1} parent=1 // loop_pre_header
      _
    $region3: #{tpu_custom_call.1} parent=1 // loop_header
      %s27 = sphi 0, %s31
      %p28 = scmp.ge.s32.totalorder %s27, 4
      %s37 = sphi 0, %s39
      %s40 = sphi 0, %s37
      %s41 = sphi 0, %s40
      %s57 = sphi 0, %s41
      %s63 = sphi 0, %s65
      %s66 = sphi 0, %s63
      %s67 = sphi 0, %s66
      %s83 = sphi 0, %s67
      %s89 = sphi 0, %s91
      %s92 = sphi 0, %s89
      %s93 = sphi 0, %s92
      %s109 = sphi 0, %s93
      %s115 = sphi 0, %s117
      %s118 = sphi 0, %s115
      %s119 = sphi 0, %s118
      %s135 = sphi 0, %s119
      %s139 = sphi 0, %s139
      %s141 = sphi 0, %s139
      %s142 = sphi 0, %s141
      %s156 = sphi 0, %s142
      %s160 = sphi 0, %s160
      %s162 = sphi 0, %s160
      %s163 = sphi 0, %s162
      %s177 = sphi 0, %s163
      %s181 = sphi 0, %s181
      %s183 = sphi 0, %s181
      %s184 = sphi 0, %s183
      %s198 = sphi 0, %s184
      %s202 = sphi 0, %s202
      %s204 = sphi 0, %s202
      %s205 = sphi 0, %s204
      %s219 = sphi 0, %s205
      %s223 = sphi 0, %s223
      %s225 = sphi 0, %s223
      %s226 = sphi 0, %s225
      %s240 = sphi 0, %s226
      %s244 = sphi 0, %s244
      %s246 = sphi 0, %s244
      %s247 = sphi 0, %s246
      %s261 = sphi 0, %s247
      %s265 = sphi 0, %s265
      %s267 = sphi 0, %s265
      %s268 = sphi 0, %s267
      %s282 = sphi 0, %s268
      %s286 = sphi 0, %s286
      %s288 = sphi 0, %s286
      %s289 = sphi 0, %s288
      %s303 = sphi 0, %s289
      %s307 = sphi 0, %s307
      %s309 = sphi 0, %s307
      %s310 = sphi 0, %s309
      %s324 = sphi 0, %s310
      %s330 = sphi 0, %s332
      %s333 = sphi 0, %s330
      %s334 = sphi 0, %s333
      %s350 = sphi 0, %s334
    $region4: #{tpu_custom_call.1} parent=1 // loop_header_branch
      %30 = sbr.rel (%p28) target = $region8
    $region5: #{tpu_custom_call.1} parent=1 // loop_body
      %s32 = ssub.s32 %s27, 1
      %s33 = ssub.s32 %s27, 2
      %s34 = sadd.s32 %s27, 1
      %s35 = ssub.s32 %s27, %s34
      %p36 = scmp.eq.s32.totalorder %s35, 0
      %s38 = sadd.s32 %s37, 1
      %s39 = scalar_select %p36, %s37, %s38
      %p42 = pneg %p36
      %p43 = scmp.eq.s32.totalorder %s27, 1
      %p44 = por %p42, %p43
      %p45 = scmp.ne.s32.totalorder %s37, %s40
      %p46 = scmp.eq.s32.totalorder %s27, 0
      %p47 = por %p45, %p46
      %p48 = scmp.ne.s32.totalorder %s37, %s40
      %p49 = scmp.eq.s32.totalorder %s32, 1
      %p50 = por %p48, %p49
      %p51 = scmp.ne.s32.totalorder %s40, %s41
      %p52 = scmp.eq.s32.totalorder %s32, 0
      %p53 = por %p51, %p52
      %p54 = scmp.ne.s32.totalorder %s40, %s41
      %p55 = scmp.eq.s32.totalorder %s33, 1
      %p56 = por %p54, %p55
      %p58 = scmp.ne.s32.totalorder %s41, %s57
      %p59 = scmp.eq.s32.totalorder %s33, 0
      %p60 = por %p58, %p59
      %s61 = ssub.s32 %s27, %s34
      %p62 = scmp.eq.s32.totalorder %s61, 0
      %s64 = sadd.s32 %s63, 1
      %s65 = scalar_select %p62, %s63, %s64
      %p68 = pneg %p62
      %p69 = scmp.eq.s32.totalorder %s27, 1
      %p70 = por %p68, %p69
      %p71 = scmp.ne.s32.totalorder %s63, %s66
      %p72 = scmp.eq.s32.totalorder %s27, 0
      %p73 = por %p71, %p72
      %p74 = scmp.ne.s32.totalorder %s63, %s66
      %p75 = scmp.eq.s32.totalorder %s32, 1
      %p76 = por %p74, %p75
      %p77 = scmp.ne.s32.totalorder %s66, %s67
      %p78 = scmp.eq.s32.totalorder %s32, 0
      %p79 = por %p77, %p78
      %p80 = scmp.ne.s32.totalorder %s66, %s67
      %p81 = scmp.eq.s32.totalorder %s33, 1
      %p82 = por %p80, %p81
      %p84 = scmp.ne.s32.totalorder %s67, %s83
      %p85 = scmp.eq.s32.totalorder %s33, 0
      %p86 = por %p84, %p85
      %s87 = ssub.s32 %s27, %s34
      %p88 = scmp.eq.s32.totalorder %s87, 0
      %s90 = sadd.s32 %s89, 1
      %s91 = scalar_select %p88, %s89, %s90
      %p94 = pneg %p88
      %p95 = scmp.eq.s32.totalorder %s27, 1
      %p96 = por %p94, %p95
      %p97 = scmp.ne.s32.totalorder %s89, %s92
      %p98 = scmp.eq.s32.totalorder %s27, 0
      %p99 = por %p97, %p98
      %p100 = scmp.ne.s32.totalorder %s89, %s92
      %p101 = scmp.eq.s32.totalorder %s32, 1
      %p102 = por %p100, %p101
      %p103 = scmp.ne.s32.totalorder %s92, %s93
      %p104 = scmp.eq.s32.totalorder %s32, 0
      %p105 = por %p103, %p104
      %p106 = scmp.ne.s32.totalorder %s92, %s93
      %p107 = scmp.eq.s32.totalorder %s33, 1
      %p108 = por %p106, %p107
      %p110 = scmp.ne.s32.totalorder %s93, %s109
      %p111 = scmp.eq.s32.totalorder %s33, 0
      %p112 = por %p110, %p111
      %s113 = ssub.s32 %s27, %s34
      %p114 = scmp.eq.s32.totalorder %s113, 0
      %s116 = sadd.s32 %s115, 1
      %s117 = scalar_select %p114, %s115, %s116
      %p120 = pneg %p114
      %p121 = scmp.eq.s32.totalorder %s27, 1
      %p122 = por %p120, %p121
      %p123 = scmp.ne.s32.totalorder %s115, %s118
      %p124 = scmp.eq.s32.totalorder %s27, 0
      %p125 = por %p123, %p124
      %p126 = scmp.ne.s32.totalorder %s115, %s118
      %p127 = scmp.eq.s32.totalorder %s32, 1
      %p128 = por %p126, %p127
      %p129 = scmp.ne.s32.totalorder %s118, %s119
      %p130 = scmp.eq.s32.totalorder %s32, 0
      %p131 = por %p129, %p130
      %p132 = scmp.ne.s32.totalorder %s118, %s119
      %p133 = scmp.eq.s32.totalorder %s33, 1
      %p134 = por %p132, %p133
      %p136 = scmp.ne.s32.totalorder %s119, %s135
      %p137 = scmp.eq.s32.totalorder %s33, 0
      %p138 = por %p136, %p137
      %s140 = sadd.s32 %s139, 1
      %p143 = scmp.eq.s32.totalorder %s27, 1
      %p144 = scmp.ne.s32.totalorder %s139, %s141
      %p145 = scmp.eq.s32.totalorder %s27, 0
      %p146 = por %p144, %p145
      %p147 = scmp.ne.s32.totalorder %s139, %s141
      %p148 = scmp.eq.s32.totalorder %s32, 1
      %p149 = por %p147, %p148
      %p150 = scmp.ne.s32.totalorder %s141, %s142
      %p151 = scmp.eq.s32.totalorder %s32, 0
      %p152 = por %p150, %p151
      %p153 = scmp.ne.s32.totalorder %s141, %s142
      %p154 = scmp.eq.s32.totalorder %s33, 1
      %p155 = por %p153, %p154
      %p157 = scmp.ne.s32.totalorder %s142, %s156
      %p158 = scmp.eq.s32.totalorder %s33, 0
      %p159 = por %p157, %p158
      %s161 = sadd.s32 %s160, 1
      %p164 = scmp.eq.s32.totalorder %s27, 1
      %p165 = scmp.ne.s32.totalorder %s160, %s162
      %p166 = scmp.eq.s32.totalorder %s27, 0
      %p167 = por %p165, %p166
      %p168 = scmp.ne.s32.totalorder %s160, %s162
      %p169 = scmp.eq.s32.totalorder %s32, 1
      %p170 = por %p168, %p169
      %p171 = scmp.ne.s32.totalorder %s162, %s163
      %p172 = scmp.eq.s32.totalorder %s32, 0
      %p173 = por %p171, %p172
      %p174 = scmp.ne.s32.totalorder %s162, %s163
      %p175 = scmp.eq.s32.totalorder %s33, 1
      %p176 = por %p174, %p175
      %p178 = scmp.ne.s32.totalorder %s163, %s177
      %p179 = scmp.eq.s32.totalorder %s33, 0
      %p180 = por %p178, %p179
      %s182 = sadd.s32 %s181, 1
      %p185 = scmp.eq.s32.totalorder %s27, 1
      %p186 = scmp.ne.s32.totalorder %s181, %s183
      %p187 = scmp.eq.s32.totalorder %s27, 0
      %p188 = por %p186, %p187
      %p189 = scmp.ne.s32.totalorder %s181, %s183
      %p190 = scmp.eq.s32.totalorder %s32, 1
      %p191 = por %p189, %p190
      %p192 = scmp.ne.s32.totalorder %s183, %s184
      %p193 = scmp.eq.s32.totalorder %s32, 0
      %p194 = por %p192, %p193
      %p195 = scmp.ne.s32.totalorder %s183, %s184
      %p196 = scmp.eq.s32.totalorder %s33, 1
      %p197 = por %p195, %p196
      %p199 = scmp.ne.s32.totalorder %s184, %s198
      %p200 = scmp.eq.s32.totalorder %s33, 0
      %p201 = por %p199, %p200
      %s203 = sadd.s32 %s202, 1
      %p206 = scmp.eq.s32.totalorder %s27, 1
      %p207 = scmp.ne.s32.totalorder %s202, %s204
      %p208 = scmp.eq.s32.totalorder %s27, 0
      %p209 = por %p207, %p208
      %p210 = scmp.ne.s32.totalorder %s202, %s204
      %p211 = scmp.eq.s32.totalorder %s32, 1
      %p212 = por %p210, %p211
      %p213 = scmp.ne.s32.totalorder %s204, %s205
      %p214 = scmp.eq.s32.totalorder %s32, 0
      %p215 = por %p213, %p214
      %p216 = scmp.ne.s32.totalorder %s204, %s205
      %p217 = scmp.eq.s32.totalorder %s33, 1
      %p218 = por %p216, %p217
      %p220 = scmp.ne.s32.totalorder %s205, %s219
      %p221 = scmp.eq.s32.totalorder %s33, 0
      %p222 = por %p220, %p221
      %s224 = sadd.s32 %s223, 1
      %p227 = scmp.eq.s32.totalorder %s27, 1
      %p228 = scmp.ne.s32.totalorder %s223, %s225
      %p229 = scmp.eq.s32.totalorder %s27, 0
      %p230 = por %p228, %p229
      %p231 = scmp.ne.s32.totalorder %s223, %s225
      %p232 = scmp.eq.s32.totalorder %s32, 1
      %p233 = por %p231, %p232
      %p234 = scmp.ne.s32.totalorder %s225, %s226
      %p235 = scmp.eq.s32.totalorder %s32, 0
      %p236 = por %p234, %p235
      %p237 = scmp.ne.s32.totalorder %s225, %s226
      %p238 = scmp.eq.s32.totalorder %s33, 1
      %p239 = por %p237, %p238
      %p241 = scmp.ne.s32.totalorder %s226, %s240
      %p242 = scmp.eq.s32.totalorder %s33, 0
      %p243 = por %p241, %p242
      %s245 = sadd.s32 %s244, 1
      %p248 = scmp.eq.s32.totalorder %s27, 1
      %p249 = scmp.ne.s32.totalorder %s244, %s246
      %p250 = scmp.eq.s32.totalorder %s27, 0
      %p251 = por %p249, %p250
      %p252 = scmp.ne.s32.totalorder %s244, %s246
      %p253 = scmp.eq.s32.totalorder %s32, 1
      %p254 = por %p252, %p253
      %p255 = scmp.ne.s32.totalorder %s246, %s247
      %p256 = scmp.eq.s32.totalorder %s32, 0
      %p257 = por %p255, %p256
      %p258 = scmp.ne.s32.totalorder %s246, %s247
      %p259 = scmp.eq.s32.totalorder %s33, 1
      %p260 = por %p258, %p259
      %p262 = scmp.ne.s32.totalorder %s247, %s261
      %p263 = scmp.eq.s32.totalorder %s33, 0
      %p264 = por %p262, %p263
      %s266 = sadd.s32 %s265, 1
      %p269 = scmp.eq.s32.totalorder %s27, 1
      %p270 = scmp.ne.s32.totalorder %s265, %s267
      %p271 = scmp.eq.s32.totalorder %s27, 0
      %p272 = por %p270, %p271
      %p273 = scmp.ne.s32.totalorder %s265, %s267
      %p274 = scmp.eq.s32.totalorder %s32, 1
      %p275 = por %p273, %p274
      %p276 = scmp.ne.s32.totalorder %s267, %s268
      %p277 = scmp.eq.s32.totalorder %s32, 0
      %p278 = por %p276, %p277
      %p279 = scmp.ne.s32.totalorder %s267, %s268
      %p280 = scmp.eq.s32.totalorder %s33, 1
      %p281 = por %p279, %p280
      %p283 = scmp.ne.s32.totalorder %s268, %s282
      %p284 = scmp.eq.s32.totalorder %s33, 0
      %p285 = por %p283, %p284
      %s287 = sadd.s32 %s286, 1
      %p290 = scmp.eq.s32.totalorder %s27, 1
      %p291 = scmp.ne.s32.totalorder %s286, %s288
      %p292 = scmp.eq.s32.totalorder %s27, 0
      %p293 = por %p291, %p292
      %p294 = scmp.ne.s32.totalorder %s286, %s288
      %p295 = scmp.eq.s32.totalorder %s32, 1
      %p296 = por %p294, %p295
      %p297 = scmp.ne.s32.totalorder %s288, %s289
      %p298 = scmp.eq.s32.totalorder %s32, 0
      %p299 = por %p297, %p298
      %p300 = scmp.ne.s32.totalorder %s288, %s289
      %p301 = scmp.eq.s32.totalorder %s33, 1
      %p302 = por %p300, %p301
      %p304 = scmp.ne.s32.totalorder %s289, %s303
      %p305 = scmp.eq.s32.totalorder %s33, 0
      %p306 = por %p304, %p305
      %s308 = sadd.s32 %s307, 1
      %p311 = scmp.eq.s32.totalorder %s27, 1
      %p312 = scmp.ne.s32.totalorder %s307, %s309
      %p313 = scmp.eq.s32.totalorder %s27, 0
      %p314 = por %p312, %p313
      %p315 = scmp.ne.s32.totalorder %s307, %s309
      %p316 = scmp.eq.s32.totalorder %s32, 1
      %p317 = por %p315, %p316
      %p318 = scmp.ne.s32.totalorder %s309, %s310
      %p319 = scmp.eq.s32.totalorder %s32, 0
      %p320 = por %p318, %p319
      %p321 = scmp.ne.s32.totalorder %s309, %s310
      %p322 = scmp.eq.s32.totalorder %s33, 1
      %p323 = por %p321, %p322
      %p325 = scmp.ne.s32.totalorder %s310, %s324
      %p326 = scmp.eq.s32.totalorder %s33, 0
      %p327 = por %p325, %p326
      %s328 = ssub.s32 %s27, %s34
      %p329 = scmp.eq.s32.totalorder %s328, 0
      %s331 = sadd.s32 %s330, 1
      %s332 = scalar_select %p329, %s330, %s331
      %p335 = pneg %p329
      %p336 = scmp.eq.s32.totalorder %s27, 1
      %p337 = por %p335, %p336
      %p338 = scmp.ne.s32.totalorder %s330, %s333
      %p339 = scmp.eq.s32.totalorder %s27, 0
      %p340 = por %p338, %p339
      %p341 = scmp.ne.s32.totalorder %s330, %s333
      %p342 = scmp.eq.s32.totalorder %s32, 1
      %p343 = por %p341, %p342
      %p344 = scmp.ne.s32.totalorder %s333, %s334
      %p345 = scmp.eq.s32.totalorder %s32, 0
      %p346 = por %p344, %p345
      %p347 = scmp.ne.s32.totalorder %s333, %s334
      %p348 = scmp.eq.s32.totalorder %s33, 1
      %p349 = por %p347, %p348
      %p351 = scmp.ne.s32.totalorder %s334, %s350
      %p352 = scmp.eq.s32.totalorder %s33, 0
      %p353 = por %p351, %p352
      %p354 = scmp.le.s32.totalorder 1, %s27
      %p355 = scmp.lt.s32.totalorder %s27, 3
      %p356 = pnand %p354, %p355
      %p357 = pneg %p356
      // Predicated region
      $region9: #{tpu_custom_call.1} parent=5 // pred_check
        _
      $region10: #{tpu_custom_call.1} parent=5 // pred_check_branch
        %359 = sbr.rel (%p356) target = $region12
      $region11: #{tpu_custom_call.1} parent=5 // pred_region
        %s360 = ssub.s32 %s27, 1
        // Predicated region
        $region13: #{tpu_custom_call.1} parent=11 // pred_check
          %p361 = pneg %p152
        $region14: #{tpu_custom_call.1} parent=11 // pred_check_branch
          %363 = sbr.rel (%p361) target = $region16
        $region15: #{tpu_custom_call.1} parent=11 // pred_region
          %s365 = ssub.s32 384, 384
          %366 = vsyncadd [#allocation6], %s365
          %s367 = sshll.u32 [#allocation5], 4
          %s368 = int_to_ptr.vmem [resolvable:$true] %s367
          %373 = dma.hbm_to_vmem [thread:$0]  %s4, 384, %s368, [#allocation6], 128, 128, 8
        $region16: #{tpu_custom_call.1} parent=11 // pred_fallthru
          _
        // Predicated region
        $region17: #{tpu_custom_call.1} parent=11 // pred_check
          %p374 = pneg %p173
        $region18: #{tpu_custom_call.1} parent=11 // pred_check_branch
          %376 = sbr.rel (%p374) target = $region20
        $region19: #{tpu_custom_call.1} parent=11 // pred_region
          %s378 = ssub.s32 256, 256
          %379 = vsyncadd [#allocation6], %s378
          %s380 = sshll.u32 [#allocation7], 4
          %s381 = int_to_ptr.vmem [resolvable:$true] %s380
          %386 = dma.hbm_to_vmem [thread:$0]  %s5, 256, %s381, [#allocation6], 128, 128, 8
        $region20: #{tpu_custom_call.1} parent=11 // pred_fallthru
          _
        // Predicated region
        $region21: #{tpu_custom_call.1} parent=11 // pred_check
          %p387 = pneg %p194
        $region22: #{tpu_custom_call.1} parent=11 // pred_check_branch
          %389 = sbr.rel (%p387) target = $region24
        $region23: #{tpu_custom_call.1} parent=11 // pred_region
          %s391 = ssub.s32 256, 256
          %392 = vsyncadd [#allocation9], %s391
          %s393 = sshll.u32 [#allocation8], 4
          %s394 = int_to_ptr.vmem [resolvable:$true] %s393
          %399 = dma.hbm_to_vmem [thread:$0]  %s6, 256, %s394, [#allocation9], 128, 128, 8
        $region24: #{tpu_custom_call.1} parent=11 // pred_fallthru
          _
        // Predicated region
        $region25: #{tpu_custom_call.1} parent=11 // pred_check
          %p400 = pneg %p215
        $region26: #{tpu_custom_call.1} parent=11 // pred_check_branch
          %402 = sbr.rel (%p400) target = $region28
        $region27: #{tpu_custom_call.1} parent=11 // pred_region
          _
        $region28: #{tpu_custom_call.1} parent=11 // pred_fallthru
          _
        // Predicated region
        $region29: #{tpu_custom_call.1} parent=11 // pred_check
          %p403 = pneg %p236
        $region30: #{tpu_custom_call.1} parent=11 // pred_check_branch
          %405 = sbr.rel (%p403) target = $region32
        $region31: #{tpu_custom_call.1} parent=11 // pred_region
          _
        $region32: #{tpu_custom_call.1} parent=11 // pred_fallthru
          _
        // Predicated region
        $region33: #{tpu_custom_call.1} parent=11 // pred_check
          %p406 = pneg %p257
        $region34: #{tpu_custom_call.1} parent=11 // pred_check_branch
          %408 = sbr.rel (%p406) target = $region36
        $region35: #{tpu_custom_call.1} parent=11 // pred_region
          %s410 = ssub.s32 3072, 3072
          %411 = vsyncadd [#allocation9], %s410
          %s412 = sshll.u32 [#allocation10], 4
          %s413 = int_to_ptr.vmem [resolvable:$true] %s412
          %418 = dma.hbm_to_vmem [thread:$0]  %s9, 3072, %s413, [#allocation9], 384, 384, 24
        $region36: #{tpu_custom_call.1} parent=11 // pred_fallthru
          _
        // Predicated region
        $region37: #{tpu_custom_call.1} parent=11 // pred_check
          %p419 = pneg %p278
        $region38: #{tpu_custom_call.1} parent=11 // pred_check_branch
          %421 = sbr.rel (%p419) target = $region40
        $region39: #{tpu_custom_call.1} parent=11 // pred_region
          _
        $region40: #{tpu_custom_call.1} parent=11 // pred_fallthru
          _
        // Predicated region
        $region41: #{tpu_custom_call.1} parent=11 // pred_check
          %p422 = pneg %p299
        $region42: #{tpu_custom_call.1} parent=11 // pred_check_branch
          %424 = sbr.rel (%p422) target = $region44
        $region43: #{tpu_custom_call.1} parent=11 // pred_region
          _
        $region44: #{tpu_custom_call.1} parent=11 // pred_fallthru
          _
        // Predicated region
        $region45: #{tpu_custom_call.1} parent=11 // pred_check
          %p425 = pneg %p320
        $region46: #{tpu_custom_call.1} parent=11 // pred_check_branch
          %427 = sbr.rel (%p425) target = $region48
        $region47: #{tpu_custom_call.1} parent=11 // pred_region
          _
        $region48: #{tpu_custom_call.1} parent=11 // pred_fallthru
          _
      $region12: #{tpu_custom_call.1} parent=5 // pred_fallthru
        _
      %p428 = scmp.lt.s32.totalorder %s27, 2
      // Predicated region
      $region49: #{tpu_custom_call.1} parent=5 // pred_check
        %p429 = pneg %p428
      $region50: #{tpu_custom_call.1} parent=5 // pred_check_branch
        %431 = sbr.rel (%p429) target = $region52
      $region51: #{tpu_custom_call.1} parent=5 // pred_region
        // Predicated region
        $region53: #{tpu_custom_call.1} parent=51 // pred_check
          %p432 = pneg %p47
        $region54: #{tpu_custom_call.1} parent=51 // pred_check_branch
          %434 = sbr.rel (%p432) target = $region56
        $region55: #{tpu_custom_call.1} parent=51 // pred_region
          %p435 = scmp.lt.s32.totalorder %s27, 1
          %s436 = scalar_select %p435, %s27, 1
          %s437 = smul.addr %s436, 8
          %s438 = scalar_lea.vmem %s0, %s437
        $region56: #{tpu_custom_call.1} parent=51 // pred_fallthru
          _
        // Predicated region
        $region57: #{tpu_custom_call.1} parent=51 // pred_check
          %p439 = pneg %p73
        $region58: #{tpu_custom_call.1} parent=51 // pred_check_branch
          %441 = sbr.rel (%p439) target = $region60
        $region59: #{tpu_custom_call.1} parent=51 // pred_region
          %p442 = scmp.lt.s32.totalorder %s27, 1
          %s443 = scalar_select %p442, %s27, 1
          %s444 = smul.addr %s443, 8
          %s445 = scalar_lea.vmem %s1, %s444
        $region60: #{tpu_custom_call.1} parent=51 // pred_fallthru
          _
        // Predicated region
        $region61: #{tpu_custom_call.1} parent=51 // pred_check
          %p446 = pneg %p99
        $region62: #{tpu_custom_call.1} parent=51 // pred_check_branch
          %448 = sbr.rel (%p446) target = $region64
        $region63: #{tpu_custom_call.1} parent=51 // pred_region
          %p449 = scmp.lt.s32.totalorder %s27, 1
          %s450 = scalar_select %p449, %s27, 1
          %s451 = smul.addr %s450, 8
          %s452 = scalar_lea.vmem %s2, %s451
        $region64: #{tpu_custom_call.1} parent=51 // pred_fallthru
          _
        // Predicated region
        $region65: #{tpu_custom_call.1} parent=51 // pred_check
          %p453 = pneg %p125
        $region66: #{tpu_custom_call.1} parent=51 // pred_check_branch
          %455 = sbr.rel (%p453) target = $region68
        $region67: #{tpu_custom_call.1} parent=51 // pred_region
          %s456 = sand.u32 %s115, 1
          %s457 = scalar_lea.sflag [#allocation3], %s456
          %s458 = sand.u32 %s115, 1
          %s459 = smul.addr %s458, 8
          %s460 = scalar_lea.vmem [#allocation2], %s459
          %s462 = ssub.s32 128, 128
          %463 = vsyncadd %s457, %s462
          %s464 = smul.addr %s27, 128
          %s465 = scalar_lea.hbm %s3, %s464
          %s467 = sshll.u32 %s460, 4
          %s468 = int_to_ptr.vmem [resolvable:$true] %s467
          %470 = dma.hbm_to_vmem [thread:$0]  %s465, 128, %s468, %s457
        $region68: #{tpu_custom_call.1} parent=51 // pred_fallthru
          _
      $region52: #{tpu_custom_call.1} parent=5 // pred_fallthru
        _
      %p471 = scmp.le.s32.totalorder 1, %s27
      %p472 = scmp.lt.s32.totalorder %s27, 3
      %p473 = pnand %p471, %p472
      %p474 = pneg %p473
      // Predicated region
      $region69: #{tpu_custom_call.1} parent=5 // pred_check
        _
      $region70: #{tpu_custom_call.1} parent=5 // pred_check_branch
        %476 = sbr.rel (%p473) target = $region72
      $region71: #{tpu_custom_call.1} parent=5 // pred_region
        %s477 = ssub.s32 %s27, 1
        %s478 = sand.u32 %s118, 1
        %s479 = scalar_lea.sflag [#allocation3], %s478
        %s480 = sand.u32 %s118, 1
        %s481 = smul.addr %s480, 8
        %s482 = scalar_lea.vmem [#allocation2], %s481
        // Predicated region
        $region73: #{tpu_custom_call.1} parent=71 // pred_check
          %p483 = pneg %p131
        $region74: #{tpu_custom_call.1} parent=71 // pred_check_branch
          %485 = sbr.rel (%p483) target = $region76
        $region75: #{tpu_custom_call.1} parent=71 // pred_region
          %486 = dma.done %s479, 128
        $region76: #{tpu_custom_call.1} parent=71 // pred_fallthru
          _
        // Predicated region
        $region77: #{tpu_custom_call.1} parent=71 // pred_check
          %p487 = pneg %p152
        $region78: #{tpu_custom_call.1} parent=71 // pred_check_branch
          %489 = sbr.rel (%p487) target = $region80
        $region79: #{tpu_custom_call.1} parent=71 // pred_region
          %490 = dma.done [#allocation6], 384
        $region80: #{tpu_custom_call.1} parent=71 // pred_fallthru
          _
        // Predicated region
        $region81: #{tpu_custom_call.1} parent=71 // pred_check
          %p491 = pneg %p173
        $region82: #{tpu_custom_call.1} parent=71 // pred_check_branch
          %493 = sbr.rel (%p491) target = $region84
        $region83: #{tpu_custom_call.1} parent=71 // pred_region
          %494 = dma.done [#allocation6], 256
        $region84: #{tpu_custom_call.1} parent=71 // pred_fallthru
          _
        // Predicated region
        $region85: #{tpu_custom_call.1} parent=71 // pred_check
          %p495 = pneg %p194
        $region86: #{tpu_custom_call.1} parent=71 // pred_check_branch
          %497 = sbr.rel (%p495) target = $region88
        $region87: #{tpu_custom_call.1} parent=71 // pred_region
          %498 = dma.done [#allocation9], 256
        $region88: #{tpu_custom_call.1} parent=71 // pred_fallthru
          _
        // Predicated region
        $region89: #{tpu_custom_call.1} parent=71 // pred_check
          %p499 = pneg %p257
        $region90: #{tpu_custom_call.1} parent=71 // pred_check_branch
          %501 = sbr.rel (%p499) target = $region92
        $region91: #{tpu_custom_call.1} parent=71 // pred_region
          %502 = dma.done [#allocation9], 3072
        $region92: #{tpu_custom_call.1} parent=71 // pred_fallthru
          _
        %p503 = scmp.lt.s32.totalorder %s32, 1
        %s504 = scalar_select %p503, %s32, 1
        %s505 = smul.addr %s504, 8
        %s506 = scalar_lea.vmem %s0, %s505
        %p507 = pneg %p53
        %p508 = pneg %p50
        %p509 = scmp.lt.s32.totalorder %s32, 1
        %s510 = scalar_select %p509, %s32, 1
        %s511 = smul.addr %s510, 8
        %s512 = scalar_lea.vmem %s1, %s511
        %p513 = pneg %p79
        %p514 = pneg %p76
        %p515 = scmp.lt.s32.totalorder %s32, 1
        %s516 = scalar_select %p515, %s32, 1
        %s517 = smul.addr %s516, 8
        %s518 = scalar_lea.vmem %s2, %s517
        %p519 = pneg %p105
        %p520 = pneg %p102
        %s521 = sand.u32 %s118, 1
        %s522 = scalar_lea.sflag [#allocation3], %s521
        %s523 = sand.u32 %s118, 1
        %s524 = smul.addr %s523, 8
        %s525 = scalar_lea.vmem [#allocation2], %s524
        %p526 = pneg %p131
        %p527 = pneg %p128
        %p528 = pneg %p152
        %p529 = pneg %p149
        %p530 = pneg %p173
        %p531 = pneg %p170
        %p532 = pneg %p194
        %p533 = pneg %p191
        %p534 = pneg %p215
        %p535 = pneg %p212
        %p536 = pneg %p236
        %p537 = pneg %p233
        %p538 = pneg %p257
        %p539 = pneg %p254
        %p540 = pneg %p278
        %p541 = pneg %p275
        %p542 = pneg %p299
        %p543 = pneg %p296
        %p544 = pneg %p320
        %p545 = pneg %p317
        %p546 = pneg %p346
        %p547 = pneg %p343
        %s548 = sand.u32 %s333, 1
        %s549 = scalar_lea.sflag [#allocation4], %s548
        %s550 = sand.u32 %s333, 1
        %s551 = smul.addr %s550, 8
        %s552 = scalar_lea.vmem [#allocation11], %s551
        %p553 = scmp.lt.s32.totalorder %s32, 1
        %s554 = scalar_select %p553, %s32, 1
        %s555 = smul.addr %s554, 8
        %s556 = scalar_lea.vmem %s0, %s555
        %p557 = scmp.lt.s32.totalorder %s32, 1
        %s558 = scalar_select %p557, %s32, 1
        %s559 = smul.addr %s558, 8
        %s560 = scalar_lea.vmem %s1, %s559
        %p561 = scmp.lt.s32.totalorder %s32, 1
        %s562 = scalar_select %p561, %s32, 1
        %s563 = smul.addr %s562, 8
        %s564 = scalar_lea.vmem %s2, %s563
        %v565 = vlaneseq
        %v566 = vshrl.u32 %v565, 7
        %v567 = vlaneseq
        %v568 = vand.u32 %v567, 127
        %vm569 = vcmp.gt.s32.totalorder %v568, %v566
        %v570 = vsel %vm569, -1e+30, 0.0
        %v571 = vld [vmem:[%s482] sm:$0xff]
        %v572 = vld [vmem:[%s556] sm:$0xff]
        %573 = vset.pattern.permute.xlu0 0
        %574 = vperm.xlu0 %573, %v572
        %v575 = vpop.permute.xlu0 %574
        %vm576 = vcmp.eq.s32.totalorder %v568, %v575
        %v577 = vsel %vm576, 1, 0
        %v578 = vcvt.s32.f32 %v577
        %v579 = vld [vmem:[#allocation5] sm:$0xff]
        %v580 = vld [vmem:[#allocation5 + $0x8] sm:$0xff]
        %v581 = vld [vmem:[#allocation5 + $0x10] sm:$0xf]
        %v582 = vld [vmem:[%s560] sm:$0xff]
        %583 = vset.pattern.permute.xlu0 0
        %584 = vperm.xlu0 %583, %v582
        %v585 = vpop.permute.xlu0 %584
        %vm586 = vcmp.eq.s32.totalorder %v568, %v585
        %v587 = vsel %vm586, 1, 0
        %v588 = vcvt.s32.f32 %v587
        %v589 = vld [vmem:[#allocation7] sm:$0xff]
        %v590 = vld [vmem:[#allocation7 + $0x8] sm:$0xf]
        %vm591 = vcmask 97280
        %v593 = vsel %vm591, %v588, 0
        %vm595 = vcmask 1043456
        %v597 = vsel %vm595, %v590, 0
        %599 = vmatprep.subr.mxu0 0.0
        %600 = vmatpush1.msra.mxu0 0.0
        %601 = vmatprep.subr.mxu0 0.0
        %602 = vmatpush1.msra.mxu0 0.0
        %603 = vmatprep.subr.mxu0 0.0
        %604 = vmatpush1.msra.mxu0 0.0
        %605 = vmatprep.subr.mxu0 0.0
        %606 = vmatpush1.msra.mxu0 0.0
        %607 = vmatprep.subr.mxu0 0.0
        %608 = vmatpush1.msra.mxu0 0.0
        %609 = vmatprep.subr.mxu0 0.0
        %610 = vmatpush1.msra.mxu0 0.0
        %611 = vmatprep.subr.mxu0 0.0
        %612 = vmatpush1.msra.mxu0 0.0
        %613 = vmatprep.subr.mxu0 0.0
        %614 = vmatpush1.msra.mxu0 0.0
        %615 = vmatprep.subr.mxu0 0.0
        %616 = vmatpush1.msra.mxu0 0.0
        %617 = vmatprep.subr.mxu0 0.0
        %618 = vmatpush1.msra.mxu0 0.0
        %619 = vmatprep.subr.mxu0 0.0
        %620 = vmatpush1.msra.mxu0 0.0
        %621 = vmatprep.subr.mxu0 0.0
        %622 = vmatpush1.msra.mxu0 0.0
        %623 = vmatprep.subr.mxu0 0.0
        %624 = vmatpush1.msra.mxu0 0.0
        %625 = vmatprep.subr.mxu0 0.0
        %626 = vmatpush1.msra.mxu0 0.0
        %627 = vmatprep.subr.mxu0 0.0
        %628 = vmatpush1.msra.mxu0 %v597
        %629 = vmatprep.subr.mxu0 0.0
        %630 = vmatpush1.msra.mxu0 %v589
        %631 = vmatprep.subr.mxu0 0.0
        %632 = vmatpush2.msra.mxu0 0.0
        %633 = vmatprep.subr.mxu0 0.0
        %634 = vmatpush2.msra.mxu0 0.0
        %635 = vmatprep.subr.mxu0 0.0
        %636 = vmatpush2.msra.mxu0 0.0
        %637 = vmatprep.subr.mxu0 0.0
        %638 = vmatpush2.msra.mxu0 0.0
        %639 = vmatprep.subr.mxu0 0.0
        %640 = vmatpush2.msra.mxu0 0.0
        %641 = vmatprep.subr.mxu0 0.0
        %642 = vmatpush2.msra.mxu0 0.0
        %643 = vmatprep.subr.mxu0 0.0
        %644 = vmatpush2.msra.mxu0 0.0
        %645 = vmatprep.subr.mxu0 0.0
        %646 = vmatpush2.msra.mxu0 0.0
        %647 = vmatprep.subr.mxu0 0.0
        %648 = vmatpush2.msra.mxu0 0.0
        %649 = vmatprep.subr.mxu0 0.0
        %650 = vmatpush2.msra.mxu0 0.0
        %651 = vmatprep.subr.mxu0 0.0
        %652 = vmatpush2.msra.mxu0 0.0
        %653 = vmatprep.subr.mxu0 0.0
        %654 = vmatpush2.msra.mxu0 0.0
        %655 = vmatprep.subr.mxu0 0.0
        %656 = vmatpush2.msra.mxu0 0.0
        %657 = vmatprep.subr.mxu0 0.0
        %658 = vmatpush2.msra.mxu0 0.0
        %659 = vmatprep.subr.mxu0 0.0
        %660 = vmatpush2.msra.mxu0 0.0
        %661 = vmatprep.subr.mxu0 0.0
        %662 = vmatpush2.msra.mxu0 0.0
        %663 = vmatprep.mubr.f32.mxu0 0.0
        %664 = vmatmul.mubr.f32.gmra.mxu0 %v593
        %v665 = vpop.f32.mrf.mxu0
        %v666 = vadd.f32 0.0, %v665
        %v667 = vpop.f32.mrf.mxu0
        %668 = vdwg.mxu0
        %vm669 = vcmask 162816
        %v671 = vsel %vm669, %v578, 0
        %v674 = vsel %vm595, %v581, 0
        %676 = vmatprep.subr.mxu0 0.0
        %677 = vmatpush1.msra.mxu0 0.0
        %678 = vmatprep.subr.mxu0 0.0
        %679 = vmatpush1.msra.mxu0 0.0
        %680 = vmatprep.subr.mxu0 0.0
        %681 = vmatpush1.msra.mxu0 0.0
        %682 = vmatprep.subr.mxu0 0.0
        %683 = vmatpush1.msra.mxu0 0.0
        %684 = vmatprep.subr.mxu0 0.0
        %685 = vmatpush1.msra.mxu0 0.0
        %686 = vmatprep.subr.mxu0 0.0
        %687 = vmatpush1.msra.mxu0 0.0
        %688 = vmatprep.subr.mxu0 0.0
        %689 = vmatpush1.msra.mxu0 0.0
        %690 = vmatprep.subr.mxu0 0.0
        %691 = vmatpush1.msra.mxu0 0.0
        %692 = vmatprep.subr.mxu0 0.0
        %693 = vmatpush1.msra.mxu0 0.0
        %694 = vmatprep.subr.mxu0 0.0
        %695 = vmatpush1.msra.mxu0 0.0
        %696 = vmatprep.subr.mxu0 0.0
        %697 = vmatpush1.msra.mxu0 0.0
        %698 = vmatprep.subr.mxu0 0.0
        %699 = vmatpush1.msra.mxu0 0.0
        %700 = vmatprep.subr.mxu0 0.0
        %701 = vmatpush1.msra.mxu0 0.0
        %702 = vmatprep.subr.mxu0 0.0
        %703 = vmatpush1.msra.mxu0 %v674
        %704 = vmatprep.subr.mxu0 0.0
        %705 = vmatpush1.msra.mxu0 %v580
        %706 = vmatprep.subr.mxu0 0.0
        %707 = vmatpush1.msra.mxu0 %v579
        %708 = vmatprep.subr.mxu0 0.0
        %709 = vmatpush2.msra.mxu0 0.0
        %710 = vmatprep.subr.mxu0 0.0
        %711 = vmatpush2.msra.mxu0 0.0
        %712 = vmatprep.subr.mxu0 0.0
        %713 = vmatpush2.msra.mxu0 0.0
        %714 = vmatprep.subr.mxu0 0.0
        %715 = vmatpush2.msra.mxu0 0.0
        %716 = vmatprep.subr.mxu0 0.0
        %717 = vmatpush2.msra.mxu0 0.0
        %718 = vmatprep.subr.mxu0 0.0
        %719 = vmatpush2.msra.mxu0 0.0
        %720 = vmatprep.subr.mxu0 0.0
        %721 = vmatpush2.msra.mxu0 0.0
        %722 = vmatprep.subr.mxu0 0.0
        %723 = vmatpush2.msra.mxu0 0.0
        %724 = vmatprep.subr.mxu0 0.0
        %725 = vmatpush2.msra.mxu0 0.0
        %726 = vmatprep.subr.mxu0 0.0
        %727 = vmatpush2.msra.mxu0 0.0
        %728 = vmatprep.subr.mxu0 0.0
        %729 = vmatpush2.msra.mxu0 0.0
        %730 = vmatprep.subr.mxu0 0.0
        %731 = vmatpush2.msra.mxu0 0.0
        %732 = vmatprep.subr.mxu0 0.0
        %733 = vmatpush2.msra.mxu0 0.0
        %734 = vmatprep.subr.mxu0 0.0
        %735 = vmatpush2.msra.mxu0 0.0
        %736 = vmatprep.subr.mxu0 0.0
        %737 = vmatpush2.msra.mxu0 0.0
        %738 = vmatprep.subr.mxu0 0.0
        %739 = vmatpush2.msra.mxu0 0.0
        %740 = vmatprep.mubr.f32.mxu0 0.0
        %741 = vmatmul.mubr.f32.gmra.mxu0 %v671
        %v742 = vpop.f32.mrf.mxu0
        %v743 = vadd.f32 %v666, %v742
        %v744 = vpop.f32.mrf.mxu0
        %745 = vdwg.mxu0
        %v746 = vadd.f32 %v743, %v571
        %v747 = vld [vmem:[%s7] sm:$0xff]
        %v748 = vld [vmem:[%s7 + $0x8] sm:$0xff]
        %v749 = vld [vmem:[%s7 + $0x10] sm:$0xff]
        %v750 = vld [vmem:[%s7 + $0x18] sm:$0xff]
        %v751 = vld [vmem:[%s7 + $0x20] sm:$0xff]
        %v752 = vld [vmem:[%s7 + $0x28] sm:$0xff]
        %v753 = vld [vmem:[%s7 + $0x30] sm:$0xff]
        %v754 = vld [vmem:[%s7 + $0x38] sm:$0xff]
        %v755 = vld [vmem:[%s8] sm:$0xff]
        %v756 = vld [vmem:[%s8 + $0x8] sm:$0x3]
        %vm757 = vcmask 261120
        %v759 = vsel %vm757, %v746, 0
        %761 = vmatprep.subr.mxu0 0.0
        %762 = vmatpush1.msra.mxu0 0.0
        %763 = vmatprep.subr.mxu0 0.0
        %764 = vmatpush1.msra.mxu0 0.0
        %765 = vmatprep.subr.mxu0 0.0
        %766 = vmatpush1.msra.mxu0 0.0
        %767 = vmatprep.subr.mxu0 0.0
        %768 = vmatpush1.msra.mxu0 0.0
        %769 = vmatprep.subr.mxu0 0.0
        %770 = vmatpush1.msra.mxu0 0.0
        %771 = vmatprep.subr.mxu0 0.0
        %772 = vmatpush1.msra.mxu0 0.0
        %773 = vmatprep.subr.mxu0 0.0
        %774 = vmatpush1.msra.mxu0 0.0
        %775 = vmatprep.subr.mxu0 0.0
        %776 = vmatpush1.msra.mxu0 0.0
        %777 = vmatprep.subr.mxu0 0.0
        %778 = vmatpush1.msra.mxu0 0.0
        %779 = vmatprep.subr.mxu0 0.0
        %780 = vmatpush1.msra.mxu0 0.0
        %781 = vmatprep.subr.mxu0 0.0
        %782 = vmatpush1.msra.mxu0 0.0
        %783 = vmatprep.subr.mxu0 0.0
        %784 = vmatpush1.msra.mxu0 0.0
        %785 = vmatprep.subr.mxu0 0.0
        %786 = vmatpush1.msra.mxu0 %v753
        %787 = vmatprep.subr.mxu0 0.0
        %788 = vmatpush1.msra.mxu0 %v751
        %789 = vmatprep.subr.mxu0 0.0
        %790 = vmatpush1.msra.mxu0 %v749
        %791 = vmatprep.subr.mxu0 0.0
        %792 = vmatpush1.msra.mxu0 %v747
        %793 = vmatprep.subr.mxu0 0.0
        %794 = vmatpush2.msra.mxu0 0.0
        %795 = vmatprep.subr.mxu0 0.0
        %796 = vmatpush2.msra.mxu0 0.0
        %797 = vmatprep.subr.mxu0 0.0
        %798 = vmatpush2.msra.mxu0 0.0
        %799 = vmatprep.subr.mxu0 0.0
        %800 = vmatpush2.msra.mxu0 0.0
        %801 = vmatprep.subr.mxu0 0.0
        %802 = vmatpush2.msra.mxu0 0.0
        %803 = vmatprep.subr.mxu0 0.0
        %804 = vmatpush2.msra.mxu0 0.0
        %805 = vmatprep.subr.mxu0 0.0
        %806 = vmatpush2.msra.mxu0 0.0
        %807 = vmatprep.subr.mxu0 0.0
        %808 = vmatpush2.msra.mxu0 0.0
        %809 = vmatprep.subr.mxu0 0.0
        %810 = vmatpush2.msra.mxu0 0.0
        %811 = vmatprep.subr.mxu0 0.0
        %812 = vmatpush2.msra.mxu0 0.0
        %813 = vmatprep.subr.mxu0 0.0
        %814 = vmatpush2.msra.mxu0 0.0
        %815 = vmatprep.subr.mxu0 0.0
        %816 = vmatpush2.msra.mxu0 0.0
        %817 = vmatprep.subr.mxu0 0.0
        %818 = vmatpush2.msra.mxu0 0.0
        %819 = vmatprep.subr.mxu0 0.0
        %820 = vmatpush2.msra.mxu0 0.0
        %821 = vmatprep.subr.mxu0 0.0
        %822 = vmatpush2.msra.mxu0 0.0
        %823 = vmatprep.subr.mxu0 0.0
        %824 = vmatpush2.msra.mxu0 0.0
        %825 = vmatprep.mubr.f32.mxu0 0.0
        %826 = vmatmul.mubr.f32.gmra.mxu0 %v759
        %v827 = vpop.f32.mrf.mxu0
        %v828 = vadd.f32 0.0, %v827
        %v829 = vpop.f32.mrf.mxu0
        %830 = vdwg.mxu0
        %v831 = vlaneseq
        %v832 = vshrl.u32 %v831, 7
        %v833 = vsub.s32 0, %v832
        %v834 = vrot.slane %v755, %v833
        %v835 = vadd.f32 %v828, %v834
        %v836 = vlaneseq
        %v837 = vshrl.u32 %v836, 7
        %v838 = vsub.s32 1, %v837
        %v839 = vrot.slane %v755, %v838
        %841 = vrot.lane.b32.xlu0 %v839, 32
        %v842 = vpop.permute.xlu0 %841
        %v844 = vadd.f32 %v828, %v842
        %v845 = vlaneseq
        %v846 = vshrl.u32 %v845, 7
        %v847 = vsub.s32 2, %v846
        %v848 = vrot.slane %v755, %v847
        %850 = vrot.lane.b32.xlu0 %v848, 64
        %v851 = vpop.permute.xlu0 %850
        %v853 = vadd.f32 %v828, %v851
        %v854 = vmul.f32 %v835, 0.35355338
        %856 = vrot.lane.b32.xlu0 %v844, 96
        %v857 = vpop.permute.xlu0 %856
        %vm858 = vcmask 64512
        %v860 = vsel %vm858, %v854, 0
        %v862 = vsel %vm858, %v857, 0
        %864 = vmatprep.subr.mxu0 0.0
        %865 = vmatpush1.xpose.msra.mxu0 0.0
        %866 = vmatprep.subr.mxu0 0.0
        %867 = vmatpush1.xpose.msra.mxu0 0.0
        %868 = vmatprep.subr.mxu0 0.0
        %869 = vmatpush1.xpose.msra.mxu0 0.0
        %870 = vmatprep.subr.mxu0 0.0
        %871 = vmatpush1.xpose.msra.mxu0 0.0
        %872 = vmatprep.subr.mxu0 0.0
        %873 = vmatpush1.xpose.msra.mxu0 0.0
        %874 = vmatprep.subr.mxu0 0.0
        %875 = vmatpush1.xpose.msra.mxu0 0.0
        %876 = vmatprep.subr.mxu0 0.0
        %877 = vmatpush1.xpose.msra.mxu0 0.0
        %878 = vmatprep.subr.mxu0 0.0
        %879 = vmatpush1.xpose.msra.mxu0 0.0
        %880 = vmatprep.subr.mxu0 0.0
        %881 = vmatpush1.xpose.msra.mxu0 0.0
        %882 = vmatprep.subr.mxu0 0.0
        %883 = vmatpush1.xpose.msra.mxu0 0.0
        %884 = vmatprep.subr.mxu0 0.0
        %885 = vmatpush1.xpose.msra.mxu0 0.0
        %886 = vmatprep.subr.mxu0 0.0
        %887 = vmatpush1.xpose.msra.mxu0 0.0
        %888 = vmatprep.subr.mxu0 0.0
        %889 = vmatpush1.xpose.msra.mxu0 0.0
        %890 = vmatprep.subr.mxu0 0.0
        %891 = vmatpush1.xpose.msra.mxu0 0.0
        %892 = vmatprep.subr.mxu0 0.0
        %893 = vmatpush1.xpose.msra.mxu0 0.0
        %894 = vmatprep.subr.mxu0 0.0
        %895 = vmatpush1.xpose.msra.mxu0 %v862
        %896 = vmatprep.subr.mxu0 0.0
        %897 = vmatpush2.xpose.msra.mxu0 0.0
        %898 = vmatprep.subr.mxu0 0.0
        %899 = vmatpush2.xpose.msra.mxu0 0.0
        %900 = vmatprep.subr.mxu0 0.0
        %901 = vmatpush2.xpose.msra.mxu0 0.0
        %902 = vmatprep.subr.mxu0 0.0
        %903 = vmatpush2.xpose.msra.mxu0 0.0
        %904 = vmatprep.subr.mxu0 0.0
        %905 = vmatpush2.xpose.msra.mxu0 0.0
        %906 = vmatprep.subr.mxu0 0.0
        %907 = vmatpush2.xpose.msra.mxu0 0.0
        %908 = vmatprep.subr.mxu0 0.0
        %909 = vmatpush2.xpose.msra.mxu0 0.0
        %910 = vmatprep.subr.mxu0 0.0
        %911 = vmatpush2.xpose.msra.mxu0 0.0
        %912 = vmatprep.subr.mxu0 0.0
        %913 = vmatpush2.xpose.msra.mxu0 0.0
        %914 = vmatprep.subr.mxu0 0.0
        %915 = vmatpush2.xpose.msra.mxu0 0.0
        %916 = vmatprep.subr.mxu0 0.0
        %917 = vmatpush2.xpose.msra.mxu0 0.0
        %918 = vmatprep.subr.mxu0 0.0
        %919 = vmatpush2.xpose.msra.mxu0 0.0
        %920 = vmatprep.subr.mxu0 0.0
        %921 = vmatpush2.xpose.msra.mxu0 0.0
        %922 = vmatprep.subr.mxu0 0.0
        %923 = vmatpush2.xpose.msra.mxu0 0.0
        %924 = vmatprep.subr.mxu0 0.0
        %925 = vmatpush2.xpose.msra.mxu0 0.0
        %926 = vmatprep.subr.mxu0 0.0
        %927 = vmatpush2.xpose.msra.mxu0 0.0
        %928 = vmatprep.mubr.f32.mxu0 0.0
        %929 = vmatmul.mubr.f32.gmra.mxu0 %v860
        %v930 = vpop.f32.mrf.mxu0
        %v931 = vadd.f32 %v570, %v930
        %v932 = vpop.f32.mrf.mxu0
        %933 = vdwg.mxu0
        %v934 = vsel %vm858, %v931, -inf
        %935 = vmax.xlane.f32.xlu0 %v934
        %v936 = vpop.xlane.xlu0 %935
        %v937 = vsub.f32 %v931, %v936
        %v938 = vmul.f32 %v937, 1.442695
        %v939 = vpow.pop %v938
        %v940 = vsel %vm858, %v939, 0.0
        %941 = vadd.xlane.f32.xlu0 %v940
        %v942 = vpop.xlane.xlu0 %941
        %v943 = vrcp.pop %v942
        %v944 = vmul.f32 %v939, %v943
        %946 = vrot.lane.b32.xlu0 %v853, 64
        %v947 = vpop.permute.xlu0 %946
        %v950 = vsel %vm858, %v944, 0
        %952 = vmatprep.subr.mxu0 0.0
        %953 = vmatpush1.msra.mxu0 0.0
        %954 = vmatprep.subr.mxu0 0.0
        %955 = vmatpush1.msra.mxu0 0.0
        %956 = vmatprep.subr.mxu0 0.0
        %957 = vmatpush1.msra.mxu0 0.0
        %958 = vmatprep.subr.mxu0 0.0
        %959 = vmatpush1.msra.mxu0 0.0
        %960 = vmatprep.subr.mxu0 0.0
        %961 = vmatpush1.msra.mxu0 0.0
        %962 = vmatprep.subr.mxu0 0.0
        %963 = vmatpush1.msra.mxu0 0.0
        %964 = vmatprep.subr.mxu0 0.0
        %965 = vmatpush1.msra.mxu0 0.0
        %966 = vmatprep.subr.mxu0 0.0
        %967 = vmatpush1.msra.mxu0 0.0
        %968 = vmatprep.subr.mxu0 0.0
        %969 = vmatpush1.msra.mxu0 0.0
        %970 = vmatprep.subr.mxu0 0.0
        %971 = vmatpush1.msra.mxu0 0.0
        %972 = vmatprep.subr.mxu0 0.0
        %973 = vmatpush1.msra.mxu0 0.0
        %974 = vmatprep.subr.mxu0 0.0
        %975 = vmatpush1.msra.mxu0 0.0
        %976 = vmatprep.subr.mxu0 0.0
        %977 = vmatpush1.msra.mxu0 0.0
        %978 = vmatprep.subr.mxu0 0.0
        %979 = vmatpush1.msra.mxu0 0.0
        %980 = vmatprep.subr.mxu0 0.0
        %981 = vmatpush1.msra.mxu0 0.0
        %982 = vmatprep.subr.mxu0 0.0
        %983 = vmatpush1.msra.mxu0 %v947
        %984 = vmatprep.subr.mxu0 0.0
        %985 = vmatpush2.msra.mxu0 0.0
        %986 = vmatprep.subr.mxu0 0.0
        %987 = vmatpush2.msra.mxu0 0.0
        %988 = vmatprep.subr.mxu0 0.0
        %989 = vmatpush2.msra.mxu0 0.0
        %990 = vmatprep.subr.mxu0 0.0
        %991 = vmatpush2.msra.mxu0 0.0
        %992 = vmatprep.subr.mxu0 0.0
        %993 = vmatpush2.msra.mxu0 0.0
        %994 = vmatprep.subr.mxu0 0.0
        %995 = vmatpush2.msra.mxu0 0.0
        %996 = vmatprep.subr.mxu0 0.0
        %997 = vmatpush2.msra.mxu0 0.0
        %998 = vmatprep.subr.mxu0 0.0
        %999 = vmatpush2.msra.mxu0 0.0
        %1000 = vmatprep.subr.mxu0 0.0
        %1001 = vmatpush2.msra.mxu0 0.0
        %1002 = vmatprep.subr.mxu0 0.0
        %1003 = vmatpush2.msra.mxu0 0.0
        %1004 = vmatprep.subr.mxu0 0.0
        %1005 = vmatpush2.msra.mxu0 0.0
        %1006 = vmatprep.subr.mxu0 0.0
        %1007 = vmatpush2.msra.mxu0 0.0
        %1008 = vmatprep.subr.mxu0 0.0
        %1009 = vmatpush2.msra.mxu0 0.0
        %1010 = vmatprep.subr.mxu0 0.0
        %1011 = vmatpush2.msra.mxu0 0.0
        %1012 = vmatprep.subr.mxu0 0.0
        %1013 = vmatpush2.msra.mxu0 0.0
        %1014 = vmatprep.subr.mxu0 0.0
        %1015 = vmatpush2.msra.mxu0 0.0
        %1016 = vmatprep.mubr.f32.mxu0 0.0
        %1017 = vmatmul.mubr.f32.gmra.mxu0 %v950
        %v1018 = vpop.f32.mrf.mxu0
        %v1019 = vadd.f32 0.0, %v1018
        %v1020 = vpop.f32.mrf.mxu0
        %1021 = vdwg.mxu0
        %1022 = vrot.lane.b32.xlu0 %v854, 120
        %v1023 = vpop.permute.xlu0 %1022
        %1024 = vrot.lane.b32.xlu0 %v844, 88
        %v1025 = vpop.permute.xlu0 %1024
        %v1026 = vsel %vm858, %v1023, 0
        %v1028 = vsel %vm858, %v1025, 0
        %1030 = vmatprep.subr.mxu0 0.0
        %1031 = vmatpush1.xpose.msra.mxu0 0.0
        %1032 = vmatprep.subr.mxu0 0.0
        %1033 = vmatpush1.xpose.msra.mxu0 0.0
        %1034 = vmatprep.subr.mxu0 0.0
        %1035 = vmatpush1.xpose.msra.mxu0 0.0
        %1036 = vmatprep.subr.mxu0 0.0
        %1037 = vmatpush1.xpose.msra.mxu0 0.0
        %1038 = vmatprep.subr.mxu0 0.0
        %1039 = vmatpush1.xpose.msra.mxu0 0.0
        %1040 = vmatprep.subr.mxu0 0.0
        %1041 = vmatpush1.xpose.msra.mxu0 0.0
        %1042 = vmatprep.subr.mxu0 0.0
        %1043 = vmatpush1.xpose.msra.mxu0 0.0
        %1044 = vmatprep.subr.mxu0 0.0
        %1045 = vmatpush1.xpose.msra.mxu0 0.0
        %1046 = vmatprep.subr.mxu0 0.0
        %1047 = vmatpush1.xpose.msra.mxu0 0.0
        %1048 = vmatprep.subr.mxu0 0.0
        %1049 = vmatpush1.xpose.msra.mxu0 0.0
        %1050 = vmatprep.subr.mxu0 0.0
        %1051 = vmatpush1.xpose.msra.mxu0 0.0
        %1052 = vmatprep.subr.mxu0 0.0
        %1053 = vmatpush1.xpose.msra.mxu0 0.0
        %1054 = vmatprep.subr.mxu0 0.0
        %1055 = vmatpush1.xpose.msra.mxu0 0.0
        %1056 = vmatprep.subr.mxu0 0.0
        %1057 = vmatpush1.xpose.msra.mxu0 0.0
        %1058 = vmatprep.subr.mxu0 0.0
        %1059 = vmatpush1.xpose.msra.mxu0 0.0
        %1060 = vmatprep.subr.mxu0 0.0
        %1061 = vmatpush1.xpose.msra.mxu0 %v1028
        %1062 = vmatprep.subr.mxu0 0.0
        %1063 = vmatpush2.xpose.msra.mxu0 0.0
        %1064 = vmatprep.subr.mxu0 0.0
        %1065 = vmatpush2.xpose.msra.mxu0 0.0
        %1066 = vmatprep.subr.mxu0 0.0
        %1067 = vmatpush2.xpose.msra.mxu0 0.0
        %1068 = vmatprep.subr.mxu0 0.0
        %1069 = vmatpush2.xpose.msra.mxu0 0.0
        %1070 = vmatprep.subr.mxu0 0.0
        %1071 = vmatpush2.xpose.msra.mxu0 0.0
        %1072 = vmatprep.subr.mxu0 0.0
        %1073 = vmatpush2.xpose.msra.mxu0 0.0
        %1074 = vmatprep.subr.mxu0 0.0
        %1075 = vmatpush2.xpose.msra.mxu0 0.0
        %1076 = vmatprep.subr.mxu0 0.0
        %1077 = vmatpush2.xpose.msra.mxu0 0.0
        %1078 = vmatprep.subr.mxu0 0.0
        %1079 = vmatpush2.xpose.msra.mxu0 0.0
        %1080 = vmatprep.subr.mxu0 0.0
        %1081 = vmatpush2.xpose.msra.mxu0 0.0
        %1082 = vmatprep.subr.mxu0 0.0
        %1083 = vmatpush2.xpose.msra.mxu0 0.0
        %1084 = vmatprep.subr.mxu0 0.0
        %1085 = vmatpush2.xpose.msra.mxu0 0.0
        %1086 = vmatprep.subr.mxu0 0.0
        %1087 = vmatpush2.xpose.msra.mxu0 0.0
        %1088 = vmatprep.subr.mxu0 0.0
        %1089 = vmatpush2.xpose.msra.mxu0 0.0
        %1090 = vmatprep.subr.mxu0 0.0
        %1091 = vmatpush2.xpose.msra.mxu0 0.0
        %1092 = vmatprep.subr.mxu0 0.0
        %1093 = vmatpush2.xpose.msra.mxu0 0.0
        %1094 = vmatprep.mubr.f32.mxu0 0.0
        %1095 = vmatmul.mubr.f32.gmra.mxu0 %v1026
        %v1096 = vpop.f32.mrf.mxu0
        %v1097 = vadd.f32 %v570, %v1096
        %v1098 = vpop.f32.mrf.mxu0
        %1099 = vdwg.mxu0
        %v1100 = vsel %vm858, %v1097, -inf
        %1101 = vmax.xlane.f32.xlu0 %v1100
        %v1102 = vpop.xlane.xlu0 %1101
        %v1103 = vsub.f32 %v1097, %v1102
        %v1104 = vmul.f32 %v1103, 1.442695
        %v1105 = vpow.pop %v1104
        %v1106 = vsel %vm858, %v1105, 0.0
        %1107 = vadd.xlane.f32.xlu0 %v1106
        %v1108 = vpop.xlane.xlu0 %1107
        %v1109 = vrcp.pop %v1108
        %v1110 = vmul.f32 %v1105, %v1109
        %1111 = vrot.lane.b32.xlu0 %v853, 56
        %v1112 = vpop.permute.xlu0 %1111
        %v1115 = vsel %vm858, %v1110, 0
        %1117 = vmatprep.subr.mxu0 0.0
        %1118 = vmatpush1.msra.mxu0 0.0
        %1119 = vmatprep.subr.mxu0 0.0
        %1120 = vmatpush1.msra.mxu0 0.0
        %1121 = vmatprep.subr.mxu0 0.0
        %1122 = vmatpush1.msra.mxu0 0.0
        %1123 = vmatprep.subr.mxu0 0.0
        %1124 = vmatpush1.msra.mxu0 0.0
        %1125 = vmatprep.subr.mxu0 0.0
        %1126 = vmatpush1.msra.mxu0 0.0
        %1127 = vmatprep.subr.mxu0 0.0
        %1128 = vmatpush1.msra.mxu0 0.0
        %1129 = vmatprep.subr.mxu0 0.0
        %1130 = vmatpush1.msra.mxu0 0.0
        %1131 = vmatprep.subr.mxu0 0.0
        %1132 = vmatpush1.msra.mxu0 0.0
        %1133 = vmatprep.subr.mxu0 0.0
        %1134 = vmatpush1.msra.mxu0 0.0
        %1135 = vmatprep.subr.mxu0 0.0
        %1136 = vmatpush1.msra.mxu0 0.0
        %1137 = vmatprep.subr.mxu0 0.0
        %1138 = vmatpush1.msra.mxu0 0.0
        %1139 = vmatprep.subr.mxu0 0.0
        %1140 = vmatpush1.msra.mxu0 0.0
        %1141 = vmatprep.subr.mxu0 0.0
        %1142 = vmatpush1.msra.mxu0 0.0
        %1143 = vmatprep.subr.mxu0 0.0
        %1144 = vmatpush1.msra.mxu0 0.0
        %1145 = vmatprep.subr.mxu0 0.0
        %1146 = vmatpush1.msra.mxu0 0.0
        %1147 = vmatprep.subr.mxu0 0.0
        %1148 = vmatpush1.msra.mxu0 %v1112
        %1149 = vmatprep.subr.mxu0 0.0
        %1150 = vmatpush2.msra.mxu0 0.0
        %1151 = vmatprep.subr.mxu0 0.0
        %1152 = vmatpush2.msra.mxu0 0.0
        %1153 = vmatprep.subr.mxu0 0.0
        %1154 = vmatpush2.msra.mxu0 0.0
        %1155 = vmatprep.subr.mxu0 0.0
        %1156 = vmatpush2.msra.mxu0 0.0
        %1157 = vmatprep.subr.mxu0 0.0
        %1158 = vmatpush2.msra.mxu0 0.0
        %1159 = vmatprep.subr.mxu0 0.0
        %1160 = vmatpush2.msra.mxu0 0.0
        %1161 = vmatprep.subr.mxu0 0.0
        %1162 = vmatpush2.msra.mxu0 0.0
        %1163 = vmatprep.subr.mxu0 0.0
        %1164 = vmatpush2.msra.mxu0 0.0
        %1165 = vmatprep.subr.mxu0 0.0
        %1166 = vmatpush2.msra.mxu0 0.0
        %1167 = vmatprep.subr.mxu0 0.0
        %1168 = vmatpush2.msra.mxu0 0.0
        %1169 = vmatprep.subr.mxu0 0.0
        %1170 = vmatpush2.msra.mxu0 0.0
        %1171 = vmatprep.subr.mxu0 0.0
        %1172 = vmatpush2.msra.mxu0 0.0
        %1173 = vmatprep.subr.mxu0 0.0
        %1174 = vmatpush2.msra.mxu0 0.0
        %1175 = vmatprep.subr.mxu0 0.0
        %1176 = vmatpush2.msra.mxu0 0.0
        %1177 = vmatprep.subr.mxu0 0.0
        %1178 = vmatpush2.msra.mxu0 0.0
        %1179 = vmatprep.subr.mxu0 0.0
        %1180 = vmatpush2.msra.mxu0 0.0
        %1181 = vmatprep.mubr.f32.mxu0 0.0
        %1182 = vmatmul.mubr.f32.gmra.mxu0 %v1115
        %v1183 = vpop.f32.mrf.mxu0
        %v1184 = vadd.f32 0.0, %v1183
        %v1185 = vpop.f32.mrf.mxu0
        %1186 = vdwg.mxu0
        %1188 = vrot.lane.b32.xlu0 %v749, 32
        %v1189 = vpop.permute.xlu0 %1188
        %v1192 = vsel %vm858, %v1184, 0
        %1194 = vmatprep.subr.mxu0 0.0
        %1195 = vmatpush1.msra.mxu0 0.0
        %1196 = vmatprep.subr.mxu0 0.0
        %1197 = vmatpush1.msra.mxu0 0.0
        %1198 = vmatprep.subr.mxu0 0.0
        %1199 = vmatpush1.msra.mxu0 0.0
        %1200 = vmatprep.subr.mxu0 0.0
        %1201 = vmatpush1.msra.mxu0 0.0
        %1202 = vmatprep.subr.mxu0 0.0
        %1203 = vmatpush1.msra.mxu0 0.0
        %1204 = vmatprep.subr.mxu0 0.0
        %1205 = vmatpush1.msra.mxu0 0.0
        %1206 = vmatprep.subr.mxu0 0.0
        %1207 = vmatpush1.msra.mxu0 0.0
        %1208 = vmatprep.subr.mxu0 0.0
        %1209 = vmatpush1.msra.mxu0 0.0
        %1210 = vmatprep.subr.mxu0 0.0
        %1211 = vmatpush1.msra.mxu0 0.0
        %1212 = vmatprep.subr.mxu0 0.0
        %1213 = vmatpush1.msra.mxu0 0.0
        %1214 = vmatprep.subr.mxu0 0.0
        %1215 = vmatpush1.msra.mxu0 0.0
        %1216 = vmatprep.subr.mxu0 0.0
        %1217 = vmatpush1.msra.mxu0 0.0
        %1218 = vmatprep.subr.mxu0 0.0
        %1219 = vmatpush1.msra.mxu0 0.0
        %1220 = vmatprep.subr.mxu0 0.0
        %1221 = vmatpush1.msra.mxu0 0.0
        %1222 = vmatprep.subr.mxu0 0.0
        %1223 = vmatpush1.msra.mxu0 0.0
        %1224 = vmatprep.subr.mxu0 0.0
        %1225 = vmatpush1.msra.mxu0 %v1189
        %1226 = vmatprep.subr.mxu0 0.0
        %1227 = vmatpush2.msra.mxu0 0.0
        %1228 = vmatprep.subr.mxu0 0.0
        %1229 = vmatpush2.msra.mxu0 0.0
        %1230 = vmatprep.subr.mxu0 0.0
        %1231 = vmatpush2.msra.mxu0 0.0
        %1232 = vmatprep.subr.mxu0 0.0
        %1233 = vmatpush2.msra.mxu0 0.0
        %1234 = vmatprep.subr.mxu0 0.0
        %1235 = vmatpush2.msra.mxu0 0.0
        %1236 = vmatprep.subr.mxu0 0.0
        %1237 = vmatpush2.msra.mxu0 0.0
        %1238 = vmatprep.subr.mxu0 0.0
        %1239 = vmatpush2.msra.mxu0 0.0
        %1240 = vmatprep.subr.mxu0 0.0
        %1241 = vmatpush2.msra.mxu0 0.0
        %1242 = vmatprep.subr.mxu0 0.0
        %1243 = vmatpush2.msra.mxu0 0.0
        %1244 = vmatprep.subr.mxu0 0.0
        %1245 = vmatpush2.msra.mxu0 0.0
        %1246 = vmatprep.subr.mxu0 0.0
        %1247 = vmatpush2.msra.mxu0 0.0
        %1248 = vmatprep.subr.mxu0 0.0
        %1249 = vmatpush2.msra.mxu0 0.0
        %1250 = vmatprep.subr.mxu0 0.0
        %1251 = vmatpush2.msra.mxu0 0.0
        %1252 = vmatprep.subr.mxu0 0.0
        %1253 = vmatpush2.msra.mxu0 0.0
        %1254 = vmatprep.subr.mxu0 0.0
        %1255 = vmatpush2.msra.mxu0 0.0
        %1256 = vmatprep.subr.mxu0 0.0
        %1257 = vmatpush2.msra.mxu0 0.0
        %1258 = vmatprep.mubr.f32.mxu0 0.0
        %1259 = vmatmul.mubr.f32.gmra.mxu0 %v1192
        %v1260 = vpop.f32.mrf.mxu0
        %v1261 = vadd.f32 0.0, %v1260
        %v1262 = vpop.f32.mrf.mxu0
        %1263 = vdwg.mxu0
        %1265 = vrot.lane.b32.xlu0 %v747, 32
        %v1266 = vpop.permute.xlu0 %1265
        %v1269 = vsel %vm858, %v1019, 0
        %1271 = vmatprep.subr.mxu0 0.0
        %1272 = vmatpush1.msra.mxu0 0.0
        %1273 = vmatprep.subr.mxu0 0.0
        %1274 = vmatpush1.msra.mxu0 0.0
        %1275 = vmatprep.subr.mxu0 0.0
        %1276 = vmatpush1.msra.mxu0 0.0
        %1277 = vmatprep.subr.mxu0 0.0
        %1278 = vmatpush1.msra.mxu0 0.0
        %1279 = vmatprep.subr.mxu0 0.0
        %1280 = vmatpush1.msra.mxu0 0.0
        %1281 = vmatprep.subr.mxu0 0.0
        %1282 = vmatpush1.msra.mxu0 0.0
        %1283 = vmatprep.subr.mxu0 0.0
        %1284 = vmatpush1.msra.mxu0 0.0
        %1285 = vmatprep.subr.mxu0 0.0
        %1286 = vmatpush1.msra.mxu0 0.0
        %1287 = vmatprep.subr.mxu0 0.0
        %1288 = vmatpush1.msra.mxu0 0.0
        %1289 = vmatprep.subr.mxu0 0.0
        %1290 = vmatpush1.msra.mxu0 0.0
        %1291 = vmatprep.subr.mxu0 0.0
        %1292 = vmatpush1.msra.mxu0 0.0
        %1293 = vmatprep.subr.mxu0 0.0
        %1294 = vmatpush1.msra.mxu0 0.0
        %1295 = vmatprep.subr.mxu0 0.0
        %1296 = vmatpush1.msra.mxu0 0.0
        %1297 = vmatprep.subr.mxu0 0.0
        %1298 = vmatpush1.msra.mxu0 0.0
        %1299 = vmatprep.subr.mxu0 0.0
        %1300 = vmatpush1.msra.mxu0 0.0
        %1301 = vmatprep.subr.mxu0 0.0
        %1302 = vmatpush1.msra.mxu0 %v1266
        %1303 = vmatprep.subr.mxu0 0.0
        %1304 = vmatpush2.msra.mxu0 0.0
        %1305 = vmatprep.subr.mxu0 0.0
        %1306 = vmatpush2.msra.mxu0 0.0
        %1307 = vmatprep.subr.mxu0 0.0
        %1308 = vmatpush2.msra.mxu0 0.0
        %1309 = vmatprep.subr.mxu0 0.0
        %1310 = vmatpush2.msra.mxu0 0.0
        %1311 = vmatprep.subr.mxu0 0.0
        %1312 = vmatpush2.msra.mxu0 0.0
        %1313 = vmatprep.subr.mxu0 0.0
        %1314 = vmatpush2.msra.mxu0 0.0
        %1315 = vmatprep.subr.mxu0 0.0
        %1316 = vmatpush2.msra.mxu0 0.0
        %1317 = vmatprep.subr.mxu0 0.0
        %1318 = vmatpush2.msra.mxu0 0.0
        %1319 = vmatprep.subr.mxu0 0.0
        %1320 = vmatpush2.msra.mxu0 0.0
        %1321 = vmatprep.subr.mxu0 0.0
        %1322 = vmatpush2.msra.mxu0 0.0
        %1323 = vmatprep.subr.mxu0 0.0
        %1324 = vmatpush2.msra.mxu0 0.0
        %1325 = vmatprep.subr.mxu0 0.0
        %1326 = vmatpush2.msra.mxu0 0.0
        %1327 = vmatprep.subr.mxu0 0.0
        %1328 = vmatpush2.msra.mxu0 0.0
        %1329 = vmatprep.subr.mxu0 0.0
        %1330 = vmatpush2.msra.mxu0 0.0
        %1331 = vmatprep.subr.mxu0 0.0
        %1332 = vmatpush2.msra.mxu0 0.0
        %1333 = vmatprep.subr.mxu0 0.0
        %1334 = vmatpush2.msra.mxu0 0.0
        %1335 = vmatprep.mubr.f32.mxu0 0.0
        %1336 = vmatmul.mubr.f32.gmra.mxu0 %v1269
        %v1337 = vpop.f32.mrf.mxu0
        %v1338 = vadd.f32 %v1261, %v1337
        %v1339 = vpop.f32.mrf.mxu0
        %1340 = vdwg.mxu0
        %1341 = vrot.lane.b32.xlu0 %v854, 112
        %v1342 = vpop.permute.xlu0 %1341
        %1343 = vrot.lane.b32.xlu0 %v844, 80
        %v1344 = vpop.permute.xlu0 %1343
        %v1345 = vsel %vm858, %v1342, 0
        %v1347 = vsel %vm858, %v1344, 0
        %1349 = vmatprep.subr.mxu0 0.0
        %1350 = vmatpush1.xpose.msra.mxu0 0.0
        %1351 = vmatprep.subr.mxu0 0.0
        %1352 = vmatpush1.xpose.msra.mxu0 0.0
        %1353 = vmatprep.subr.mxu0 0.0
        %1354 = vmatpush1.xpose.msra.mxu0 0.0
        %1355 = vmatprep.subr.mxu0 0.0
        %1356 = vmatpush1.xpose.msra.mxu0 0.0
        %1357 = vmatprep.subr.mxu0 0.0
        %1358 = vmatpush1.xpose.msra.mxu0 0.0
        %1359 = vmatprep.subr.mxu0 0.0
        %1360 = vmatpush1.xpose.msra.mxu0 0.0
        %1361 = vmatprep.subr.mxu0 0.0
        %1362 = vmatpush1.xpose.msra.mxu0 0.0
        %1363 = vmatprep.subr.mxu0 0.0
        %1364 = vmatpush1.xpose.msra.mxu0 0.0
        %1365 = vmatprep.subr.mxu0 0.0
        %1366 = vmatpush1.xpose.msra.mxu0 0.0
        %1367 = vmatprep.subr.mxu0 0.0
        %1368 = vmatpush1.xpose.msra.mxu0 0.0
        %1369 = vmatprep.subr.mxu0 0.0
        %1370 = vmatpush1.xpose.msra.mxu0 0.0
        %1371 = vmatprep.subr.mxu0 0.0
        %1372 = vmatpush1.xpose.msra.mxu0 0.0
        %1373 = vmatprep.subr.mxu0 0.0
        %1374 = vmatpush1.xpose.msra.mxu0 0.0
        %1375 = vmatprep.subr.mxu0 0.0
        %1376 = vmatpush1.xpose.msra.mxu0 0.0
        %1377 = vmatprep.subr.mxu0 0.0
        %1378 = vmatpush1.xpose.msra.mxu0 0.0
        %1379 = vmatprep.subr.mxu0 0.0
        %1380 = vmatpush1.xpose.msra.mxu0 %v1347
        %1381 = vmatprep.subr.mxu0 0.0
        %1382 = vmatpush2.xpose.msra.mxu0 0.0
        %1383 = vmatprep.subr.mxu0 0.0
        %1384 = vmatpush2.xpose.msra.mxu0 0.0
        %1385 = vmatprep.subr.mxu0 0.0
        %1386 = vmatpush2.xpose.msra.mxu0 0.0
        %1387 = vmatprep.subr.mxu0 0.0
        %1388 = vmatpush2.xpose.msra.mxu0 0.0
        %1389 = vmatprep.subr.mxu0 0.0
        %1390 = vmatpush2.xpose.msra.mxu0 0.0
        %1391 = vmatprep.subr.mxu0 0.0
        %1392 = vmatpush2.xpose.msra.mxu0 0.0
        %1393 = vmatprep.subr.mxu0 0.0
        %1394 = vmatpush2.xpose.msra.mxu0 0.0
        %1395 = vmatprep.subr.mxu0 0.0
        %1396 = vmatpush2.xpose.msra.mxu0 0.0
        %1397 = vmatprep.subr.mxu0 0.0
        %1398 = vmatpush2.xpose.msra.mxu0 0.0
        %1399 = vmatprep.subr.mxu0 0.0
        %1400 = vmatpush2.xpose.msra.mxu0 0.0
        %1401 = vmatprep.subr.mxu0 0.0
        %1402 = vmatpush2.xpose.msra.mxu0 0.0
        %1403 = vmatprep.subr.mxu0 0.0
        %1404 = vmatpush2.xpose.msra.mxu0 0.0
        %1405 = vmatprep.subr.mxu0 0.0
        %1406 = vmatpush2.xpose.msra.mxu0 0.0
        %1407 = vmatprep.subr.mxu0 0.0
        %1408 = vmatpush2.xpose.msra.mxu0 0.0
        %1409 = vmatprep.subr.mxu0 0.0
        %1410 = vmatpush2.xpose.msra.mxu0 0.0
        %1411 = vmatprep.subr.mxu0 0.0
        %1412 = vmatpush2.xpose.msra.mxu0 0.0
        %1413 = vmatprep.mubr.f32.mxu0 0.0
        %1414 = vmatmul.mubr.f32.gmra.mxu0 %v1345
        %v1415 = vpop.f32.mrf.mxu0
        %v1416 = vadd.f32 %v570, %v1415
        %v1417 = vpop.f32.mrf.mxu0
        %1418 = vdwg.mxu0
        %v1419 = vsel %vm858, %v1416, -inf
        %1420 = vmax.xlane.f32.xlu0 %v1419
        %v1421 = vpop.xlane.xlu0 %1420
        %v1422 = vsub.f32 %v1416, %v1421
        %v1423 = vmul.f32 %v1422, 1.442695
        %v1424 = vpow.pop %v1423
        %v1425 = vsel %vm858, %v1424, 0.0
        %1426 = vadd.xlane.f32.xlu0 %v1425
        %v1427 = vpop.xlane.xlu0 %1426
        %v1428 = vrcp.pop %v1427
        %v1429 = vmul.f32 %v1424, %v1428
        %1430 = vrot.lane.b32.xlu0 %v853, 48
        %v1431 = vpop.permute.xlu0 %1430
        %v1434 = vsel %vm858, %v1429, 0
        %1436 = vmatprep.subr.mxu0 0.0
        %1437 = vmatpush1.msra.mxu0 0.0
        %1438 = vmatprep.subr.mxu0 0.0
        %1439 = vmatpush1.msra.mxu0 0.0
        %1440 = vmatprep.subr.mxu0 0.0
        %1441 = vmatpush1.msra.mxu0 0.0
        %1442 = vmatprep.subr.mxu0 0.0
        %1443 = vmatpush1.msra.mxu0 0.0
        %1444 = vmatprep.subr.mxu0 0.0
        %1445 = vmatpush1.msra.mxu0 0.0
        %1446 = vmatprep.subr.mxu0 0.0
        %1447 = vmatpush1.msra.mxu0 0.0
        %1448 = vmatprep.subr.mxu0 0.0
        %1449 = vmatpush1.msra.mxu0 0.0
        %1450 = vmatprep.subr.mxu0 0.0
        %1451 = vmatpush1.msra.mxu0 0.0
        %1452 = vmatprep.subr.mxu0 0.0
        %1453 = vmatpush1.msra.mxu0 0.0
        %1454 = vmatprep.subr.mxu0 0.0
        %1455 = vmatpush1.msra.mxu0 0.0
        %1456 = vmatprep.subr.mxu0 0.0
        %1457 = vmatpush1.msra.mxu0 0.0
        %1458 = vmatprep.subr.mxu0 0.0
        %1459 = vmatpush1.msra.mxu0 0.0
        %1460 = vmatprep.subr.mxu0 0.0
        %1461 = vmatpush1.msra.mxu0 0.0
        %1462 = vmatprep.subr.mxu0 0.0
        %1463 = vmatpush1.msra.mxu0 0.0
        %1464 = vmatprep.subr.mxu0 0.0
        %1465 = vmatpush1.msra.mxu0 0.0
        %1466 = vmatprep.subr.mxu0 0.0
        %1467 = vmatpush1.msra.mxu0 %v1431
        %1468 = vmatprep.subr.mxu0 0.0
        %1469 = vmatpush2.msra.mxu0 0.0
        %1470 = vmatprep.subr.mxu0 0.0
        %1471 = vmatpush2.msra.mxu0 0.0
        %1472 = vmatprep.subr.mxu0 0.0
        %1473 = vmatpush2.msra.mxu0 0.0
        %1474 = vmatprep.subr.mxu0 0.0
        %1475 = vmatpush2.msra.mxu0 0.0
        %1476 = vmatprep.subr.mxu0 0.0
        %1477 = vmatpush2.msra.mxu0 0.0
        %1478 = vmatprep.subr.mxu0 0.0
        %1479 = vmatpush2.msra.mxu0 0.0
        %1480 = vmatprep.subr.mxu0 0.0
        %1481 = vmatpush2.msra.mxu0 0.0
        %1482 = vmatprep.subr.mxu0 0.0
        %1483 = vmatpush2.msra.mxu0 0.0
        %1484 = vmatprep.subr.mxu0 0.0
        %1485 = vmatpush2.msra.mxu0 0.0
        %1486 = vmatprep.subr.mxu0 0.0
        %1487 = vmatpush2.msra.mxu0 0.0
        %1488 = vmatprep.subr.mxu0 0.0
        %1489 = vmatpush2.msra.mxu0 0.0
        %1490 = vmatprep.subr.mxu0 0.0
        %1491 = vmatpush2.msra.mxu0 0.0
        %1492 = vmatprep.subr.mxu0 0.0
        %1493 = vmatpush2.msra.mxu0 0.0
        %1494 = vmatprep.subr.mxu0 0.0
        %1495 = vmatpush2.msra.mxu0 0.0
        %1496 = vmatprep.subr.mxu0 0.0
        %1497 = vmatpush2.msra.mxu0 0.0
        %1498 = vmatprep.subr.mxu0 0.0
        %1499 = vmatpush2.msra.mxu0 0.0
        %1500 = vmatprep.mubr.f32.mxu0 0.0
        %1501 = vmatmul.mubr.f32.gmra.mxu0 %v1434
        %v1502 = vpop.f32.mrf.mxu0
        %v1503 = vadd.f32 0.0, %v1502
        %v1504 = vpop.f32.mrf.mxu0
        %1505 = vdwg.mxu0
        %1507 = vrot.lane.b32.xlu0 %v751, 32
        %v1508 = vpop.permute.xlu0 %1507
        %v1511 = vsel %vm858, %v1503, 0
        %1513 = vmatprep.subr.mxu0 0.0
        %1514 = vmatpush1.msra.mxu0 0.0
        %1515 = vmatprep.subr.mxu0 0.0
        %1516 = vmatpush1.msra.mxu0 0.0
        %1517 = vmatprep.subr.mxu0 0.0
        %1518 = vmatpush1.msra.mxu0 0.0
        %1519 = vmatprep.subr.mxu0 0.0
        %1520 = vmatpush1.msra.mxu0 0.0
        %1521 = vmatprep.subr.mxu0 0.0
        %1522 = vmatpush1.msra.mxu0 0.0
        %1523 = vmatprep.subr.mxu0 0.0
        %1524 = vmatpush1.msra.mxu0 0.0
        %1525 = vmatprep.subr.mxu0 0.0
        %1526 = vmatpush1.msra.mxu0 0.0
        %1527 = vmatprep.subr.mxu0 0.0
        %1528 = vmatpush1.msra.mxu0 0.0
        %1529 = vmatprep.subr.mxu0 0.0
        %1530 = vmatpush1.msra.mxu0 0.0
        %1531 = vmatprep.subr.mxu0 0.0
        %1532 = vmatpush1.msra.mxu0 0.0
        %1533 = vmatprep.subr.mxu0 0.0
        %1534 = vmatpush1.msra.mxu0 0.0
        %1535 = vmatprep.subr.mxu0 0.0
        %1536 = vmatpush1.msra.mxu0 0.0
        %1537 = vmatprep.subr.mxu0 0.0
        %1538 = vmatpush1.msra.mxu0 0.0
        %1539 = vmatprep.subr.mxu0 0.0
        %1540 = vmatpush1.msra.mxu0 0.0
        %1541 = vmatprep.subr.mxu0 0.0
        %1542 = vmatpush1.msra.mxu0 0.0
        %1543 = vmatprep.subr.mxu0 0.0
        %1544 = vmatpush1.msra.mxu0 %v1508
        %1545 = vmatprep.subr.mxu0 0.0
        %1546 = vmatpush2.msra.mxu0 0.0
        %1547 = vmatprep.subr.mxu0 0.0
        %1548 = vmatpush2.msra.mxu0 0.0
        %1549 = vmatprep.subr.mxu0 0.0
        %1550 = vmatpush2.msra.mxu0 0.0
        %1551 = vmatprep.subr.mxu0 0.0
        %1552 = vmatpush2.msra.mxu0 0.0
        %1553 = vmatprep.subr.mxu0 0.0
        %1554 = vmatpush2.msra.mxu0 0.0
        %1555 = vmatprep.subr.mxu0 0.0
        %1556 = vmatpush2.msra.mxu0 0.0
        %1557 = vmatprep.subr.mxu0 0.0
        %1558 = vmatpush2.msra.mxu0 0.0
        %1559 = vmatprep.subr.mxu0 0.0
        %1560 = vmatpush2.msra.mxu0 0.0
        %1561 = vmatprep.subr.mxu0 0.0
        %1562 = vmatpush2.msra.mxu0 0.0
        %1563 = vmatprep.subr.mxu0 0.0
        %1564 = vmatpush2.msra.mxu0 0.0
        %1565 = vmatprep.subr.mxu0 0.0
        %1566 = vmatpush2.msra.mxu0 0.0
        %1567 = vmatprep.subr.mxu0 0.0
        %1568 = vmatpush2.msra.mxu0 0.0
        %1569 = vmatprep.subr.mxu0 0.0
        %1570 = vmatpush2.msra.mxu0 0.0
        %1571 = vmatprep.subr.mxu0 0.0
        %1572 = vmatpush2.msra.mxu0 0.0
        %1573 = vmatprep.subr.mxu0 0.0
        %1574 = vmatpush2.msra.mxu0 0.0
        %1575 = vmatprep.subr.mxu0 0.0
        %1576 = vmatpush2.msra.mxu0 0.0
        %1577 = vmatprep.mubr.f32.mxu0 0.0
        %1578 = vmatmul.mubr.f32.gmra.mxu0 %v1511
        %v1579 = vpop.f32.mrf.mxu0
        %v1580 = vadd.f32 0.0, %v1579
        %v1581 = vpop.f32.mrf.mxu0
        %1582 = vdwg.mxu0
        %v1583 = vadd.f32 %v1338, %v1580
        %1584 = vrot.lane.b32.xlu0 %v854, 104
        %v1585 = vpop.permute.xlu0 %1584
        %1586 = vrot.lane.b32.xlu0 %v844, 72
        %v1587 = vpop.permute.xlu0 %1586
        %v1588 = vsel %vm858, %v1585, 0
        %v1590 = vsel %vm858, %v1587, 0
        %1592 = vmatprep.subr.mxu0 0.0
        %1593 = vmatpush1.xpose.msra.mxu0 0.0
        %1594 = vmatprep.subr.mxu0 0.0
        %1595 = vmatpush1.xpose.msra.mxu0 0.0
        %1596 = vmatprep.subr.mxu0 0.0
        %1597 = vmatpush1.xpose.msra.mxu0 0.0
        %1598 = vmatprep.subr.mxu0 0.0
        %1599 = vmatpush1.xpose.msra.mxu0 0.0
        %1600 = vmatprep.subr.mxu0 0.0
        %1601 = vmatpush1.xpose.msra.mxu0 0.0
        %1602 = vmatprep.subr.mxu0 0.0
        %1603 = vmatpush1.xpose.msra.mxu0 0.0
        %1604 = vmatprep.subr.mxu0 0.0
        %1605 = vmatpush1.xpose.msra.mxu0 0.0
        %1606 = vmatprep.subr.mxu0 0.0
        %1607 = vmatpush1.xpose.msra.mxu0 0.0
        %1608 = vmatprep.subr.mxu0 0.0
        %1609 = vmatpush1.xpose.msra.mxu0 0.0
        %1610 = vmatprep.subr.mxu0 0.0
        %1611 = vmatpush1.xpose.msra.mxu0 0.0
        %1612 = vmatprep.subr.mxu0 0.0
        %1613 = vmatpush1.xpose.msra.mxu0 0.0
        %1614 = vmatprep.subr.mxu0 0.0
        %1615 = vmatpush1.xpose.msra.mxu0 0.0
        %1616 = vmatprep.subr.mxu0 0.0
        %1617 = vmatpush1.xpose.msra.mxu0 0.0
        %1618 = vmatprep.subr.mxu0 0.0
        %1619 = vmatpush1.xpose.msra.mxu0 0.0
        %1620 = vmatprep.subr.mxu0 0.0
        %1621 = vmatpush1.xpose.msra.mxu0 0.0
        %1622 = vmatprep.subr.mxu0 0.0
        %1623 = vmatpush1.xpose.msra.mxu0 %v1590
        %1624 = vmatprep.subr.mxu0 0.0
        %1625 = vmatpush2.xpose.msra.mxu0 0.0
        %1626 = vmatprep.subr.mxu0 0.0
        %1627 = vmatpush2.xpose.msra.mxu0 0.0
        %1628 = vmatprep.subr.mxu0 0.0
        %1629 = vmatpush2.xpose.msra.mxu0 0.0
        %1630 = vmatprep.subr.mxu0 0.0
        %1631 = vmatpush2.xpose.msra.mxu0 0.0
        %1632 = vmatprep.subr.mxu0 0.0
        %1633 = vmatpush2.xpose.msra.mxu0 0.0
        %1634 = vmatprep.subr.mxu0 0.0
        %1635 = vmatpush2.xpose.msra.mxu0 0.0
        %1636 = vmatprep.subr.mxu0 0.0
        %1637 = vmatpush2.xpose.msra.mxu0 0.0
        %1638 = vmatprep.subr.mxu0 0.0
        %1639 = vmatpush2.xpose.msra.mxu0 0.0
        %1640 = vmatprep.subr.mxu0 0.0
        %1641 = vmatpush2.xpose.msra.mxu0 0.0
        %1642 = vmatprep.subr.mxu0 0.0
        %1643 = vmatpush2.xpose.msra.mxu0 0.0
        %1644 = vmatprep.subr.mxu0 0.0
        %1645 = vmatpush2.xpose.msra.mxu0 0.0
        %1646 = vmatprep.subr.mxu0 0.0
        %1647 = vmatpush2.xpose.msra.mxu0 0.0
        %1648 = vmatprep.subr.mxu0 0.0
        %1649 = vmatpush2.xpose.msra.mxu0 0.0
        %1650 = vmatprep.subr.mxu0 0.0
        %1651 = vmatpush2.xpose.msra.mxu0 0.0
        %1652 = vmatprep.subr.mxu0 0.0
        %1653 = vmatpush2.xpose.msra.mxu0 0.0
        %1654 = vmatprep.subr.mxu0 0.0
        %1655 = vmatpush2.xpose.msra.mxu0 0.0
        %1656 = vmatprep.mubr.f32.mxu0 0.0
        %1657 = vmatmul.mubr.f32.gmra.mxu0 %v1588
        %v1658 = vpop.f32.mrf.mxu0
        %v1659 = vadd.f32 %v570, %v1658
        %v1660 = vpop.f32.mrf.mxu0
        %1661 = vdwg.mxu0
        %v1662 = vsel %vm858, %v1659, -inf
        %1663 = vmax.xlane.f32.xlu0 %v1662
        %v1664 = vpop.xlane.xlu0 %1663
        %v1665 = vsub.f32 %v1659, %v1664
        %v1666 = vmul.f32 %v1665, 1.442695
        %v1667 = vpow.pop %v1666
        %v1668 = vsel %vm858, %v1667, 0.0
        %1669 = vadd.xlane.f32.xlu0 %v1668
        %v1670 = vpop.xlane.xlu0 %1669
        %v1671 = vrcp.pop %v1670
        %v1672 = vmul.f32 %v1667, %v1671
        %1673 = vrot.lane.b32.xlu0 %v853, 40
        %v1674 = vpop.permute.xlu0 %1673
        %v1677 = vsel %vm858, %v1672, 0
        %1679 = vmatprep.subr.mxu0 0.0
        %1680 = vmatpush1.msra.mxu0 0.0
        %1681 = vmatprep.subr.mxu0 0.0
        %1682 = vmatpush1.msra.mxu0 0.0
        %1683 = vmatprep.subr.mxu0 0.0
        %1684 = vmatpush1.msra.mxu0 0.0
        %1685 = vmatprep.subr.mxu0 0.0
        %1686 = vmatpush1.msra.mxu0 0.0
        %1687 = vmatprep.subr.mxu0 0.0
        %1688 = vmatpush1.msra.mxu0 0.0
        %1689 = vmatprep.subr.mxu0 0.0
        %1690 = vmatpush1.msra.mxu0 0.0
        %1691 = vmatprep.subr.mxu0 0.0
        %1692 = vmatpush1.msra.mxu0 0.0
        %1693 = vmatprep.subr.mxu0 0.0
        %1694 = vmatpush1.msra.mxu0 0.0
        %1695 = vmatprep.subr.mxu0 0.0
        %1696 = vmatpush1.msra.mxu0 0.0
        %1697 = vmatprep.subr.mxu0 0.0
        %1698 = vmatpush1.msra.mxu0 0.0
        %1699 = vmatprep.subr.mxu0 0.0
        %1700 = vmatpush1.msra.mxu0 0.0
        %1701 = vmatprep.subr.mxu0 0.0
        %1702 = vmatpush1.msra.mxu0 0.0
        %1703 = vmatprep.subr.mxu0 0.0
        %1704 = vmatpush1.msra.mxu0 0.0
        %1705 = vmatprep.subr.mxu0 0.0
        %1706 = vmatpush1.msra.mxu0 0.0
        %1707 = vmatprep.subr.mxu0 0.0
        %1708 = vmatpush1.msra.mxu0 0.0
        %1709 = vmatprep.subr.mxu0 0.0
        %1710 = vmatpush1.msra.mxu0 %v1674
        %1711 = vmatprep.subr.mxu0 0.0
        %1712 = vmatpush2.msra.mxu0 0.0
        %1713 = vmatprep.subr.mxu0 0.0
        %1714 = vmatpush2.msra.mxu0 0.0
        %1715 = vmatprep.subr.mxu0 0.0
        %1716 = vmatpush2.msra.mxu0 0.0
        %1717 = vmatprep.subr.mxu0 0.0
        %1718 = vmatpush2.msra.mxu0 0.0
        %1719 = vmatprep.subr.mxu0 0.0
        %1720 = vmatpush2.msra.mxu0 0.0
        %1721 = vmatprep.subr.mxu0 0.0
        %1722 = vmatpush2.msra.mxu0 0.0
        %1723 = vmatprep.subr.mxu0 0.0
        %1724 = vmatpush2.msra.mxu0 0.0
        %1725 = vmatprep.subr.mxu0 0.0
        %1726 = vmatpush2.msra.mxu0 0.0
        %1727 = vmatprep.subr.mxu0 0.0
        %1728 = vmatpush2.msra.mxu0 0.0
        %1729 = vmatprep.subr.mxu0 0.0
        %1730 = vmatpush2.msra.mxu0 0.0
        %1731 = vmatprep.subr.mxu0 0.0
        %1732 = vmatpush2.msra.mxu0 0.0
        %1733 = vmatprep.subr.mxu0 0.0
        %1734 = vmatpush2.msra.mxu0 0.0
        %1735 = vmatprep.subr.mxu0 0.0
        %1736 = vmatpush2.msra.mxu0 0.0
        %1737 = vmatprep.subr.mxu0 0.0
        %1738 = vmatpush2.msra.mxu0 0.0
        %1739 = vmatprep.subr.mxu0 0.0
        %1740 = vmatpush2.msra.mxu0 0.0
        %1741 = vmatprep.subr.mxu0 0.0
        %1742 = vmatpush2.msra.mxu0 0.0
        %1743 = vmatprep.mubr.f32.mxu0 0.0
        %1744 = vmatmul.mubr.f32.gmra.mxu0 %v1677
        %v1745 = vpop.f32.mrf.mxu0
        %v1746 = vadd.f32 0.0, %v1745
        %v1747 = vpop.f32.mrf.mxu0
        %1748 = vdwg.mxu0
        %1750 = vrot.lane.b32.xlu0 %v753, 32
        %v1751 = vpop.permute.xlu0 %1750
        %v1754 = vsel %vm858, %v1746, 0
        %1756 = vmatprep.subr.mxu0 0.0
        %1757 = vmatpush1.msra.mxu0 0.0
        %1758 = vmatprep.subr.mxu0 0.0
        %1759 = vmatpush1.msra.mxu0 0.0
        %1760 = vmatprep.subr.mxu0 0.0
        %1761 = vmatpush1.msra.mxu0 0.0
        %1762 = vmatprep.subr.mxu0 0.0
        %1763 = vmatpush1.msra.mxu0 0.0
        %1764 = vmatprep.subr.mxu0 0.0
        %1765 = vmatpush1.msra.mxu0 0.0
        %1766 = vmatprep.subr.mxu0 0.0
        %1767 = vmatpush1.msra.mxu0 0.0
        %1768 = vmatprep.subr.mxu0 0.0
        %1769 = vmatpush1.msra.mxu0 0.0
        %1770 = vmatprep.subr.mxu0 0.0
        %1771 = vmatpush1.msra.mxu0 0.0
        %1772 = vmatprep.subr.mxu0 0.0
        %1773 = vmatpush1.msra.mxu0 0.0
        %1774 = vmatprep.subr.mxu0 0.0
        %1775 = vmatpush1.msra.mxu0 0.0
        %1776 = vmatprep.subr.mxu0 0.0
        %1777 = vmatpush1.msra.mxu0 0.0
        %1778 = vmatprep.subr.mxu0 0.0
        %1779 = vmatpush1.msra.mxu0 0.0
        %1780 = vmatprep.subr.mxu0 0.0
        %1781 = vmatpush1.msra.mxu0 0.0
        %1782 = vmatprep.subr.mxu0 0.0
        %1783 = vmatpush1.msra.mxu0 0.0
        %1784 = vmatprep.subr.mxu0 0.0
        %1785 = vmatpush1.msra.mxu0 0.0
        %1786 = vmatprep.subr.mxu0 0.0
        %1787 = vmatpush1.msra.mxu0 %v1751
        %1788 = vmatprep.subr.mxu0 0.0
        %1789 = vmatpush2.msra.mxu0 0.0
        %1790 = vmatprep.subr.mxu0 0.0
        %1791 = vmatpush2.msra.mxu0 0.0
        %1792 = vmatprep.subr.mxu0 0.0
        %1793 = vmatpush2.msra.mxu0 0.0
        %1794 = vmatprep.subr.mxu0 0.0
        %1795 = vmatpush2.msra.mxu0 0.0
        %1796 = vmatprep.subr.mxu0 0.0
        %1797 = vmatpush2.msra.mxu0 0.0
        %1798 = vmatprep.subr.mxu0 0.0
        %1799 = vmatpush2.msra.mxu0 0.0
        %1800 = vmatprep.subr.mxu0 0.0
        %1801 = vmatpush2.msra.mxu0 0.0
        %1802 = vmatprep.subr.mxu0 0.0
        %1803 = vmatpush2.msra.mxu0 0.0
        %1804 = vmatprep.subr.mxu0 0.0
        %1805 = vmatpush2.msra.mxu0 0.0
        %1806 = vmatprep.subr.mxu0 0.0
        %1807 = vmatpush2.msra.mxu0 0.0
        %1808 = vmatprep.subr.mxu0 0.0
        %1809 = vmatpush2.msra.mxu0 0.0
        %1810 = vmatprep.subr.mxu0 0.0
        %1811 = vmatpush2.msra.mxu0 0.0
        %1812 = vmatprep.subr.mxu0 0.0
        %1813 = vmatpush2.msra.mxu0 0.0
        %1814 = vmatprep.subr.mxu0 0.0
        %1815 = vmatpush2.msra.mxu0 0.0
        %1816 = vmatprep.subr.mxu0 0.0
        %1817 = vmatpush2.msra.mxu0 0.0
        %1818 = vmatprep.subr.mxu0 0.0
        %1819 = vmatpush2.msra.mxu0 0.0
        %1820 = vmatprep.mubr.f32.mxu0 0.0
        %1821 = vmatmul.mubr.f32.gmra.mxu0 %v1754
        %v1822 = vpop.f32.mrf.mxu0
        %v1823 = vadd.f32 0.0, %v1822
        %v1824 = vpop.f32.mrf.mxu0
        %1825 = vdwg.mxu0
        %v1826 = vadd.f32 %v1583, %v1823
        %v1827 = vlaneseq
        %v1828 = vshrl.u32 %v1827, 7
        %v1829 = vsub.s32 3, %v1828
        %v1830 = vrot.slane %v755, %v1829
        %v1831 = vadd.f32 %v1826, %v1830
        %v1832 = vadd.f32 %v1831, %v746
        %v1833 = vsel %vm757, %v1832, 0.0
        %1834 = vadd.xlane.f32.xlu0 %v1833
        %v1835 = vpop.xlane.xlu0 %1834
        %v1836 = vrcp.pop 32.0
        %v1837 = vmul.f32 %v1835, %v1836
        %v1838 = vsub.f32 %v1832, %v1837
        %v1839 = vmul.f32 %v1838, %v1838
        %v1840 = vsel %vm757, %v1839, 0.0
        %1841 = vadd.xlane.f32.xlu0 %v1840
        %v1842 = vpop.xlane.xlu0 %1841
        %v1843 = vmul.f32 %v1842, %v1836
        %v1844 = vadd.f32 %v1843, 1e-05
        %v1845 = vrsqrt.pop %v1844
        %v1846 = vmul.f32 %v1838, %v1845
        %v1847 = vlaneseq
        %v1848 = vshrl.u32 %v1847, 7
        %v1849 = vsub.s32 6, %v1848
        %v1850 = vrot.slane %v755, %v1849
        %v1851 = vmul.f32 %v1846, %v1850
        %v1852 = vlaneseq
        %v1853 = vshrl.u32 %v1852, 7
        %v1854 = vsub.s32 7, %v1853
        %v1855 = vrot.slane %v755, %v1854
        %v1856 = vadd.f32 %v1851, %v1855
        %v1857 = vlaneseq
        %v1858 = vshrl.u32 %v1857, 7
        %v1859 = vsub.s32 4, %v1858
        %v1860 = vrot.slane %v755, %v1859
        %v1862 = vsel %vm757, %v1856, 0
        %1864 = vmatprep.subr.mxu0 0.0
        %1865 = vmatpush1.msra.mxu0 0.0
        %1866 = vmatprep.subr.mxu0 0.0
        %1867 = vmatpush1.msra.mxu0 0.0
        %1868 = vmatprep.subr.mxu0 0.0
        %1869 = vmatpush1.msra.mxu0 0.0
        %1870 = vmatprep.subr.mxu0 0.0
        %1871 = vmatpush1.msra.mxu0 0.0
        %1872 = vmatprep.subr.mxu0 0.0
        %1873 = vmatpush1.msra.mxu0 0.0
        %1874 = vmatprep.subr.mxu0 0.0
        %1875 = vmatpush1.msra.mxu0 0.0
        %1876 = vmatprep.subr.mxu0 0.0
        %1877 = vmatpush1.msra.mxu0 0.0
        %1878 = vmatprep.subr.mxu0 0.0
        %1879 = vmatpush1.msra.mxu0 0.0
        %1880 = vmatprep.subr.mxu0 0.0
        %1881 = vmatpush1.msra.mxu0 0.0
        %1882 = vmatprep.subr.mxu0 0.0
        %1883 = vmatpush1.msra.mxu0 0.0
        %1884 = vmatprep.subr.mxu0 0.0
        %1885 = vmatpush1.msra.mxu0 0.0
        %1886 = vmatprep.subr.mxu0 0.0
        %1887 = vmatpush1.msra.mxu0 0.0
        %1888 = vmatprep.subr.mxu0 0.0
        %1889 = vmatpush1.msra.mxu0 %v754
        %1890 = vmatprep.subr.mxu0 0.0
        %1891 = vmatpush1.msra.mxu0 %v752
        %1892 = vmatprep.subr.mxu0 0.0
        %1893 = vmatpush1.msra.mxu0 %v750
        %1894 = vmatprep.subr.mxu0 0.0
        %1895 = vmatpush1.msra.mxu0 %v748
        %1896 = vmatprep.subr.mxu0 0.0
        %1897 = vmatpush2.msra.mxu0 0.0
        %1898 = vmatprep.subr.mxu0 0.0
        %1899 = vmatpush2.msra.mxu0 0.0
        %1900 = vmatprep.subr.mxu0 0.0
        %1901 = vmatpush2.msra.mxu0 0.0
        %1902 = vmatprep.subr.mxu0 0.0
        %1903 = vmatpush2.msra.mxu0 0.0
        %1904 = vmatprep.subr.mxu0 0.0
        %1905 = vmatpush2.msra.mxu0 0.0
        %1906 = vmatprep.subr.mxu0 0.0
        %1907 = vmatpush2.msra.mxu0 0.0
        %1908 = vmatprep.subr.mxu0 0.0
        %1909 = vmatpush2.msra.mxu0 0.0
        %1910 = vmatprep.subr.mxu0 0.0
        %1911 = vmatpush2.msra.mxu0 0.0
        %1912 = vmatprep.subr.mxu0 0.0
        %1913 = vmatpush2.msra.mxu0 0.0
        %1914 = vmatprep.subr.mxu0 0.0
        %1915 = vmatpush2.msra.mxu0 0.0
        %1916 = vmatprep.subr.mxu0 0.0
        %1917 = vmatpush2.msra.mxu0 0.0
        %1918 = vmatprep.subr.mxu0 0.0
        %1919 = vmatpush2.msra.mxu0 0.0
        %1920 = vmatprep.subr.mxu0 0.0
        %1921 = vmatpush2.msra.mxu0 0.0
        %1922 = vmatprep.subr.mxu0 0.0
        %1923 = vmatpush2.msra.mxu0 0.0
        %1924 = vmatprep.subr.mxu0 0.0
        %1925 = vmatpush2.msra.mxu0 0.0
        %1926 = vmatprep.subr.mxu0 0.0
        %1927 = vmatpush2.msra.mxu0 0.0
        %1928 = vmatprep.mubr.f32.mxu0 0.0
        %1929 = vmatmul.mubr.f32.gmra.mxu0 %v1862
        %v1930 = vpop.f32.mrf.mxu0
        %v1931 = vadd.f32 %v1860, %v1930
        %v1932 = vpop.f32.mrf.mxu0
        %1933 = vdwg.mxu0
        %v1934 = vmax.f32 %v1931, 0.0
        %v1935 = vlaneseq
        %v1936 = vshrl.u32 %v1935, 7
        %v1937 = vsub.s32 5, %v1936
        %v1938 = vrot.slane %v755, %v1937
        %1943 = vrot.lane.b32.xlu0 %v748, 96
        %v1944 = vpop.permute.xlu0 %1943
        %1945 = vrot.lane.b32.xlu0 %v750, 96
        %v1946 = vpop.permute.xlu0 %1945
        %1947 = vrot.lane.b32.xlu0 %v752, 96
        %v1948 = vpop.permute.xlu0 %1947
        %1949 = vrot.lane.b32.xlu0 %v754, 96
        %v1950 = vpop.permute.xlu0 %1949
        %v1956 = vsel %vm757, %v1934, 0
        %1958 = vmatprep.subr.mxu0 0.0
        %1959 = vmatpush1.msra.mxu0 0.0
        %1960 = vmatprep.subr.mxu0 0.0
        %1961 = vmatpush1.msra.mxu0 0.0
        %1962 = vmatprep.subr.mxu0 0.0
        %1963 = vmatpush1.msra.mxu0 0.0
        %1964 = vmatprep.subr.mxu0 0.0
        %1965 = vmatpush1.msra.mxu0 0.0
        %1966 = vmatprep.subr.mxu0 0.0
        %1967 = vmatpush1.msra.mxu0 0.0
        %1968 = vmatprep.subr.mxu0 0.0
        %1969 = vmatpush1.msra.mxu0 0.0
        %1970 = vmatprep.subr.mxu0 0.0
        %1971 = vmatpush1.msra.mxu0 0.0
        %1972 = vmatprep.subr.mxu0 0.0
        %1973 = vmatpush1.msra.mxu0 0.0
        %1974 = vmatprep.subr.mxu0 0.0
        %1975 = vmatpush1.msra.mxu0 0.0
        %1976 = vmatprep.subr.mxu0 0.0
        %1977 = vmatpush1.msra.mxu0 0.0
        %1978 = vmatprep.subr.mxu0 0.0
        %1979 = vmatpush1.msra.mxu0 0.0
        %1980 = vmatprep.subr.mxu0 0.0
        %1981 = vmatpush1.msra.mxu0 0.0
        %1982 = vmatprep.subr.mxu0 0.0
        %1983 = vmatpush1.msra.mxu0 %v1950
        %1984 = vmatprep.subr.mxu0 0.0
        %1985 = vmatpush1.msra.mxu0 %v1948
        %1986 = vmatprep.subr.mxu0 0.0
        %1987 = vmatpush1.msra.mxu0 %v1946
        %1988 = vmatprep.subr.mxu0 0.0
        %1989 = vmatpush1.msra.mxu0 %v1944
        %1990 = vmatprep.subr.mxu0 0.0
        %1991 = vmatpush2.msra.mxu0 0.0
        %1992 = vmatprep.subr.mxu0 0.0
        %1993 = vmatpush2.msra.mxu0 0.0
        %1994 = vmatprep.subr.mxu0 0.0
        %1995 = vmatpush2.msra.mxu0 0.0
        %1996 = vmatprep.subr.mxu0 0.0
        %1997 = vmatpush2.msra.mxu0 0.0
        %1998 = vmatprep.subr.mxu0 0.0
        %1999 = vmatpush2.msra.mxu0 0.0
        %2000 = vmatprep.subr.mxu0 0.0
        %2001 = vmatpush2.msra.mxu0 0.0
        %2002 = vmatprep.subr.mxu0 0.0
        %2003 = vmatpush2.msra.mxu0 0.0
        %2004 = vmatprep.subr.mxu0 0.0
        %2005 = vmatpush2.msra.mxu0 0.0
        %2006 = vmatprep.subr.mxu0 0.0
        %2007 = vmatpush2.msra.mxu0 0.0
        %2008 = vmatprep.subr.mxu0 0.0
        %2009 = vmatpush2.msra.mxu0 0.0
        %2010 = vmatprep.subr.mxu0 0.0
        %2011 = vmatpush2.msra.mxu0 0.0
        %2012 = vmatprep.subr.mxu0 0.0
        %2013 = vmatpush2.msra.mxu0 0.0
        %2014 = vmatprep.subr.mxu0 0.0
        %2015 = vmatpush2.msra.mxu0 0.0
        %2016 = vmatprep.subr.mxu0 0.0
        %2017 = vmatpush2.msra.mxu0 0.0
        %2018 = vmatprep.subr.mxu0 0.0
        %2019 = vmatpush2.msra.mxu0 0.0
        %2020 = vmatprep.subr.mxu0 0.0
        %2021 = vmatpush2.msra.mxu0 0.0
        %2022 = vmatprep.mubr.f32.mxu0 0.0
        %2023 = vmatmul.mubr.f32.gmra.mxu0 %v1956
        %v2024 = vpop.f32.mrf.mxu0
        %v2025 = vadd.f32 %v1938, %v2024
        %v2026 = vpop.f32.mrf.mxu0
        %2027 = vdwg.mxu0
        %v2028 = vadd.f32 %v2025, %v1856
        %v2029 = vsel %vm757, %v2028, 0.0
        %2030 = vadd.xlane.f32.xlu0 %v2029
        %v2031 = vpop.xlane.xlu0 %2030
        %v2032 = vmul.f32 %v2031, %v1836
        %v2033 = vsub.f32 %v2028, %v2032
        %v2034 = vmul.f32 %v2033, %v2033
        %v2035 = vsel %vm757, %v2034, 0.0
        %2036 = vadd.xlane.f32.xlu0 %v2035
        %v2037 = vpop.xlane.xlu0 %2036
        %v2038 = vmul.f32 %v2037, %v1836
        %v2039 = vadd.f32 %v2038, 1e-05
        %v2040 = vrsqrt.pop %v2039
        %v2041 = vmul.f32 %v2033, %v2040
        %v2042 = vlaneseq
        %v2043 = vshrl.u32 %v2042, 7
        %v2044 = vsub.s32 0, %v2043
        %v2045 = vrot.slane %v756, %v2044
        %v2046 = vmul.f32 %v2041, %v2045
        %v2047 = vlaneseq
        %v2048 = vshrl.u32 %v2047, 7
        %v2049 = vsub.s32 1, %v2048
        %v2050 = vrot.slane %v756, %v2049
        %v2051 = vadd.f32 %v2046, %v2050
        %s2052 = scalar_lea.vmem %s7, 64
        %v2053 = vld [vmem:[%s2052] sm:$0xff]
        %v2054 = vld [vmem:[%s2052 + $0x8] sm:$0xff]
        %v2055 = vld [vmem:[%s2052 + $0x10] sm:$0xff]
        %v2056 = vld [vmem:[%s2052 + $0x18] sm:$0xff]
        %v2057 = vld [vmem:[%s2052 + $0x20] sm:$0xff]
        %v2058 = vld [vmem:[%s2052 + $0x28] sm:$0xff]
        %v2059 = vld [vmem:[%s2052 + $0x30] sm:$0xff]
        %v2060 = vld [vmem:[%s2052 + $0x38] sm:$0xff]
        %s2061 = scalar_lea.vmem %s8, 16
        %v2062 = vld [vmem:[%s2061] sm:$0xff]
        %v2063 = vld [vmem:[%s2061 + $0x8] sm:$0x3]
        %v2065 = vsel %vm757, %v2051, 0
        %2067 = vmatprep.subr.mxu0 0.0
        %2068 = vmatpush1.msra.mxu0 0.0
        %2069 = vmatprep.subr.mxu0 0.0
        %2070 = vmatpush1.msra.mxu0 0.0
        %2071 = vmatprep.subr.mxu0 0.0
        %2072 = vmatpush1.msra.mxu0 0.0
        %2073 = vmatprep.subr.mxu0 0.0
        %2074 = vmatpush1.msra.mxu0 0.0
        %2075 = vmatprep.subr.mxu0 0.0
        %2076 = vmatpush1.msra.mxu0 0.0
        %2077 = vmatprep.subr.mxu0 0.0
        %2078 = vmatpush1.msra.mxu0 0.0
        %2079 = vmatprep.subr.mxu0 0.0
        %2080 = vmatpush1.msra.mxu0 0.0
        %2081 = vmatprep.subr.mxu0 0.0
        %2082 = vmatpush1.msra.mxu0 0.0
        %2083 = vmatprep.subr.mxu0 0.0
        %2084 = vmatpush1.msra.mxu0 0.0
        %2085 = vmatprep.subr.mxu0 0.0
        %2086 = vmatpush1.msra.mxu0 0.0
        %2087 = vmatprep.subr.mxu0 0.0
        %2088 = vmatpush1.msra.mxu0 0.0
        %2089 = vmatprep.subr.mxu0 0.0
        %2090 = vmatpush1.msra.mxu0 0.0
        %2091 = vmatprep.subr.mxu0 0.0
        %2092 = vmatpush1.msra.mxu0 %v2059
        %2093 = vmatprep.subr.mxu0 0.0
        %2094 = vmatpush1.msra.mxu0 %v2057
        %2095 = vmatprep.subr.mxu0 0.0
        %2096 = vmatpush1.msra.mxu0 %v2055
        %2097 = vmatprep.subr.mxu0 0.0
        %2098 = vmatpush1.msra.mxu0 %v2053
        %2099 = vmatprep.subr.mxu0 0.0
        %2100 = vmatpush2.msra.mxu0 0.0
        %2101 = vmatprep.subr.mxu0 0.0
        %2102 = vmatpush2.msra.mxu0 0.0
        %2103 = vmatprep.subr.mxu0 0.0
        %2104 = vmatpush2.msra.mxu0 0.0
        %2105 = vmatprep.subr.mxu0 0.0
        %2106 = vmatpush2.msra.mxu0 0.0
        %2107 = vmatprep.subr.mxu0 0.0
        %2108 = vmatpush2.msra.mxu0 0.0
        %2109 = vmatprep.subr.mxu0 0.0
        %2110 = vmatpush2.msra.mxu0 0.0
        %2111 = vmatprep.subr.mxu0 0.0
        %2112 = vmatpush2.msra.mxu0 0.0
        %2113 = vmatprep.subr.mxu0 0.0
        %2114 = vmatpush2.msra.mxu0 0.0
        %2115 = vmatprep.subr.mxu0 0.0
        %2116 = vmatpush2.msra.mxu0 0.0
        %2117 = vmatprep.subr.mxu0 0.0
        %2118 = vmatpush2.msra.mxu0 0.0
        %2119 = vmatprep.subr.mxu0 0.0
        %2120 = vmatpush2.msra.mxu0 0.0
        %2121 = vmatprep.subr.mxu0 0.0
        %2122 = vmatpush2.msra.mxu0 0.0
        %2123 = vmatprep.subr.mxu0 0.0
        %2124 = vmatpush2.msra.mxu0 0.0
        %2125 = vmatprep.subr.mxu0 0.0
        %2126 = vmatpush2.msra.mxu0 0.0
        %2127 = vmatprep.subr.mxu0 0.0
        %2128 = vmatpush2.msra.mxu0 0.0
        %2129 = vmatprep.subr.mxu0 0.0
        %2130 = vmatpush2.msra.mxu0 0.0
        %2131 = vmatprep.mubr.f32.mxu0 0.0
        %2132 = vmatmul.mubr.f32.gmra.mxu0 %v2065
        %v2133 = vpop.f32.mrf.mxu0
        %v2134 = vadd.f32 0.0, %v2133
        %v2135 = vpop.f32.mrf.mxu0
        %2136 = vdwg.mxu0
        %v2137 = vlaneseq
        %v2138 = vshrl.u32 %v2137, 7
        %v2139 = vsub.s32 0, %v2138
        %v2140 = vrot.slane %v2062, %v2139
        %v2141 = vadd.f32 %v2134, %v2140
        %v2142 = vlaneseq
        %v2143 = vshrl.u32 %v2142, 7
        %v2144 = vsub.s32 1, %v2143
        %v2145 = vrot.slane %v2062, %v2144
        %2147 = vrot.lane.b32.xlu0 %v2145, 32
        %v2148 = vpop.permute.xlu0 %2147
        %v2150 = vadd.f32 %v2134, %v2148
        %v2151 = vlaneseq
        %v2152 = vshrl.u32 %v2151, 7
        %v2153 = vsub.s32 2, %v2152
        %v2154 = vrot.slane %v2062, %v2153
        %2156 = vrot.lane.b32.xlu0 %v2154, 64
        %v2157 = vpop.permute.xlu0 %2156
        %v2159 = vadd.f32 %v2134, %v2157
        %v2160 = vmul.f32 %v2141, 0.35355338
        %2162 = vrot.lane.b32.xlu0 %v2150, 96
        %v2163 = vpop.permute.xlu0 %2162
        %v2165 = vsel %vm858, %v2160, 0
        %v2167 = vsel %vm858, %v2163, 0
        %2169 = vmatprep.subr.mxu0 0.0
        %2170 = vmatpush1.xpose.msra.mxu0 0.0
        %2171 = vmatprep.subr.mxu0 0.0
        %2172 = vmatpush1.xpose.msra.mxu0 0.0
        %2173 = vmatprep.subr.mxu0 0.0
        %2174 = vmatpush1.xpose.msra.mxu0 0.0
        %2175 = vmatprep.subr.mxu0 0.0
        %2176 = vmatpush1.xpose.msra.mxu0 0.0
        %2177 = vmatprep.subr.mxu0 0.0
        %2178 = vmatpush1.xpose.msra.mxu0 0.0
        %2179 = vmatprep.subr.mxu0 0.0
        %2180 = vmatpush1.xpose.msra.mxu0 0.0
        %2181 = vmatprep.subr.mxu0 0.0
        %2182 = vmatpush1.xpose.msra.mxu0 0.0
        %2183 = vmatprep.subr.mxu0 0.0
        %2184 = vmatpush1.xpose.msra.mxu0 0.0
        %2185 = vmatprep.subr.mxu0 0.0
        %2186 = vmatpush1.xpose.msra.mxu0 0.0
        %2187 = vmatprep.subr.mxu0 0.0
        %2188 = vmatpush1.xpose.msra.mxu0 0.0
        %2189 = vmatprep.subr.mxu0 0.0
        %2190 = vmatpush1.xpose.msra.mxu0 0.0
        %2191 = vmatprep.subr.mxu0 0.0
        %2192 = vmatpush1.xpose.msra.mxu0 0.0
        %2193 = vmatprep.subr.mxu0 0.0
        %2194 = vmatpush1.xpose.msra.mxu0 0.0
        %2195 = vmatprep.subr.mxu0 0.0
        %2196 = vmatpush1.xpose.msra.mxu0 0.0
        %2197 = vmatprep.subr.mxu0 0.0
        %2198 = vmatpush1.xpose.msra.mxu0 0.0
        %2199 = vmatprep.subr.mxu0 0.0
        %2200 = vmatpush1.xpose.msra.mxu0 %v2167
        %2201 = vmatprep.subr.mxu0 0.0
        %2202 = vmatpush2.xpose.msra.mxu0 0.0
        %2203 = vmatprep.subr.mxu0 0.0
        %2204 = vmatpush2.xpose.msra.mxu0 0.0
        %2205 = vmatprep.subr.mxu0 0.0
        %2206 = vmatpush2.xpose.msra.mxu0 0.0
        %2207 = vmatprep.subr.mxu0 0.0
        %2208 = vmatpush2.xpose.msra.mxu0 0.0
        %2209 = vmatprep.subr.mxu0 0.0
        %2210 = vmatpush2.xpose.msra.mxu0 0.0
        %2211 = vmatprep.subr.mxu0 0.0
        %2212 = vmatpush2.xpose.msra.mxu0 0.0
        %2213 = vmatprep.subr.mxu0 0.0
        %2214 = vmatpush2.xpose.msra.mxu0 0.0
        %2215 = vmatprep.subr.mxu0 0.0
        %2216 = vmatpush2.xpose.msra.mxu0 0.0
        %2217 = vmatprep.subr.mxu0 0.0
        %2218 = vmatpush2.xpose.msra.mxu0 0.0
        %2219 = vmatprep.subr.mxu0 0.0
        %2220 = vmatpush2.xpose.msra.mxu0 0.0
        %2221 = vmatprep.subr.mxu0 0.0
        %2222 = vmatpush2.xpose.msra.mxu0 0.0
        %2223 = vmatprep.subr.mxu0 0.0
        %2224 = vmatpush2.xpose.msra.mxu0 0.0
        %2225 = vmatprep.subr.mxu0 0.0
        %2226 = vmatpush2.xpose.msra.mxu0 0.0
        %2227 = vmatprep.subr.mxu0 0.0
        %2228 = vmatpush2.xpose.msra.mxu0 0.0
        %2229 = vmatprep.subr.mxu0 0.0
        %2230 = vmatpush2.xpose.msra.mxu0 0.0
        %2231 = vmatprep.subr.mxu0 0.0
        %2232 = vmatpush2.xpose.msra.mxu0 0.0
        %2233 = vmatprep.mubr.f32.mxu0 0.0
        %2234 = vmatmul.mubr.f32.gmra.mxu0 %v2165
        %v2235 = vpop.f32.mrf.mxu0
        %v2236 = vadd.f32 %v570, %v2235
        %v2237 = vpop.f32.mrf.mxu0
        %2238 = vdwg.mxu0
        %v2239 = vsel %vm858, %v2236, -inf
        %2240 = vmax.xlane.f32.xlu0 %v2239
        %v2241 = vpop.xlane.xlu0 %2240
        %v2242 = vsub.f32 %v2236, %v2241
        %v2243 = vmul.f32 %v2242, 1.442695
        %v2244 = vpow.pop %v2243
        %v2245 = vsel %vm858, %v2244, 0.0
        %2246 = vadd.xlane.f32.xlu0 %v2245
        %v2247 = vpop.xlane.xlu0 %2246
        %v2248 = vrcp.pop %v2247
        %v2249 = vmul.f32 %v2244, %v2248
        %2251 = vrot.lane.b32.xlu0 %v2159, 64
        %v2252 = vpop.permute.xlu0 %2251
        %v2255 = vsel %vm858, %v2249, 0
        %2257 = vmatprep.subr.mxu0 0.0
        %2258 = vmatpush1.msra.mxu0 0.0
        %2259 = vmatprep.subr.mxu0 0.0
        %2260 = vmatpush1.msra.mxu0 0.0
        %2261 = vmatprep.subr.mxu0 0.0
        %2262 = vmatpush1.msra.mxu0 0.0
        %2263 = vmatprep.subr.mxu0 0.0
        %2264 = vmatpush1.msra.mxu0 0.0
        %2265 = vmatprep.subr.mxu0 0.0
        %2266 = vmatpush1.msra.mxu0 0.0
        %2267 = vmatprep.subr.mxu0 0.0
        %2268 = vmatpush1.msra.mxu0 0.0
        %2269 = vmatprep.subr.mxu0 0.0
        %2270 = vmatpush1.msra.mxu0 0.0
        %2271 = vmatprep.subr.mxu0 0.0
        %2272 = vmatpush1.msra.mxu0 0.0
        %2273 = vmatprep.subr.mxu0 0.0
        %2274 = vmatpush1.msra.mxu0 0.0
        %2275 = vmatprep.subr.mxu0 0.0
        %2276 = vmatpush1.msra.mxu0 0.0
        %2277 = vmatprep.subr.mxu0 0.0
        %2278 = vmatpush1.msra.mxu0 0.0
        %2279 = vmatprep.subr.mxu0 0.0
        %2280 = vmatpush1.msra.mxu0 0.0
        %2281 = vmatprep.subr.mxu0 0.0
        %2282 = vmatpush1.msra.mxu0 0.0
        %2283 = vmatprep.subr.mxu0 0.0
        %2284 = vmatpush1.msra.mxu0 0.0
        %2285 = vmatprep.subr.mxu0 0.0
        %2286 = vmatpush1.msra.mxu0 0.0
        %2287 = vmatprep.subr.mxu0 0.0
        %2288 = vmatpush1.msra.mxu0 %v2252
        %2289 = vmatprep.subr.mxu0 0.0
        %2290 = vmatpush2.msra.mxu0 0.0
        %2291 = vmatprep.subr.mxu0 0.0
        %2292 = vmatpush2.msra.mxu0 0.0
        %2293 = vmatprep.subr.mxu0 0.0
        %2294 = vmatpush2.msra.mxu0 0.0
        %2295 = vmatprep.subr.mxu0 0.0
        %2296 = vmatpush2.msra.mxu0 0.0
        %2297 = vmatprep.subr.mxu0 0.0
        %2298 = vmatpush2.msra.mxu0 0.0
        %2299 = vmatprep.subr.mxu0 0.0
        %2300 = vmatpush2.msra.mxu0 0.0
        %2301 = vmatprep.subr.mxu0 0.0
        %2302 = vmatpush2.msra.mxu0 0.0
        %2303 = vmatprep.subr.mxu0 0.0
        %2304 = vmatpush2.msra.mxu0 0.0
        %2305 = vmatprep.subr.mxu0 0.0
        %2306 = vmatpush2.msra.mxu0 0.0
        %2307 = vmatprep.subr.mxu0 0.0
        %2308 = vmatpush2.msra.mxu0 0.0
        %2309 = vmatprep.subr.mxu0 0.0
        %2310 = vmatpush2.msra.mxu0 0.0
        %2311 = vmatprep.subr.mxu0 0.0
        %2312 = vmatpush2.msra.mxu0 0.0
        %2313 = vmatprep.subr.mxu0 0.0
        %2314 = vmatpush2.msra.mxu0 0.0
        %2315 = vmatprep.subr.mxu0 0.0
        %2316 = vmatpush2.msra.mxu0 0.0
        %2317 = vmatprep.subr.mxu0 0.0
        %2318 = vmatpush2.msra.mxu0 0.0
        %2319 = vmatprep.subr.mxu0 0.0
        %2320 = vmatpush2.msra.mxu0 0.0
        %2321 = vmatprep.mubr.f32.mxu0 0.0
        %2322 = vmatmul.mubr.f32.gmra.mxu0 %v2255
        %v2323 = vpop.f32.mrf.mxu0
        %v2324 = vadd.f32 0.0, %v2323
        %v2325 = vpop.f32.mrf.mxu0
        %2326 = vdwg.mxu0
        %2327 = vrot.lane.b32.xlu0 %v2160, 120
        %v2328 = vpop.permute.xlu0 %2327
        %2329 = vrot.lane.b32.xlu0 %v2150, 88
        %v2330 = vpop.permute.xlu0 %2329
        %v2331 = vsel %vm858, %v2328, 0
        %v2333 = vsel %vm858, %v2330, 0
        %2335 = vmatprep.subr.mxu0 0.0
        %2336 = vmatpush1.xpose.msra.mxu0 0.0
        %2337 = vmatprep.subr.mxu0 0.0
        %2338 = vmatpush1.xpose.msra.mxu0 0.0
        %2339 = vmatprep.subr.mxu0 0.0
        %2340 = vmatpush1.xpose.msra.mxu0 0.0
        %2341 = vmatprep.subr.mxu0 0.0
        %2342 = vmatpush1.xpose.msra.mxu0 0.0
        %2343 = vmatprep.subr.mxu0 0.0
        %2344 = vmatpush1.xpose.msra.mxu0 0.0
        %2345 = vmatprep.subr.mxu0 0.0
        %2346 = vmatpush1.xpose.msra.mxu0 0.0
        %2347 = vmatprep.subr.mxu0 0.0
        %2348 = vmatpush1.xpose.msra.mxu0 0.0
        %2349 = vmatprep.subr.mxu0 0.0
        %2350 = vmatpush1.xpose.msra.mxu0 0.0
        %2351 = vmatprep.subr.mxu0 0.0
        %2352 = vmatpush1.xpose.msra.mxu0 0.0
        %2353 = vmatprep.subr.mxu0 0.0
        %2354 = vmatpush1.xpose.msra.mxu0 0.0
        %2355 = vmatprep.subr.mxu0 0.0
        %2356 = vmatpush1.xpose.msra.mxu0 0.0
        %2357 = vmatprep.subr.mxu0 0.0
        %2358 = vmatpush1.xpose.msra.mxu0 0.0
        %2359 = vmatprep.subr.mxu0 0.0
        %2360 = vmatpush1.xpose.msra.mxu0 0.0
        %2361 = vmatprep.subr.mxu0 0.0
        %2362 = vmatpush1.xpose.msra.mxu0 0.0
        %2363 = vmatprep.subr.mxu0 0.0
        %2364 = vmatpush1.xpose.msra.mxu0 0.0
        %2365 = vmatprep.subr.mxu0 0.0
        %2366 = vmatpush1.xpose.msra.mxu0 %v2333
        %2367 = vmatprep.subr.mxu0 0.0
        %2368 = vmatpush2.xpose.msra.mxu0 0.0
        %2369 = vmatprep.subr.mxu0 0.0
        %2370 = vmatpush2.xpose.msra.mxu0 0.0
        %2371 = vmatprep.subr.mxu0 0.0
        %2372 = vmatpush2.xpose.msra.mxu0 0.0
        %2373 = vmatprep.subr.mxu0 0.0
        %2374 = vmatpush2.xpose.msra.mxu0 0.0
        %2375 = vmatprep.subr.mxu0 0.0
        %2376 = vmatpush2.xpose.msra.mxu0 0.0
        %2377 = vmatprep.subr.mxu0 0.0
        %2378 = vmatpush2.xpose.msra.mxu0 0.0
        %2379 = vmatprep.subr.mxu0 0.0
        %2380 = vmatpush2.xpose.msra.mxu0 0.0
        %2381 = vmatprep.subr.mxu0 0.0
        %2382 = vmatpush2.xpose.msra.mxu0 0.0
        %2383 = vmatprep.subr.mxu0 0.0
        %2384 = vmatpush2.xpose.msra.mxu0 0.0
        %2385 = vmatprep.subr.mxu0 0.0
        %2386 = vmatpush2.xpose.msra.mxu0 0.0
        %2387 = vmatprep.subr.mxu0 0.0
        %2388 = vmatpush2.xpose.msra.mxu0 0.0
        %2389 = vmatprep.subr.mxu0 0.0
        %2390 = vmatpush2.xpose.msra.mxu0 0.0
        %2391 = vmatprep.subr.mxu0 0.0
        %2392 = vmatpush2.xpose.msra.mxu0 0.0
        %2393 = vmatprep.subr.mxu0 0.0
        %2394 = vmatpush2.xpose.msra.mxu0 0.0
        %2395 = vmatprep.subr.mxu0 0.0
        %2396 = vmatpush2.xpose.msra.mxu0 0.0
        %2397 = vmatprep.subr.mxu0 0.0
        %2398 = vmatpush2.xpose.msra.mxu0 0.0
        %2399 = vmatprep.mubr.f32.mxu0 0.0
        %2400 = vmatmul.mubr.f32.gmra.mxu0 %v2331
        %v2401 = vpop.f32.mrf.mxu0
        %v2402 = vadd.f32 %v570, %v2401
        %v2403 = vpop.f32.mrf.mxu0
        %2404 = vdwg.mxu0
        %v2405 = vsel %vm858, %v2402, -inf
        %2406 = vmax.xlane.f32.xlu0 %v2405
        %v2407 = vpop.xlane.xlu0 %2406
        %v2408 = vsub.f32 %v2402, %v2407
        %v2409 = vmul.f32 %v2408, 1.442695
        %v2410 = vpow.pop %v2409
        %v2411 = vsel %vm858, %v2410, 0.0
        %2412 = vadd.xlane.f32.xlu0 %v2411
        %v2413 = vpop.xlane.xlu0 %2412
        %v2414 = vrcp.pop %v2413
        %v2415 = vmul.f32 %v2410, %v2414
        %2416 = vrot.lane.b32.xlu0 %v2159, 56
        %v2417 = vpop.permute.xlu0 %2416
        %v2420 = vsel %vm858, %v2415, 0
        %2422 = vmatprep.subr.mxu0 0.0
        %2423 = vmatpush1.msra.mxu0 0.0
        %2424 = vmatprep.subr.mxu0 0.0
        %2425 = vmatpush1.msra.mxu0 0.0
        %2426 = vmatprep.subr.mxu0 0.0
        %2427 = vmatpush1.msra.mxu0 0.0
        %2428 = vmatprep.subr.mxu0 0.0
        %2429 = vmatpush1.msra.mxu0 0.0
        %2430 = vmatprep.subr.mxu0 0.0
        %2431 = vmatpush1.msra.mxu0 0.0
        %2432 = vmatprep.subr.mxu0 0.0
        %2433 = vmatpush1.msra.mxu0 0.0
        %2434 = vmatprep.subr.mxu0 0.0
        %2435 = vmatpush1.msra.mxu0 0.0
        %2436 = vmatprep.subr.mxu0 0.0
        %2437 = vmatpush1.msra.mxu0 0.0
        %2438 = vmatprep.subr.mxu0 0.0
        %2439 = vmatpush1.msra.mxu0 0.0
        %2440 = vmatprep.subr.mxu0 0.0
        %2441 = vmatpush1.msra.mxu0 0.0
        %2442 = vmatprep.subr.mxu0 0.0
        %2443 = vmatpush1.msra.mxu0 0.0
        %2444 = vmatprep.subr.mxu0 0.0
        %2445 = vmatpush1.msra.mxu0 0.0
        %2446 = vmatprep.subr.mxu0 0.0
        %2447 = vmatpush1.msra.mxu0 0.0
        %2448 = vmatprep.subr.mxu0 0.0
        %2449 = vmatpush1.msra.mxu0 0.0
        %2450 = vmatprep.subr.mxu0 0.0
        %2451 = vmatpush1.msra.mxu0 0.0
        %2452 = vmatprep.subr.mxu0 0.0
        %2453 = vmatpush1.msra.mxu0 %v2417
        %2454 = vmatprep.subr.mxu0 0.0
        %2455 = vmatpush2.msra.mxu0 0.0
        %2456 = vmatprep.subr.mxu0 0.0
        %2457 = vmatpush2.msra.mxu0 0.0
        %2458 = vmatprep.subr.mxu0 0.0
        %2459 = vmatpush2.msra.mxu0 0.0
        %2460 = vmatprep.subr.mxu0 0.0
        %2461 = vmatpush2.msra.mxu0 0.0
        %2462 = vmatprep.subr.mxu0 0.0
        %2463 = vmatpush2.msra.mxu0 0.0
        %2464 = vmatprep.subr.mxu0 0.0
        %2465 = vmatpush2.msra.mxu0 0.0
        %2466 = vmatprep.subr.mxu0 0.0
        %2467 = vmatpush2.msra.mxu0 0.0
        %2468 = vmatprep.subr.mxu0 0.0
        %2469 = vmatpush2.msra.mxu0 0.0
        %2470 = vmatprep.subr.mxu0 0.0
        %2471 = vmatpush2.msra.mxu0 0.0
        %2472 = vmatprep.subr.mxu0 0.0
        %2473 = vmatpush2.msra.mxu0 0.0
        %2474 = vmatprep.subr.mxu0 0.0
        %2475 = vmatpush2.msra.mxu0 0.0
        %2476 = vmatprep.subr.mxu0 0.0
        %2477 = vmatpush2.msra.mxu0 0.0
        %2478 = vmatprep.subr.mxu0 0.0
        %2479 = vmatpush2.msra.mxu0 0.0
        %2480 = vmatprep.subr.mxu0 0.0
        %2481 = vmatpush2.msra.mxu0 0.0
        %2482 = vmatprep.subr.mxu0 0.0
        %2483 = vmatpush2.msra.mxu0 0.0
        %2484 = vmatprep.subr.mxu0 0.0
        %2485 = vmatpush2.msra.mxu0 0.0
        %2486 = vmatprep.mubr.f32.mxu0 0.0
        %2487 = vmatmul.mubr.f32.gmra.mxu0 %v2420
        %v2488 = vpop.f32.mrf.mxu0
        %v2489 = vadd.f32 0.0, %v2488
        %v2490 = vpop.f32.mrf.mxu0
        %2491 = vdwg.mxu0
        %2493 = vrot.lane.b32.xlu0 %v2055, 32
        %v2494 = vpop.permute.xlu0 %2493
        %v2497 = vsel %vm858, %v2489, 0
        %2499 = vmatprep.subr.mxu0 0.0
        %2500 = vmatpush1.msra.mxu0 0.0
        %2501 = vmatprep.subr.mxu0 0.0
        %2502 = vmatpush1.msra.mxu0 0.0
        %2503 = vmatprep.subr.mxu0 0.0
        %2504 = vmatpush1.msra.mxu0 0.0
        %2505 = vmatprep.subr.mxu0 0.0
        %2506 = vmatpush1.msra.mxu0 0.0
        %2507 = vmatprep.subr.mxu0 0.0
        %2508 = vmatpush1.msra.mxu0 0.0
        %2509 = vmatprep.subr.mxu0 0.0
        %2510 = vmatpush1.msra.mxu0 0.0
        %2511 = vmatprep.subr.mxu0 0.0
        %2512 = vmatpush1.msra.mxu0 0.0
        %2513 = vmatprep.subr.mxu0 0.0
        %2514 = vmatpush1.msra.mxu0 0.0
        %2515 = vmatprep.subr.mxu0 0.0
        %2516 = vmatpush1.msra.mxu0 0.0
        %2517 = vmatprep.subr.mxu0 0.0
        %2518 = vmatpush1.msra.mxu0 0.0
        %2519 = vmatprep.subr.mxu0 0.0
        %2520 = vmatpush1.msra.mxu0 0.0
        %2521 = vmatprep.subr.mxu0 0.0
        %2522 = vmatpush1.msra.mxu0 0.0
        %2523 = vmatprep.subr.mxu0 0.0
        %2524 = vmatpush1.msra.mxu0 0.0
        %2525 = vmatprep.subr.mxu0 0.0
        %2526 = vmatpush1.msra.mxu0 0.0
        %2527 = vmatprep.subr.mxu0 0.0
        %2528 = vmatpush1.msra.mxu0 0.0
        %2529 = vmatprep.subr.mxu0 0.0
        %2530 = vmatpush1.msra.mxu0 %v2494
        %2531 = vmatprep.subr.mxu0 0.0
        %2532 = vmatpush2.msra.mxu0 0.0
        %2533 = vmatprep.subr.mxu0 0.0
        %2534 = vmatpush2.msra.mxu0 0.0
        %2535 = vmatprep.subr.mxu0 0.0
        %2536 = vmatpush2.msra.mxu0 0.0
        %2537 = vmatprep.subr.mxu0 0.0
        %2538 = vmatpush2.msra.mxu0 0.0
        %2539 = vmatprep.subr.mxu0 0.0
        %2540 = vmatpush2.msra.mxu0 0.0
        %2541 = vmatprep.subr.mxu0 0.0
        %2542 = vmatpush2.msra.mxu0 0.0
        %2543 = vmatprep.subr.mxu0 0.0
        %2544 = vmatpush2.msra.mxu0 0.0
        %2545 = vmatprep.subr.mxu0 0.0
        %2546 = vmatpush2.msra.mxu0 0.0
        %2547 = vmatprep.subr.mxu0 0.0
        %2548 = vmatpush2.msra.mxu0 0.0
        %2549 = vmatprep.subr.mxu0 0.0
        %2550 = vmatpush2.msra.mxu0 0.0
        %2551 = vmatprep.subr.mxu0 0.0
        %2552 = vmatpush2.msra.mxu0 0.0
        %2553 = vmatprep.subr.mxu0 0.0
        %2554 = vmatpush2.msra.mxu0 0.0
        %2555 = vmatprep.subr.mxu0 0.0
        %2556 = vmatpush2.msra.mxu0 0.0
        %2557 = vmatprep.subr.mxu0 0.0
        %2558 = vmatpush2.msra.mxu0 0.0
        %2559 = vmatprep.subr.mxu0 0.0
        %2560 = vmatpush2.msra.mxu0 0.0
        %2561 = vmatprep.subr.mxu0 0.0
        %2562 = vmatpush2.msra.mxu0 0.0
        %2563 = vmatprep.mubr.f32.mxu0 0.0
        %2564 = vmatmul.mubr.f32.gmra.mxu0 %v2497
        %v2565 = vpop.f32.mrf.mxu0
        %v2566 = vadd.f32 0.0, %v2565
        %v2567 = vpop.f32.mrf.mxu0
        %2568 = vdwg.mxu0
        %2570 = vrot.lane.b32.xlu0 %v2053, 32
        %v2571 = vpop.permute.xlu0 %2570
        %v2574 = vsel %vm858, %v2324, 0
        %2576 = vmatprep.subr.mxu0 0.0
        %2577 = vmatpush1.msra.mxu0 0.0
        %2578 = vmatprep.subr.mxu0 0.0
        %2579 = vmatpush1.msra.mxu0 0.0
        %2580 = vmatprep.subr.mxu0 0.0
        %2581 = vmatpush1.msra.mxu0 0.0
        %2582 = vmatprep.subr.mxu0 0.0
        %2583 = vmatpush1.msra.mxu0 0.0
        %2584 = vmatprep.subr.mxu0 0.0
        %2585 = vmatpush1.msra.mxu0 0.0
        %2586 = vmatprep.subr.mxu0 0.0
        %2587 = vmatpush1.msra.mxu0 0.0
        %2588 = vmatprep.subr.mxu0 0.0
        %2589 = vmatpush1.msra.mxu0 0.0
        %2590 = vmatprep.subr.mxu0 0.0
        %2591 = vmatpush1.msra.mxu0 0.0
        %2592 = vmatprep.subr.mxu0 0.0
        %2593 = vmatpush1.msra.mxu0 0.0
        %2594 = vmatprep.subr.mxu0 0.0
        %2595 = vmatpush1.msra.mxu0 0.0
        %2596 = vmatprep.subr.mxu0 0.0
        %2597 = vmatpush1.msra.mxu0 0.0
        %2598 = vmatprep.subr.mxu0 0.0
        %2599 = vmatpush1.msra.mxu0 0.0
        %2600 = vmatprep.subr.mxu0 0.0
        %2601 = vmatpush1.msra.mxu0 0.0
        %2602 = vmatprep.subr.mxu0 0.0
        %2603 = vmatpush1.msra.mxu0 0.0
        %2604 = vmatprep.subr.mxu0 0.0
        %2605 = vmatpush1.msra.mxu0 0.0
        %2606 = vmatprep.subr.mxu0 0.0
        %2607 = vmatpush1.msra.mxu0 %v2571
        %2608 = vmatprep.subr.mxu0 0.0
        %2609 = vmatpush2.msra.mxu0 0.0
        %2610 = vmatprep.subr.mxu0 0.0
        %2611 = vmatpush2.msra.mxu0 0.0
        %2612 = vmatprep.subr.mxu0 0.0
        %2613 = vmatpush2.msra.mxu0 0.0
        %2614 = vmatprep.subr.mxu0 0.0
        %2615 = vmatpush2.msra.mxu0 0.0
        %2616 = vmatprep.subr.mxu0 0.0
        %2617 = vmatpush2.msra.mxu0 0.0
        %2618 = vmatprep.subr.mxu0 0.0
        %2619 = vmatpush2.msra.mxu0 0.0
        %2620 = vmatprep.subr.mxu0 0.0
        %2621 = vmatpush2.msra.mxu0 0.0
        %2622 = vmatprep.subr.mxu0 0.0
        %2623 = vmatpush2.msra.mxu0 0.0
        %2624 = vmatprep.subr.mxu0 0.0
        %2625 = vmatpush2.msra.mxu0 0.0
        %2626 = vmatprep.subr.mxu0 0.0
        %2627 = vmatpush2.msra.mxu0 0.0
        %2628 = vmatprep.subr.mxu0 0.0
        %2629 = vmatpush2.msra.mxu0 0.0
        %2630 = vmatprep.subr.mxu0 0.0
        %2631 = vmatpush2.msra.mxu0 0.0
        %2632 = vmatprep.subr.mxu0 0.0
        %2633 = vmatpush2.msra.mxu0 0.0
        %2634 = vmatprep.subr.mxu0 0.0
        %2635 = vmatpush2.msra.mxu0 0.0
        %2636 = vmatprep.subr.mxu0 0.0
        %2637 = vmatpush2.msra.mxu0 0.0
        %2638 = vmatprep.subr.mxu0 0.0
        %2639 = vmatpush2.msra.mxu0 0.0
        %2640 = vmatprep.mubr.f32.mxu0 0.0
        %2641 = vmatmul.mubr.f32.gmra.mxu0 %v2574
        %v2642 = vpop.f32.mrf.mxu0
        %v2643 = vadd.f32 %v2566, %v2642
        %v2644 = vpop.f32.mrf.mxu0
        %2645 = vdwg.mxu0
        %2646 = vrot.lane.b32.xlu0 %v2160, 112
        %v2647 = vpop.permute.xlu0 %2646
        %2648 = vrot.lane.b32.xlu0 %v2150, 80
        %v2649 = vpop.permute.xlu0 %2648
        %v2650 = vsel %vm858, %v2647, 0
        %v2652 = vsel %vm858, %v2649, 0
        %2654 = vmatprep.subr.mxu0 0.0
        %2655 = vmatpush1.xpose.msra.mxu0 0.0
        %2656 = vmatprep.subr.mxu0 0.0
        %2657 = vmatpush1.xpose.msra.mxu0 0.0
        %2658 = vmatprep.subr.mxu0 0.0
        %2659 = vmatpush1.xpose.msra.mxu0 0.0
        %2660 = vmatprep.subr.mxu0 0.0
        %2661 = vmatpush1.xpose.msra.mxu0 0.0
        %2662 = vmatprep.subr.mxu0 0.0
        %2663 = vmatpush1.xpose.msra.mxu0 0.0
        %2664 = vmatprep.subr.mxu0 0.0
        %2665 = vmatpush1.xpose.msra.mxu0 0.0
        %2666 = vmatprep.subr.mxu0 0.0
        %2667 = vmatpush1.xpose.msra.mxu0 0.0
        %2668 = vmatprep.subr.mxu0 0.0
        %2669 = vmatpush1.xpose.msra.mxu0 0.0
        %2670 = vmatprep.subr.mxu0 0.0
        %2671 = vmatpush1.xpose.msra.mxu0 0.0
        %2672 = vmatprep.subr.mxu0 0.0
        %2673 = vmatpush1.xpose.msra.mxu0 0.0
        %2674 = vmatprep.subr.mxu0 0.0
        %2675 = vmatpush1.xpose.msra.mxu0 0.0
        %2676 = vmatprep.subr.mxu0 0.0
        %2677 = vmatpush1.xpose.msra.mxu0 0.0
        %2678 = vmatprep.subr.mxu0 0.0
        %2679 = vmatpush1.xpose.msra.mxu0 0.0
        %2680 = vmatprep.subr.mxu0 0.0
        %2681 = vmatpush1.xpose.msra.mxu0 0.0
        %2682 = vmatprep.subr.mxu0 0.0
        %2683 = vmatpush1.xpose.msra.mxu0 0.0
        %2684 = vmatprep.subr.mxu0 0.0
        %2685 = vmatpush1.xpose.msra.mxu0 %v2652
        %2686 = vmatprep.subr.mxu0 0.0
        %2687 = vmatpush2.xpose.msra.mxu0 0.0
        %2688 = vmatprep.subr.mxu0 0.0
        %2689 = vmatpush2.xpose.msra.mxu0 0.0
        %2690 = vmatprep.subr.mxu0 0.0
        %2691 = vmatpush2.xpose.msra.mxu0 0.0
        %2692 = vmatprep.subr.mxu0 0.0
        %2693 = vmatpush2.xpose.msra.mxu0 0.0
        %2694 = vmatprep.subr.mxu0 0.0
        %2695 = vmatpush2.xpose.msra.mxu0 0.0
        %2696 = vmatprep.subr.mxu0 0.0
        %2697 = vmatpush2.xpose.msra.mxu0 0.0
        %2698 = vmatprep.subr.mxu0 0.0
        %2699 = vmatpush2.xpose.msra.mxu0 0.0
        %2700 = vmatprep.subr.mxu0 0.0
        %2701 = vmatpush2.xpose.msra.mxu0 0.0
        %2702 = vmatprep.subr.mxu0 0.0
        %2703 = vmatpush2.xpose.msra.mxu0 0.0
        %2704 = vmatprep.subr.mxu0 0.0
        %2705 = vmatpush2.xpose.msra.mxu0 0.0
        %2706 = vmatprep.subr.mxu0 0.0
        %2707 = vmatpush2.xpose.msra.mxu0 0.0
        %2708 = vmatprep.subr.mxu0 0.0
        %2709 = vmatpush2.xpose.msra.mxu0 0.0
        %2710 = vmatprep.subr.mxu0 0.0
        %2711 = vmatpush2.xpose.msra.mxu0 0.0
        %2712 = vmatprep.subr.mxu0 0.0
        %2713 = vmatpush2.xpose.msra.mxu0 0.0
        %2714 = vmatprep.subr.mxu0 0.0
        %2715 = vmatpush2.xpose.msra.mxu0 0.0
        %2716 = vmatprep.subr.mxu0 0.0
        %2717 = vmatpush2.xpose.msra.mxu0 0.0
        %2718 = vmatprep.mubr.f32.mxu0 0.0
        %2719 = vmatmul.mubr.f32.gmra.mxu0 %v2650
        %v2720 = vpop.f32.mrf.mxu0
        %v2721 = vadd.f32 %v570, %v2720
        %v2722 = vpop.f32.mrf.mxu0
        %2723 = vdwg.mxu0
        %v2724 = vsel %vm858, %v2721, -inf
        %2725 = vmax.xlane.f32.xlu0 %v2724
        %v2726 = vpop.xlane.xlu0 %2725
        %v2727 = vsub.f32 %v2721, %v2726
        %v2728 = vmul.f32 %v2727, 1.442695
        %v2729 = vpow.pop %v2728
        %v2730 = vsel %vm858, %v2729, 0.0
        %2731 = vadd.xlane.f32.xlu0 %v2730
        %v2732 = vpop.xlane.xlu0 %2731
        %v2733 = vrcp.pop %v2732
        %v2734 = vmul.f32 %v2729, %v2733
        %2735 = vrot.lane.b32.xlu0 %v2159, 48
        %v2736 = vpop.permute.xlu0 %2735
        %v2739 = vsel %vm858, %v2734, 0
        %2741 = vmatprep.subr.mxu0 0.0
        %2742 = vmatpush1.msra.mxu0 0.0
        %2743 = vmatprep.subr.mxu0 0.0
        %2744 = vmatpush1.msra.mxu0 0.0
        %2745 = vmatprep.subr.mxu0 0.0
        %2746 = vmatpush1.msra.mxu0 0.0
        %2747 = vmatprep.subr.mxu0 0.0
        %2748 = vmatpush1.msra.mxu0 0.0
        %2749 = vmatprep.subr.mxu0 0.0
        %2750 = vmatpush1.msra.mxu0 0.0
        %2751 = vmatprep.subr.mxu0 0.0
        %2752 = vmatpush1.msra.mxu0 0.0
        %2753 = vmatprep.subr.mxu0 0.0
        %2754 = vmatpush1.msra.mxu0 0.0
        %2755 = vmatprep.subr.mxu0 0.0
        %2756 = vmatpush1.msra.mxu0 0.0
        %2757 = vmatprep.subr.mxu0 0.0
        %2758 = vmatpush1.msra.mxu0 0.0
        %2759 = vmatprep.subr.mxu0 0.0
        %2760 = vmatpush1.msra.mxu0 0.0
        %2761 = vmatprep.subr.mxu0 0.0
        %2762 = vmatpush1.msra.mxu0 0.0
        %2763 = vmatprep.subr.mxu0 0.0
        %2764 = vmatpush1.msra.mxu0 0.0
        %2765 = vmatprep.subr.mxu0 0.0
        %2766 = vmatpush1.msra.mxu0 0.0
        %2767 = vmatprep.subr.mxu0 0.0
        %2768 = vmatpush1.msra.mxu0 0.0
        %2769 = vmatprep.subr.mxu0 0.0
        %2770 = vmatpush1.msra.mxu0 0.0
        %2771 = vmatprep.subr.mxu0 0.0
        %2772 = vmatpush1.msra.mxu0 %v2736
        %2773 = vmatprep.subr.mxu0 0.0
        %2774 = vmatpush2.msra.mxu0 0.0
        %2775 = vmatprep.subr.mxu0 0.0
        %2776 = vmatpush2.msra.mxu0 0.0
        %2777 = vmatprep.subr.mxu0 0.0
        %2778 = vmatpush2.msra.mxu0 0.0
        %2779 = vmatprep.subr.mxu0 0.0
        %2780 = vmatpush2.msra.mxu0 0.0
        %2781 = vmatprep.subr.mxu0 0.0
        %2782 = vmatpush2.msra.mxu0 0.0
        %2783 = vmatprep.subr.mxu0 0.0
        %2784 = vmatpush2.msra.mxu0 0.0
        %2785 = vmatprep.subr.mxu0 0.0
        %2786 = vmatpush2.msra.mxu0 0.0
        %2787 = vmatprep.subr.mxu0 0.0
        %2788 = vmatpush2.msra.mxu0 0.0
        %2789 = vmatprep.subr.mxu0 0.0
        %2790 = vmatpush2.msra.mxu0 0.0
        %2791 = vmatprep.subr.mxu0 0.0
        %2792 = vmatpush2.msra.mxu0 0.0
        %2793 = vmatprep.subr.mxu0 0.0
        %2794 = vmatpush2.msra.mxu0 0.0
        %2795 = vmatprep.subr.mxu0 0.0
        %2796 = vmatpush2.msra.mxu0 0.0
        %2797 = vmatprep.subr.mxu0 0.0
        %2798 = vmatpush2.msra.mxu0 0.0
        %2799 = vmatprep.subr.mxu0 0.0
        %2800 = vmatpush2.msra.mxu0 0.0
        %2801 = vmatprep.subr.mxu0 0.0
        %2802 = vmatpush2.msra.mxu0 0.0
        %2803 = vmatprep.subr.mxu0 0.0
        %2804 = vmatpush2.msra.mxu0 0.0
        %2805 = vmatprep.mubr.f32.mxu0 0.0
        %2806 = vmatmul.mubr.f32.gmra.mxu0 %v2739
        %v2807 = vpop.f32.mrf.mxu0
        %v2808 = vadd.f32 0.0, %v2807
        %v2809 = vpop.f32.mrf.mxu0
        %2810 = vdwg.mxu0
        %2812 = vrot.lane.b32.xlu0 %v2057, 32
        %v2813 = vpop.permute.xlu0 %2812
        %v2816 = vsel %vm858, %v2808, 0
        %2818 = vmatprep.subr.mxu0 0.0
        %2819 = vmatpush1.msra.mxu0 0.0
        %2820 = vmatprep.subr.mxu0 0.0
        %2821 = vmatpush1.msra.mxu0 0.0
        %2822 = vmatprep.subr.mxu0 0.0
        %2823 = vmatpush1.msra.mxu0 0.0
        %2824 = vmatprep.subr.mxu0 0.0
        %2825 = vmatpush1.msra.mxu0 0.0
        %2826 = vmatprep.subr.mxu0 0.0
        %2827 = vmatpush1.msra.mxu0 0.0
        %2828 = vmatprep.subr.mxu0 0.0
        %2829 = vmatpush1.msra.mxu0 0.0
        %2830 = vmatprep.subr.mxu0 0.0
        %2831 = vmatpush1.msra.mxu0 0.0
        %2832 = vmatprep.subr.mxu0 0.0
        %2833 = vmatpush1.msra.mxu0 0.0
        %2834 = vmatprep.subr.mxu0 0.0
        %2835 = vmatpush1.msra.mxu0 0.0
        %2836 = vmatprep.subr.mxu0 0.0
        %2837 = vmatpush1.msra.mxu0 0.0
        %2838 = vmatprep.subr.mxu0 0.0
        %2839 = vmatpush1.msra.mxu0 0.0
        %2840 = vmatprep.subr.mxu0 0.0
        %2841 = vmatpush1.msra.mxu0 0.0
        %2842 = vmatprep.subr.mxu0 0.0
        %2843 = vmatpush1.msra.mxu0 0.0
        %2844 = vmatprep.subr.mxu0 0.0
        %2845 = vmatpush1.msra.mxu0 0.0
        %2846 = vmatprep.subr.mxu0 0.0
        %2847 = vmatpush1.msra.mxu0 0.0
        %2848 = vmatprep.subr.mxu0 0.0
        %2849 = vmatpush1.msra.mxu0 %v2813
        %2850 = vmatprep.subr.mxu0 0.0
        %2851 = vmatpush2.msra.mxu0 0.0
        %2852 = vmatprep.subr.mxu0 0.0
        %2853 = vmatpush2.msra.mxu0 0.0
        %2854 = vmatprep.subr.mxu0 0.0
        %2855 = vmatpush2.msra.mxu0 0.0
        %2856 = vmatprep.subr.mxu0 0.0
        %2857 = vmatpush2.msra.mxu0 0.0
        %2858 = vmatprep.subr.mxu0 0.0
        %2859 = vmatpush2.msra.mxu0 0.0
        %2860 = vmatprep.subr.mxu0 0.0
        %2861 = vmatpush2.msra.mxu0 0.0
        %2862 = vmatprep.subr.mxu0 0.0
        %2863 = vmatpush2.msra.mxu0 0.0
        %2864 = vmatprep.subr.mxu0 0.0
        %2865 = vmatpush2.msra.mxu0 0.0
        %2866 = vmatprep.subr.mxu0 0.0
        %2867 = vmatpush2.msra.mxu0 0.0
        %2868 = vmatprep.subr.mxu0 0.0
        %2869 = vmatpush2.msra.mxu0 0.0
        %2870 = vmatprep.subr.mxu0 0.0
        %2871 = vmatpush2.msra.mxu0 0.0
        %2872 = vmatprep.subr.mxu0 0.0
        %2873 = vmatpush2.msra.mxu0 0.0
        %2874 = vmatprep.subr.mxu0 0.0
        %2875 = vmatpush2.msra.mxu0 0.0
        %2876 = vmatprep.subr.mxu0 0.0
        %2877 = vmatpush2.msra.mxu0 0.0
        %2878 = vmatprep.subr.mxu0 0.0
        %2879 = vmatpush2.msra.mxu0 0.0
        %2880 = vmatprep.subr.mxu0 0.0
        %2881 = vmatpush2.msra.mxu0 0.0
        %2882 = vmatprep.mubr.f32.mxu0 0.0
        %2883 = vmatmul.mubr.f32.gmra.mxu0 %v2816
        %v2884 = vpop.f32.mrf.mxu0
        %v2885 = vadd.f32 0.0, %v2884
        %v2886 = vpop.f32.mrf.mxu0
        %2887 = vdwg.mxu0
        %v2888 = vadd.f32 %v2643, %v2885
        %2889 = vrot.lane.b32.xlu0 %v2160, 104
        %v2890 = vpop.permute.xlu0 %2889
        %2891 = vrot.lane.b32.xlu0 %v2150, 72
        %v2892 = vpop.permute.xlu0 %2891
        %v2893 = vsel %vm858, %v2890, 0
        %v2895 = vsel %vm858, %v2892, 0
        %2897 = vmatprep.subr.mxu0 0.0
        %2898 = vmatpush1.xpose.msra.mxu0 0.0
        %2899 = vmatprep.subr.mxu0 0.0
        %2900 = vmatpush1.xpose.msra.mxu0 0.0
        %2901 = vmatprep.subr.mxu0 0.0
        %2902 = vmatpush1.xpose.msra.mxu0 0.0
        %2903 = vmatprep.subr.mxu0 0.0
        %2904 = vmatpush1.xpose.msra.mxu0 0.0
        %2905 = vmatprep.subr.mxu0 0.0
        %2906 = vmatpush1.xpose.msra.mxu0 0.0
        %2907 = vmatprep.subr.mxu0 0.0
        %2908 = vmatpush1.xpose.msra.mxu0 0.0
        %2909 = vmatprep.subr.mxu0 0.0
        %2910 = vmatpush1.xpose.msra.mxu0 0.0
        %2911 = vmatprep.subr.mxu0 0.0
        %2912 = vmatpush1.xpose.msra.mxu0 0.0
        %2913 = vmatprep.subr.mxu0 0.0
        %2914 = vmatpush1.xpose.msra.mxu0 0.0
        %2915 = vmatprep.subr.mxu0 0.0
        %2916 = vmatpush1.xpose.msra.mxu0 0.0
        %2917 = vmatprep.subr.mxu0 0.0
        %2918 = vmatpush1.xpose.msra.mxu0 0.0
        %2919 = vmatprep.subr.mxu0 0.0
        %2920 = vmatpush1.xpose.msra.mxu0 0.0
        %2921 = vmatprep.subr.mxu0 0.0
        %2922 = vmatpush1.xpose.msra.mxu0 0.0
        %2923 = vmatprep.subr.mxu0 0.0
        %2924 = vmatpush1.xpose.msra.mxu0 0.0
        %2925 = vmatprep.subr.mxu0 0.0
        %2926 = vmatpush1.xpose.msra.mxu0 0.0
        %2927 = vmatprep.subr.mxu0 0.0
        %2928 = vmatpush1.xpose.msra.mxu0 %v2895
        %2929 = vmatprep.subr.mxu0 0.0
        %2930 = vmatpush2.xpose.msra.mxu0 0.0
        %2931 = vmatprep.subr.mxu0 0.0
        %2932 = vmatpush2.xpose.msra.mxu0 0.0
        %2933 = vmatprep.subr.mxu0 0.0
        %2934 = vmatpush2.xpose.msra.mxu0 0.0
        %2935 = vmatprep.subr.mxu0 0.0
        %2936 = vmatpush2.xpose.msra.mxu0 0.0
        %2937 = vmatprep.subr.mxu0 0.0
        %2938 = vmatpush2.xpose.msra.mxu0 0.0
        %2939 = vmatprep.subr.mxu0 0.0
        %2940 = vmatpush2.xpose.msra.mxu0 0.0
        %2941 = vmatprep.subr.mxu0 0.0
        %2942 = vmatpush2.xpose.msra.mxu0 0.0
        %2943 = vmatprep.subr.mxu0 0.0
        %2944 = vmatpush2.xpose.msra.mxu0 0.0
        %2945 = vmatprep.subr.mxu0 0.0
        %2946 = vmatpush2.xpose.msra.mxu0 0.0
        %2947 = vmatprep.subr.mxu0 0.0
        %2948 = vmatpush2.xpose.msra.mxu0 0.0
        %2949 = vmatprep.subr.mxu0 0.0
        %2950 = vmatpush2.xpose.msra.mxu0 0.0
        %2951 = vmatprep.subr.mxu0 0.0
        %2952 = vmatpush2.xpose.msra.mxu0 0.0
        %2953 = vmatprep.subr.mxu0 0.0
        %2954 = vmatpush2.xpose.msra.mxu0 0.0
        %2955 = vmatprep.subr.mxu0 0.0
        %2956 = vmatpush2.xpose.msra.mxu0 0.0
        %2957 = vmatprep.subr.mxu0 0.0
        %2958 = vmatpush2.xpose.msra.mxu0 0.0
        %2959 = vmatprep.subr.mxu0 0.0
        %2960 = vmatpush2.xpose.msra.mxu0 0.0
        %2961 = vmatprep.mubr.f32.mxu0 0.0
        %2962 = vmatmul.mubr.f32.gmra.mxu0 %v2893
        %v2963 = vpop.f32.mrf.mxu0
        %v2964 = vadd.f32 %v570, %v2963
        %v2965 = vpop.f32.mrf.mxu0
        %2966 = vdwg.mxu0
        %v2967 = vsel %vm858, %v2964, -inf
        %2968 = vmax.xlane.f32.xlu0 %v2967
        %v2969 = vpop.xlane.xlu0 %2968
        %v2970 = vsub.f32 %v2964, %v2969
        %v2971 = vmul.f32 %v2970, 1.442695
        %v2972 = vpow.pop %v2971
        %v2973 = vsel %vm858, %v2972, 0.0
        %2974 = vadd.xlane.f32.xlu0 %v2973
        %v2975 = vpop.xlane.xlu0 %2974
        %v2976 = vrcp.pop %v2975
        %v2977 = vmul.f32 %v2972, %v2976
        %2978 = vrot.lane.b32.xlu0 %v2159, 40
        %v2979 = vpop.permute.xlu0 %2978
        %v2982 = vsel %vm858, %v2977, 0
        %2984 = vmatprep.subr.mxu0 0.0
        %2985 = vmatpush1.msra.mxu0 0.0
        %2986 = vmatprep.subr.mxu0 0.0
        %2987 = vmatpush1.msra.mxu0 0.0
        %2988 = vmatprep.subr.mxu0 0.0
        %2989 = vmatpush1.msra.mxu0 0.0
        %2990 = vmatprep.subr.mxu0 0.0
        %2991 = vmatpush1.msra.mxu0 0.0
        %2992 = vmatprep.subr.mxu0 0.0
        %2993 = vmatpush1.msra.mxu0 0.0
        %2994 = vmatprep.subr.mxu0 0.0
        %2995 = vmatpush1.msra.mxu0 0.0
        %2996 = vmatprep.subr.mxu0 0.0
        %2997 = vmatpush1.msra.mxu0 0.0
        %2998 = vmatprep.subr.mxu0 0.0
        %2999 = vmatpush1.msra.mxu0 0.0
        %3000 = vmatprep.subr.mxu0 0.0
        %3001 = vmatpush1.msra.mxu0 0.0
        %3002 = vmatprep.subr.mxu0 0.0
        %3003 = vmatpush1.msra.mxu0 0.0
        %3004 = vmatprep.subr.mxu0 0.0
        %3005 = vmatpush1.msra.mxu0 0.0
        %3006 = vmatprep.subr.mxu0 0.0
        %3007 = vmatpush1.msra.mxu0 0.0
        %3008 = vmatprep.subr.mxu0 0.0
        %3009 = vmatpush1.msra.mxu0 0.0
        %3010 = vmatprep.subr.mxu0 0.0
        %3011 = vmatpush1.msra.mxu0 0.0
        %3012 = vmatprep.subr.mxu0 0.0
        %3013 = vmatpush1.msra.mxu0 0.0
        %3014 = vmatprep.subr.mxu0 0.0
        %3015 = vmatpush1.msra.mxu0 %v2979
        %3016 = vmatprep.subr.mxu0 0.0
        %3017 = vmatpush2.msra.mxu0 0.0
        %3018 = vmatprep.subr.mxu0 0.0
        %3019 = vmatpush2.msra.mxu0 0.0
        %3020 = vmatprep.subr.mxu0 0.0
        %3021 = vmatpush2.msra.mxu0 0.0
        %3022 = vmatprep.subr.mxu0 0.0
        %3023 = vmatpush2.msra.mxu0 0.0
        %3024 = vmatprep.subr.mxu0 0.0
        %3025 = vmatpush2.msra.mxu0 0.0
        %3026 = vmatprep.subr.mxu0 0.0
        %3027 = vmatpush2.msra.mxu0 0.0
        %3028 = vmatprep.subr.mxu0 0.0
        %3029 = vmatpush2.msra.mxu0 0.0
        %3030 = vmatprep.subr.mxu0 0.0
        %3031 = vmatpush2.msra.mxu0 0.0
        %3032 = vmatprep.subr.mxu0 0.0
        %3033 = vmatpush2.msra.mxu0 0.0
        %3034 = vmatprep.subr.mxu0 0.0
        %3035 = vmatpush2.msra.mxu0 0.0
        %3036 = vmatprep.subr.mxu0 0.0
        %3037 = vmatpush2.msra.mxu0 0.0
        %3038 = vmatprep.subr.mxu0 0.0
        %3039 = vmatpush2.msra.mxu0 0.0
        %3040 = vmatprep.subr.mxu0 0.0
        %3041 = vmatpush2.msra.mxu0 0.0
        %3042 = vmatprep.subr.mxu0 0.0
        %3043 = vmatpush2.msra.mxu0 0.0
        %3044 = vmatprep.subr.mxu0 0.0
        %3045 = vmatpush2.msra.mxu0 0.0
        %3046 = vmatprep.subr.mxu0 0.0
        %3047 = vmatpush2.msra.mxu0 0.0
        %3048 = vmatprep.mubr.f32.mxu0 0.0
        %3049 = vmatmul.mubr.f32.gmra.mxu0 %v2982
        %v3050 = vpop.f32.mrf.mxu0
        %v3051 = vadd.f32 0.0, %v3050
        %v3052 = vpop.f32.mrf.mxu0
        %3053 = vdwg.mxu0
        %3055 = vrot.lane.b32.xlu0 %v2059, 32
        %v3056 = vpop.permute.xlu0 %3055
        %v3059 = vsel %vm858, %v3051, 0
        %3061 = vmatprep.subr.mxu0 0.0
        %3062 = vmatpush1.msra.mxu0 0.0
        %3063 = vmatprep.subr.mxu0 0.0
        %3064 = vmatpush1.msra.mxu0 0.0
        %3065 = vmatprep.subr.mxu0 0.0
        %3066 = vmatpush1.msra.mxu0 0.0
        %3067 = vmatprep.subr.mxu0 0.0
        %3068 = vmatpush1.msra.mxu0 0.0
        %3069 = vmatprep.subr.mxu0 0.0
        %3070 = vmatpush1.msra.mxu0 0.0
        %3071 = vmatprep.subr.mxu0 0.0
        %3072 = vmatpush1.msra.mxu0 0.0
        %3073 = vmatprep.subr.mxu0 0.0
        %3074 = vmatpush1.msra.mxu0 0.0
        %3075 = vmatprep.subr.mxu0 0.0
        %3076 = vmatpush1.msra.mxu0 0.0
        %3077 = vmatprep.subr.mxu0 0.0
        %3078 = vmatpush1.msra.mxu0 0.0
        %3079 = vmatprep.subr.mxu0 0.0
        %3080 = vmatpush1.msra.mxu0 0.0
        %3081 = vmatprep.subr.mxu0 0.0
        %3082 = vmatpush1.msra.mxu0 0.0
        %3083 = vmatprep.subr.mxu0 0.0
        %3084 = vmatpush1.msra.mxu0 0.0
        %3085 = vmatprep.subr.mxu0 0.0
        %3086 = vmatpush1.msra.mxu0 0.0
        %3087 = vmatprep.subr.mxu0 0.0
        %3088 = vmatpush1.msra.mxu0 0.0
        %3089 = vmatprep.subr.mxu0 0.0
        %3090 = vmatpush1.msra.mxu0 0.0
        %3091 = vmatprep.subr.mxu0 0.0
        %3092 = vmatpush1.msra.mxu0 %v3056
        %3093 = vmatprep.subr.mxu0 0.0
        %3094 = vmatpush2.msra.mxu0 0.0
        %3095 = vmatprep.subr.mxu0 0.0
        %3096 = vmatpush2.msra.mxu0 0.0
        %3097 = vmatprep.subr.mxu0 0.0
        %3098 = vmatpush2.msra.mxu0 0.0
        %3099 = vmatprep.subr.mxu0 0.0
        %3100 = vmatpush2.msra.mxu0 0.0
        %3101 = vmatprep.subr.mxu0 0.0
        %3102 = vmatpush2.msra.mxu0 0.0
        %3103 = vmatprep.subr.mxu0 0.0
        %3104 = vmatpush2.msra.mxu0 0.0
        %3105 = vmatprep.subr.mxu0 0.0
        %3106 = vmatpush2.msra.mxu0 0.0
        %3107 = vmatprep.subr.mxu0 0.0
        %3108 = vmatpush2.msra.mxu0 0.0
        %3109 = vmatprep.subr.mxu0 0.0
        %3110 = vmatpush2.msra.mxu0 0.0
        %3111 = vmatprep.subr.mxu0 0.0
        %3112 = vmatpush2.msra.mxu0 0.0
        %3113 = vmatprep.subr.mxu0 0.0
        %3114 = vmatpush2.msra.mxu0 0.0
        %3115 = vmatprep.subr.mxu0 0.0
        %3116 = vmatpush2.msra.mxu0 0.0
        %3117 = vmatprep.subr.mxu0 0.0
        %3118 = vmatpush2.msra.mxu0 0.0
        %3119 = vmatprep.subr.mxu0 0.0
        %3120 = vmatpush2.msra.mxu0 0.0
        %3121 = vmatprep.subr.mxu0 0.0
        %3122 = vmatpush2.msra.mxu0 0.0
        %3123 = vmatprep.subr.mxu0 0.0
        %3124 = vmatpush2.msra.mxu0 0.0
        %3125 = vmatprep.mubr.f32.mxu0 0.0
        %3126 = vmatmul.mubr.f32.gmra.mxu0 %v3059
        %v3127 = vpop.f32.mrf.mxu0
        %v3128 = vadd.f32 0.0, %v3127
        %v3129 = vpop.f32.mrf.mxu0
        %3130 = vdwg.mxu0
        %v3131 = vadd.f32 %v2888, %v3128
        %v3132 = vlaneseq
        %v3133 = vshrl.u32 %v3132, 7
        %v3134 = vsub.s32 3, %v3133
        %v3135 = vrot.slane %v2062, %v3134
        %v3136 = vadd.f32 %v3131, %v3135
        %v3137 = vadd.f32 %v3136, %v2051
        %v3138 = vsel %vm757, %v3137, 0.0
        %3139 = vadd.xlane.f32.xlu0 %v3138
        %v3140 = vpop.xlane.xlu0 %3139
        %v3141 = vmul.f32 %v3140, %v1836
        %v3142 = vsub.f32 %v3137, %v3141
        %v3143 = vmul.f32 %v3142, %v3142
        %v3144 = vsel %vm757, %v3143, 0.0
        %3145 = vadd.xlane.f32.xlu0 %v3144
        %v3146 = vpop.xlane.xlu0 %3145
        %v3147 = vmul.f32 %v3146, %v1836
        %v3148 = vadd.f32 %v3147, 1e-05
        %v3149 = vrsqrt.pop %v3148
        %v3150 = vmul.f32 %v3142, %v3149
        %v3151 = vlaneseq
        %v3152 = vshrl.u32 %v3151, 7
        %v3153 = vsub.s32 6, %v3152
        %v3154 = vrot.slane %v2062, %v3153
        %v3155 = vmul.f32 %v3150, %v3154
        %v3156 = vlaneseq
        %v3157 = vshrl.u32 %v3156, 7
        %v3158 = vsub.s32 7, %v3157
        %v3159 = vrot.slane %v2062, %v3158
        %v3160 = vadd.f32 %v3155, %v3159
        %v3161 = vlaneseq
        %v3162 = vshrl.u32 %v3161, 7
        %v3163 = vsub.s32 4, %v3162
        %v3164 = vrot.slane %v2062, %v3163
        %v3166 = vsel %vm757, %v3160, 0
        %3168 = vmatprep.subr.mxu0 0.0
        %3169 = vmatpush1.msra.mxu0 0.0
        %3170 = vmatprep.subr.mxu0 0.0
        %3171 = vmatpush1.msra.mxu0 0.0
        %3172 = vmatprep.subr.mxu0 0.0
        %3173 = vmatpush1.msra.mxu0 0.0
        %3174 = vmatprep.subr.mxu0 0.0
        %3175 = vmatpush1.msra.mxu0 0.0
        %3176 = vmatprep.subr.mxu0 0.0
        %3177 = vmatpush1.msra.mxu0 0.0
        %3178 = vmatprep.subr.mxu0 0.0
        %3179 = vmatpush1.msra.mxu0 0.0
        %3180 = vmatprep.subr.mxu0 0.0
        %3181 = vmatpush1.msra.mxu0 0.0
        %3182 = vmatprep.subr.mxu0 0.0
        %3183 = vmatpush1.msra.mxu0 0.0
        %3184 = vmatprep.subr.mxu0 0.0
        %3185 = vmatpush1.msra.mxu0 0.0
        %3186 = vmatprep.subr.mxu0 0.0
        %3187 = vmatpush1.msra.mxu0 0.0
        %3188 = vmatprep.subr.mxu0 0.0
        %3189 = vmatpush1.msra.mxu0 0.0
        %3190 = vmatprep.subr.mxu0 0.0
        %3191 = vmatpush1.msra.mxu0 0.0
        %3192 = vmatprep.subr.mxu0 0.0
        %3193 = vmatpush1.msra.mxu0 %v2060
        %3194 = vmatprep.subr.mxu0 0.0
        %3195 = vmatpush1.msra.mxu0 %v2058
        %3196 = vmatprep.subr.mxu0 0.0
        %3197 = vmatpush1.msra.mxu0 %v2056
        %3198 = vmatprep.subr.mxu0 0.0
        %3199 = vmatpush1.msra.mxu0 %v2054
        %3200 = vmatprep.subr.mxu0 0.0
        %3201 = vmatpush2.msra.mxu0 0.0
        %3202 = vmatprep.subr.mxu0 0.0
        %3203 = vmatpush2.msra.mxu0 0.0
        %3204 = vmatprep.subr.mxu0 0.0
        %3205 = vmatpush2.msra.mxu0 0.0
        %3206 = vmatprep.subr.mxu0 0.0
        %3207 = vmatpush2.msra.mxu0 0.0
        %3208 = vmatprep.subr.mxu0 0.0
        %3209 = vmatpush2.msra.mxu0 0.0
        %3210 = vmatprep.subr.mxu0 0.0
        %3211 = vmatpush2.msra.mxu0 0.0
        %3212 = vmatprep.subr.mxu0 0.0
        %3213 = vmatpush2.msra.mxu0 0.0
        %3214 = vmatprep.subr.mxu0 0.0
        %3215 = vmatpush2.msra.mxu0 0.0
        %3216 = vmatprep.subr.mxu0 0.0
        %3217 = vmatpush2.msra.mxu0 0.0
        %3218 = vmatprep.subr.mxu0 0.0
        %3219 = vmatpush2.msra.mxu0 0.0
        %3220 = vmatprep.subr.mxu0 0.0
        %3221 = vmatpush2.msra.mxu0 0.0
        %3222 = vmatprep.subr.mxu0 0.0
        %3223 = vmatpush2.msra.mxu0 0.0
        %3224 = vmatprep.subr.mxu0 0.0
        %3225 = vmatpush2.msra.mxu0 0.0
        %3226 = vmatprep.subr.mxu0 0.0
        %3227 = vmatpush2.msra.mxu0 0.0
        %3228 = vmatprep.subr.mxu0 0.0
        %3229 = vmatpush2.msra.mxu0 0.0
        %3230 = vmatprep.subr.mxu0 0.0
        %3231 = vmatpush2.msra.mxu0 0.0
        %3232 = vmatprep.mubr.f32.mxu0 0.0
        %3233 = vmatmul.mubr.f32.gmra.mxu0 %v3166
        %v3234 = vpop.f32.mrf.mxu0
        %v3235 = vadd.f32 %v3164, %v3234
        %v3236 = vpop.f32.mrf.mxu0
        %3237 = vdwg.mxu0
        %v3238 = vmax.f32 %v3235, 0.0
        %v3239 = vlaneseq
        %v3240 = vshrl.u32 %v3239, 7
        %v3241 = vsub.s32 5, %v3240
        %v3242 = vrot.slane %v2062, %v3241
        %3247 = vrot.lane.b32.xlu0 %v2054, 96
        %v3248 = vpop.permute.xlu0 %3247
        %3249 = vrot.lane.b32.xlu0 %v2056, 96
        %v3250 = vpop.permute.xlu0 %3249
        %3251 = vrot.lane.b32.xlu0 %v2058, 96
        %v3252 = vpop.permute.xlu0 %3251
        %3253 = vrot.lane.b32.xlu0 %v2060, 96
        %v3254 = vpop.permute.xlu0 %3253
        %v3260 = vsel %vm757, %v3238, 0
        %3262 = vmatprep.subr.mxu0 0.0
        %3263 = vmatpush1.msra.mxu0 0.0
        %3264 = vmatprep.subr.mxu0 0.0
        %3265 = vmatpush1.msra.mxu0 0.0
        %3266 = vmatprep.subr.mxu0 0.0
        %3267 = vmatpush1.msra.mxu0 0.0
        %3268 = vmatprep.subr.mxu0 0.0
        %3269 = vmatpush1.msra.mxu0 0.0
        %3270 = vmatprep.subr.mxu0 0.0
        %3271 = vmatpush1.msra.mxu0 0.0
        %3272 = vmatprep.subr.mxu0 0.0
        %3273 = vmatpush1.msra.mxu0 0.0
        %3274 = vmatprep.subr.mxu0 0.0
        %3275 = vmatpush1.msra.mxu0 0.0
        %3276 = vmatprep.subr.mxu0 0.0
        %3277 = vmatpush1.msra.mxu0 0.0
        %3278 = vmatprep.subr.mxu0 0.0
        %3279 = vmatpush1.msra.mxu0 0.0
        %3280 = vmatprep.subr.mxu0 0.0
        %3281 = vmatpush1.msra.mxu0 0.0
        %3282 = vmatprep.subr.mxu0 0.0
        %3283 = vmatpush1.msra.mxu0 0.0
        %3284 = vmatprep.subr.mxu0 0.0
        %3285 = vmatpush1.msra.mxu0 0.0
        %3286 = vmatprep.subr.mxu0 0.0
        %3287 = vmatpush1.msra.mxu0 %v3254
        %3288 = vmatprep.subr.mxu0 0.0
        %3289 = vmatpush1.msra.mxu0 %v3252
        %3290 = vmatprep.subr.mxu0 0.0
        %3291 = vmatpush1.msra.mxu0 %v3250
        %3292 = vmatprep.subr.mxu0 0.0
        %3293 = vmatpush1.msra.mxu0 %v3248
        %3294 = vmatprep.subr.mxu0 0.0
        %3295 = vmatpush2.msra.mxu0 0.0
        %3296 = vmatprep.subr.mxu0 0.0
        %3297 = vmatpush2.msra.mxu0 0.0
        %3298 = vmatprep.subr.mxu0 0.0
        %3299 = vmatpush2.msra.mxu0 0.0
        %3300 = vmatprep.subr.mxu0 0.0
        %3301 = vmatpush2.msra.mxu0 0.0
        %3302 = vmatprep.subr.mxu0 0.0
        %3303 = vmatpush2.msra.mxu0 0.0
        %3304 = vmatprep.subr.mxu0 0.0
        %3305 = vmatpush2.msra.mxu0 0.0
        %3306 = vmatprep.subr.mxu0 0.0
        %3307 = vmatpush2.msra.mxu0 0.0
        %3308 = vmatprep.subr.mxu0 0.0
        %3309 = vmatpush2.msra.mxu0 0.0
        %3310 = vmatprep.subr.mxu0 0.0
        %3311 = vmatpush2.msra.mxu0 0.0
        %3312 = vmatprep.subr.mxu0 0.0
        %3313 = vmatpush2.msra.mxu0 0.0
        %3314 = vmatprep.subr.mxu0 0.0
        %3315 = vmatpush2.msra.mxu0 0.0
        %3316 = vmatprep.subr.mxu0 0.0
        %3317 = vmatpush2.msra.mxu0 0.0
        %3318 = vmatprep.subr.mxu0 0.0
        %3319 = vmatpush2.msra.mxu0 0.0
        %3320 = vmatprep.subr.mxu0 0.0
        %3321 = vmatpush2.msra.mxu0 0.0
        %3322 = vmatprep.subr.mxu0 0.0
        %3323 = vmatpush2.msra.mxu0 0.0
        %3324 = vmatprep.subr.mxu0 0.0
        %3325 = vmatpush2.msra.mxu0 0.0
        %3326 = vmatprep.mubr.f32.mxu0 0.0
        %3327 = vmatmul.mubr.f32.gmra.mxu0 %v3260
        %v3328 = vpop.f32.mrf.mxu0
        %v3329 = vadd.f32 %v3242, %v3328
        %v3330 = vpop.f32.mrf.mxu0
        %3331 = vdwg.mxu0
        %v3332 = vadd.f32 %v3329, %v3160
        %v3333 = vsel %vm757, %v3332, 0.0
        %3334 = vadd.xlane.f32.xlu0 %v3333
        %v3335 = vpop.xlane.xlu0 %3334
        %v3336 = vmul.f32 %v3335, %v1836
        %v3337 = vsub.f32 %v3332, %v3336
        %v3338 = vmul.f32 %v3337, %v3337
        %v3339 = vsel %vm757, %v3338, 0.0
        %3340 = vadd.xlane.f32.xlu0 %v3339
        %v3341 = vpop.xlane.xlu0 %3340
        %v3342 = vmul.f32 %v3341, %v1836
        %v3343 = vadd.f32 %v3342, 1e-05
        %v3344 = vrsqrt.pop %v3343
        %v3345 = vmul.f32 %v3337, %v3344
        %v3346 = vlaneseq
        %v3347 = vshrl.u32 %v3346, 7
        %v3348 = vsub.s32 0, %v3347
        %v3349 = vrot.slane %v2063, %v3348
        %v3350 = vmul.f32 %v3345, %v3349
        %v3351 = vlaneseq
        %v3352 = vshrl.u32 %v3351, 7
        %v3353 = vsub.s32 1, %v3352
        %v3354 = vrot.slane %v2063, %v3353
        %v3355 = vadd.f32 %v3350, %v3354
        %v3356 = vld [vmem:[%s564] sm:$0xff]
        %3357 = vset.pattern.permute.xlu0 0
        %3358 = vperm.xlu0 %3357, %v3356
        %v3359 = vpop.permute.xlu0 %3358
        %vm3360 = vcmp.eq.s32.totalorder %v568, %v3359
        %v3361 = vsel %vm3360, 1, 0
        %v3362 = vcvt.s32.f32 %v3361
        %v3363 = vld [vmem:[#allocation8] sm:$0xff]
        %v3364 = vld [vmem:[#allocation8 + $0x8] sm:$0x3]
        %vm3365 = vcmask 80896
        %v3367 = vsel %vm3365, %v3362, 0
        %vm3369 = vcmask 1041408
        %v3371 = vsel %vm3369, %v3364, 0
        %3373 = vmatprep.subr.mxu0 0.0
        %3374 = vmatpush1.msra.mxu0 0.0
        %3375 = vmatprep.subr.mxu0 0.0
        %3376 = vmatpush1.msra.mxu0 0.0
        %3377 = vmatprep.subr.mxu0 0.0
        %3378 = vmatpush1.msra.mxu0 0.0
        %3379 = vmatprep.subr.mxu0 0.0
        %3380 = vmatpush1.msra.mxu0 0.0
        %3381 = vmatprep.subr.mxu0 0.0
        %3382 = vmatpush1.msra.mxu0 0.0
        %3383 = vmatprep.subr.mxu0 0.0
        %3384 = vmatpush1.msra.mxu0 0.0
        %3385 = vmatprep.subr.mxu0 0.0
        %3386 = vmatpush1.msra.mxu0 0.0
        %3387 = vmatprep.subr.mxu0 0.0
        %3388 = vmatpush1.msra.mxu0 0.0
        %3389 = vmatprep.subr.mxu0 0.0
        %3390 = vmatpush1.msra.mxu0 0.0
        %3391 = vmatprep.subr.mxu0 0.0
        %3392 = vmatpush1.msra.mxu0 0.0
        %3393 = vmatprep.subr.mxu0 0.0
        %3394 = vmatpush1.msra.mxu0 0.0
        %3395 = vmatprep.subr.mxu0 0.0
        %3396 = vmatpush1.msra.mxu0 0.0
        %3397 = vmatprep.subr.mxu0 0.0
        %3398 = vmatpush1.msra.mxu0 0.0
        %3399 = vmatprep.subr.mxu0 0.0
        %3400 = vmatpush1.msra.mxu0 0.0
        %3401 = vmatprep.subr.mxu0 0.0
        %3402 = vmatpush1.msra.mxu0 %v3371
        %3403 = vmatprep.subr.mxu0 0.0
        %3404 = vmatpush1.msra.mxu0 %v3363
        %3405 = vmatprep.subr.mxu0 0.0
        %3406 = vmatpush2.msra.mxu0 0.0
        %3407 = vmatprep.subr.mxu0 0.0
        %3408 = vmatpush2.msra.mxu0 0.0
        %3409 = vmatprep.subr.mxu0 0.0
        %3410 = vmatpush2.msra.mxu0 0.0
        %3411 = vmatprep.subr.mxu0 0.0
        %3412 = vmatpush2.msra.mxu0 0.0
        %3413 = vmatprep.subr.mxu0 0.0
        %3414 = vmatpush2.msra.mxu0 0.0
        %3415 = vmatprep.subr.mxu0 0.0
        %3416 = vmatpush2.msra.mxu0 0.0
        %3417 = vmatprep.subr.mxu0 0.0
        %3418 = vmatpush2.msra.mxu0 0.0
        %3419 = vmatprep.subr.mxu0 0.0
        %3420 = vmatpush2.msra.mxu0 0.0
        %3421 = vmatprep.subr.mxu0 0.0
        %3422 = vmatpush2.msra.mxu0 0.0
        %3423 = vmatprep.subr.mxu0 0.0
        %3424 = vmatpush2.msra.mxu0 0.0
        %3425 = vmatprep.subr.mxu0 0.0
        %3426 = vmatpush2.msra.mxu0 0.0
        %3427 = vmatprep.subr.mxu0 0.0
        %3428 = vmatpush2.msra.mxu0 0.0
        %3429 = vmatprep.subr.mxu0 0.0
        %3430 = vmatpush2.msra.mxu0 0.0
        %3431 = vmatprep.subr.mxu0 0.0
        %3432 = vmatpush2.msra.mxu0 0.0
        %3433 = vmatprep.subr.mxu0 0.0
        %3434 = vmatpush2.msra.mxu0 0.0
        %3435 = vmatprep.subr.mxu0 0.0
        %3436 = vmatpush2.msra.mxu0 0.0
        %3437 = vmatprep.mubr.f32.mxu0 0.0
        %3438 = vmatmul.mubr.f32.gmra.mxu0 %v3367
        %v3439 = vpop.f32.mrf.mxu0
        %v3440 = vadd.f32 %v571, %v3439
        %v3441 = vpop.f32.mrf.mxu0
        %3442 = vdwg.mxu0
        %v3443 = vld [vmem:[#allocation10] sm:$0xff]
        %v3444 = vld [vmem:[#allocation10 + $0x8] sm:$0xff]
        %v3445 = vld [vmem:[#allocation10 + $0x10] sm:$0xff]
        %v3446 = vld [vmem:[#allocation10 + $0x18] sm:$0xff]
        %v3447 = vld [vmem:[#allocation10 + $0x20] sm:$0xff]
        %v3448 = vld [vmem:[#allocation10 + $0x28] sm:$0xff]
        %v3449 = vld [vmem:[#allocation10 + $0x30] sm:$0xff]
        %v3450 = vld [vmem:[#allocation10 + $0x38] sm:$0xff]
        %v3451 = vld [vmem:[#allocation10 + $0x40] sm:$0xff]
        %v3452 = vld [vmem:[#allocation10 + $0x48] sm:$0xff]
        %v3453 = vld [vmem:[#allocation10 + $0x50] sm:$0xff]
        %v3454 = vld [vmem:[#allocation10 + $0x58] sm:$0xff]
        %v3455 = vld [vmem:[%s10] sm:$0xff]
        %v3456 = vld [vmem:[%s10 + $0x8] sm:$0x3f]
        %v3458 = vsel %vm757, %v3440, 0
        %3460 = vmatprep.subr.mxu0 0.0
        %3461 = vmatpush1.msra.mxu0 0.0
        %3462 = vmatprep.subr.mxu0 0.0
        %3463 = vmatpush1.msra.mxu0 0.0
        %3464 = vmatprep.subr.mxu0 0.0
        %3465 = vmatpush1.msra.mxu0 0.0
        %3466 = vmatprep.subr.mxu0 0.0
        %3467 = vmatpush1.msra.mxu0 0.0
        %3468 = vmatprep.subr.mxu0 0.0
        %3469 = vmatpush1.msra.mxu0 0.0
        %3470 = vmatprep.subr.mxu0 0.0
        %3471 = vmatpush1.msra.mxu0 0.0
        %3472 = vmatprep.subr.mxu0 0.0
        %3473 = vmatpush1.msra.mxu0 0.0
        %3474 = vmatprep.subr.mxu0 0.0
        %3475 = vmatpush1.msra.mxu0 0.0
        %3476 = vmatprep.subr.mxu0 0.0
        %3477 = vmatpush1.msra.mxu0 0.0
        %3478 = vmatprep.subr.mxu0 0.0
        %3479 = vmatpush1.msra.mxu0 0.0
        %3480 = vmatprep.subr.mxu0 0.0
        %3481 = vmatpush1.msra.mxu0 0.0
        %3482 = vmatprep.subr.mxu0 0.0
        %3483 = vmatpush1.msra.mxu0 0.0
        %3484 = vmatprep.subr.mxu0 0.0
        %3485 = vmatpush1.msra.mxu0 %v3452
        %3486 = vmatprep.subr.mxu0 0.0
        %3487 = vmatpush1.msra.mxu0 %v3449
        %3488 = vmatprep.subr.mxu0 0.0
        %3489 = vmatpush1.msra.mxu0 %v3446
        %3490 = vmatprep.subr.mxu0 0.0
        %3491 = vmatpush1.msra.mxu0 %v3443
        %3492 = vmatprep.subr.mxu0 0.0
        %3493 = vmatpush2.msra.mxu0 0.0
        %3494 = vmatprep.subr.mxu0 0.0
        %3495 = vmatpush2.msra.mxu0 0.0
        %3496 = vmatprep.subr.mxu0 0.0
        %3497 = vmatpush2.msra.mxu0 0.0
        %3498 = vmatprep.subr.mxu0 0.0
        %3499 = vmatpush2.msra.mxu0 0.0
        %3500 = vmatprep.subr.mxu0 0.0
        %3501 = vmatpush2.msra.mxu0 0.0
        %3502 = vmatprep.subr.mxu0 0.0
        %3503 = vmatpush2.msra.mxu0 0.0
        %3504 = vmatprep.subr.mxu0 0.0
        %3505 = vmatpush2.msra.mxu0 0.0
        %3506 = vmatprep.subr.mxu0 0.0
        %3507 = vmatpush2.msra.mxu0 0.0
        %3508 = vmatprep.subr.mxu0 0.0
        %3509 = vmatpush2.msra.mxu0 0.0
        %3510 = vmatprep.subr.mxu0 0.0
        %3511 = vmatpush2.msra.mxu0 0.0
        %3512 = vmatprep.subr.mxu0 0.0
        %3513 = vmatpush2.msra.mxu0 0.0
        %3514 = vmatprep.subr.mxu0 0.0
        %3515 = vmatpush2.msra.mxu0 0.0
        %3516 = vmatprep.subr.mxu0 0.0
        %3517 = vmatpush2.msra.mxu0 0.0
        %3518 = vmatprep.subr.mxu0 0.0
        %3519 = vmatpush2.msra.mxu0 0.0
        %3520 = vmatprep.subr.mxu0 0.0
        %3521 = vmatpush2.msra.mxu0 0.0
        %3522 = vmatprep.subr.mxu0 0.0
        %3523 = vmatpush2.msra.mxu0 0.0
        %3524 = vmatprep.mubr.f32.mxu0 0.0
        %3525 = vmatmul.mubr.f32.gmra.mxu0 %v3458
        %v3526 = vpop.f32.mrf.mxu0
        %v3527 = vadd.f32 0.0, %v3526
        %v3528 = vpop.f32.mrf.mxu0
        %3529 = vdwg.mxu0
        %v3530 = vlaneseq
        %v3531 = vshrl.u32 %v3530, 7
        %v3532 = vsub.s32 0, %v3531
        %v3533 = vrot.slane %v3455, %v3532
        %v3534 = vadd.f32 %v3527, %v3533
        %v3535 = vlaneseq
        %v3536 = vshrl.u32 %v3535, 7
        %v3537 = vsub.s32 1, %v3536
        %v3538 = vrot.slane %v3455, %v3537
        %3540 = vrot.lane.b32.xlu0 %v3538, 32
        %v3541 = vpop.permute.xlu0 %3540
        %v3543 = vadd.f32 %v3527, %v3541
        %v3544 = vlaneseq
        %v3545 = vshrl.u32 %v3544, 7
        %v3546 = vsub.s32 2, %v3545
        %v3547 = vrot.slane %v3455, %v3546
        %3549 = vrot.lane.b32.xlu0 %v3547, 64
        %v3550 = vpop.permute.xlu0 %3549
        %v3552 = vadd.f32 %v3527, %v3550
        %v3553 = vmul.f32 %v3534, 0.35355338
        %3555 = vrot.lane.b32.xlu0 %v3543, 96
        %v3556 = vpop.permute.xlu0 %3555
        %v3558 = vsel %vm858, %v3553, 0
        %v3560 = vsel %vm858, %v3556, 0
        %3562 = vmatprep.subr.mxu0 0.0
        %3563 = vmatpush1.xpose.msra.mxu0 0.0
        %3564 = vmatprep.subr.mxu0 0.0
        %3565 = vmatpush1.xpose.msra.mxu0 0.0
        %3566 = vmatprep.subr.mxu0 0.0
        %3567 = vmatpush1.xpose.msra.mxu0 0.0
        %3568 = vmatprep.subr.mxu0 0.0
        %3569 = vmatpush1.xpose.msra.mxu0 0.0
        %3570 = vmatprep.subr.mxu0 0.0
        %3571 = vmatpush1.xpose.msra.mxu0 0.0
        %3572 = vmatprep.subr.mxu0 0.0
        %3573 = vmatpush1.xpose.msra.mxu0 0.0
        %3574 = vmatprep.subr.mxu0 0.0
        %3575 = vmatpush1.xpose.msra.mxu0 0.0
        %3576 = vmatprep.subr.mxu0 0.0
        %3577 = vmatpush1.xpose.msra.mxu0 0.0
        %3578 = vmatprep.subr.mxu0 0.0
        %3579 = vmatpush1.xpose.msra.mxu0 0.0
        %3580 = vmatprep.subr.mxu0 0.0
        %3581 = vmatpush1.xpose.msra.mxu0 0.0
        %3582 = vmatprep.subr.mxu0 0.0
        %3583 = vmatpush1.xpose.msra.mxu0 0.0
        %3584 = vmatprep.subr.mxu0 0.0
        %3585 = vmatpush1.xpose.msra.mxu0 0.0
        %3586 = vmatprep.subr.mxu0 0.0
        %3587 = vmatpush1.xpose.msra.mxu0 0.0
        %3588 = vmatprep.subr.mxu0 0.0
        %3589 = vmatpush1.xpose.msra.mxu0 0.0
        %3590 = vmatprep.subr.mxu0 0.0
        %3591 = vmatpush1.xpose.msra.mxu0 0.0
        %3592 = vmatprep.subr.mxu0 0.0
        %3593 = vmatpush1.xpose.msra.mxu0 %v3560
        %3594 = vmatprep.subr.mxu0 0.0
        %3595 = vmatpush2.xpose.msra.mxu0 0.0
        %3596 = vmatprep.subr.mxu0 0.0
        %3597 = vmatpush2.xpose.msra.mxu0 0.0
        %3598 = vmatprep.subr.mxu0 0.0
        %3599 = vmatpush2.xpose.msra.mxu0 0.0
        %3600 = vmatprep.subr.mxu0 0.0
        %3601 = vmatpush2.xpose.msra.mxu0 0.0
        %3602 = vmatprep.subr.mxu0 0.0
        %3603 = vmatpush2.xpose.msra.mxu0 0.0
        %3604 = vmatprep.subr.mxu0 0.0
        %3605 = vmatpush2.xpose.msra.mxu0 0.0
        %3606 = vmatprep.subr.mxu0 0.0
        %3607 = vmatpush2.xpose.msra.mxu0 0.0
        %3608 = vmatprep.subr.mxu0 0.0
        %3609 = vmatpush2.xpose.msra.mxu0 0.0
        %3610 = vmatprep.subr.mxu0 0.0
        %3611 = vmatpush2.xpose.msra.mxu0 0.0
        %3612 = vmatprep.subr.mxu0 0.0
        %3613 = vmatpush2.xpose.msra.mxu0 0.0
        %3614 = vmatprep.subr.mxu0 0.0
        %3615 = vmatpush2.xpose.msra.mxu0 0.0
        %3616 = vmatprep.subr.mxu0 0.0
        %3617 = vmatpush2.xpose.msra.mxu0 0.0
        %3618 = vmatprep.subr.mxu0 0.0
        %3619 = vmatpush2.xpose.msra.mxu0 0.0
        %3620 = vmatprep.subr.mxu0 0.0
        %3621 = vmatpush2.xpose.msra.mxu0 0.0
        %3622 = vmatprep.subr.mxu0 0.0
        %3623 = vmatpush2.xpose.msra.mxu0 0.0
        %3624 = vmatprep.subr.mxu0 0.0
        %3625 = vmatpush2.xpose.msra.mxu0 0.0
        %3626 = vmatprep.mubr.f32.mxu0 0.0
        %3627 = vmatmul.mubr.f32.gmra.mxu0 %v3558
        %v3628 = vpop.f32.mrf.mxu0
        %v3629 = vadd.f32 %v570, %v3628
        %v3630 = vpop.f32.mrf.mxu0
        %3631 = vdwg.mxu0
        %v3632 = vsel %vm858, %v3629, -inf
        %3633 = vmax.xlane.f32.xlu0 %v3632
        %v3634 = vpop.xlane.xlu0 %3633
        %v3635 = vsub.f32 %v3629, %v3634
        %v3636 = vmul.f32 %v3635, 1.442695
        %v3637 = vpow.pop %v3636
        %v3638 = vsel %vm858, %v3637, 0.0
        %3639 = vadd.xlane.f32.xlu0 %v3638
        %v3640 = vpop.xlane.xlu0 %3639
        %v3641 = vrcp.pop %v3640
        %v3642 = vmul.f32 %v3637, %v3641
        %3644 = vrot.lane.b32.xlu0 %v3552, 64
        %v3645 = vpop.permute.xlu0 %3644
        %v3648 = vsel %vm858, %v3642, 0
        %3650 = vmatprep.subr.mxu0 0.0
        %3651 = vmatpush1.msra.mxu0 0.0
        %3652 = vmatprep.subr.mxu0 0.0
        %3653 = vmatpush1.msra.mxu0 0.0
        %3654 = vmatprep.subr.mxu0 0.0
        %3655 = vmatpush1.msra.mxu0 0.0
        %3656 = vmatprep.subr.mxu0 0.0
        %3657 = vmatpush1.msra.mxu0 0.0
        %3658 = vmatprep.subr.mxu0 0.0
        %3659 = vmatpush1.msra.mxu0 0.0
        %3660 = vmatprep.subr.mxu0 0.0
        %3661 = vmatpush1.msra.mxu0 0.0
        %3662 = vmatprep.subr.mxu0 0.0
        %3663 = vmatpush1.msra.mxu0 0.0
        %3664 = vmatprep.subr.mxu0 0.0
        %3665 = vmatpush1.msra.mxu0 0.0
        %3666 = vmatprep.subr.mxu0 0.0
        %3667 = vmatpush1.msra.mxu0 0.0
        %3668 = vmatprep.subr.mxu0 0.0
        %3669 = vmatpush1.msra.mxu0 0.0
        %3670 = vmatprep.subr.mxu0 0.0
        %3671 = vmatpush1.msra.mxu0 0.0
        %3672 = vmatprep.subr.mxu0 0.0
        %3673 = vmatpush1.msra.mxu0 0.0
        %3674 = vmatprep.subr.mxu0 0.0
        %3675 = vmatpush1.msra.mxu0 0.0
        %3676 = vmatprep.subr.mxu0 0.0
        %3677 = vmatpush1.msra.mxu0 0.0
        %3678 = vmatprep.subr.mxu0 0.0
        %3679 = vmatpush1.msra.mxu0 0.0
        %3680 = vmatprep.subr.mxu0 0.0
        %3681 = vmatpush1.msra.mxu0 %v3645
        %3682 = vmatprep.subr.mxu0 0.0
        %3683 = vmatpush2.msra.mxu0 0.0
        %3684 = vmatprep.subr.mxu0 0.0
        %3685 = vmatpush2.msra.mxu0 0.0
        %3686 = vmatprep.subr.mxu0 0.0
        %3687 = vmatpush2.msra.mxu0 0.0
        %3688 = vmatprep.subr.mxu0 0.0
        %3689 = vmatpush2.msra.mxu0 0.0
        %3690 = vmatprep.subr.mxu0 0.0
        %3691 = vmatpush2.msra.mxu0 0.0
        %3692 = vmatprep.subr.mxu0 0.0
        %3693 = vmatpush2.msra.mxu0 0.0
        %3694 = vmatprep.subr.mxu0 0.0
        %3695 = vmatpush2.msra.mxu0 0.0
        %3696 = vmatprep.subr.mxu0 0.0
        %3697 = vmatpush2.msra.mxu0 0.0
        %3698 = vmatprep.subr.mxu0 0.0
        %3699 = vmatpush2.msra.mxu0 0.0
        %3700 = vmatprep.subr.mxu0 0.0
        %3701 = vmatpush2.msra.mxu0 0.0
        %3702 = vmatprep.subr.mxu0 0.0
        %3703 = vmatpush2.msra.mxu0 0.0
        %3704 = vmatprep.subr.mxu0 0.0
        %3705 = vmatpush2.msra.mxu0 0.0
        %3706 = vmatprep.subr.mxu0 0.0
        %3707 = vmatpush2.msra.mxu0 0.0
        %3708 = vmatprep.subr.mxu0 0.0
        %3709 = vmatpush2.msra.mxu0 0.0
        %3710 = vmatprep.subr.mxu0 0.0
        %3711 = vmatpush2.msra.mxu0 0.0
        %3712 = vmatprep.subr.mxu0 0.0
        %3713 = vmatpush2.msra.mxu0 0.0
        %3714 = vmatprep.mubr.f32.mxu0 0.0
        %3715 = vmatmul.mubr.f32.gmra.mxu0 %v3648
        %v3716 = vpop.f32.mrf.mxu0
        %v3717 = vadd.f32 0.0, %v3716
        %v3718 = vpop.f32.mrf.mxu0
        %3719 = vdwg.mxu0
        %3720 = vrot.lane.b32.xlu0 %v3553, 120
        %v3721 = vpop.permute.xlu0 %3720
        %3722 = vrot.lane.b32.xlu0 %v3543, 88
        %v3723 = vpop.permute.xlu0 %3722
        %v3724 = vsel %vm858, %v3721, 0
        %v3726 = vsel %vm858, %v3723, 0
        %3728 = vmatprep.subr.mxu0 0.0
        %3729 = vmatpush1.xpose.msra.mxu0 0.0
        %3730 = vmatprep.subr.mxu0 0.0
        %3731 = vmatpush1.xpose.msra.mxu0 0.0
        %3732 = vmatprep.subr.mxu0 0.0
        %3733 = vmatpush1.xpose.msra.mxu0 0.0
        %3734 = vmatprep.subr.mxu0 0.0
        %3735 = vmatpush1.xpose.msra.mxu0 0.0
        %3736 = vmatprep.subr.mxu0 0.0
        %3737 = vmatpush1.xpose.msra.mxu0 0.0
        %3738 = vmatprep.subr.mxu0 0.0
        %3739 = vmatpush1.xpose.msra.mxu0 0.0
        %3740 = vmatprep.subr.mxu0 0.0
        %3741 = vmatpush1.xpose.msra.mxu0 0.0
        %3742 = vmatprep.subr.mxu0 0.0
        %3743 = vmatpush1.xpose.msra.mxu0 0.0
        %3744 = vmatprep.subr.mxu0 0.0
        %3745 = vmatpush1.xpose.msra.mxu0 0.0
        %3746 = vmatprep.subr.mxu0 0.0
        %3747 = vmatpush1.xpose.msra.mxu0 0.0
        %3748 = vmatprep.subr.mxu0 0.0
        %3749 = vmatpush1.xpose.msra.mxu0 0.0
        %3750 = vmatprep.subr.mxu0 0.0
        %3751 = vmatpush1.xpose.msra.mxu0 0.0
        %3752 = vmatprep.subr.mxu0 0.0
        %3753 = vmatpush1.xpose.msra.mxu0 0.0
        %3754 = vmatprep.subr.mxu0 0.0
        %3755 = vmatpush1.xpose.msra.mxu0 0.0
        %3756 = vmatprep.subr.mxu0 0.0
        %3757 = vmatpush1.xpose.msra.mxu0 0.0
        %3758 = vmatprep.subr.mxu0 0.0
        %3759 = vmatpush1.xpose.msra.mxu0 %v3726
        %3760 = vmatprep.subr.mxu0 0.0
        %3761 = vmatpush2.xpose.msra.mxu0 0.0
        %3762 = vmatprep.subr.mxu0 0.0
        %3763 = vmatpush2.xpose.msra.mxu0 0.0
        %3764 = vmatprep.subr.mxu0 0.0
        %3765 = vmatpush2.xpose.msra.mxu0 0.0
        %3766 = vmatprep.subr.mxu0 0.0
        %3767 = vmatpush2.xpose.msra.mxu0 0.0
        %3768 = vmatprep.subr.mxu0 0.0
        %3769 = vmatpush2.xpose.msra.mxu0 0.0
        %3770 = vmatprep.subr.mxu0 0.0
        %3771 = vmatpush2.xpose.msra.mxu0 0.0
        %3772 = vmatprep.subr.mxu0 0.0
        %3773 = vmatpush2.xpose.msra.mxu0 0.0
        %3774 = vmatprep.subr.mxu0 0.0
        %3775 = vmatpush2.xpose.msra.mxu0 0.0
        %3776 = vmatprep.subr.mxu0 0.0
        %3777 = vmatpush2.xpose.msra.mxu0 0.0
        %3778 = vmatprep.subr.mxu0 0.0
        %3779 = vmatpush2.xpose.msra.mxu0 0.0
        %3780 = vmatprep.subr.mxu0 0.0
        %3781 = vmatpush2.xpose.msra.mxu0 0.0
        %3782 = vmatprep.subr.mxu0 0.0
        %3783 = vmatpush2.xpose.msra.mxu0 0.0
        %3784 = vmatprep.subr.mxu0 0.0
        %3785 = vmatpush2.xpose.msra.mxu0 0.0
        %3786 = vmatprep.subr.mxu0 0.0
        %3787 = vmatpush2.xpose.msra.mxu0 0.0
        %3788 = vmatprep.subr.mxu0 0.0
        %3789 = vmatpush2.xpose.msra.mxu0 0.0
        %3790 = vmatprep.subr.mxu0 0.0
        %3791 = vmatpush2.xpose.msra.mxu0 0.0
        %3792 = vmatprep.mubr.f32.mxu0 0.0
        %3793 = vmatmul.mubr.f32.gmra.mxu0 %v3724
        %v3794 = vpop.f32.mrf.mxu0
        %v3795 = vadd.f32 %v570, %v3794
        %v3796 = vpop.f32.mrf.mxu0
        %3797 = vdwg.mxu0
        %v3798 = vsel %vm858, %v3795, -inf
        %3799 = vmax.xlane.f32.xlu0 %v3798
        %v3800 = vpop.xlane.xlu0 %3799
        %v3801 = vsub.f32 %v3795, %v3800
        %v3802 = vmul.f32 %v3801, 1.442695
        %v3803 = vpow.pop %v3802
        %v3804 = vsel %vm858, %v3803, 0.0
        %3805 = vadd.xlane.f32.xlu0 %v3804
        %v3806 = vpop.xlane.xlu0 %3805
        %v3807 = vrcp.pop %v3806
        %v3808 = vmul.f32 %v3803, %v3807
        %3809 = vrot.lane.b32.xlu0 %v3552, 56
        %v3810 = vpop.permute.xlu0 %3809
        %v3813 = vsel %vm858, %v3808, 0
        %3815 = vmatprep.subr.mxu0 0.0
        %3816 = vmatpush1.msra.mxu0 0.0
        %3817 = vmatprep.subr.mxu0 0.0
        %3818 = vmatpush1.msra.mxu0 0.0
        %3819 = vmatprep.subr.mxu0 0.0
        %3820 = vmatpush1.msra.mxu0 0.0
        %3821 = vmatprep.subr.mxu0 0.0
        %3822 = vmatpush1.msra.mxu0 0.0
        %3823 = vmatprep.subr.mxu0 0.0
        %3824 = vmatpush1.msra.mxu0 0.0
        %3825 = vmatprep.subr.mxu0 0.0
        %3826 = vmatpush1.msra.mxu0 0.0
        %3827 = vmatprep.subr.mxu0 0.0
        %3828 = vmatpush1.msra.mxu0 0.0
        %3829 = vmatprep.subr.mxu0 0.0
        %3830 = vmatpush1.msra.mxu0 0.0
        %3831 = vmatprep.subr.mxu0 0.0
        %3832 = vmatpush1.msra.mxu0 0.0
        %3833 = vmatprep.subr.mxu0 0.0
        %3834 = vmatpush1.msra.mxu0 0.0
        %3835 = vmatprep.subr.mxu0 0.0
        %3836 = vmatpush1.msra.mxu0 0.0
        %3837 = vmatprep.subr.mxu0 0.0
        %3838 = vmatpush1.msra.mxu0 0.0
        %3839 = vmatprep.subr.mxu0 0.0
        %3840 = vmatpush1.msra.mxu0 0.0
        %3841 = vmatprep.subr.mxu0 0.0
        %3842 = vmatpush1.msra.mxu0 0.0
        %3843 = vmatprep.subr.mxu0 0.0
        %3844 = vmatpush1.msra.mxu0 0.0
        %3845 = vmatprep.subr.mxu0 0.0
        %3846 = vmatpush1.msra.mxu0 %v3810
        %3847 = vmatprep.subr.mxu0 0.0
        %3848 = vmatpush2.msra.mxu0 0.0
        %3849 = vmatprep.subr.mxu0 0.0
        %3850 = vmatpush2.msra.mxu0 0.0
        %3851 = vmatprep.subr.mxu0 0.0
        %3852 = vmatpush2.msra.mxu0 0.0
        %3853 = vmatprep.subr.mxu0 0.0
        %3854 = vmatpush2.msra.mxu0 0.0
        %3855 = vmatprep.subr.mxu0 0.0
        %3856 = vmatpush2.msra.mxu0 0.0
        %3857 = vmatprep.subr.mxu0 0.0
        %3858 = vmatpush2.msra.mxu0 0.0
        %3859 = vmatprep.subr.mxu0 0.0
        %3860 = vmatpush2.msra.mxu0 0.0
        %3861 = vmatprep.subr.mxu0 0.0
        %3862 = vmatpush2.msra.mxu0 0.0
        %3863 = vmatprep.subr.mxu0 0.0
        %3864 = vmatpush2.msra.mxu0 0.0
        %3865 = vmatprep.subr.mxu0 0.0
        %3866 = vmatpush2.msra.mxu0 0.0
        %3867 = vmatprep.subr.mxu0 0.0
        %3868 = vmatpush2.msra.mxu0 0.0
        %3869 = vmatprep.subr.mxu0 0.0
        %3870 = vmatpush2.msra.mxu0 0.0
        %3871 = vmatprep.subr.mxu0 0.0
        %3872 = vmatpush2.msra.mxu0 0.0
        %3873 = vmatprep.subr.mxu0 0.0
        %3874 = vmatpush2.msra.mxu0 0.0
        %3875 = vmatprep.subr.mxu0 0.0
        %3876 = vmatpush2.msra.mxu0 0.0
        %3877 = vmatprep.subr.mxu0 0.0
        %3878 = vmatpush2.msra.mxu0 0.0
        %3879 = vmatprep.mubr.f32.mxu0 0.0
        %3880 = vmatmul.mubr.f32.gmra.mxu0 %v3813
        %v3881 = vpop.f32.mrf.mxu0
        %v3882 = vadd.f32 0.0, %v3881
        %v3883 = vpop.f32.mrf.mxu0
        %3884 = vdwg.mxu0
        %3886 = vrot.lane.b32.xlu0 %v3446, 32
        %v3887 = vpop.permute.xlu0 %3886
        %v3890 = vsel %vm858, %v3882, 0
        %3892 = vmatprep.subr.mxu0 0.0
        %3893 = vmatpush1.msra.mxu0 0.0
        %3894 = vmatprep.subr.mxu0 0.0
        %3895 = vmatpush1.msra.mxu0 0.0
        %3896 = vmatprep.subr.mxu0 0.0
        %3897 = vmatpush1.msra.mxu0 0.0
        %3898 = vmatprep.subr.mxu0 0.0
        %3899 = vmatpush1.msra.mxu0 0.0
        %3900 = vmatprep.subr.mxu0 0.0
        %3901 = vmatpush1.msra.mxu0 0.0
        %3902 = vmatprep.subr.mxu0 0.0
        %3903 = vmatpush1.msra.mxu0 0.0
        %3904 = vmatprep.subr.mxu0 0.0
        %3905 = vmatpush1.msra.mxu0 0.0
        %3906 = vmatprep.subr.mxu0 0.0
        %3907 = vmatpush1.msra.mxu0 0.0
        %3908 = vmatprep.subr.mxu0 0.0
        %3909 = vmatpush1.msra.mxu0 0.0
        %3910 = vmatprep.subr.mxu0 0.0
        %3911 = vmatpush1.msra.mxu0 0.0
        %3912 = vmatprep.subr.mxu0 0.0
        %3913 = vmatpush1.msra.mxu0 0.0
        %3914 = vmatprep.subr.mxu0 0.0
        %3915 = vmatpush1.msra.mxu0 0.0
        %3916 = vmatprep.subr.mxu0 0.0
        %3917 = vmatpush1.msra.mxu0 0.0
        %3918 = vmatprep.subr.mxu0 0.0
        %3919 = vmatpush1.msra.mxu0 0.0
        %3920 = vmatprep.subr.mxu0 0.0
        %3921 = vmatpush1.msra.mxu0 0.0
        %3922 = vmatprep.subr.mxu0 0.0
        %3923 = vmatpush1.msra.mxu0 %v3887
        %3924 = vmatprep.subr.mxu0 0.0
        %3925 = vmatpush2.msra.mxu0 0.0
        %3926 = vmatprep.subr.mxu0 0.0
        %3927 = vmatpush2.msra.mxu0 0.0
        %3928 = vmatprep.subr.mxu0 0.0
        %3929 = vmatpush2.msra.mxu0 0.0
        %3930 = vmatprep.subr.mxu0 0.0
        %3931 = vmatpush2.msra.mxu0 0.0
        %3932 = vmatprep.subr.mxu0 0.0
        %3933 = vmatpush2.msra.mxu0 0.0
        %3934 = vmatprep.subr.mxu0 0.0
        %3935 = vmatpush2.msra.mxu0 0.0
        %3936 = vmatprep.subr.mxu0 0.0
        %3937 = vmatpush2.msra.mxu0 0.0
        %3938 = vmatprep.subr.mxu0 0.0
        %3939 = vmatpush2.msra.mxu0 0.0
        %3940 = vmatprep.subr.mxu0 0.0
        %3941 = vmatpush2.msra.mxu0 0.0
        %3942 = vmatprep.subr.mxu0 0.0
        %3943 = vmatpush2.msra.mxu0 0.0
        %3944 = vmatprep.subr.mxu0 0.0
        %3945 = vmatpush2.msra.mxu0 0.0
        %3946 = vmatprep.subr.mxu0 0.0
        %3947 = vmatpush2.msra.mxu0 0.0
        %3948 = vmatprep.subr.mxu0 0.0
        %3949 = vmatpush2.msra.mxu0 0.0
        %3950 = vmatprep.subr.mxu0 0.0
        %3951 = vmatpush2.msra.mxu0 0.0
        %3952 = vmatprep.subr.mxu0 0.0
        %3953 = vmatpush2.msra.mxu0 0.0
        %3954 = vmatprep.subr.mxu0 0.0
        %3955 = vmatpush2.msra.mxu0 0.0
        %3956 = vmatprep.mubr.f32.mxu0 0.0
        %3957 = vmatmul.mubr.f32.gmra.mxu0 %v3890
        %v3958 = vpop.f32.mrf.mxu0
        %v3959 = vadd.f32 0.0, %v3958
        %v3960 = vpop.f32.mrf.mxu0
        %3961 = vdwg.mxu0
        %3963 = vrot.lane.b32.xlu0 %v3443, 32
        %v3964 = vpop.permute.xlu0 %3963
        %v3967 = vsel %vm858, %v3717, 0
        %3969 = vmatprep.subr.mxu0 0.0
        %3970 = vmatpush1.msra.mxu0 0.0
        %3971 = vmatprep.subr.mxu0 0.0
        %3972 = vmatpush1.msra.mxu0 0.0
        %3973 = vmatprep.subr.mxu0 0.0
        %3974 = vmatpush1.msra.mxu0 0.0
        %3975 = vmatprep.subr.mxu0 0.0
        %3976 = vmatpush1.msra.mxu0 0.0
        %3977 = vmatprep.subr.mxu0 0.0
        %3978 = vmatpush1.msra.mxu0 0.0
        %3979 = vmatprep.subr.mxu0 0.0
        %3980 = vmatpush1.msra.mxu0 0.0
        %3981 = vmatprep.subr.mxu0 0.0
        %3982 = vmatpush1.msra.mxu0 0.0
        %3983 = vmatprep.subr.mxu0 0.0
        %3984 = vmatpush1.msra.mxu0 0.0
        %3985 = vmatprep.subr.mxu0 0.0
        %3986 = vmatpush1.msra.mxu0 0.0
        %3987 = vmatprep.subr.mxu0 0.0
        %3988 = vmatpush1.msra.mxu0 0.0
        %3989 = vmatprep.subr.mxu0 0.0
        %3990 = vmatpush1.msra.mxu0 0.0
        %3991 = vmatprep.subr.mxu0 0.0
        %3992 = vmatpush1.msra.mxu0 0.0
        %3993 = vmatprep.subr.mxu0 0.0
        %3994 = vmatpush1.msra.mxu0 0.0
        %3995 = vmatprep.subr.mxu0 0.0
        %3996 = vmatpush1.msra.mxu0 0.0
        %3997 = vmatprep.subr.mxu0 0.0
        %3998 = vmatpush1.msra.mxu0 0.0
        %3999 = vmatprep.subr.mxu0 0.0
        %4000 = vmatpush1.msra.mxu0 %v3964
        %4001 = vmatprep.subr.mxu0 0.0
        %4002 = vmatpush2.msra.mxu0 0.0
        %4003 = vmatprep.subr.mxu0 0.0
        %4004 = vmatpush2.msra.mxu0 0.0
        %4005 = vmatprep.subr.mxu0 0.0
        %4006 = vmatpush2.msra.mxu0 0.0
        %4007 = vmatprep.subr.mxu0 0.0
        %4008 = vmatpush2.msra.mxu0 0.0
        %4009 = vmatprep.subr.mxu0 0.0
        %4010 = vmatpush2.msra.mxu0 0.0
        %4011 = vmatprep.subr.mxu0 0.0
        %4012 = vmatpush2.msra.mxu0 0.0
        %4013 = vmatprep.subr.mxu0 0.0
        %4014 = vmatpush2.msra.mxu0 0.0
        %4015 = vmatprep.subr.mxu0 0.0
        %4016 = vmatpush2.msra.mxu0 0.0
        %4017 = vmatprep.subr.mxu0 0.0
        %4018 = vmatpush2.msra.mxu0 0.0
        %4019 = vmatprep.subr.mxu0 0.0
        %4020 = vmatpush2.msra.mxu0 0.0
        %4021 = vmatprep.subr.mxu0 0.0
        %4022 = vmatpush2.msra.mxu0 0.0
        %4023 = vmatprep.subr.mxu0 0.0
        %4024 = vmatpush2.msra.mxu0 0.0
        %4025 = vmatprep.subr.mxu0 0.0
        %4026 = vmatpush2.msra.mxu0 0.0
        %4027 = vmatprep.subr.mxu0 0.0
        %4028 = vmatpush2.msra.mxu0 0.0
        %4029 = vmatprep.subr.mxu0 0.0
        %4030 = vmatpush2.msra.mxu0 0.0
        %4031 = vmatprep.subr.mxu0 0.0
        %4032 = vmatpush2.msra.mxu0 0.0
        %4033 = vmatprep.mubr.f32.mxu0 0.0
        %4034 = vmatmul.mubr.f32.gmra.mxu0 %v3967
        %v4035 = vpop.f32.mrf.mxu0
        %v4036 = vadd.f32 %v3959, %v4035
        %v4037 = vpop.f32.mrf.mxu0
        %4038 = vdwg.mxu0
        %4039 = vrot.lane.b32.xlu0 %v3553, 112
        %v4040 = vpop.permute.xlu0 %4039
        %4041 = vrot.lane.b32.xlu0 %v3543, 80
        %v4042 = vpop.permute.xlu0 %4041
        %v4043 = vsel %vm858, %v4040, 0
        %v4045 = vsel %vm858, %v4042, 0
        %4047 = vmatprep.subr.mxu0 0.0
        %4048 = vmatpush1.xpose.msra.mxu0 0.0
        %4049 = vmatprep.subr.mxu0 0.0
        %4050 = vmatpush1.xpose.msra.mxu0 0.0
        %4051 = vmatprep.subr.mxu0 0.0
        %4052 = vmatpush1.xpose.msra.mxu0 0.0
        %4053 = vmatprep.subr.mxu0 0.0
        %4054 = vmatpush1.xpose.msra.mxu0 0.0
        %4055 = vmatprep.subr.mxu0 0.0
        %4056 = vmatpush1.xpose.msra.mxu0 0.0
        %4057 = vmatprep.subr.mxu0 0.0
        %4058 = vmatpush1.xpose.msra.mxu0 0.0
        %4059 = vmatprep.subr.mxu0 0.0
        %4060 = vmatpush1.xpose.msra.mxu0 0.0
        %4061 = vmatprep.subr.mxu0 0.0
        %4062 = vmatpush1.xpose.msra.mxu0 0.0
        %4063 = vmatprep.subr.mxu0 0.0
        %4064 = vmatpush1.xpose.msra.mxu0 0.0
        %4065 = vmatprep.subr.mxu0 0.0
        %4066 = vmatpush1.xpose.msra.mxu0 0.0
        %4067 = vmatprep.subr.mxu0 0.0
        %4068 = vmatpush1.xpose.msra.mxu0 0.0
        %4069 = vmatprep.subr.mxu0 0.0
        %4070 = vmatpush1.xpose.msra.mxu0 0.0
        %4071 = vmatprep.subr.mxu0 0.0
        %4072 = vmatpush1.xpose.msra.mxu0 0.0
        %4073 = vmatprep.subr.mxu0 0.0
        %4074 = vmatpush1.xpose.msra.mxu0 0.0
        %4075 = vmatprep.subr.mxu0 0.0
        %4076 = vmatpush1.xpose.msra.mxu0 0.0
        %4077 = vmatprep.subr.mxu0 0.0
        %4078 = vmatpush1.xpose.msra.mxu0 %v4045
        %4079 = vmatprep.subr.mxu0 0.0
        %4080 = vmatpush2.xpose.msra.mxu0 0.0
        %4081 = vmatprep.subr.mxu0 0.0
        %4082 = vmatpush2.xpose.msra.mxu0 0.0
        %4083 = vmatprep.subr.mxu0 0.0
        %4084 = vmatpush2.xpose.msra.mxu0 0.0
        %4085 = vmatprep.subr.mxu0 0.0
        %4086 = vmatpush2.xpose.msra.mxu0 0.0
        %4087 = vmatprep.subr.mxu0 0.0
        %4088 = vmatpush2.xpose.msra.mxu0 0.0
        %4089 = vmatprep.subr.mxu0 0.0
        %4090 = vmatpush2.xpose.msra.mxu0 0.0
        %4091 = vmatprep.subr.mxu0 0.0
        %4092 = vmatpush2.xpose.msra.mxu0 0.0
        %4093 = vmatprep.subr.mxu0 0.0
        %4094 = vmatpush2.xpose.msra.mxu0 0.0
        %4095 = vmatprep.subr.mxu0 0.0
        %4096 = vmatpush2.xpose.msra.mxu0 0.0
        %4097 = vmatprep.subr.mxu0 0.0
        %4098 = vmatpush2.xpose.msra.mxu0 0.0
        %4099 = vmatprep.subr.mxu0 0.0
        %4100 = vmatpush2.xpose.msra.mxu0 0.0
        %4101 = vmatprep.subr.mxu0 0.0
        %4102 = vmatpush2.xpose.msra.mxu0 0.0
        %4103 = vmatprep.subr.mxu0 0.0
        %4104 = vmatpush2.xpose.msra.mxu0 0.0
        %4105 = vmatprep.subr.mxu0 0.0
        %4106 = vmatpush2.xpose.msra.mxu0 0.0
        %4107 = vmatprep.subr.mxu0 0.0
        %4108 = vmatpush2.xpose.msra.mxu0 0.0
        %4109 = vmatprep.subr.mxu0 0.0
        %4110 = vmatpush2.xpose.msra.mxu0 0.0
        %4111 = vmatprep.mubr.f32.mxu0 0.0
        %4112 = vmatmul.mubr.f32.gmra.mxu0 %v4043
        %v4113 = vpop.f32.mrf.mxu0
        %v4114 = vadd.f32 %v570, %v4113
        %v4115 = vpop.f32.mrf.mxu0
        %4116 = vdwg.mxu0
        %v4117 = vsel %vm858, %v4114, -inf
        %4118 = vmax.xlane.f32.xlu0 %v4117
        %v4119 = vpop.xlane.xlu0 %4118
        %v4120 = vsub.f32 %v4114, %v4119
        %v4121 = vmul.f32 %v4120, 1.442695
        %v4122 = vpow.pop %v4121
        %v4123 = vsel %vm858, %v4122, 0.0
        %4124 = vadd.xlane.f32.xlu0 %v4123
        %v4125 = vpop.xlane.xlu0 %4124
        %v4126 = vrcp.pop %v4125
        %v4127 = vmul.f32 %v4122, %v4126
        %4128 = vrot.lane.b32.xlu0 %v3552, 48
        %v4129 = vpop.permute.xlu0 %4128
        %v4132 = vsel %vm858, %v4127, 0
        %4134 = vmatprep.subr.mxu0 0.0
        %4135 = vmatpush1.msra.mxu0 0.0
        %4136 = vmatprep.subr.mxu0 0.0
        %4137 = vmatpush1.msra.mxu0 0.0
        %4138 = vmatprep.subr.mxu0 0.0
        %4139 = vmatpush1.msra.mxu0 0.0
        %4140 = vmatprep.subr.mxu0 0.0
        %4141 = vmatpush1.msra.mxu0 0.0
        %4142 = vmatprep.subr.mxu0 0.0
        %4143 = vmatpush1.msra.mxu0 0.0
        %4144 = vmatprep.subr.mxu0 0.0
        %4145 = vmatpush1.msra.mxu0 0.0
        %4146 = vmatprep.subr.mxu0 0.0
        %4147 = vmatpush1.msra.mxu0 0.0
        %4148 = vmatprep.subr.mxu0 0.0
        %4149 = vmatpush1.msra.mxu0 0.0
        %4150 = vmatprep.subr.mxu0 0.0
        %4151 = vmatpush1.msra.mxu0 0.0
        %4152 = vmatprep.subr.mxu0 0.0
        %4153 = vmatpush1.msra.mxu0 0.0
        %4154 = vmatprep.subr.mxu0 0.0
        %4155 = vmatpush1.msra.mxu0 0.0
        %4156 = vmatprep.subr.mxu0 0.0
        %4157 = vmatpush1.msra.mxu0 0.0
        %4158 = vmatprep.subr.mxu0 0.0
        %4159 = vmatpush1.msra.mxu0 0.0
        %4160 = vmatprep.subr.mxu0 0.0
        %4161 = vmatpush1.msra.mxu0 0.0
        %4162 = vmatprep.subr.mxu0 0.0
        %4163 = vmatpush1.msra.mxu0 0.0
        %4164 = vmatprep.subr.mxu0 0.0
        %4165 = vmatpush1.msra.mxu0 %v4129
        %4166 = vmatprep.subr.mxu0 0.0
        %4167 = vmatpush2.msra.mxu0 0.0
        %4168 = vmatprep.subr.mxu0 0.0
        %4169 = vmatpush2.msra.mxu0 0.0
        %4170 = vmatprep.subr.mxu0 0.0
        %4171 = vmatpush2.msra.mxu0 0.0
        %4172 = vmatprep.subr.mxu0 0.0
        %4173 = vmatpush2.msra.mxu0 0.0
        %4174 = vmatprep.subr.mxu0 0.0
        %4175 = vmatpush2.msra.mxu0 0.0
        %4176 = vmatprep.subr.mxu0 0.0
        %4177 = vmatpush2.msra.mxu0 0.0
        %4178 = vmatprep.subr.mxu0 0.0
        %4179 = vmatpush2.msra.mxu0 0.0
        %4180 = vmatprep.subr.mxu0 0.0
        %4181 = vmatpush2.msra.mxu0 0.0
        %4182 = vmatprep.subr.mxu0 0.0
        %4183 = vmatpush2.msra.mxu0 0.0
        %4184 = vmatprep.subr.mxu0 0.0
        %4185 = vmatpush2.msra.mxu0 0.0
        %4186 = vmatprep.subr.mxu0 0.0
        %4187 = vmatpush2.msra.mxu0 0.0
        %4188 = vmatprep.subr.mxu0 0.0
        %4189 = vmatpush2.msra.mxu0 0.0
        %4190 = vmatprep.subr.mxu0 0.0
        %4191 = vmatpush2.msra.mxu0 0.0
        %4192 = vmatprep.subr.mxu0 0.0
        %4193 = vmatpush2.msra.mxu0 0.0
        %4194 = vmatprep.subr.mxu0 0.0
        %4195 = vmatpush2.msra.mxu0 0.0
        %4196 = vmatprep.subr.mxu0 0.0
        %4197 = vmatpush2.msra.mxu0 0.0
        %4198 = vmatprep.mubr.f32.mxu0 0.0
        %4199 = vmatmul.mubr.f32.gmra.mxu0 %v4132
        %v4200 = vpop.f32.mrf.mxu0
        %v4201 = vadd.f32 0.0, %v4200
        %v4202 = vpop.f32.mrf.mxu0
        %4203 = vdwg.mxu0
        %4205 = vrot.lane.b32.xlu0 %v3449, 32
        %v4206 = vpop.permute.xlu0 %4205
        %v4209 = vsel %vm858, %v4201, 0
        %4211 = vmatprep.subr.mxu0 0.0
        %4212 = vmatpush1.msra.mxu0 0.0
        %4213 = vmatprep.subr.mxu0 0.0
        %4214 = vmatpush1.msra.mxu0 0.0
        %4215 = vmatprep.subr.mxu0 0.0
        %4216 = vmatpush1.msra.mxu0 0.0
        %4217 = vmatprep.subr.mxu0 0.0
        %4218 = vmatpush1.msra.mxu0 0.0
        %4219 = vmatprep.subr.mxu0 0.0
        %4220 = vmatpush1.msra.mxu0 0.0
        %4221 = vmatprep.subr.mxu0 0.0
        %4222 = vmatpush1.msra.mxu0 0.0
        %4223 = vmatprep.subr.mxu0 0.0
        %4224 = vmatpush1.msra.mxu0 0.0
        %4225 = vmatprep.subr.mxu0 0.0
        %4226 = vmatpush1.msra.mxu0 0.0
        %4227 = vmatprep.subr.mxu0 0.0
        %4228 = vmatpush1.msra.mxu0 0.0
        %4229 = vmatprep.subr.mxu0 0.0
        %4230 = vmatpush1.msra.mxu0 0.0
        %4231 = vmatprep.subr.mxu0 0.0
        %4232 = vmatpush1.msra.mxu0 0.0
        %4233 = vmatprep.subr.mxu0 0.0
        %4234 = vmatpush1.msra.mxu0 0.0
        %4235 = vmatprep.subr.mxu0 0.0
        %4236 = vmatpush1.msra.mxu0 0.0
        %4237 = vmatprep.subr.mxu0 0.0
        %4238 = vmatpush1.msra.mxu0 0.0
        %4239 = vmatprep.subr.mxu0 0.0
        %4240 = vmatpush1.msra.mxu0 0.0
        %4241 = vmatprep.subr.mxu0 0.0
        %4242 = vmatpush1.msra.mxu0 %v4206
        %4243 = vmatprep.subr.mxu0 0.0
        %4244 = vmatpush2.msra.mxu0 0.0
        %4245 = vmatprep.subr.mxu0 0.0
        %4246 = vmatpush2.msra.mxu0 0.0
        %4247 = vmatprep.subr.mxu0 0.0
        %4248 = vmatpush2.msra.mxu0 0.0
        %4249 = vmatprep.subr.mxu0 0.0
        %4250 = vmatpush2.msra.mxu0 0.0
        %4251 = vmatprep.subr.mxu0 0.0
        %4252 = vmatpush2.msra.mxu0 0.0
        %4253 = vmatprep.subr.mxu0 0.0
        %4254 = vmatpush2.msra.mxu0 0.0
        %4255 = vmatprep.subr.mxu0 0.0
        %4256 = vmatpush2.msra.mxu0 0.0
        %4257 = vmatprep.subr.mxu0 0.0
        %4258 = vmatpush2.msra.mxu0 0.0
        %4259 = vmatprep.subr.mxu0 0.0
        %4260 = vmatpush2.msra.mxu0 0.0
        %4261 = vmatprep.subr.mxu0 0.0
        %4262 = vmatpush2.msra.mxu0 0.0
        %4263 = vmatprep.subr.mxu0 0.0
        %4264 = vmatpush2.msra.mxu0 0.0
        %4265 = vmatprep.subr.mxu0 0.0
        %4266 = vmatpush2.msra.mxu0 0.0
        %4267 = vmatprep.subr.mxu0 0.0
        %4268 = vmatpush2.msra.mxu0 0.0
        %4269 = vmatprep.subr.mxu0 0.0
        %4270 = vmatpush2.msra.mxu0 0.0
        %4271 = vmatprep.subr.mxu0 0.0
        %4272 = vmatpush2.msra.mxu0 0.0
        %4273 = vmatprep.subr.mxu0 0.0
        %4274 = vmatpush2.msra.mxu0 0.0
        %4275 = vmatprep.mubr.f32.mxu0 0.0
        %4276 = vmatmul.mubr.f32.gmra.mxu0 %v4209
        %v4277 = vpop.f32.mrf.mxu0
        %v4278 = vadd.f32 0.0, %v4277
        %v4279 = vpop.f32.mrf.mxu0
        %4280 = vdwg.mxu0
        %v4281 = vadd.f32 %v4036, %v4278
        %4282 = vrot.lane.b32.xlu0 %v3553, 104
        %v4283 = vpop.permute.xlu0 %4282
        %4284 = vrot.lane.b32.xlu0 %v3543, 72
        %v4285 = vpop.permute.xlu0 %4284
        %v4286 = vsel %vm858, %v4283, 0
        %v4288 = vsel %vm858, %v4285, 0
        %4290 = vmatprep.subr.mxu0 0.0
        %4291 = vmatpush1.xpose.msra.mxu0 0.0
        %4292 = vmatprep.subr.mxu0 0.0
        %4293 = vmatpush1.xpose.msra.mxu0 0.0
        %4294 = vmatprep.subr.mxu0 0.0
        %4295 = vmatpush1.xpose.msra.mxu0 0.0
        %4296 = vmatprep.subr.mxu0 0.0
        %4297 = vmatpush1.xpose.msra.mxu0 0.0
        %4298 = vmatprep.subr.mxu0 0.0
        %4299 = vmatpush1.xpose.msra.mxu0 0.0
        %4300 = vmatprep.subr.mxu0 0.0
        %4301 = vmatpush1.xpose.msra.mxu0 0.0
        %4302 = vmatprep.subr.mxu0 0.0
        %4303 = vmatpush1.xpose.msra.mxu0 0.0
        %4304 = vmatprep.subr.mxu0 0.0
        %4305 = vmatpush1.xpose.msra.mxu0 0.0
        %4306 = vmatprep.subr.mxu0 0.0
        %4307 = vmatpush1.xpose.msra.mxu0 0.0
        %4308 = vmatprep.subr.mxu0 0.0
        %4309 = vmatpush1.xpose.msra.mxu0 0.0
        %4310 = vmatprep.subr.mxu0 0.0
        %4311 = vmatpush1.xpose.msra.mxu0 0.0
        %4312 = vmatprep.subr.mxu0 0.0
        %4313 = vmatpush1.xpose.msra.mxu0 0.0
        %4314 = vmatprep.subr.mxu0 0.0
        %4315 = vmatpush1.xpose.msra.mxu0 0.0
        %4316 = vmatprep.subr.mxu0 0.0
        %4317 = vmatpush1.xpose.msra.mxu0 0.0
        %4318 = vmatprep.subr.mxu0 0.0
        %4319 = vmatpush1.xpose.msra.mxu0 0.0
        %4320 = vmatprep.subr.mxu0 0.0
        %4321 = vmatpush1.xpose.msra.mxu0 %v4288
        %4322 = vmatprep.subr.mxu0 0.0
        %4323 = vmatpush2.xpose.msra.mxu0 0.0
        %4324 = vmatprep.subr.mxu0 0.0
        %4325 = vmatpush2.xpose.msra.mxu0 0.0
        %4326 = vmatprep.subr.mxu0 0.0
        %4327 = vmatpush2.xpose.msra.mxu0 0.0
        %4328 = vmatprep.subr.mxu0 0.0
        %4329 = vmatpush2.xpose.msra.mxu0 0.0
        %4330 = vmatprep.subr.mxu0 0.0
        %4331 = vmatpush2.xpose.msra.mxu0 0.0
        %4332 = vmatprep.subr.mxu0 0.0
        %4333 = vmatpush2.xpose.msra.mxu0 0.0
        %4334 = vmatprep.subr.mxu0 0.0
        %4335 = vmatpush2.xpose.msra.mxu0 0.0
        %4336 = vmatprep.subr.mxu0 0.0
        %4337 = vmatpush2.xpose.msra.mxu0 0.0
        %4338 = vmatprep.subr.mxu0 0.0
        %4339 = vmatpush2.xpose.msra.mxu0 0.0
        %4340 = vmatprep.subr.mxu0 0.0
        %4341 = vmatpush2.xpose.msra.mxu0 0.0
        %4342 = vmatprep.subr.mxu0 0.0
        %4343 = vmatpush2.xpose.msra.mxu0 0.0
        %4344 = vmatprep.subr.mxu0 0.0
        %4345 = vmatpush2.xpose.msra.mxu0 0.0
        %4346 = vmatprep.subr.mxu0 0.0
        %4347 = vmatpush2.xpose.msra.mxu0 0.0
        %4348 = vmatprep.subr.mxu0 0.0
        %4349 = vmatpush2.xpose.msra.mxu0 0.0
        %4350 = vmatprep.subr.mxu0 0.0
        %4351 = vmatpush2.xpose.msra.mxu0 0.0
        %4352 = vmatprep.subr.mxu0 0.0
        %4353 = vmatpush2.xpose.msra.mxu0 0.0
        %4354 = vmatprep.mubr.f32.mxu0 0.0
        %4355 = vmatmul.mubr.f32.gmra.mxu0 %v4286
        %v4356 = vpop.f32.mrf.mxu0
        %v4357 = vadd.f32 %v570, %v4356
        %v4358 = vpop.f32.mrf.mxu0
        %4359 = vdwg.mxu0
        %v4360 = vsel %vm858, %v4357, -inf
        %4361 = vmax.xlane.f32.xlu0 %v4360
        %v4362 = vpop.xlane.xlu0 %4361
        %v4363 = vsub.f32 %v4357, %v4362
        %v4364 = vmul.f32 %v4363, 1.442695
        %v4365 = vpow.pop %v4364
        %v4366 = vsel %vm858, %v4365, 0.0
        %4367 = vadd.xlane.f32.xlu0 %v4366
        %v4368 = vpop.xlane.xlu0 %4367
        %v4369 = vrcp.pop %v4368
        %v4370 = vmul.f32 %v4365, %v4369
        %4371 = vrot.lane.b32.xlu0 %v3552, 40
        %v4372 = vpop.permute.xlu0 %4371
        %v4375 = vsel %vm858, %v4370, 0
        %4377 = vmatprep.subr.mxu0 0.0
        %4378 = vmatpush1.msra.mxu0 0.0
        %4379 = vmatprep.subr.mxu0 0.0
        %4380 = vmatpush1.msra.mxu0 0.0
        %4381 = vmatprep.subr.mxu0 0.0
        %4382 = vmatpush1.msra.mxu0 0.0
        %4383 = vmatprep.subr.mxu0 0.0
        %4384 = vmatpush1.msra.mxu0 0.0
        %4385 = vmatprep.subr.mxu0 0.0
        %4386 = vmatpush1.msra.mxu0 0.0
        %4387 = vmatprep.subr.mxu0 0.0
        %4388 = vmatpush1.msra.mxu0 0.0
        %4389 = vmatprep.subr.mxu0 0.0
        %4390 = vmatpush1.msra.mxu0 0.0
        %4391 = vmatprep.subr.mxu0 0.0
        %4392 = vmatpush1.msra.mxu0 0.0
        %4393 = vmatprep.subr.mxu0 0.0
        %4394 = vmatpush1.msra.mxu0 0.0
        %4395 = vmatprep.subr.mxu0 0.0
        %4396 = vmatpush1.msra.mxu0 0.0
        %4397 = vmatprep.subr.mxu0 0.0
        %4398 = vmatpush1.msra.mxu0 0.0
        %4399 = vmatprep.subr.mxu0 0.0
        %4400 = vmatpush1.msra.mxu0 0.0
        %4401 = vmatprep.subr.mxu0 0.0
        %4402 = vmatpush1.msra.mxu0 0.0
        %4403 = vmatprep.subr.mxu0 0.0
        %4404 = vmatpush1.msra.mxu0 0.0
        %4405 = vmatprep.subr.mxu0 0.0
        %4406 = vmatpush1.msra.mxu0 0.0
        %4407 = vmatprep.subr.mxu0 0.0
        %4408 = vmatpush1.msra.mxu0 %v4372
        %4409 = vmatprep.subr.mxu0 0.0
        %4410 = vmatpush2.msra.mxu0 0.0
        %4411 = vmatprep.subr.mxu0 0.0
        %4412 = vmatpush2.msra.mxu0 0.0
        %4413 = vmatprep.subr.mxu0 0.0
        %4414 = vmatpush2.msra.mxu0 0.0
        %4415 = vmatprep.subr.mxu0 0.0
        %4416 = vmatpush2.msra.mxu0 0.0
        %4417 = vmatprep.subr.mxu0 0.0
        %4418 = vmatpush2.msra.mxu0 0.0
        %4419 = vmatprep.subr.mxu0 0.0
        %4420 = vmatpush2.msra.mxu0 0.0
        %4421 = vmatprep.subr.mxu0 0.0
        %4422 = vmatpush2.msra.mxu0 0.0
        %4423 = vmatprep.subr.mxu0 0.0
        %4424 = vmatpush2.msra.mxu0 0.0
        %4425 = vmatprep.subr.mxu0 0.0
        %4426 = vmatpush2.msra.mxu0 0.0
        %4427 = vmatprep.subr.mxu0 0.0
        %4428 = vmatpush2.msra.mxu0 0.0
        %4429 = vmatprep.subr.mxu0 0.0
        %4430 = vmatpush2.msra.mxu0 0.0
        %4431 = vmatprep.subr.mxu0 0.0
        %4432 = vmatpush2.msra.mxu0 0.0
        %4433 = vmatprep.subr.mxu0 0.0
        %4434 = vmatpush2.msra.mxu0 0.0
        %4435 = vmatprep.subr.mxu0 0.0
        %4436 = vmatpush2.msra.mxu0 0.0
        %4437 = vmatprep.subr.mxu0 0.0
        %4438 = vmatpush2.msra.mxu0 0.0
        %4439 = vmatprep.subr.mxu0 0.0
        %4440 = vmatpush2.msra.mxu0 0.0
        %4441 = vmatprep.mubr.f32.mxu0 0.0
        %4442 = vmatmul.mubr.f32.gmra.mxu0 %v4375
        %v4443 = vpop.f32.mrf.mxu0
        %v4444 = vadd.f32 0.0, %v4443
        %v4445 = vpop.f32.mrf.mxu0
        %4446 = vdwg.mxu0
        %4448 = vrot.lane.b32.xlu0 %v3452, 32
        %v4449 = vpop.permute.xlu0 %4448
        %v4452 = vsel %vm858, %v4444, 0
        %4454 = vmatprep.subr.mxu0 0.0
        %4455 = vmatpush1.msra.mxu0 0.0
        %4456 = vmatprep.subr.mxu0 0.0
        %4457 = vmatpush1.msra.mxu0 0.0
        %4458 = vmatprep.subr.mxu0 0.0
        %4459 = vmatpush1.msra.mxu0 0.0
        %4460 = vmatprep.subr.mxu0 0.0
        %4461 = vmatpush1.msra.mxu0 0.0
        %4462 = vmatprep.subr.mxu0 0.0
        %4463 = vmatpush1.msra.mxu0 0.0
        %4464 = vmatprep.subr.mxu0 0.0
        %4465 = vmatpush1.msra.mxu0 0.0
        %4466 = vmatprep.subr.mxu0 0.0
        %4467 = vmatpush1.msra.mxu0 0.0
        %4468 = vmatprep.subr.mxu0 0.0
        %4469 = vmatpush1.msra.mxu0 0.0
        %4470 = vmatprep.subr.mxu0 0.0
        %4471 = vmatpush1.msra.mxu0 0.0
        %4472 = vmatprep.subr.mxu0 0.0
        %4473 = vmatpush1.msra.mxu0 0.0
        %4474 = vmatprep.subr.mxu0 0.0
        %4475 = vmatpush1.msra.mxu0 0.0
        %4476 = vmatprep.subr.mxu0 0.0
        %4477 = vmatpush1.msra.mxu0 0.0
        %4478 = vmatprep.subr.mxu0 0.0
        %4479 = vmatpush1.msra.mxu0 0.0
        %4480 = vmatprep.subr.mxu0 0.0
        %4481 = vmatpush1.msra.mxu0 0.0
        %4482 = vmatprep.subr.mxu0 0.0
        %4483 = vmatpush1.msra.mxu0 0.0
        %4484 = vmatprep.subr.mxu0 0.0
        %4485 = vmatpush1.msra.mxu0 %v4449
        %4486 = vmatprep.subr.mxu0 0.0
        %4487 = vmatpush2.msra.mxu0 0.0
        %4488 = vmatprep.subr.mxu0 0.0
        %4489 = vmatpush2.msra.mxu0 0.0
        %4490 = vmatprep.subr.mxu0 0.0
        %4491 = vmatpush2.msra.mxu0 0.0
        %4492 = vmatprep.subr.mxu0 0.0
        %4493 = vmatpush2.msra.mxu0 0.0
        %4494 = vmatprep.subr.mxu0 0.0
        %4495 = vmatpush2.msra.mxu0 0.0
        %4496 = vmatprep.subr.mxu0 0.0
        %4497 = vmatpush2.msra.mxu0 0.0
        %4498 = vmatprep.subr.mxu0 0.0
        %4499 = vmatpush2.msra.mxu0 0.0
        %4500 = vmatprep.subr.mxu0 0.0
        %4501 = vmatpush2.msra.mxu0 0.0
        %4502 = vmatprep.subr.mxu0 0.0
        %4503 = vmatpush2.msra.mxu0 0.0
        %4504 = vmatprep.subr.mxu0 0.0
        %4505 = vmatpush2.msra.mxu0 0.0
        %4506 = vmatprep.subr.mxu0 0.0
        %4507 = vmatpush2.msra.mxu0 0.0
        %4508 = vmatprep.subr.mxu0 0.0
        %4509 = vmatpush2.msra.mxu0 0.0
        %4510 = vmatprep.subr.mxu0 0.0
        %4511 = vmatpush2.msra.mxu0 0.0
        %4512 = vmatprep.subr.mxu0 0.0
        %4513 = vmatpush2.msra.mxu0 0.0
        %4514 = vmatprep.subr.mxu0 0.0
        %4515 = vmatpush2.msra.mxu0 0.0
        %4516 = vmatprep.subr.mxu0 0.0
        %4517 = vmatpush2.msra.mxu0 0.0
        %4518 = vmatprep.mubr.f32.mxu0 0.0
        %4519 = vmatmul.mubr.f32.gmra.mxu0 %v4452
        %v4520 = vpop.f32.mrf.mxu0
        %v4521 = vadd.f32 0.0, %v4520
        %v4522 = vpop.f32.mrf.mxu0
        %4523 = vdwg.mxu0
        %v4524 = vadd.f32 %v4281, %v4521
        %v4525 = vlaneseq
        %v4526 = vshrl.u32 %v4525, 7
        %v4527 = vsub.s32 3, %v4526
        %v4528 = vrot.slane %v3455, %v4527
        %v4529 = vadd.f32 %v4524, %v4528
        %v4530 = vadd.f32 %v4529, %v3440
        %v4531 = vsel %vm757, %v4530, 0.0
        %4532 = vadd.xlane.f32.xlu0 %v4531
        %v4533 = vpop.xlane.xlu0 %4532
        %v4534 = vmul.f32 %v4533, %v1836
        %v4535 = vsub.f32 %v4530, %v4534
        %v4536 = vmul.f32 %v4535, %v4535
        %v4537 = vsel %vm757, %v4536, 0.0
        %4538 = vadd.xlane.f32.xlu0 %v4537
        %v4539 = vpop.xlane.xlu0 %4538
        %v4540 = vmul.f32 %v4539, %v1836
        %v4541 = vadd.f32 %v4540, 1e-05
        %v4542 = vrsqrt.pop %v4541
        %v4543 = vmul.f32 %v4535, %v4542
        %v4544 = vlaneseq
        %v4545 = vshrl.u32 %v4544, 7
        %v4546 = vsub.s32 2, %v4545
        %v4547 = vrot.slane %v3456, %v4546
        %v4548 = vmul.f32 %v4543, %v4547
        %v4549 = vlaneseq
        %v4550 = vshrl.u32 %v4549, 7
        %v4551 = vsub.s32 3, %v4550
        %v4552 = vrot.slane %v3456, %v4551
        %v4553 = vadd.f32 %v4548, %v4552
        %v4554 = vlaneseq
        %v4555 = vshrl.u32 %v4554, 7
        %v4556 = vsub.s32 4, %v4555
        %v4557 = vrot.slane %v3455, %v4556
        %v4559 = vsel %vm757, %v4553, 0
        %4561 = vmatprep.subr.mxu0 0.0
        %4562 = vmatpush1.msra.mxu0 0.0
        %4563 = vmatprep.subr.mxu0 0.0
        %4564 = vmatpush1.msra.mxu0 0.0
        %4565 = vmatprep.subr.mxu0 0.0
        %4566 = vmatpush1.msra.mxu0 0.0
        %4567 = vmatprep.subr.mxu0 0.0
        %4568 = vmatpush1.msra.mxu0 0.0
        %4569 = vmatprep.subr.mxu0 0.0
        %4570 = vmatpush1.msra.mxu0 0.0
        %4571 = vmatprep.subr.mxu0 0.0
        %4572 = vmatpush1.msra.mxu0 0.0
        %4573 = vmatprep.subr.mxu0 0.0
        %4574 = vmatpush1.msra.mxu0 0.0
        %4575 = vmatprep.subr.mxu0 0.0
        %4576 = vmatpush1.msra.mxu0 0.0
        %4577 = vmatprep.subr.mxu0 0.0
        %4578 = vmatpush1.msra.mxu0 0.0
        %4579 = vmatprep.subr.mxu0 0.0
        %4580 = vmatpush1.msra.mxu0 0.0
        %4581 = vmatprep.subr.mxu0 0.0
        %4582 = vmatpush1.msra.mxu0 0.0
        %4583 = vmatprep.subr.mxu0 0.0
        %4584 = vmatpush1.msra.mxu0 0.0
        %4585 = vmatprep.subr.mxu0 0.0
        %4586 = vmatpush1.msra.mxu0 %v3453
        %4587 = vmatprep.subr.mxu0 0.0
        %4588 = vmatpush1.msra.mxu0 %v3450
        %4589 = vmatprep.subr.mxu0 0.0
        %4590 = vmatpush1.msra.mxu0 %v3447
        %4591 = vmatprep.subr.mxu0 0.0
        %4592 = vmatpush1.msra.mxu0 %v3444
        %4593 = vmatprep.subr.mxu0 0.0
        %4594 = vmatpush2.msra.mxu0 0.0
        %4595 = vmatprep.subr.mxu0 0.0
        %4596 = vmatpush2.msra.mxu0 0.0
        %4597 = vmatprep.subr.mxu0 0.0
        %4598 = vmatpush2.msra.mxu0 0.0
        %4599 = vmatprep.subr.mxu0 0.0
        %4600 = vmatpush2.msra.mxu0 0.0
        %4601 = vmatprep.subr.mxu0 0.0
        %4602 = vmatpush2.msra.mxu0 0.0
        %4603 = vmatprep.subr.mxu0 0.0
        %4604 = vmatpush2.msra.mxu0 0.0
        %4605 = vmatprep.subr.mxu0 0.0
        %4606 = vmatpush2.msra.mxu0 0.0
        %4607 = vmatprep.subr.mxu0 0.0
        %4608 = vmatpush2.msra.mxu0 0.0
        %4609 = vmatprep.subr.mxu0 0.0
        %4610 = vmatpush2.msra.mxu0 0.0
        %4611 = vmatprep.subr.mxu0 0.0
        %4612 = vmatpush2.msra.mxu0 0.0
        %4613 = vmatprep.subr.mxu0 0.0
        %4614 = vmatpush2.msra.mxu0 0.0
        %4615 = vmatprep.subr.mxu0 0.0
        %4616 = vmatpush2.msra.mxu0 0.0
        %4617 = vmatprep.subr.mxu0 0.0
        %4618 = vmatpush2.msra.mxu0 0.0
        %4619 = vmatprep.subr.mxu0 0.0
        %4620 = vmatpush2.msra.mxu0 0.0
        %4621 = vmatprep.subr.mxu0 0.0
        %4622 = vmatpush2.msra.mxu0 0.0
        %4623 = vmatprep.subr.mxu0 0.0
        %4624 = vmatpush2.msra.mxu0 0.0
        %4625 = vmatprep.mubr.f32.mxu0 0.0
        %4626 = vmatmul.mubr.f32.gmra.mxu0 %v4559
        %v4627 = vpop.f32.mrf.mxu0
        %v4628 = vadd.f32 %v4557, %v4627
        %v4629 = vpop.f32.mrf.mxu0
        %4630 = vdwg.mxu0
        %4635 = vrot.lane.b32.xlu0 %v3444, 96
        %v4636 = vpop.permute.xlu0 %4635
        %4637 = vrot.lane.b32.xlu0 %v3447, 96
        %v4638 = vpop.permute.xlu0 %4637
        %4639 = vrot.lane.b32.xlu0 %v3450, 96
        %v4640 = vpop.permute.xlu0 %4639
        %4641 = vrot.lane.b32.xlu0 %v3453, 96
        %v4642 = vpop.permute.xlu0 %4641
        %v4648 = vsel %vm757, %v3355, 0
        %4650 = vmatprep.subr.mxu0 0.0
        %4651 = vmatpush1.msra.mxu0 0.0
        %4652 = vmatprep.subr.mxu0 0.0
        %4653 = vmatpush1.msra.mxu0 0.0
        %4654 = vmatprep.subr.mxu0 0.0
        %4655 = vmatpush1.msra.mxu0 0.0
        %4656 = vmatprep.subr.mxu0 0.0
        %4657 = vmatpush1.msra.mxu0 0.0
        %4658 = vmatprep.subr.mxu0 0.0
        %4659 = vmatpush1.msra.mxu0 0.0
        %4660 = vmatprep.subr.mxu0 0.0
        %4661 = vmatpush1.msra.mxu0 0.0
        %4662 = vmatprep.subr.mxu0 0.0
        %4663 = vmatpush1.msra.mxu0 0.0
        %4664 = vmatprep.subr.mxu0 0.0
        %4665 = vmatpush1.msra.mxu0 0.0
        %4666 = vmatprep.subr.mxu0 0.0
        %4667 = vmatpush1.msra.mxu0 0.0
        %4668 = vmatprep.subr.mxu0 0.0
        %4669 = vmatpush1.msra.mxu0 0.0
        %4670 = vmatprep.subr.mxu0 0.0
        %4671 = vmatpush1.msra.mxu0 0.0
        %4672 = vmatprep.subr.mxu0 0.0
        %4673 = vmatpush1.msra.mxu0 0.0
        %4674 = vmatprep.subr.mxu0 0.0
        %4675 = vmatpush1.msra.mxu0 %v4642
        %4676 = vmatprep.subr.mxu0 0.0
        %4677 = vmatpush1.msra.mxu0 %v4640
        %4678 = vmatprep.subr.mxu0 0.0
        %4679 = vmatpush1.msra.mxu0 %v4638
        %4680 = vmatprep.subr.mxu0 0.0
        %4681 = vmatpush1.msra.mxu0 %v4636
        %4682 = vmatprep.subr.mxu0 0.0
        %4683 = vmatpush2.msra.mxu0 0.0
        %4684 = vmatprep.subr.mxu0 0.0
        %4685 = vmatpush2.msra.mxu0 0.0
        %4686 = vmatprep.subr.mxu0 0.0
        %4687 = vmatpush2.msra.mxu0 0.0
        %4688 = vmatprep.subr.mxu0 0.0
        %4689 = vmatpush2.msra.mxu0 0.0
        %4690 = vmatprep.subr.mxu0 0.0
        %4691 = vmatpush2.msra.mxu0 0.0
        %4692 = vmatprep.subr.mxu0 0.0
        %4693 = vmatpush2.msra.mxu0 0.0
        %4694 = vmatprep.subr.mxu0 0.0
        %4695 = vmatpush2.msra.mxu0 0.0
        %4696 = vmatprep.subr.mxu0 0.0
        %4697 = vmatpush2.msra.mxu0 0.0
        %4698 = vmatprep.subr.mxu0 0.0
        %4699 = vmatpush2.msra.mxu0 0.0
        %4700 = vmatprep.subr.mxu0 0.0
        %4701 = vmatpush2.msra.mxu0 0.0
        %4702 = vmatprep.subr.mxu0 0.0
        %4703 = vmatpush2.msra.mxu0 0.0
        %4704 = vmatprep.subr.mxu0 0.0
        %4705 = vmatpush2.msra.mxu0 0.0
        %4706 = vmatprep.subr.mxu0 0.0
        %4707 = vmatpush2.msra.mxu0 0.0
        %4708 = vmatprep.subr.mxu0 0.0
        %4709 = vmatpush2.msra.mxu0 0.0
        %4710 = vmatprep.subr.mxu0 0.0
        %4711 = vmatpush2.msra.mxu0 0.0
        %4712 = vmatprep.subr.mxu0 0.0
        %4713 = vmatpush2.msra.mxu0 0.0
        %4714 = vmatprep.mubr.f32.mxu0 0.0
        %4715 = vmatmul.mubr.f32.gmra.mxu0 %v4648
        %v4716 = vpop.f32.mrf.mxu0
        %v4717 = vadd.f32 0.0, %v4716
        %v4718 = vpop.f32.mrf.mxu0
        %4719 = vdwg.mxu0
        %v4720 = vlaneseq
        %v4721 = vshrl.u32 %v4720, 7
        %v4722 = vsub.s32 5, %v4721
        %v4723 = vrot.slane %v3455, %v4722
        %v4724 = vadd.f32 %v4717, %v4723
        %v4725 = vlaneseq
        %v4726 = vshrl.u32 %v4725, 7
        %v4727 = vsub.s32 6, %v4726
        %v4728 = vrot.slane %v3455, %v4727
        %4730 = vrot.lane.b32.xlu0 %v4728, 32
        %v4731 = vpop.permute.xlu0 %4730
        %v4733 = vadd.f32 %v4717, %v4731
        %v4734 = vmul.f32 %v4628, 0.35355338
        %v4736 = vsel %vm858, %v4734, 0
        %v4739 = vsel %vm858, %v4724, 0
        %4741 = vmatprep.subr.mxu0 0.0
        %4742 = vmatpush1.xpose.msra.mxu0 0.0
        %4743 = vmatprep.subr.mxu0 0.0
        %4744 = vmatpush1.xpose.msra.mxu0 0.0
        %4745 = vmatprep.subr.mxu0 0.0
        %4746 = vmatpush1.xpose.msra.mxu0 0.0
        %4747 = vmatprep.subr.mxu0 0.0
        %4748 = vmatpush1.xpose.msra.mxu0 0.0
        %4749 = vmatprep.subr.mxu0 0.0
        %4750 = vmatpush1.xpose.msra.mxu0 0.0
        %4751 = vmatprep.subr.mxu0 0.0
        %4752 = vmatpush1.xpose.msra.mxu0 0.0
        %4753 = vmatprep.subr.mxu0 0.0
        %4754 = vmatpush1.xpose.msra.mxu0 0.0
        %4755 = vmatprep.subr.mxu0 0.0
        %4756 = vmatpush1.xpose.msra.mxu0 0.0
        %4757 = vmatprep.subr.mxu0 0.0
        %4758 = vmatpush1.xpose.msra.mxu0 0.0
        %4759 = vmatprep.subr.mxu0 0.0
        %4760 = vmatpush1.xpose.msra.mxu0 0.0
        %4761 = vmatprep.subr.mxu0 0.0
        %4762 = vmatpush1.xpose.msra.mxu0 0.0
        %4763 = vmatprep.subr.mxu0 0.0
        %4764 = vmatpush1.xpose.msra.mxu0 0.0
        %4765 = vmatprep.subr.mxu0 0.0
        %4766 = vmatpush1.xpose.msra.mxu0 0.0
        %4767 = vmatprep.subr.mxu0 0.0
        %4768 = vmatpush1.xpose.msra.mxu0 0.0
        %4769 = vmatprep.subr.mxu0 0.0
        %4770 = vmatpush1.xpose.msra.mxu0 0.0
        %4771 = vmatprep.subr.mxu0 0.0
        %4772 = vmatpush1.xpose.msra.mxu0 %v4739
        %4773 = vmatprep.subr.mxu0 0.0
        %4774 = vmatpush2.xpose.msra.mxu0 0.0
        %4775 = vmatprep.subr.mxu0 0.0
        %4776 = vmatpush2.xpose.msra.mxu0 0.0
        %4777 = vmatprep.subr.mxu0 0.0
        %4778 = vmatpush2.xpose.msra.mxu0 0.0
        %4779 = vmatprep.subr.mxu0 0.0
        %4780 = vmatpush2.xpose.msra.mxu0 0.0
        %4781 = vmatprep.subr.mxu0 0.0
        %4782 = vmatpush2.xpose.msra.mxu0 0.0
        %4783 = vmatprep.subr.mxu0 0.0
        %4784 = vmatpush2.xpose.msra.mxu0 0.0
        %4785 = vmatprep.subr.mxu0 0.0
        %4786 = vmatpush2.xpose.msra.mxu0 0.0
        %4787 = vmatprep.subr.mxu0 0.0
        %4788 = vmatpush2.xpose.msra.mxu0 0.0
        %4789 = vmatprep.subr.mxu0 0.0
        %4790 = vmatpush2.xpose.msra.mxu0 0.0
        %4791 = vmatprep.subr.mxu0 0.0
        %4792 = vmatpush2.xpose.msra.mxu0 0.0
        %4793 = vmatprep.subr.mxu0 0.0
        %4794 = vmatpush2.xpose.msra.mxu0 0.0
        %4795 = vmatprep.subr.mxu0 0.0
        %4796 = vmatpush2.xpose.msra.mxu0 0.0
        %4797 = vmatprep.subr.mxu0 0.0
        %4798 = vmatpush2.xpose.msra.mxu0 0.0
        %4799 = vmatprep.subr.mxu0 0.0
        %4800 = vmatpush2.xpose.msra.mxu0 0.0
        %4801 = vmatprep.subr.mxu0 0.0
        %4802 = vmatpush2.xpose.msra.mxu0 0.0
        %4803 = vmatprep.subr.mxu0 0.0
        %4804 = vmatpush2.xpose.msra.mxu0 0.0
        %4805 = vmatprep.mubr.f32.mxu0 0.0
        %4806 = vmatmul.mubr.f32.gmra.mxu0 %v4736
        %v4807 = vpop.f32.mrf.mxu0
        %v4808 = vadd.f32 %v570, %v4807
        %v4809 = vpop.f32.mrf.mxu0
        %4810 = vdwg.mxu0
        %v4811 = vsel %vm858, %v4808, -inf
        %4812 = vmax.xlane.f32.xlu0 %v4811
        %v4813 = vpop.xlane.xlu0 %4812
        %v4814 = vsub.f32 %v4808, %v4813
        %v4815 = vmul.f32 %v4814, 1.442695
        %v4816 = vpow.pop %v4815
        %v4817 = vsel %vm858, %v4816, 0.0
        %4818 = vadd.xlane.f32.xlu0 %v4817
        %v4819 = vpop.xlane.xlu0 %4818
        %v4820 = vrcp.pop %v4819
        %v4821 = vmul.f32 %v4816, %v4820
        %4823 = vrot.lane.b32.xlu0 %v4733, 96
        %v4824 = vpop.permute.xlu0 %4823
        %v4827 = vsel %vm858, %v4821, 0
        %4829 = vmatprep.subr.mxu0 0.0
        %4830 = vmatpush1.msra.mxu0 0.0
        %4831 = vmatprep.subr.mxu0 0.0
        %4832 = vmatpush1.msra.mxu0 0.0
        %4833 = vmatprep.subr.mxu0 0.0
        %4834 = vmatpush1.msra.mxu0 0.0
        %4835 = vmatprep.subr.mxu0 0.0
        %4836 = vmatpush1.msra.mxu0 0.0
        %4837 = vmatprep.subr.mxu0 0.0
        %4838 = vmatpush1.msra.mxu0 0.0
        %4839 = vmatprep.subr.mxu0 0.0
        %4840 = vmatpush1.msra.mxu0 0.0
        %4841 = vmatprep.subr.mxu0 0.0
        %4842 = vmatpush1.msra.mxu0 0.0
        %4843 = vmatprep.subr.mxu0 0.0
        %4844 = vmatpush1.msra.mxu0 0.0
        %4845 = vmatprep.subr.mxu0 0.0
        %4846 = vmatpush1.msra.mxu0 0.0
        %4847 = vmatprep.subr.mxu0 0.0
        %4848 = vmatpush1.msra.mxu0 0.0
        %4849 = vmatprep.subr.mxu0 0.0
        %4850 = vmatpush1.msra.mxu0 0.0
        %4851 = vmatprep.subr.mxu0 0.0
        %4852 = vmatpush1.msra.mxu0 0.0
        %4853 = vmatprep.subr.mxu0 0.0
        %4854 = vmatpush1.msra.mxu0 0.0
        %4855 = vmatprep.subr.mxu0 0.0
        %4856 = vmatpush1.msra.mxu0 0.0
        %4857 = vmatprep.subr.mxu0 0.0
        %4858 = vmatpush1.msra.mxu0 0.0
        %4859 = vmatprep.subr.mxu0 0.0
        %4860 = vmatpush1.msra.mxu0 %v4824
        %4861 = vmatprep.subr.mxu0 0.0
        %4862 = vmatpush2.msra.mxu0 0.0
        %4863 = vmatprep.subr.mxu0 0.0
        %4864 = vmatpush2.msra.mxu0 0.0
        %4865 = vmatprep.subr.mxu0 0.0
        %4866 = vmatpush2.msra.mxu0 0.0
        %4867 = vmatprep.subr.mxu0 0.0
        %4868 = vmatpush2.msra.mxu0 0.0
        %4869 = vmatprep.subr.mxu0 0.0
        %4870 = vmatpush2.msra.mxu0 0.0
        %4871 = vmatprep.subr.mxu0 0.0
        %4872 = vmatpush2.msra.mxu0 0.0
        %4873 = vmatprep.subr.mxu0 0.0
        %4874 = vmatpush2.msra.mxu0 0.0
        %4875 = vmatprep.subr.mxu0 0.0
        %4876 = vmatpush2.msra.mxu0 0.0
        %4877 = vmatprep.subr.mxu0 0.0
        %4878 = vmatpush2.msra.mxu0 0.0
        %4879 = vmatprep.subr.mxu0 0.0
        %4880 = vmatpush2.msra.mxu0 0.0
        %4881 = vmatprep.subr.mxu0 0.0
        %4882 = vmatpush2.msra.mxu0 0.0
        %4883 = vmatprep.subr.mxu0 0.0
        %4884 = vmatpush2.msra.mxu0 0.0
        %4885 = vmatprep.subr.mxu0 0.0
        %4886 = vmatpush2.msra.mxu0 0.0
        %4887 = vmatprep.subr.mxu0 0.0
        %4888 = vmatpush2.msra.mxu0 0.0
        %4889 = vmatprep.subr.mxu0 0.0
        %4890 = vmatpush2.msra.mxu0 0.0
        %4891 = vmatprep.subr.mxu0 0.0
        %4892 = vmatpush2.msra.mxu0 0.0
        %4893 = vmatprep.mubr.f32.mxu0 0.0
        %4894 = vmatmul.mubr.f32.gmra.mxu0 %v4827
        %v4895 = vpop.f32.mrf.mxu0
        %v4896 = vadd.f32 0.0, %v4895
        %v4897 = vpop.f32.mrf.mxu0
        %4898 = vdwg.mxu0
        %4899 = vrot.lane.b32.xlu0 %v4734, 120
        %v4900 = vpop.permute.xlu0 %4899
        %4901 = vrot.lane.b32.xlu0 %v4724, 120
        %v4902 = vpop.permute.xlu0 %4901
        %v4903 = vsel %vm858, %v4900, 0
        %v4905 = vsel %vm858, %v4902, 0
        %4907 = vmatprep.subr.mxu0 0.0
        %4908 = vmatpush1.xpose.msra.mxu0 0.0
        %4909 = vmatprep.subr.mxu0 0.0
        %4910 = vmatpush1.xpose.msra.mxu0 0.0
        %4911 = vmatprep.subr.mxu0 0.0
        %4912 = vmatpush1.xpose.msra.mxu0 0.0
        %4913 = vmatprep.subr.mxu0 0.0
        %4914 = vmatpush1.xpose.msra.mxu0 0.0
        %4915 = vmatprep.subr.mxu0 0.0
        %4916 = vmatpush1.xpose.msra.mxu0 0.0
        %4917 = vmatprep.subr.mxu0 0.0
        %4918 = vmatpush1.xpose.msra.mxu0 0.0
        %4919 = vmatprep.subr.mxu0 0.0
        %4920 = vmatpush1.xpose.msra.mxu0 0.0
        %4921 = vmatprep.subr.mxu0 0.0
        %4922 = vmatpush1.xpose.msra.mxu0 0.0
        %4923 = vmatprep.subr.mxu0 0.0
        %4924 = vmatpush1.xpose.msra.mxu0 0.0
        %4925 = vmatprep.subr.mxu0 0.0
        %4926 = vmatpush1.xpose.msra.mxu0 0.0
        %4927 = vmatprep.subr.mxu0 0.0
        %4928 = vmatpush1.xpose.msra.mxu0 0.0
        %4929 = vmatprep.subr.mxu0 0.0
        %4930 = vmatpush1.xpose.msra.mxu0 0.0
        %4931 = vmatprep.subr.mxu0 0.0
        %4932 = vmatpush1.xpose.msra.mxu0 0.0
        %4933 = vmatprep.subr.mxu0 0.0
        %4934 = vmatpush1.xpose.msra.mxu0 0.0
        %4935 = vmatprep.subr.mxu0 0.0
        %4936 = vmatpush1.xpose.msra.mxu0 0.0
        %4937 = vmatprep.subr.mxu0 0.0
        %4938 = vmatpush1.xpose.msra.mxu0 %v4905
        %4939 = vmatprep.subr.mxu0 0.0
        %4940 = vmatpush2.xpose.msra.mxu0 0.0
        %4941 = vmatprep.subr.mxu0 0.0
        %4942 = vmatpush2.xpose.msra.mxu0 0.0
        %4943 = vmatprep.subr.mxu0 0.0
        %4944 = vmatpush2.xpose.msra.mxu0 0.0
        %4945 = vmatprep.subr.mxu0 0.0
        %4946 = vmatpush2.xpose.msra.mxu0 0.0
        %4947 = vmatprep.subr.mxu0 0.0
        %4948 = vmatpush2.xpose.msra.mxu0 0.0
        %4949 = vmatprep.subr.mxu0 0.0
        %4950 = vmatpush2.xpose.msra.mxu0 0.0
        %4951 = vmatprep.subr.mxu0 0.0
        %4952 = vmatpush2.xpose.msra.mxu0 0.0
        %4953 = vmatprep.subr.mxu0 0.0
        %4954 = vmatpush2.xpose.msra.mxu0 0.0
        %4955 = vmatprep.subr.mxu0 0.0
        %4956 = vmatpush2.xpose.msra.mxu0 0.0
        %4957 = vmatprep.subr.mxu0 0.0
        %4958 = vmatpush2.xpose.msra.mxu0 0.0
        %4959 = vmatprep.subr.mxu0 0.0
        %4960 = vmatpush2.xpose.msra.mxu0 0.0
        %4961 = vmatprep.subr.mxu0 0.0
        %4962 = vmatpush2.xpose.msra.mxu0 0.0
        %4963 = vmatprep.subr.mxu0 0.0
        %4964 = vmatpush2.xpose.msra.mxu0 0.0
        %4965 = vmatprep.subr.mxu0 0.0
        %4966 = vmatpush2.xpose.msra.mxu0 0.0
        %4967 = vmatprep.subr.mxu0 0.0
        %4968 = vmatpush2.xpose.msra.mxu0 0.0
        %4969 = vmatprep.subr.mxu0 0.0
        %4970 = vmatpush2.xpose.msra.mxu0 0.0
        %4971 = vmatprep.mubr.f32.mxu0 0.0
        %4972 = vmatmul.mubr.f32.gmra.mxu0 %v4903
        %v4973 = vpop.f32.mrf.mxu0
        %v4974 = vadd.f32 %v570, %v4973
        %v4975 = vpop.f32.mrf.mxu0
        %4976 = vdwg.mxu0
        %v4977 = vsel %vm858, %v4974, -inf
        %4978 = vmax.xlane.f32.xlu0 %v4977
        %v4979 = vpop.xlane.xlu0 %4978
        %v4980 = vsub.f32 %v4974, %v4979
        %v4981 = vmul.f32 %v4980, 1.442695
        %v4982 = vpow.pop %v4981
        %v4983 = vsel %vm858, %v4982, 0.0
        %4984 = vadd.xlane.f32.xlu0 %v4983
        %v4985 = vpop.xlane.xlu0 %4984
        %v4986 = vrcp.pop %v4985
        %v4987 = vmul.f32 %v4982, %v4986
        %4988 = vrot.lane.b32.xlu0 %v4733, 88
        %v4989 = vpop.permute.xlu0 %4988
        %v4992 = vsel %vm858, %v4987, 0
        %4994 = vmatprep.subr.mxu0 0.0
        %4995 = vmatpush1.msra.mxu0 0.0
        %4996 = vmatprep.subr.mxu0 0.0
        %4997 = vmatpush1.msra.mxu0 0.0
        %4998 = vmatprep.subr.mxu0 0.0
        %4999 = vmatpush1.msra.mxu0 0.0
        %5000 = vmatprep.subr.mxu0 0.0
        %5001 = vmatpush1.msra.mxu0 0.0
        %5002 = vmatprep.subr.mxu0 0.0
        %5003 = vmatpush1.msra.mxu0 0.0
        %5004 = vmatprep.subr.mxu0 0.0
        %5005 = vmatpush1.msra.mxu0 0.0
        %5006 = vmatprep.subr.mxu0 0.0
        %5007 = vmatpush1.msra.mxu0 0.0
        %5008 = vmatprep.subr.mxu0 0.0
        %5009 = vmatpush1.msra.mxu0 0.0
        %5010 = vmatprep.subr.mxu0 0.0
        %5011 = vmatpush1.msra.mxu0 0.0
        %5012 = vmatprep.subr.mxu0 0.0
        %5013 = vmatpush1.msra.mxu0 0.0
        %5014 = vmatprep.subr.mxu0 0.0
        %5015 = vmatpush1.msra.mxu0 0.0
        %5016 = vmatprep.subr.mxu0 0.0
        %5017 = vmatpush1.msra.mxu0 0.0
        %5018 = vmatprep.subr.mxu0 0.0
        %5019 = vmatpush1.msra.mxu0 0.0
        %5020 = vmatprep.subr.mxu0 0.0
        %5021 = vmatpush1.msra.mxu0 0.0
        %5022 = vmatprep.subr.mxu0 0.0
        %5023 = vmatpush1.msra.mxu0 0.0
        %5024 = vmatprep.subr.mxu0 0.0
        %5025 = vmatpush1.msra.mxu0 %v4989
        %5026 = vmatprep.subr.mxu0 0.0
        %5027 = vmatpush2.msra.mxu0 0.0
        %5028 = vmatprep.subr.mxu0 0.0
        %5029 = vmatpush2.msra.mxu0 0.0
        %5030 = vmatprep.subr.mxu0 0.0
        %5031 = vmatpush2.msra.mxu0 0.0
        %5032 = vmatprep.subr.mxu0 0.0
        %5033 = vmatpush2.msra.mxu0 0.0
        %5034 = vmatprep.subr.mxu0 0.0
        %5035 = vmatpush2.msra.mxu0 0.0
        %5036 = vmatprep.subr.mxu0 0.0
        %5037 = vmatpush2.msra.mxu0 0.0
        %5038 = vmatprep.subr.mxu0 0.0
        %5039 = vmatpush2.msra.mxu0 0.0
        %5040 = vmatprep.subr.mxu0 0.0
        %5041 = vmatpush2.msra.mxu0 0.0
        %5042 = vmatprep.subr.mxu0 0.0
        %5043 = vmatpush2.msra.mxu0 0.0
        %5044 = vmatprep.subr.mxu0 0.0
        %5045 = vmatpush2.msra.mxu0 0.0
        %5046 = vmatprep.subr.mxu0 0.0
        %5047 = vmatpush2.msra.mxu0 0.0
        %5048 = vmatprep.subr.mxu0 0.0
        %5049 = vmatpush2.msra.mxu0 0.0
        %5050 = vmatprep.subr.mxu0 0.0
        %5051 = vmatpush2.msra.mxu0 0.0
        %5052 = vmatprep.subr.mxu0 0.0
        %5053 = vmatpush2.msra.mxu0 0.0
        %5054 = vmatprep.subr.mxu0 0.0
        %5055 = vmatpush2.msra.mxu0 0.0
        %5056 = vmatprep.subr.mxu0 0.0
        %5057 = vmatpush2.msra.mxu0 0.0
        %5058 = vmatprep.mubr.f32.mxu0 0.0
        %5059 = vmatmul.mubr.f32.gmra.mxu0 %v4992
        %v5060 = vpop.f32.mrf.mxu0
        %v5061 = vadd.f32 0.0, %v5060
        %v5062 = vpop.f32.mrf.mxu0
        %5063 = vdwg.mxu0
        %5064 = vrot.lane.b32.xlu0 %v3447, 32
        %v5065 = vpop.permute.xlu0 %5064
        %v5068 = vsel %vm858, %v5061, 0
        %5070 = vmatprep.subr.mxu0 0.0
        %5071 = vmatpush1.msra.mxu0 0.0
        %5072 = vmatprep.subr.mxu0 0.0
        %5073 = vmatpush1.msra.mxu0 0.0
        %5074 = vmatprep.subr.mxu0 0.0
        %5075 = vmatpush1.msra.mxu0 0.0
        %5076 = vmatprep.subr.mxu0 0.0
        %5077 = vmatpush1.msra.mxu0 0.0
        %5078 = vmatprep.subr.mxu0 0.0
        %5079 = vmatpush1.msra.mxu0 0.0
        %5080 = vmatprep.subr.mxu0 0.0
        %5081 = vmatpush1.msra.mxu0 0.0
        %5082 = vmatprep.subr.mxu0 0.0
        %5083 = vmatpush1.msra.mxu0 0.0
        %5084 = vmatprep.subr.mxu0 0.0
        %5085 = vmatpush1.msra.mxu0 0.0
        %5086 = vmatprep.subr.mxu0 0.0
        %5087 = vmatpush1.msra.mxu0 0.0
        %5088 = vmatprep.subr.mxu0 0.0
        %5089 = vmatpush1.msra.mxu0 0.0
        %5090 = vmatprep.subr.mxu0 0.0
        %5091 = vmatpush1.msra.mxu0 0.0
        %5092 = vmatprep.subr.mxu0 0.0
        %5093 = vmatpush1.msra.mxu0 0.0
        %5094 = vmatprep.subr.mxu0 0.0
        %5095 = vmatpush1.msra.mxu0 0.0
        %5096 = vmatprep.subr.mxu0 0.0
        %5097 = vmatpush1.msra.mxu0 0.0
        %5098 = vmatprep.subr.mxu0 0.0
        %5099 = vmatpush1.msra.mxu0 0.0
        %5100 = vmatprep.subr.mxu0 0.0
        %5101 = vmatpush1.msra.mxu0 %v5065
        %5102 = vmatprep.subr.mxu0 0.0
        %5103 = vmatpush2.msra.mxu0 0.0
        %5104 = vmatprep.subr.mxu0 0.0
        %5105 = vmatpush2.msra.mxu0 0.0
        %5106 = vmatprep.subr.mxu0 0.0
        %5107 = vmatpush2.msra.mxu0 0.0
        %5108 = vmatprep.subr.mxu0 0.0
        %5109 = vmatpush2.msra.mxu0 0.0
        %5110 = vmatprep.subr.mxu0 0.0
        %5111 = vmatpush2.msra.mxu0 0.0
        %5112 = vmatprep.subr.mxu0 0.0
        %5113 = vmatpush2.msra.mxu0 0.0
        %5114 = vmatprep.subr.mxu0 0.0
        %5115 = vmatpush2.msra.mxu0 0.0
        %5116 = vmatprep.subr.mxu0 0.0
        %5117 = vmatpush2.msra.mxu0 0.0
        %5118 = vmatprep.subr.mxu0 0.0
        %5119 = vmatpush2.msra.mxu0 0.0
        %5120 = vmatprep.subr.mxu0 0.0
        %5121 = vmatpush2.msra.mxu0 0.0
        %5122 = vmatprep.subr.mxu0 0.0
        %5123 = vmatpush2.msra.mxu0 0.0
        %5124 = vmatprep.subr.mxu0 0.0
        %5125 = vmatpush2.msra.mxu0 0.0
        %5126 = vmatprep.subr.mxu0 0.0
        %5127 = vmatpush2.msra.mxu0 0.0
        %5128 = vmatprep.subr.mxu0 0.0
        %5129 = vmatpush2.msra.mxu0 0.0
        %5130 = vmatprep.subr.mxu0 0.0
        %5131 = vmatpush2.msra.mxu0 0.0
        %5132 = vmatprep.subr.mxu0 0.0
        %5133 = vmatpush2.msra.mxu0 0.0
        %5134 = vmatprep.mubr.f32.mxu0 0.0
        %5135 = vmatmul.mubr.f32.gmra.mxu0 %v5068
        %v5136 = vpop.f32.mrf.mxu0
        %v5137 = vadd.f32 0.0, %v5136
        %v5138 = vpop.f32.mrf.mxu0
        %5139 = vdwg.mxu0
        %5140 = vrot.lane.b32.xlu0 %v3444, 32
        %v5141 = vpop.permute.xlu0 %5140
        %v5144 = vsel %vm858, %v4896, 0
        %5146 = vmatprep.subr.mxu0 0.0
        %5147 = vmatpush1.msra.mxu0 0.0
        %5148 = vmatprep.subr.mxu0 0.0
        %5149 = vmatpush1.msra.mxu0 0.0
        %5150 = vmatprep.subr.mxu0 0.0
        %5151 = vmatpush1.msra.mxu0 0.0
        %5152 = vmatprep.subr.mxu0 0.0
        %5153 = vmatpush1.msra.mxu0 0.0
        %5154 = vmatprep.subr.mxu0 0.0
        %5155 = vmatpush1.msra.mxu0 0.0
        %5156 = vmatprep.subr.mxu0 0.0
        %5157 = vmatpush1.msra.mxu0 0.0
        %5158 = vmatprep.subr.mxu0 0.0
        %5159 = vmatpush1.msra.mxu0 0.0
        %5160 = vmatprep.subr.mxu0 0.0
        %5161 = vmatpush1.msra.mxu0 0.0
        %5162 = vmatprep.subr.mxu0 0.0
        %5163 = vmatpush1.msra.mxu0 0.0
        %5164 = vmatprep.subr.mxu0 0.0
        %5165 = vmatpush1.msra.mxu0 0.0
        %5166 = vmatprep.subr.mxu0 0.0
        %5167 = vmatpush1.msra.mxu0 0.0
        %5168 = vmatprep.subr.mxu0 0.0
        %5169 = vmatpush1.msra.mxu0 0.0
        %5170 = vmatprep.subr.mxu0 0.0
        %5171 = vmatpush1.msra.mxu0 0.0
        %5172 = vmatprep.subr.mxu0 0.0
        %5173 = vmatpush1.msra.mxu0 0.0
        %5174 = vmatprep.subr.mxu0 0.0
        %5175 = vmatpush1.msra.mxu0 0.0
        %5176 = vmatprep.subr.mxu0 0.0
        %5177 = vmatpush1.msra.mxu0 %v5141
        %5178 = vmatprep.subr.mxu0 0.0
        %5179 = vmatpush2.msra.mxu0 0.0
        %5180 = vmatprep.subr.mxu0 0.0
        %5181 = vmatpush2.msra.mxu0 0.0
        %5182 = vmatprep.subr.mxu0 0.0
        %5183 = vmatpush2.msra.mxu0 0.0
        %5184 = vmatprep.subr.mxu0 0.0
        %5185 = vmatpush2.msra.mxu0 0.0
        %5186 = vmatprep.subr.mxu0 0.0
        %5187 = vmatpush2.msra.mxu0 0.0
        %5188 = vmatprep.subr.mxu0 0.0
        %5189 = vmatpush2.msra.mxu0 0.0
        %5190 = vmatprep.subr.mxu0 0.0
        %5191 = vmatpush2.msra.mxu0 0.0
        %5192 = vmatprep.subr.mxu0 0.0
        %5193 = vmatpush2.msra.mxu0 0.0
        %5194 = vmatprep.subr.mxu0 0.0
        %5195 = vmatpush2.msra.mxu0 0.0
        %5196 = vmatprep.subr.mxu0 0.0
        %5197 = vmatpush2.msra.mxu0 0.0
        %5198 = vmatprep.subr.mxu0 0.0
        %5199 = vmatpush2.msra.mxu0 0.0
        %5200 = vmatprep.subr.mxu0 0.0
        %5201 = vmatpush2.msra.mxu0 0.0
        %5202 = vmatprep.subr.mxu0 0.0
        %5203 = vmatpush2.msra.mxu0 0.0
        %5204 = vmatprep.subr.mxu0 0.0
        %5205 = vmatpush2.msra.mxu0 0.0
        %5206 = vmatprep.subr.mxu0 0.0
        %5207 = vmatpush2.msra.mxu0 0.0
        %5208 = vmatprep.subr.mxu0 0.0
        %5209 = vmatpush2.msra.mxu0 0.0
        %5210 = vmatprep.mubr.f32.mxu0 0.0
        %5211 = vmatmul.mubr.f32.gmra.mxu0 %v5144
        %v5212 = vpop.f32.mrf.mxu0
        %v5213 = vadd.f32 %v5137, %v5212
        %v5214 = vpop.f32.mrf.mxu0
        %5215 = vdwg.mxu0
        %5216 = vrot.lane.b32.xlu0 %v4734, 112
        %v5217 = vpop.permute.xlu0 %5216
        %5218 = vrot.lane.b32.xlu0 %v4724, 112
        %v5219 = vpop.permute.xlu0 %5218
        %v5220 = vsel %vm858, %v5217, 0
        %v5222 = vsel %vm858, %v5219, 0
        %5224 = vmatprep.subr.mxu0 0.0
        %5225 = vmatpush1.xpose.msra.mxu0 0.0
        %5226 = vmatprep.subr.mxu0 0.0
        %5227 = vmatpush1.xpose.msra.mxu0 0.0
        %5228 = vmatprep.subr.mxu0 0.0
        %5229 = vmatpush1.xpose.msra.mxu0 0.0
        %5230 = vmatprep.subr.mxu0 0.0
        %5231 = vmatpush1.xpose.msra.mxu0 0.0
        %5232 = vmatprep.subr.mxu0 0.0
        %5233 = vmatpush1.xpose.msra.mxu0 0.0
        %5234 = vmatprep.subr.mxu0 0.0
        %5235 = vmatpush1.xpose.msra.mxu0 0.0
        %5236 = vmatprep.subr.mxu0 0.0
        %5237 = vmatpush1.xpose.msra.mxu0 0.0
        %5238 = vmatprep.subr.mxu0 0.0
        %5239 = vmatpush1.xpose.msra.mxu0 0.0
        %5240 = vmatprep.subr.mxu0 0.0
        %5241 = vmatpush1.xpose.msra.mxu0 0.0
        %5242 = vmatprep.subr.mxu0 0.0
        %5243 = vmatpush1.xpose.msra.mxu0 0.0
        %5244 = vmatprep.subr.mxu0 0.0
        %5245 = vmatpush1.xpose.msra.mxu0 0.0
        %5246 = vmatprep.subr.mxu0 0.0
        %5247 = vmatpush1.xpose.msra.mxu0 0.0
        %5248 = vmatprep.subr.mxu0 0.0
        %5249 = vmatpush1.xpose.msra.mxu0 0.0
        %5250 = vmatprep.subr.mxu0 0.0
        %5251 = vmatpush1.xpose.msra.mxu0 0.0
        %5252 = vmatprep.subr.mxu0 0.0
        %5253 = vmatpush1.xpose.msra.mxu0 0.0
        %5254 = vmatprep.subr.mxu0 0.0
        %5255 = vmatpush1.xpose.msra.mxu0 %v5222
        %5256 = vmatprep.subr.mxu0 0.0
        %5257 = vmatpush2.xpose.msra.mxu0 0.0
        %5258 = vmatprep.subr.mxu0 0.0
        %5259 = vmatpush2.xpose.msra.mxu0 0.0
        %5260 = vmatprep.subr.mxu0 0.0
        %5261 = vmatpush2.xpose.msra.mxu0 0.0
        %5262 = vmatprep.subr.mxu0 0.0
        %5263 = vmatpush2.xpose.msra.mxu0 0.0
        %5264 = vmatprep.subr.mxu0 0.0
        %5265 = vmatpush2.xpose.msra.mxu0 0.0
        %5266 = vmatprep.subr.mxu0 0.0
        %5267 = vmatpush2.xpose.msra.mxu0 0.0
        %5268 = vmatprep.subr.mxu0 0.0
        %5269 = vmatpush2.xpose.msra.mxu0 0.0
        %5270 = vmatprep.subr.mxu0 0.0
        %5271 = vmatpush2.xpose.msra.mxu0 0.0
        %5272 = vmatprep.subr.mxu0 0.0
        %5273 = vmatpush2.xpose.msra.mxu0 0.0
        %5274 = vmatprep.subr.mxu0 0.0
        %5275 = vmatpush2.xpose.msra.mxu0 0.0
        %5276 = vmatprep.subr.mxu0 0.0
        %5277 = vmatpush2.xpose.msra.mxu0 0.0
        %5278 = vmatprep.subr.mxu0 0.0
        %5279 = vmatpush2.xpose.msra.mxu0 0.0
        %5280 = vmatprep.subr.mxu0 0.0
        %5281 = vmatpush2.xpose.msra.mxu0 0.0
        %5282 = vmatprep.subr.mxu0 0.0
        %5283 = vmatpush2.xpose.msra.mxu0 0.0
        %5284 = vmatprep.subr.mxu0 0.0
        %5285 = vmatpush2.xpose.msra.mxu0 0.0
        %5286 = vmatprep.subr.mxu0 0.0
        %5287 = vmatpush2.xpose.msra.mxu0 0.0
        %5288 = vmatprep.mubr.f32.mxu0 0.0
        %5289 = vmatmul.mubr.f32.gmra.mxu0 %v5220
        %v5290 = vpop.f32.mrf.mxu0
        %v5291 = vadd.f32 %v570, %v5290
        %v5292 = vpop.f32.mrf.mxu0
        %5293 = vdwg.mxu0
        %v5294 = vsel %vm858, %v5291, -inf
        %5295 = vmax.xlane.f32.xlu0 %v5294
        %v5296 = vpop.xlane.xlu0 %5295
        %v5297 = vsub.f32 %v5291, %v5296
        %v5298 = vmul.f32 %v5297, 1.442695
        %v5299 = vpow.pop %v5298
        %v5300 = vsel %vm858, %v5299, 0.0
        %5301 = vadd.xlane.f32.xlu0 %v5300
        %v5302 = vpop.xlane.xlu0 %5301
        %v5303 = vrcp.pop %v5302
        %v5304 = vmul.f32 %v5299, %v5303
        %5305 = vrot.lane.b32.xlu0 %v4733, 80
        %v5306 = vpop.permute.xlu0 %5305
        %v5309 = vsel %vm858, %v5304, 0
        %5311 = vmatprep.subr.mxu0 0.0
        %5312 = vmatpush1.msra.mxu0 0.0
        %5313 = vmatprep.subr.mxu0 0.0
        %5314 = vmatpush1.msra.mxu0 0.0
        %5315 = vmatprep.subr.mxu0 0.0
        %5316 = vmatpush1.msra.mxu0 0.0
        %5317 = vmatprep.subr.mxu0 0.0
        %5318 = vmatpush1.msra.mxu0 0.0
        %5319 = vmatprep.subr.mxu0 0.0
        %5320 = vmatpush1.msra.mxu0 0.0
        %5321 = vmatprep.subr.mxu0 0.0
        %5322 = vmatpush1.msra.mxu0 0.0
        %5323 = vmatprep.subr.mxu0 0.0
        %5324 = vmatpush1.msra.mxu0 0.0
        %5325 = vmatprep.subr.mxu0 0.0
        %5326 = vmatpush1.msra.mxu0 0.0
        %5327 = vmatprep.subr.mxu0 0.0
        %5328 = vmatpush1.msra.mxu0 0.0
        %5329 = vmatprep.subr.mxu0 0.0
        %5330 = vmatpush1.msra.mxu0 0.0
        %5331 = vmatprep.subr.mxu0 0.0
        %5332 = vmatpush1.msra.mxu0 0.0
        %5333 = vmatprep.subr.mxu0 0.0
        %5334 = vmatpush1.msra.mxu0 0.0
        %5335 = vmatprep.subr.mxu0 0.0
        %5336 = vmatpush1.msra.mxu0 0.0
        %5337 = vmatprep.subr.mxu0 0.0
        %5338 = vmatpush1.msra.mxu0 0.0
        %5339 = vmatprep.subr.mxu0 0.0
        %5340 = vmatpush1.msra.mxu0 0.0
        %5341 = vmatprep.subr.mxu0 0.0
        %5342 = vmatpush1.msra.mxu0 %v5306
        %5343 = vmatprep.subr.mxu0 0.0
        %5344 = vmatpush2.msra.mxu0 0.0
        %5345 = vmatprep.subr.mxu0 0.0
        %5346 = vmatpush2.msra.mxu0 0.0
        %5347 = vmatprep.subr.mxu0 0.0
        %5348 = vmatpush2.msra.mxu0 0.0
        %5349 = vmatprep.subr.mxu0 0.0
        %5350 = vmatpush2.msra.mxu0 0.0
        %5351 = vmatprep.subr.mxu0 0.0
        %5352 = vmatpush2.msra.mxu0 0.0
        %5353 = vmatprep.subr.mxu0 0.0
        %5354 = vmatpush2.msra.mxu0 0.0
        %5355 = vmatprep.subr.mxu0 0.0
        %5356 = vmatpush2.msra.mxu0 0.0
        %5357 = vmatprep.subr.mxu0 0.0
        %5358 = vmatpush2.msra.mxu0 0.0
        %5359 = vmatprep.subr.mxu0 0.0
        %5360 = vmatpush2.msra.mxu0 0.0
        %5361 = vmatprep.subr.mxu0 0.0
        %5362 = vmatpush2.msra.mxu0 0.0
        %5363 = vmatprep.subr.mxu0 0.0
        %5364 = vmatpush2.msra.mxu0 0.0
        %5365 = vmatprep.subr.mxu0 0.0
        %5366 = vmatpush2.msra.mxu0 0.0
        %5367 = vmatprep.subr.mxu0 0.0
        %5368 = vmatpush2.msra.mxu0 0.0
        %5369 = vmatprep.subr.mxu0 0.0
        %5370 = vmatpush2.msra.mxu0 0.0
        %5371 = vmatprep.subr.mxu0 0.0
        %5372 = vmatpush2.msra.mxu0 0.0
        %5373 = vmatprep.subr.mxu0 0.0
        %5374 = vmatpush2.msra.mxu0 0.0
        %5375 = vmatprep.mubr.f32.mxu0 0.0
        %5376 = vmatmul.mubr.f32.gmra.mxu0 %v5309
        %v5377 = vpop.f32.mrf.mxu0
        %v5378 = vadd.f32 0.0, %v5377
        %v5379 = vpop.f32.mrf.mxu0
        %5380 = vdwg.mxu0
        %5381 = vrot.lane.b32.xlu0 %v3450, 32
        %v5382 = vpop.permute.xlu0 %5381
        %v5385 = vsel %vm858, %v5378, 0
        %5387 = vmatprep.subr.mxu0 0.0
        %5388 = vmatpush1.msra.mxu0 0.0
        %5389 = vmatprep.subr.mxu0 0.0
        %5390 = vmatpush1.msra.mxu0 0.0
        %5391 = vmatprep.subr.mxu0 0.0
        %5392 = vmatpush1.msra.mxu0 0.0
        %5393 = vmatprep.subr.mxu0 0.0
        %5394 = vmatpush1.msra.mxu0 0.0
        %5395 = vmatprep.subr.mxu0 0.0
        %5396 = vmatpush1.msra.mxu0 0.0
        %5397 = vmatprep.subr.mxu0 0.0
        %5398 = vmatpush1.msra.mxu0 0.0
        %5399 = vmatprep.subr.mxu0 0.0
        %5400 = vmatpush1.msra.mxu0 0.0
        %5401 = vmatprep.subr.mxu0 0.0
        %5402 = vmatpush1.msra.mxu0 0.0
        %5403 = vmatprep.subr.mxu0 0.0
        %5404 = vmatpush1.msra.mxu0 0.0
        %5405 = vmatprep.subr.mxu0 0.0
        %5406 = vmatpush1.msra.mxu0 0.0
        %5407 = vmatprep.subr.mxu0 0.0
        %5408 = vmatpush1.msra.mxu0 0.0
        %5409 = vmatprep.subr.mxu0 0.0
        %5410 = vmatpush1.msra.mxu0 0.0
        %5411 = vmatprep.subr.mxu0 0.0
        %5412 = vmatpush1.msra.mxu0 0.0
        %5413 = vmatprep.subr.mxu0 0.0
        %5414 = vmatpush1.msra.mxu0 0.0
        %5415 = vmatprep.subr.mxu0 0.0
        %5416 = vmatpush1.msra.mxu0 0.0
        %5417 = vmatprep.subr.mxu0 0.0
        %5418 = vmatpush1.msra.mxu0 %v5382
        %5419 = vmatprep.subr.mxu0 0.0
        %5420 = vmatpush2.msra.mxu0 0.0
        %5421 = vmatprep.subr.mxu0 0.0
        %5422 = vmatpush2.msra.mxu0 0.0
        %5423 = vmatprep.subr.mxu0 0.0
        %5424 = vmatpush2.msra.mxu0 0.0
        %5425 = vmatprep.subr.mxu0 0.0
        %5426 = vmatpush2.msra.mxu0 0.0
        %5427 = vmatprep.subr.mxu0 0.0
        %5428 = vmatpush2.msra.mxu0 0.0
        %5429 = vmatprep.subr.mxu0 0.0
        %5430 = vmatpush2.msra.mxu0 0.0
        %5431 = vmatprep.subr.mxu0 0.0
        %5432 = vmatpush2.msra.mxu0 0.0
        %5433 = vmatprep.subr.mxu0 0.0
        %5434 = vmatpush2.msra.mxu0 0.0
        %5435 = vmatprep.subr.mxu0 0.0
        %5436 = vmatpush2.msra.mxu0 0.0
        %5437 = vmatprep.subr.mxu0 0.0
        %5438 = vmatpush2.msra.mxu0 0.0
        %5439 = vmatprep.subr.mxu0 0.0
        %5440 = vmatpush2.msra.mxu0 0.0
        %5441 = vmatprep.subr.mxu0 0.0
        %5442 = vmatpush2.msra.mxu0 0.0
        %5443 = vmatprep.subr.mxu0 0.0
        %5444 = vmatpush2.msra.mxu0 0.0
        %5445 = vmatprep.subr.mxu0 0.0
        %5446 = vmatpush2.msra.mxu0 0.0
        %5447 = vmatprep.subr.mxu0 0.0
        %5448 = vmatpush2.msra.mxu0 0.0
        %5449 = vmatprep.subr.mxu0 0.0
        %5450 = vmatpush2.msra.mxu0 0.0
        %5451 = vmatprep.mubr.f32.mxu0 0.0
        %5452 = vmatmul.mubr.f32.gmra.mxu0 %v5385
        %v5453 = vpop.f32.mrf.mxu0
        %v5454 = vadd.f32 0.0, %v5453
        %v5455 = vpop.f32.mrf.mxu0
        %5456 = vdwg.mxu0
        %v5457 = vadd.f32 %v5213, %v5454
        %5458 = vrot.lane.b32.xlu0 %v4734, 104
        %v5459 = vpop.permute.xlu0 %5458
        %5460 = vrot.lane.b32.xlu0 %v4724, 104
        %v5461 = vpop.permute.xlu0 %5460
        %v5462 = vsel %vm858, %v5459, 0
        %v5464 = vsel %vm858, %v5461, 0
        %5466 = vmatprep.subr.mxu0 0.0
        %5467 = vmatpush1.xpose.msra.mxu0 0.0
        %5468 = vmatprep.subr.mxu0 0.0
        %5469 = vmatpush1.xpose.msra.mxu0 0.0
        %5470 = vmatprep.subr.mxu0 0.0
        %5471 = vmatpush1.xpose.msra.mxu0 0.0
        %5472 = vmatprep.subr.mxu0 0.0
        %5473 = vmatpush1.xpose.msra.mxu0 0.0
        %5474 = vmatprep.subr.mxu0 0.0
        %5475 = vmatpush1.xpose.msra.mxu0 0.0
        %5476 = vmatprep.subr.mxu0 0.0
        %5477 = vmatpush1.xpose.msra.mxu0 0.0
        %5478 = vmatprep.subr.mxu0 0.0
        %5479 = vmatpush1.xpose.msra.mxu0 0.0
        %5480 = vmatprep.subr.mxu0 0.0
        %5481 = vmatpush1.xpose.msra.mxu0 0.0
        %5482 = vmatprep.subr.mxu0 0.0
        %5483 = vmatpush1.xpose.msra.mxu0 0.0
        %5484 = vmatprep.subr.mxu0 0.0
        %5485 = vmatpush1.xpose.msra.mxu0 0.0
        %5486 = vmatprep.subr.mxu0 0.0
        %5487 = vmatpush1.xpose.msra.mxu0 0.0
        %5488 = vmatprep.subr.mxu0 0.0
        %5489 = vmatpush1.xpose.msra.mxu0 0.0
        %5490 = vmatprep.subr.mxu0 0.0
        %5491 = vmatpush1.xpose.msra.mxu0 0.0
        %5492 = vmatprep.subr.mxu0 0.0
        %5493 = vmatpush1.xpose.msra.mxu0 0.0
        %5494 = vmatprep.subr.mxu0 0.0
        %5495 = vmatpush1.xpose.msra.mxu0 0.0
        %5496 = vmatprep.subr.mxu0 0.0
        %5497 = vmatpush1.xpose.msra.mxu0 %v5464
        %5498 = vmatprep.subr.mxu0 0.0
        %5499 = vmatpush2.xpose.msra.mxu0 0.0
        %5500 = vmatprep.subr.mxu0 0.0
        %5501 = vmatpush2.xpose.msra.mxu0 0.0
        %5502 = vmatprep.subr.mxu0 0.0
        %5503 = vmatpush2.xpose.msra.mxu0 0.0
        %5504 = vmatprep.subr.mxu0 0.0
        %5505 = vmatpush2.xpose.msra.mxu0 0.0
        %5506 = vmatprep.subr.mxu0 0.0
        %5507 = vmatpush2.xpose.msra.mxu0 0.0
        %5508 = vmatprep.subr.mxu0 0.0
        %5509 = vmatpush2.xpose.msra.mxu0 0.0
        %5510 = vmatprep.subr.mxu0 0.0
        %5511 = vmatpush2.xpose.msra.mxu0 0.0
        %5512 = vmatprep.subr.mxu0 0.0
        %5513 = vmatpush2.xpose.msra.mxu0 0.0
        %5514 = vmatprep.subr.mxu0 0.0
        %5515 = vmatpush2.xpose.msra.mxu0 0.0
        %5516 = vmatprep.subr.mxu0 0.0
        %5517 = vmatpush2.xpose.msra.mxu0 0.0
        %5518 = vmatprep.subr.mxu0 0.0
        %5519 = vmatpush2.xpose.msra.mxu0 0.0
        %5520 = vmatprep.subr.mxu0 0.0
        %5521 = vmatpush2.xpose.msra.mxu0 0.0
        %5522 = vmatprep.subr.mxu0 0.0
        %5523 = vmatpush2.xpose.msra.mxu0 0.0
        %5524 = vmatprep.subr.mxu0 0.0
        %5525 = vmatpush2.xpose.msra.mxu0 0.0
        %5526 = vmatprep.subr.mxu0 0.0
        %5527 = vmatpush2.xpose.msra.mxu0 0.0
        %5528 = vmatprep.subr.mxu0 0.0
        %5529 = vmatpush2.xpose.msra.mxu0 0.0
        %5530 = vmatprep.mubr.f32.mxu0 0.0
        %5531 = vmatmul.mubr.f32.gmra.mxu0 %v5462
        %v5532 = vpop.f32.mrf.mxu0
        %v5533 = vadd.f32 %v570, %v5532
        %v5534 = vpop.f32.mrf.mxu0
        %5535 = vdwg.mxu0
        %v5536 = vsel %vm858, %v5533, -inf
        %5537 = vmax.xlane.f32.xlu0 %v5536
        %v5538 = vpop.xlane.xlu0 %5537
        %v5539 = vsub.f32 %v5533, %v5538
        %v5540 = vmul.f32 %v5539, 1.442695
        %v5541 = vpow.pop %v5540
        %v5542 = vsel %vm858, %v5541, 0.0
        %5543 = vadd.xlane.f32.xlu0 %v5542
        %v5544 = vpop.xlane.xlu0 %5543
        %v5545 = vrcp.pop %v5544
        %v5546 = vmul.f32 %v5541, %v5545
        %5547 = vrot.lane.b32.xlu0 %v4733, 72
        %v5548 = vpop.permute.xlu0 %5547
        %v5551 = vsel %vm858, %v5546, 0
        %5553 = vmatprep.subr.mxu0 0.0
        %5554 = vmatpush1.msra.mxu0 0.0
        %5555 = vmatprep.subr.mxu0 0.0
        %5556 = vmatpush1.msra.mxu0 0.0
        %5557 = vmatprep.subr.mxu0 0.0
        %5558 = vmatpush1.msra.mxu0 0.0
        %5559 = vmatprep.subr.mxu0 0.0
        %5560 = vmatpush1.msra.mxu0 0.0
        %5561 = vmatprep.subr.mxu0 0.0
        %5562 = vmatpush1.msra.mxu0 0.0
        %5563 = vmatprep.subr.mxu0 0.0
        %5564 = vmatpush1.msra.mxu0 0.0
        %5565 = vmatprep.subr.mxu0 0.0
        %5566 = vmatpush1.msra.mxu0 0.0
        %5567 = vmatprep.subr.mxu0 0.0
        %5568 = vmatpush1.msra.mxu0 0.0
        %5569 = vmatprep.subr.mxu0 0.0
        %5570 = vmatpush1.msra.mxu0 0.0
        %5571 = vmatprep.subr.mxu0 0.0
        %5572 = vmatpush1.msra.mxu0 0.0
        %5573 = vmatprep.subr.mxu0 0.0
        %5574 = vmatpush1.msra.mxu0 0.0
        %5575 = vmatprep.subr.mxu0 0.0
        %5576 = vmatpush1.msra.mxu0 0.0
        %5577 = vmatprep.subr.mxu0 0.0
        %5578 = vmatpush1.msra.mxu0 0.0
        %5579 = vmatprep.subr.mxu0 0.0
        %5580 = vmatpush1.msra.mxu0 0.0
        %5581 = vmatprep.subr.mxu0 0.0
        %5582 = vmatpush1.msra.mxu0 0.0
        %5583 = vmatprep.subr.mxu0 0.0
        %5584 = vmatpush1.msra.mxu0 %v5548
        %5585 = vmatprep.subr.mxu0 0.0
        %5586 = vmatpush2.msra.mxu0 0.0
        %5587 = vmatprep.subr.mxu0 0.0
        %5588 = vmatpush2.msra.mxu0 0.0
        %5589 = vmatprep.subr.mxu0 0.0
        %5590 = vmatpush2.msra.mxu0 0.0
        %5591 = vmatprep.subr.mxu0 0.0
        %5592 = vmatpush2.msra.mxu0 0.0
        %5593 = vmatprep.subr.mxu0 0.0
        %5594 = vmatpush2.msra.mxu0 0.0
        %5595 = vmatprep.subr.mxu0 0.0
        %5596 = vmatpush2.msra.mxu0 0.0
        %5597 = vmatprep.subr.mxu0 0.0
        %5598 = vmatpush2.msra.mxu0 0.0
        %5599 = vmatprep.subr.mxu0 0.0
        %5600 = vmatpush2.msra.mxu0 0.0
        %5601 = vmatprep.subr.mxu0 0.0
        %5602 = vmatpush2.msra.mxu0 0.0
        %5603 = vmatprep.subr.mxu0 0.0
        %5604 = vmatpush2.msra.mxu0 0.0
        %5605 = vmatprep.subr.mxu0 0.0
        %5606 = vmatpush2.msra.mxu0 0.0
        %5607 = vmatprep.subr.mxu0 0.0
        %5608 = vmatpush2.msra.mxu0 0.0
        %5609 = vmatprep.subr.mxu0 0.0
        %5610 = vmatpush2.msra.mxu0 0.0
        %5611 = vmatprep.subr.mxu0 0.0
        %5612 = vmatpush2.msra.mxu0 0.0
        %5613 = vmatprep.subr.mxu0 0.0
        %5614 = vmatpush2.msra.mxu0 0.0
        %5615 = vmatprep.subr.mxu0 0.0
        %5616 = vmatpush2.msra.mxu0 0.0
        %5617 = vmatprep.mubr.f32.mxu0 0.0
        %5618 = vmatmul.mubr.f32.gmra.mxu0 %v5551
        %v5619 = vpop.f32.mrf.mxu0
        %v5620 = vadd.f32 0.0, %v5619
        %v5621 = vpop.f32.mrf.mxu0
        %5622 = vdwg.mxu0
        %5623 = vrot.lane.b32.xlu0 %v3453, 32
        %v5624 = vpop.permute.xlu0 %5623
        %v5627 = vsel %vm858, %v5620, 0
        %5629 = vmatprep.subr.mxu0 0.0
        %5630 = vmatpush1.msra.mxu0 0.0
        %5631 = vmatprep.subr.mxu0 0.0
        %5632 = vmatpush1.msra.mxu0 0.0
        %5633 = vmatprep.subr.mxu0 0.0
        %5634 = vmatpush1.msra.mxu0 0.0
        %5635 = vmatprep.subr.mxu0 0.0
        %5636 = vmatpush1.msra.mxu0 0.0
        %5637 = vmatprep.subr.mxu0 0.0
        %5638 = vmatpush1.msra.mxu0 0.0
        %5639 = vmatprep.subr.mxu0 0.0
        %5640 = vmatpush1.msra.mxu0 0.0
        %5641 = vmatprep.subr.mxu0 0.0
        %5642 = vmatpush1.msra.mxu0 0.0
        %5643 = vmatprep.subr.mxu0 0.0
        %5644 = vmatpush1.msra.mxu0 0.0
        %5645 = vmatprep.subr.mxu0 0.0
        %5646 = vmatpush1.msra.mxu0 0.0
        %5647 = vmatprep.subr.mxu0 0.0
        %5648 = vmatpush1.msra.mxu0 0.0
        %5649 = vmatprep.subr.mxu0 0.0
        %5650 = vmatpush1.msra.mxu0 0.0
        %5651 = vmatprep.subr.mxu0 0.0
        %5652 = vmatpush1.msra.mxu0 0.0
        %5653 = vmatprep.subr.mxu0 0.0
        %5654 = vmatpush1.msra.mxu0 0.0
        %5655 = vmatprep.subr.mxu0 0.0
        %5656 = vmatpush1.msra.mxu0 0.0
        %5657 = vmatprep.subr.mxu0 0.0
        %5658 = vmatpush1.msra.mxu0 0.0
        %5659 = vmatprep.subr.mxu0 0.0
        %5660 = vmatpush1.msra.mxu0 %v5624
        %5661 = vmatprep.subr.mxu0 0.0
        %5662 = vmatpush2.msra.mxu0 0.0
        %5663 = vmatprep.subr.mxu0 0.0
        %5664 = vmatpush2.msra.mxu0 0.0
        %5665 = vmatprep.subr.mxu0 0.0
        %5666 = vmatpush2.msra.mxu0 0.0
        %5667 = vmatprep.subr.mxu0 0.0
        %5668 = vmatpush2.msra.mxu0 0.0
        %5669 = vmatprep.subr.mxu0 0.0
        %5670 = vmatpush2.msra.mxu0 0.0
        %5671 = vmatprep.subr.mxu0 0.0
        %5672 = vmatpush2.msra.mxu0 0.0
        %5673 = vmatprep.subr.mxu0 0.0
        %5674 = vmatpush2.msra.mxu0 0.0
        %5675 = vmatprep.subr.mxu0 0.0
        %5676 = vmatpush2.msra.mxu0 0.0
        %5677 = vmatprep.subr.mxu0 0.0
        %5678 = vmatpush2.msra.mxu0 0.0
        %5679 = vmatprep.subr.mxu0 0.0
        %5680 = vmatpush2.msra.mxu0 0.0
        %5681 = vmatprep.subr.mxu0 0.0
        %5682 = vmatpush2.msra.mxu0 0.0
        %5683 = vmatprep.subr.mxu0 0.0
        %5684 = vmatpush2.msra.mxu0 0.0
        %5685 = vmatprep.subr.mxu0 0.0
        %5686 = vmatpush2.msra.mxu0 0.0
        %5687 = vmatprep.subr.mxu0 0.0
        %5688 = vmatpush2.msra.mxu0 0.0
        %5689 = vmatprep.subr.mxu0 0.0
        %5690 = vmatpush2.msra.mxu0 0.0
        %5691 = vmatprep.subr.mxu0 0.0
        %5692 = vmatpush2.msra.mxu0 0.0
        %5693 = vmatprep.mubr.f32.mxu0 0.0
        %5694 = vmatmul.mubr.f32.gmra.mxu0 %v5627
        %v5695 = vpop.f32.mrf.mxu0
        %v5696 = vadd.f32 0.0, %v5695
        %v5697 = vpop.f32.mrf.mxu0
        %5698 = vdwg.mxu0
        %v5699 = vadd.f32 %v5457, %v5696
        %v5700 = vlaneseq
        %v5701 = vshrl.u32 %v5700, 7
        %v5702 = vsub.s32 7, %v5701
        %v5703 = vrot.slane %v3455, %v5702
        %v5704 = vadd.f32 %v5699, %v5703
        %v5705 = vadd.f32 %v5704, %v4553
        %v5706 = vlaneseq
        %v5707 = vshrl.u32 %v5706, 7
        %v5708 = vsub.s32 0, %v5707
        %v5709 = vrot.slane %v3456, %v5708
        %v5711 = vsel %vm757, %v5705, 0
        %5713 = vmatprep.subr.mxu0 0.0
        %5714 = vmatpush1.msra.mxu0 0.0
        %5715 = vmatprep.subr.mxu0 0.0
        %5716 = vmatpush1.msra.mxu0 0.0
        %5717 = vmatprep.subr.mxu0 0.0
        %5718 = vmatpush1.msra.mxu0 0.0
        %5719 = vmatprep.subr.mxu0 0.0
        %5720 = vmatpush1.msra.mxu0 0.0
        %5721 = vmatprep.subr.mxu0 0.0
        %5722 = vmatpush1.msra.mxu0 0.0
        %5723 = vmatprep.subr.mxu0 0.0
        %5724 = vmatpush1.msra.mxu0 0.0
        %5725 = vmatprep.subr.mxu0 0.0
        %5726 = vmatpush1.msra.mxu0 0.0
        %5727 = vmatprep.subr.mxu0 0.0
        %5728 = vmatpush1.msra.mxu0 0.0
        %5729 = vmatprep.subr.mxu0 0.0
        %5730 = vmatpush1.msra.mxu0 0.0
        %5731 = vmatprep.subr.mxu0 0.0
        %5732 = vmatpush1.msra.mxu0 0.0
        %5733 = vmatprep.subr.mxu0 0.0
        %5734 = vmatpush1.msra.mxu0 0.0
        %5735 = vmatprep.subr.mxu0 0.0
        %5736 = vmatpush1.msra.mxu0 0.0
        %5737 = vmatprep.subr.mxu0 0.0
        %5738 = vmatpush1.msra.mxu0 %v3454
        %5739 = vmatprep.subr.mxu0 0.0
        %5740 = vmatpush1.msra.mxu0 %v3451
        %5741 = vmatprep.subr.mxu0 0.0
        %5742 = vmatpush1.msra.mxu0 %v3448
        %5743 = vmatprep.subr.mxu0 0.0
        %5744 = vmatpush1.msra.mxu0 %v3445
        %5745 = vmatprep.subr.mxu0 0.0
        %5746 = vmatpush2.msra.mxu0 0.0
        %5747 = vmatprep.subr.mxu0 0.0
        %5748 = vmatpush2.msra.mxu0 0.0
        %5749 = vmatprep.subr.mxu0 0.0
        %5750 = vmatpush2.msra.mxu0 0.0
        %5751 = vmatprep.subr.mxu0 0.0
        %5752 = vmatpush2.msra.mxu0 0.0
        %5753 = vmatprep.subr.mxu0 0.0
        %5754 = vmatpush2.msra.mxu0 0.0
        %5755 = vmatprep.subr.mxu0 0.0
        %5756 = vmatpush2.msra.mxu0 0.0
        %5757 = vmatprep.subr.mxu0 0.0
        %5758 = vmatpush2.msra.mxu0 0.0
        %5759 = vmatprep.subr.mxu0 0.0
        %5760 = vmatpush2.msra.mxu0 0.0
        %5761 = vmatprep.subr.mxu0 0.0
        %5762 = vmatpush2.msra.mxu0 0.0
        %5763 = vmatprep.subr.mxu0 0.0
        %5764 = vmatpush2.msra.mxu0 0.0
        %5765 = vmatprep.subr.mxu0 0.0
        %5766 = vmatpush2.msra.mxu0 0.0
        %5767 = vmatprep.subr.mxu0 0.0
        %5768 = vmatpush2.msra.mxu0 0.0
        %5769 = vmatprep.subr.mxu0 0.0
        %5770 = vmatpush2.msra.mxu0 0.0
        %5771 = vmatprep.subr.mxu0 0.0
        %5772 = vmatpush2.msra.mxu0 0.0
        %5773 = vmatprep.subr.mxu0 0.0
        %5774 = vmatpush2.msra.mxu0 0.0
        %5775 = vmatprep.subr.mxu0 0.0
        %5776 = vmatpush2.msra.mxu0 0.0
        %5777 = vmatprep.mubr.f32.mxu0 0.0
        %5778 = vmatmul.mubr.f32.gmra.mxu0 %v5711
        %v5779 = vpop.f32.mrf.mxu0
        %v5780 = vadd.f32 %v5709, %v5779
        %v5781 = vpop.f32.mrf.mxu0
        %5782 = vdwg.mxu0
        %v5783 = vmax.f32 %v5780, 0.0
        %v5784 = vlaneseq
        %v5785 = vshrl.u32 %v5784, 7
        %v5786 = vsub.s32 1, %v5785
        %v5787 = vrot.slane %v3456, %v5786
        %5792 = vrot.lane.b32.xlu0 %v3445, 96
        %v5793 = vpop.permute.xlu0 %5792
        %5794 = vrot.lane.b32.xlu0 %v3448, 96
        %v5795 = vpop.permute.xlu0 %5794
        %5796 = vrot.lane.b32.xlu0 %v3451, 96
        %v5797 = vpop.permute.xlu0 %5796
        %5798 = vrot.lane.b32.xlu0 %v3454, 96
        %v5799 = vpop.permute.xlu0 %5798
        %v5805 = vsel %vm757, %v5783, 0
        %5807 = vmatprep.subr.mxu0 0.0
        %5808 = vmatpush1.msra.mxu0 0.0
        %5809 = vmatprep.subr.mxu0 0.0
        %5810 = vmatpush1.msra.mxu0 0.0
        %5811 = vmatprep.subr.mxu0 0.0
        %5812 = vmatpush1.msra.mxu0 0.0
        %5813 = vmatprep.subr.mxu0 0.0
        %5814 = vmatpush1.msra.mxu0 0.0
        %5815 = vmatprep.subr.mxu0 0.0
        %5816 = vmatpush1.msra.mxu0 0.0
        %5817 = vmatprep.subr.mxu0 0.0
        %5818 = vmatpush1.msra.mxu0 0.0
        %5819 = vmatprep.subr.mxu0 0.0
        %5820 = vmatpush1.msra.mxu0 0.0
        %5821 = vmatprep.subr.mxu0 0.0
        %5822 = vmatpush1.msra.mxu0 0.0
        %5823 = vmatprep.subr.mxu0 0.0
        %5824 = vmatpush1.msra.mxu0 0.0
        %5825 = vmatprep.subr.mxu0 0.0
        %5826 = vmatpush1.msra.mxu0 0.0
        %5827 = vmatprep.subr.mxu0 0.0
        %5828 = vmatpush1.msra.mxu0 0.0
        %5829 = vmatprep.subr.mxu0 0.0
        %5830 = vmatpush1.msra.mxu0 0.0
        %5831 = vmatprep.subr.mxu0 0.0
        %5832 = vmatpush1.msra.mxu0 %v5799
        %5833 = vmatprep.subr.mxu0 0.0
        %5834 = vmatpush1.msra.mxu0 %v5797
        %5835 = vmatprep.subr.mxu0 0.0
        %5836 = vmatpush1.msra.mxu0 %v5795
        %5837 = vmatprep.subr.mxu0 0.0
        %5838 = vmatpush1.msra.mxu0 %v5793
        %5839 = vmatprep.subr.mxu0 0.0
        %5840 = vmatpush2.msra.mxu0 0.0
        %5841 = vmatprep.subr.mxu0 0.0
        %5842 = vmatpush2.msra.mxu0 0.0
        %5843 = vmatprep.subr.mxu0 0.0
        %5844 = vmatpush2.msra.mxu0 0.0
        %5845 = vmatprep.subr.mxu0 0.0
        %5846 = vmatpush2.msra.mxu0 0.0
        %5847 = vmatprep.subr.mxu0 0.0
        %5848 = vmatpush2.msra.mxu0 0.0
        %5849 = vmatprep.subr.mxu0 0.0
        %5850 = vmatpush2.msra.mxu0 0.0
        %5851 = vmatprep.subr.mxu0 0.0
        %5852 = vmatpush2.msra.mxu0 0.0
        %5853 = vmatprep.subr.mxu0 0.0
        %5854 = vmatpush2.msra.mxu0 0.0
        %5855 = vmatprep.subr.mxu0 0.0
        %5856 = vmatpush2.msra.mxu0 0.0
        %5857 = vmatprep.subr.mxu0 0.0
        %5858 = vmatpush2.msra.mxu0 0.0
        %5859 = vmatprep.subr.mxu0 0.0
        %5860 = vmatpush2.msra.mxu0 0.0
        %5861 = vmatprep.subr.mxu0 0.0
        %5862 = vmatpush2.msra.mxu0 0.0
        %5863 = vmatprep.subr.mxu0 0.0
        %5864 = vmatpush2.msra.mxu0 0.0
        %5865 = vmatprep.subr.mxu0 0.0
        %5866 = vmatpush2.msra.mxu0 0.0
        %5867 = vmatprep.subr.mxu0 0.0
        %5868 = vmatpush2.msra.mxu0 0.0
        %5869 = vmatprep.subr.mxu0 0.0
        %5870 = vmatpush2.msra.mxu0 0.0
        %5871 = vmatprep.mubr.f32.mxu0 0.0
        %5872 = vmatmul.mubr.f32.gmra.mxu0 %v5805
        %v5873 = vpop.f32.mrf.mxu0
        %v5874 = vadd.f32 %v5787, %v5873
        %v5875 = vpop.f32.mrf.mxu0
        %5876 = vdwg.mxu0
        %v5877 = vadd.f32 %v5874, %v5705
        %v5878 = vsel %vm757, %v5877, 0.0
        %5879 = vadd.xlane.f32.xlu0 %v5878
        %v5880 = vpop.xlane.xlu0 %5879
        %v5881 = vmul.f32 %v5880, %v1836
        %v5882 = vsub.f32 %v5877, %v5881
        %v5883 = vmul.f32 %v5882, %v5882
        %v5884 = vsel %vm757, %v5883, 0.0
        %5885 = vadd.xlane.f32.xlu0 %v5884
        %v5886 = vpop.xlane.xlu0 %5885
        %v5887 = vmul.f32 %v5886, %v1836
        %v5888 = vadd.f32 %v5887, 1e-05
        %v5889 = vrsqrt.pop %v5888
        %v5890 = vmul.f32 %v5882, %v5889
        %v5891 = vlaneseq
        %v5892 = vshrl.u32 %v5891, 7
        %v5893 = vsub.s32 4, %v5892
        %v5894 = vrot.slane %v3456, %v5893
        %v5895 = vmul.f32 %v5890, %v5894
        %v5896 = vlaneseq
        %v5897 = vshrl.u32 %v5896, 7
        %v5898 = vsub.s32 5, %v5897
        %v5899 = vrot.slane %v3456, %v5898
        %v5900 = vadd.f32 %v5895, %v5899
        %s5901 = scalar_lea.vmem [#allocation10], 96
        %v5902 = vld [vmem:[%s5901] sm:$0xff]
        %v5903 = vld [vmem:[%s5901 + $0x8] sm:$0xff]
        %v5904 = vld [vmem:[%s5901 + $0x10] sm:$0xff]
        %v5905 = vld [vmem:[%s5901 + $0x18] sm:$0xff]
        %v5906 = vld [vmem:[%s5901 + $0x20] sm:$0xff]
        %v5907 = vld [vmem:[%s5901 + $0x28] sm:$0xff]
        %v5908 = vld [vmem:[%s5901 + $0x30] sm:$0xff]
        %v5909 = vld [vmem:[%s5901 + $0x38] sm:$0xff]
        %v5910 = vld [vmem:[%s5901 + $0x40] sm:$0xff]
        %v5911 = vld [vmem:[%s5901 + $0x48] sm:$0xff]
        %v5912 = vld [vmem:[%s5901 + $0x50] sm:$0xff]
        %v5913 = vld [vmem:[%s5901 + $0x58] sm:$0xff]
        %s5914 = scalar_lea.vmem %s10, 16
        %v5915 = vld [vmem:[%s5914] sm:$0xff]
        %v5916 = vld [vmem:[%s5914 + $0x8] sm:$0x3f]
        %v5918 = vsel %vm757, %v5900, 0
        %5920 = vmatprep.subr.mxu0 0.0
        %5921 = vmatpush1.msra.mxu0 0.0
        %5922 = vmatprep.subr.mxu0 0.0
        %5923 = vmatpush1.msra.mxu0 0.0
        %5924 = vmatprep.subr.mxu0 0.0
        %5925 = vmatpush1.msra.mxu0 0.0
        %5926 = vmatprep.subr.mxu0 0.0
        %5927 = vmatpush1.msra.mxu0 0.0
        %5928 = vmatprep.subr.mxu0 0.0
        %5929 = vmatpush1.msra.mxu0 0.0
        %5930 = vmatprep.subr.mxu0 0.0
        %5931 = vmatpush1.msra.mxu0 0.0
        %5932 = vmatprep.subr.mxu0 0.0
        %5933 = vmatpush1.msra.mxu0 0.0
        %5934 = vmatprep.subr.mxu0 0.0
        %5935 = vmatpush1.msra.mxu0 0.0
        %5936 = vmatprep.subr.mxu0 0.0
        %5937 = vmatpush1.msra.mxu0 0.0
        %5938 = vmatprep.subr.mxu0 0.0
        %5939 = vmatpush1.msra.mxu0 0.0
        %5940 = vmatprep.subr.mxu0 0.0
        %5941 = vmatpush1.msra.mxu0 0.0
        %5942 = vmatprep.subr.mxu0 0.0
        %5943 = vmatpush1.msra.mxu0 0.0
        %5944 = vmatprep.subr.mxu0 0.0
        %5945 = vmatpush1.msra.mxu0 %v5911
        %5946 = vmatprep.subr.mxu0 0.0
        %5947 = vmatpush1.msra.mxu0 %v5908
        %5948 = vmatprep.subr.mxu0 0.0
        %5949 = vmatpush1.msra.mxu0 %v5905
        %5950 = vmatprep.subr.mxu0 0.0
        %5951 = vmatpush1.msra.mxu0 %v5902
        %5952 = vmatprep.subr.mxu0 0.0
        %5953 = vmatpush2.msra.mxu0 0.0
        %5954 = vmatprep.subr.mxu0 0.0
        %5955 = vmatpush2.msra.mxu0 0.0
        %5956 = vmatprep.subr.mxu0 0.0
        %5957 = vmatpush2.msra.mxu0 0.0
        %5958 = vmatprep.subr.mxu0 0.0
        %5959 = vmatpush2.msra.mxu0 0.0
        %5960 = vmatprep.subr.mxu0 0.0
        %5961 = vmatpush2.msra.mxu0 0.0
        %5962 = vmatprep.subr.mxu0 0.0
        %5963 = vmatpush2.msra.mxu0 0.0
        %5964 = vmatprep.subr.mxu0 0.0
        %5965 = vmatpush2.msra.mxu0 0.0
        %5966 = vmatprep.subr.mxu0 0.0
        %5967 = vmatpush2.msra.mxu0 0.0
        %5968 = vmatprep.subr.mxu0 0.0
        %5969 = vmatpush2.msra.mxu0 0.0
        %5970 = vmatprep.subr.mxu0 0.0
        %5971 = vmatpush2.msra.mxu0 0.0
        %5972 = vmatprep.subr.mxu0 0.0
        %5973 = vmatpush2.msra.mxu0 0.0
        %5974 = vmatprep.subr.mxu0 0.0
        %5975 = vmatpush2.msra.mxu0 0.0
        %5976 = vmatprep.subr.mxu0 0.0
        %5977 = vmatpush2.msra.mxu0 0.0
        %5978 = vmatprep.subr.mxu0 0.0
        %5979 = vmatpush2.msra.mxu0 0.0
        %5980 = vmatprep.subr.mxu0 0.0
        %5981 = vmatpush2.msra.mxu0 0.0
        %5982 = vmatprep.subr.mxu0 0.0
        %5983 = vmatpush2.msra.mxu0 0.0
        %5984 = vmatprep.mubr.f32.mxu0 0.0
        %5985 = vmatmul.mubr.f32.gmra.mxu0 %v5918
        %v5986 = vpop.f32.mrf.mxu0
        %v5987 = vadd.f32 0.0, %v5986
        %v5988 = vpop.f32.mrf.mxu0
        %5989 = vdwg.mxu0
        %v5990 = vlaneseq
        %v5991 = vshrl.u32 %v5990, 7
        %v5992 = vsub.s32 0, %v5991
        %v5993 = vrot.slane %v5915, %v5992
        %v5994 = vadd.f32 %v5987, %v5993
        %v5995 = vlaneseq
        %v5996 = vshrl.u32 %v5995, 7
        %v5997 = vsub.s32 1, %v5996
        %v5998 = vrot.slane %v5915, %v5997
        %6000 = vrot.lane.b32.xlu0 %v5998, 32
        %v6001 = vpop.permute.xlu0 %6000
        %v6003 = vadd.f32 %v5987, %v6001
        %v6004 = vlaneseq
        %v6005 = vshrl.u32 %v6004, 7
        %v6006 = vsub.s32 2, %v6005
        %v6007 = vrot.slane %v5915, %v6006
        %6009 = vrot.lane.b32.xlu0 %v6007, 64
        %v6010 = vpop.permute.xlu0 %6009
        %v6012 = vadd.f32 %v5987, %v6010
        %v6013 = vmul.f32 %v5994, 0.35355338
        %6015 = vrot.lane.b32.xlu0 %v6003, 96
        %v6016 = vpop.permute.xlu0 %6015
        %v6018 = vsel %vm858, %v6013, 0
        %v6020 = vsel %vm858, %v6016, 0
        %6022 = vmatprep.subr.mxu0 0.0
        %6023 = vmatpush1.xpose.msra.mxu0 0.0
        %6024 = vmatprep.subr.mxu0 0.0
        %6025 = vmatpush1.xpose.msra.mxu0 0.0
        %6026 = vmatprep.subr.mxu0 0.0
        %6027 = vmatpush1.xpose.msra.mxu0 0.0
        %6028 = vmatprep.subr.mxu0 0.0
        %6029 = vmatpush1.xpose.msra.mxu0 0.0
        %6030 = vmatprep.subr.mxu0 0.0
        %6031 = vmatpush1.xpose.msra.mxu0 0.0
        %6032 = vmatprep.subr.mxu0 0.0
        %6033 = vmatpush1.xpose.msra.mxu0 0.0
        %6034 = vmatprep.subr.mxu0 0.0
        %6035 = vmatpush1.xpose.msra.mxu0 0.0
        %6036 = vmatprep.subr.mxu0 0.0
        %6037 = vmatpush1.xpose.msra.mxu0 0.0
        %6038 = vmatprep.subr.mxu0 0.0
        %6039 = vmatpush1.xpose.msra.mxu0 0.0
        %6040 = vmatprep.subr.mxu0 0.0
        %6041 = vmatpush1.xpose.msra.mxu0 0.0
        %6042 = vmatprep.subr.mxu0 0.0
        %6043 = vmatpush1.xpose.msra.mxu0 0.0
        %6044 = vmatprep.subr.mxu0 0.0
        %6045 = vmatpush1.xpose.msra.mxu0 0.0
        %6046 = vmatprep.subr.mxu0 0.0
        %6047 = vmatpush1.xpose.msra.mxu0 0.0
        %6048 = vmatprep.subr.mxu0 0.0
        %6049 = vmatpush1.xpose.msra.mxu0 0.0
        %6050 = vmatprep.subr.mxu0 0.0
        %6051 = vmatpush1.xpose.msra.mxu0 0.0
        %6052 = vmatprep.subr.mxu0 0.0
        %6053 = vmatpush1.xpose.msra.mxu0 %v6020
        %6054 = vmatprep.subr.mxu0 0.0
        %6055 = vmatpush2.xpose.msra.mxu0 0.0
        %6056 = vmatprep.subr.mxu0 0.0
        %6057 = vmatpush2.xpose.msra.mxu0 0.0
        %6058 = vmatprep.subr.mxu0 0.0
        %6059 = vmatpush2.xpose.msra.mxu0 0.0
        %6060 = vmatprep.subr.mxu0 0.0
        %6061 = vmatpush2.xpose.msra.mxu0 0.0
        %6062 = vmatprep.subr.mxu0 0.0
        %6063 = vmatpush2.xpose.msra.mxu0 0.0
        %6064 = vmatprep.subr.mxu0 0.0
        %6065 = vmatpush2.xpose.msra.mxu0 0.0
        %6066 = vmatprep.subr.mxu0 0.0
        %6067 = vmatpush2.xpose.msra.mxu0 0.0
        %6068 = vmatprep.subr.mxu0 0.0
        %6069 = vmatpush2.xpose.msra.mxu0 0.0
        %6070 = vmatprep.subr.mxu0 0.0
        %6071 = vmatpush2.xpose.msra.mxu0 0.0
        %6072 = vmatprep.subr.mxu0 0.0
        %6073 = vmatpush2.xpose.msra.mxu0 0.0
        %6074 = vmatprep.subr.mxu0 0.0
        %6075 = vmatpush2.xpose.msra.mxu0 0.0
        %6076 = vmatprep.subr.mxu0 0.0
        %6077 = vmatpush2.xpose.msra.mxu0 0.0
        %6078 = vmatprep.subr.mxu0 0.0
        %6079 = vmatpush2.xpose.msra.mxu0 0.0
        %6080 = vmatprep.subr.mxu0 0.0
        %6081 = vmatpush2.xpose.msra.mxu0 0.0
        %6082 = vmatprep.subr.mxu0 0.0
        %6083 = vmatpush2.xpose.msra.mxu0 0.0
        %6084 = vmatprep.subr.mxu0 0.0
        %6085 = vmatpush2.xpose.msra.mxu0 0.0
        %6086 = vmatprep.mubr.f32.mxu0 0.0
        %6087 = vmatmul.mubr.f32.gmra.mxu0 %v6018
        %v6088 = vpop.f32.mrf.mxu0
        %v6089 = vadd.f32 %v570, %v6088
        %v6090 = vpop.f32.mrf.mxu0
        %6091 = vdwg.mxu0
        %v6092 = vsel %vm858, %v6089, -inf
        %6093 = vmax.xlane.f32.xlu0 %v6092
        %v6094 = vpop.xlane.xlu0 %6093
        %v6095 = vsub.f32 %v6089, %v6094
        %v6096 = vmul.f32 %v6095, 1.442695
        %v6097 = vpow.pop %v6096
        %v6098 = vsel %vm858, %v6097, 0.0
        %6099 = vadd.xlane.f32.xlu0 %v6098
        %v6100 = vpop.xlane.xlu0 %6099
        %v6101 = vrcp.pop %v6100
        %v6102 = vmul.f32 %v6097, %v6101
        %6104 = vrot.lane.b32.xlu0 %v6012, 64
        %v6105 = vpop.permute.xlu0 %6104
        %v6108 = vsel %vm858, %v6102, 0
        %6110 = vmatprep.subr.mxu0 0.0
        %6111 = vmatpush1.msra.mxu0 0.0
        %6112 = vmatprep.subr.mxu0 0.0
        %6113 = vmatpush1.msra.mxu0 0.0
        %6114 = vmatprep.subr.mxu0 0.0
        %6115 = vmatpush1.msra.mxu0 0.0
        %6116 = vmatprep.subr.mxu0 0.0
        %6117 = vmatpush1.msra.mxu0 0.0
        %6118 = vmatprep.subr.mxu0 0.0
        %6119 = vmatpush1.msra.mxu0 0.0
        %6120 = vmatprep.subr.mxu0 0.0
        %6121 = vmatpush1.msra.mxu0 0.0
        %6122 = vmatprep.subr.mxu0 0.0
        %6123 = vmatpush1.msra.mxu0 0.0
        %6124 = vmatprep.subr.mxu0 0.0
        %6125 = vmatpush1.msra.mxu0 0.0
        %6126 = vmatprep.subr.mxu0 0.0
        %6127 = vmatpush1.msra.mxu0 0.0
        %6128 = vmatprep.subr.mxu0 0.0
        %6129 = vmatpush1.msra.mxu0 0.0
        %6130 = vmatprep.subr.mxu0 0.0
        %6131 = vmatpush1.msra.mxu0 0.0
        %6132 = vmatprep.subr.mxu0 0.0
        %6133 = vmatpush1.msra.mxu0 0.0
        %6134 = vmatprep.subr.mxu0 0.0
        %6135 = vmatpush1.msra.mxu0 0.0
        %6136 = vmatprep.subr.mxu0 0.0
        %6137 = vmatpush1.msra.mxu0 0.0
        %6138 = vmatprep.subr.mxu0 0.0
        %6139 = vmatpush1.msra.mxu0 0.0
        %6140 = vmatprep.subr.mxu0 0.0
        %6141 = vmatpush1.msra.mxu0 %v6105
        %6142 = vmatprep.subr.mxu0 0.0
        %6143 = vmatpush2.msra.mxu0 0.0
        %6144 = vmatprep.subr.mxu0 0.0
        %6145 = vmatpush2.msra.mxu0 0.0
        %6146 = vmatprep.subr.mxu0 0.0
        %6147 = vmatpush2.msra.mxu0 0.0
        %6148 = vmatprep.subr.mxu0 0.0
        %6149 = vmatpush2.msra.mxu0 0.0
        %6150 = vmatprep.subr.mxu0 0.0
        %6151 = vmatpush2.msra.mxu0 0.0
        %6152 = vmatprep.subr.mxu0 0.0
        %6153 = vmatpush2.msra.mxu0 0.0
        %6154 = vmatprep.subr.mxu0 0.0
        %6155 = vmatpush2.msra.mxu0 0.0
        %6156 = vmatprep.subr.mxu0 0.0
        %6157 = vmatpush2.msra.mxu0 0.0
        %6158 = vmatprep.subr.mxu0 0.0
        %6159 = vmatpush2.msra.mxu0 0.0
        %6160 = vmatprep.subr.mxu0 0.0
        %6161 = vmatpush2.msra.mxu0 0.0
        %6162 = vmatprep.subr.mxu0 0.0
        %6163 = vmatpush2.msra.mxu0 0.0
        %6164 = vmatprep.subr.mxu0 0.0
        %6165 = vmatpush2.msra.mxu0 0.0
        %6166 = vmatprep.subr.mxu0 0.0
        %6167 = vmatpush2.msra.mxu0 0.0
        %6168 = vmatprep.subr.mxu0 0.0
        %6169 = vmatpush2.msra.mxu0 0.0
        %6170 = vmatprep.subr.mxu0 0.0
        %6171 = vmatpush2.msra.mxu0 0.0
        %6172 = vmatprep.subr.mxu0 0.0
        %6173 = vmatpush2.msra.mxu0 0.0
        %6174 = vmatprep.mubr.f32.mxu0 0.0
        %6175 = vmatmul.mubr.f32.gmra.mxu0 %v6108
        %v6176 = vpop.f32.mrf.mxu0
        %v6177 = vadd.f32 0.0, %v6176
        %v6178 = vpop.f32.mrf.mxu0
        %6179 = vdwg.mxu0
        %6180 = vrot.lane.b32.xlu0 %v6013, 120
        %v6181 = vpop.permute.xlu0 %6180
        %6182 = vrot.lane.b32.xlu0 %v6003, 88
        %v6183 = vpop.permute.xlu0 %6182
        %v6184 = vsel %vm858, %v6181, 0
        %v6186 = vsel %vm858, %v6183, 0
        %6188 = vmatprep.subr.mxu0 0.0
        %6189 = vmatpush1.xpose.msra.mxu0 0.0
        %6190 = vmatprep.subr.mxu0 0.0
        %6191 = vmatpush1.xpose.msra.mxu0 0.0
        %6192 = vmatprep.subr.mxu0 0.0
        %6193 = vmatpush1.xpose.msra.mxu0 0.0
        %6194 = vmatprep.subr.mxu0 0.0
        %6195 = vmatpush1.xpose.msra.mxu0 0.0
        %6196 = vmatprep.subr.mxu0 0.0
        %6197 = vmatpush1.xpose.msra.mxu0 0.0
        %6198 = vmatprep.subr.mxu0 0.0
        %6199 = vmatpush1.xpose.msra.mxu0 0.0
        %6200 = vmatprep.subr.mxu0 0.0
        %6201 = vmatpush1.xpose.msra.mxu0 0.0
        %6202 = vmatprep.subr.mxu0 0.0
        %6203 = vmatpush1.xpose.msra.mxu0 0.0
        %6204 = vmatprep.subr.mxu0 0.0
        %6205 = vmatpush1.xpose.msra.mxu0 0.0
        %6206 = vmatprep.subr.mxu0 0.0
        %6207 = vmatpush1.xpose.msra.mxu0 0.0
        %6208 = vmatprep.subr.mxu0 0.0
        %6209 = vmatpush1.xpose.msra.mxu0 0.0
        %6210 = vmatprep.subr.mxu0 0.0
        %6211 = vmatpush1.xpose.msra.mxu0 0.0
        %6212 = vmatprep.subr.mxu0 0.0
        %6213 = vmatpush1.xpose.msra.mxu0 0.0
        %6214 = vmatprep.subr.mxu0 0.0
        %6215 = vmatpush1.xpose.msra.mxu0 0.0
        %6216 = vmatprep.subr.mxu0 0.0
        %6217 = vmatpush1.xpose.msra.mxu0 0.0
        %6218 = vmatprep.subr.mxu0 0.0
        %6219 = vmatpush1.xpose.msra.mxu0 %v6186
        %6220 = vmatprep.subr.mxu0 0.0
        %6221 = vmatpush2.xpose.msra.mxu0 0.0
        %6222 = vmatprep.subr.mxu0 0.0
        %6223 = vmatpush2.xpose.msra.mxu0 0.0
        %6224 = vmatprep.subr.mxu0 0.0
        %6225 = vmatpush2.xpose.msra.mxu0 0.0
        %6226 = vmatprep.subr.mxu0 0.0
        %6227 = vmatpush2.xpose.msra.mxu0 0.0
        %6228 = vmatprep.subr.mxu0 0.0
        %6229 = vmatpush2.xpose.msra.mxu0 0.0
        %6230 = vmatprep.subr.mxu0 0.0
        %6231 = vmatpush2.xpose.msra.mxu0 0.0
        %6232 = vmatprep.subr.mxu0 0.0
        %6233 = vmatpush2.xpose.msra.mxu0 0.0
        %6234 = vmatprep.subr.mxu0 0.0
        %6235 = vmatpush2.xpose.msra.mxu0 0.0
        %6236 = vmatprep.subr.mxu0 0.0
        %6237 = vmatpush2.xpose.msra.mxu0 0.0
        %6238 = vmatprep.subr.mxu0 0.0
        %6239 = vmatpush2.xpose.msra.mxu0 0.0
        %6240 = vmatprep.subr.mxu0 0.0
        %6241 = vmatpush2.xpose.msra.mxu0 0.0
        %6242 = vmatprep.subr.mxu0 0.0
        %6243 = vmatpush2.xpose.msra.mxu0 0.0
        %6244 = vmatprep.subr.mxu0 0.0
        %6245 = vmatpush2.xpose.msra.mxu0 0.0
        %6246 = vmatprep.subr.mxu0 0.0
        %6247 = vmatpush2.xpose.msra.mxu0 0.0
        %6248 = vmatprep.subr.mxu0 0.0
        %6249 = vmatpush2.xpose.msra.mxu0 0.0
        %6250 = vmatprep.subr.mxu0 0.0
        %6251 = vmatpush2.xpose.msra.mxu0 0.0
        %6252 = vmatprep.mubr.f32.mxu0 0.0
        %6253 = vmatmul.mubr.f32.gmra.mxu0 %v6184
        %v6254 = vpop.f32.mrf.mxu0
        %v6255 = vadd.f32 %v570, %v6254
        %v6256 = vpop.f32.mrf.mxu0
        %6257 = vdwg.mxu0
        %v6258 = vsel %vm858, %v6255, -inf
        %6259 = vmax.xlane.f32.xlu0 %v6258
        %v6260 = vpop.xlane.xlu0 %6259
        %v6261 = vsub.f32 %v6255, %v6260
        %v6262 = vmul.f32 %v6261, 1.442695
        %v6263 = vpow.pop %v6262
        %v6264 = vsel %vm858, %v6263, 0.0
        %6265 = vadd.xlane.f32.xlu0 %v6264
        %v6266 = vpop.xlane.xlu0 %6265
        %v6267 = vrcp.pop %v6266
        %v6268 = vmul.f32 %v6263, %v6267
        %6269 = vrot.lane.b32.xlu0 %v6012, 56
        %v6270 = vpop.permute.xlu0 %6269
        %v6273 = vsel %vm858, %v6268, 0
        %6275 = vmatprep.subr.mxu0 0.0
        %6276 = vmatpush1.msra.mxu0 0.0
        %6277 = vmatprep.subr.mxu0 0.0
        %6278 = vmatpush1.msra.mxu0 0.0
        %6279 = vmatprep.subr.mxu0 0.0
        %6280 = vmatpush1.msra.mxu0 0.0
        %6281 = vmatprep.subr.mxu0 0.0
        %6282 = vmatpush1.msra.mxu0 0.0
        %6283 = vmatprep.subr.mxu0 0.0
        %6284 = vmatpush1.msra.mxu0 0.0
        %6285 = vmatprep.subr.mxu0 0.0
        %6286 = vmatpush1.msra.mxu0 0.0
        %6287 = vmatprep.subr.mxu0 0.0
        %6288 = vmatpush1.msra.mxu0 0.0
        %6289 = vmatprep.subr.mxu0 0.0
        %6290 = vmatpush1.msra.mxu0 0.0
        %6291 = vmatprep.subr.mxu0 0.0
        %6292 = vmatpush1.msra.mxu0 0.0
        %6293 = vmatprep.subr.mxu0 0.0
        %6294 = vmatpush1.msra.mxu0 0.0
        %6295 = vmatprep.subr.mxu0 0.0
        %6296 = vmatpush1.msra.mxu0 0.0
        %6297 = vmatprep.subr.mxu0 0.0
        %6298 = vmatpush1.msra.mxu0 0.0
        %6299 = vmatprep.subr.mxu0 0.0
        %6300 = vmatpush1.msra.mxu0 0.0
        %6301 = vmatprep.subr.mxu0 0.0
        %6302 = vmatpush1.msra.mxu0 0.0
        %6303 = vmatprep.subr.mxu0 0.0
        %6304 = vmatpush1.msra.mxu0 0.0
        %6305 = vmatprep.subr.mxu0 0.0
        %6306 = vmatpush1.msra.mxu0 %v6270
        %6307 = vmatprep.subr.mxu0 0.0
        %6308 = vmatpush2.msra.mxu0 0.0
        %6309 = vmatprep.subr.mxu0 0.0
        %6310 = vmatpush2.msra.mxu0 0.0
        %6311 = vmatprep.subr.mxu0 0.0
        %6312 = vmatpush2.msra.mxu0 0.0
        %6313 = vmatprep.subr.mxu0 0.0
        %6314 = vmatpush2.msra.mxu0 0.0
        %6315 = vmatprep.subr.mxu0 0.0
        %6316 = vmatpush2.msra.mxu0 0.0
        %6317 = vmatprep.subr.mxu0 0.0
        %6318 = vmatpush2.msra.mxu0 0.0
        %6319 = vmatprep.subr.mxu0 0.0
        %6320 = vmatpush2.msra.mxu0 0.0
        %6321 = vmatprep.subr.mxu0 0.0
        %6322 = vmatpush2.msra.mxu0 0.0
        %6323 = vmatprep.subr.mxu0 0.0
        %6324 = vmatpush2.msra.mxu0 0.0
        %6325 = vmatprep.subr.mxu0 0.0
        %6326 = vmatpush2.msra.mxu0 0.0
        %6327 = vmatprep.subr.mxu0 0.0
        %6328 = vmatpush2.msra.mxu0 0.0
        %6329 = vmatprep.subr.mxu0 0.0
        %6330 = vmatpush2.msra.mxu0 0.0
        %6331 = vmatprep.subr.mxu0 0.0
        %6332 = vmatpush2.msra.mxu0 0.0
        %6333 = vmatprep.subr.mxu0 0.0
        %6334 = vmatpush2.msra.mxu0 0.0
        %6335 = vmatprep.subr.mxu0 0.0
        %6336 = vmatpush2.msra.mxu0 0.0
        %6337 = vmatprep.subr.mxu0 0.0
        %6338 = vmatpush2.msra.mxu0 0.0
        %6339 = vmatprep.mubr.f32.mxu0 0.0
        %6340 = vmatmul.mubr.f32.gmra.mxu0 %v6273
        %v6341 = vpop.f32.mrf.mxu0
        %v6342 = vadd.f32 0.0, %v6341
        %v6343 = vpop.f32.mrf.mxu0
        %6344 = vdwg.mxu0
        %6346 = vrot.lane.b32.xlu0 %v5905, 32
        %v6347 = vpop.permute.xlu0 %6346
        %v6350 = vsel %vm858, %v6342, 0
        %6352 = vmatprep.subr.mxu0 0.0
        %6353 = vmatpush1.msra.mxu0 0.0
        %6354 = vmatprep.subr.mxu0 0.0
        %6355 = vmatpush1.msra.mxu0 0.0
        %6356 = vmatprep.subr.mxu0 0.0
        %6357 = vmatpush1.msra.mxu0 0.0
        %6358 = vmatprep.subr.mxu0 0.0
        %6359 = vmatpush1.msra.mxu0 0.0
        %6360 = vmatprep.subr.mxu0 0.0
        %6361 = vmatpush1.msra.mxu0 0.0
        %6362 = vmatprep.subr.mxu0 0.0
        %6363 = vmatpush1.msra.mxu0 0.0
        %6364 = vmatprep.subr.mxu0 0.0
        %6365 = vmatpush1.msra.mxu0 0.0
        %6366 = vmatprep.subr.mxu0 0.0
        %6367 = vmatpush1.msra.mxu0 0.0
        %6368 = vmatprep.subr.mxu0 0.0
        %6369 = vmatpush1.msra.mxu0 0.0
        %6370 = vmatprep.subr.mxu0 0.0
        %6371 = vmatpush1.msra.mxu0 0.0
        %6372 = vmatprep.subr.mxu0 0.0
        %6373 = vmatpush1.msra.mxu0 0.0
        %6374 = vmatprep.subr.mxu0 0.0
        %6375 = vmatpush1.msra.mxu0 0.0
        %6376 = vmatprep.subr.mxu0 0.0
        %6377 = vmatpush1.msra.mxu0 0.0
        %6378 = vmatprep.subr.mxu0 0.0
        %6379 = vmatpush1.msra.mxu0 0.0
        %6380 = vmatprep.subr.mxu0 0.0
        %6381 = vmatpush1.msra.mxu0 0.0
        %6382 = vmatprep.subr.mxu0 0.0
        %6383 = vmatpush1.msra.mxu0 %v6347
        %6384 = vmatprep.subr.mxu0 0.0
        %6385 = vmatpush2.msra.mxu0 0.0
        %6386 = vmatprep.subr.mxu0 0.0
        %6387 = vmatpush2.msra.mxu0 0.0
        %6388 = vmatprep.subr.mxu0 0.0
        %6389 = vmatpush2.msra.mxu0 0.0
        %6390 = vmatprep.subr.mxu0 0.0
        %6391 = vmatpush2.msra.mxu0 0.0
        %6392 = vmatprep.subr.mxu0 0.0
        %6393 = vmatpush2.msra.mxu0 0.0
        %6394 = vmatprep.subr.mxu0 0.0
        %6395 = vmatpush2.msra.mxu0 0.0
        %6396 = vmatprep.subr.mxu0 0.0
        %6397 = vmatpush2.msra.mxu0 0.0
        %6398 = vmatprep.subr.mxu0 0.0
        %6399 = vmatpush2.msra.mxu0 0.0
        %6400 = vmatprep.subr.mxu0 0.0
        %6401 = vmatpush2.msra.mxu0 0.0
        %6402 = vmatprep.subr.mxu0 0.0
        %6403 = vmatpush2.msra.mxu0 0.0
        %6404 = vmatprep.subr.mxu0 0.0
        %6405 = vmatpush2.msra.mxu0 0.0
        %6406 = vmatprep.subr.mxu0 0.0
        %6407 = vmatpush2.msra.mxu0 0.0
        %6408 = vmatprep.subr.mxu0 0.0
        %6409 = vmatpush2.msra.mxu0 0.0
        %6410 = vmatprep.subr.mxu0 0.0
        %6411 = vmatpush2.msra.mxu0 0.0
        %6412 = vmatprep.subr.mxu0 0.0
        %6413 = vmatpush2.msra.mxu0 0.0
        %6414 = vmatprep.subr.mxu0 0.0
        %6415 = vmatpush2.msra.mxu0 0.0
        %6416 = vmatprep.mubr.f32.mxu0 0.0
        %6417 = vmatmul.mubr.f32.gmra.mxu0 %v6350
        %v6418 = vpop.f32.mrf.mxu0
        %v6419 = vadd.f32 0.0, %v6418
        %v6420 = vpop.f32.mrf.mxu0
        %6421 = vdwg.mxu0
        %6423 = vrot.lane.b32.xlu0 %v5902, 32
        %v6424 = vpop.permute.xlu0 %6423
        %v6427 = vsel %vm858, %v6177, 0
        %6429 = vmatprep.subr.mxu0 0.0
        %6430 = vmatpush1.msra.mxu0 0.0
        %6431 = vmatprep.subr.mxu0 0.0
        %6432 = vmatpush1.msra.mxu0 0.0
        %6433 = vmatprep.subr.mxu0 0.0
        %6434 = vmatpush1.msra.mxu0 0.0
        %6435 = vmatprep.subr.mxu0 0.0
        %6436 = vmatpush1.msra.mxu0 0.0
        %6437 = vmatprep.subr.mxu0 0.0
        %6438 = vmatpush1.msra.mxu0 0.0
        %6439 = vmatprep.subr.mxu0 0.0
        %6440 = vmatpush1.msra.mxu0 0.0
        %6441 = vmatprep.subr.mxu0 0.0
        %6442 = vmatpush1.msra.mxu0 0.0
        %6443 = vmatprep.subr.mxu0 0.0
        %6444 = vmatpush1.msra.mxu0 0.0
        %6445 = vmatprep.subr.mxu0 0.0
        %6446 = vmatpush1.msra.mxu0 0.0
        %6447 = vmatprep.subr.mxu0 0.0
        %6448 = vmatpush1.msra.mxu0 0.0
        %6449 = vmatprep.subr.mxu0 0.0
        %6450 = vmatpush1.msra.mxu0 0.0
        %6451 = vmatprep.subr.mxu0 0.0
        %6452 = vmatpush1.msra.mxu0 0.0
        %6453 = vmatprep.subr.mxu0 0.0
        %6454 = vmatpush1.msra.mxu0 0.0
        %6455 = vmatprep.subr.mxu0 0.0
        %6456 = vmatpush1.msra.mxu0 0.0
        %6457 = vmatprep.subr.mxu0 0.0
        %6458 = vmatpush1.msra.mxu0 0.0
        %6459 = vmatprep.subr.mxu0 0.0
        %6460 = vmatpush1.msra.mxu0 %v6424
        %6461 = vmatprep.subr.mxu0 0.0
        %6462 = vmatpush2.msra.mxu0 0.0
        %6463 = vmatprep.subr.mxu0 0.0
        %6464 = vmatpush2.msra.mxu0 0.0
        %6465 = vmatprep.subr.mxu0 0.0
        %6466 = vmatpush2.msra.mxu0 0.0
        %6467 = vmatprep.subr.mxu0 0.0
        %6468 = vmatpush2.msra.mxu0 0.0
        %6469 = vmatprep.subr.mxu0 0.0
        %6470 = vmatpush2.msra.mxu0 0.0
        %6471 = vmatprep.subr.mxu0 0.0
        %6472 = vmatpush2.msra.mxu0 0.0
        %6473 = vmatprep.subr.mxu0 0.0
        %6474 = vmatpush2.msra.mxu0 0.0
        %6475 = vmatprep.subr.mxu0 0.0
        %6476 = vmatpush2.msra.mxu0 0.0
        %6477 = vmatprep.subr.mxu0 0.0
        %6478 = vmatpush2.msra.mxu0 0.0
        %6479 = vmatprep.subr.mxu0 0.0
        %6480 = vmatpush2.msra.mxu0 0.0
        %6481 = vmatprep.subr.mxu0 0.0
        %6482 = vmatpush2.msra.mxu0 0.0
        %6483 = vmatprep.subr.mxu0 0.0
        %6484 = vmatpush2.msra.mxu0 0.0
        %6485 = vmatprep.subr.mxu0 0.0
        %6486 = vmatpush2.msra.mxu0 0.0
        %6487 = vmatprep.subr.mxu0 0.0
        %6488 = vmatpush2.msra.mxu0 0.0
        %6489 = vmatprep.subr.mxu0 0.0
        %6490 = vmatpush2.msra.mxu0 0.0
        %6491 = vmatprep.subr.mxu0 0.0
        %6492 = vmatpush2.msra.mxu0 0.0
        %6493 = vmatprep.mubr.f32.mxu0 0.0
        %6494 = vmatmul.mubr.f32.gmra.mxu0 %v6427
        %v6495 = vpop.f32.mrf.mxu0
        %v6496 = vadd.f32 %v6419, %v6495
        %v6497 = vpop.f32.mrf.mxu0
        %6498 = vdwg.mxu0
        %6499 = vrot.lane.b32.xlu0 %v6013, 112
        %v6500 = vpop.permute.xlu0 %6499
        %6501 = vrot.lane.b32.xlu0 %v6003, 80
        %v6502 = vpop.permute.xlu0 %6501
        %v6503 = vsel %vm858, %v6500, 0
        %v6505 = vsel %vm858, %v6502, 0
        %6507 = vmatprep.subr.mxu0 0.0
        %6508 = vmatpush1.xpose.msra.mxu0 0.0
        %6509 = vmatprep.subr.mxu0 0.0
        %6510 = vmatpush1.xpose.msra.mxu0 0.0
        %6511 = vmatprep.subr.mxu0 0.0
        %6512 = vmatpush1.xpose.msra.mxu0 0.0
        %6513 = vmatprep.subr.mxu0 0.0
        %6514 = vmatpush1.xpose.msra.mxu0 0.0
        %6515 = vmatprep.subr.mxu0 0.0
        %6516 = vmatpush1.xpose.msra.mxu0 0.0
        %6517 = vmatprep.subr.mxu0 0.0
        %6518 = vmatpush1.xpose.msra.mxu0 0.0
        %6519 = vmatprep.subr.mxu0 0.0
        %6520 = vmatpush1.xpose.msra.mxu0 0.0
        %6521 = vmatprep.subr.mxu0 0.0
        %6522 = vmatpush1.xpose.msra.mxu0 0.0
        %6523 = vmatprep.subr.mxu0 0.0
        %6524 = vmatpush1.xpose.msra.mxu0 0.0
        %6525 = vmatprep.subr.mxu0 0.0
        %6526 = vmatpush1.xpose.msra.mxu0 0.0
        %6527 = vmatprep.subr.mxu0 0.0
        %6528 = vmatpush1.xpose.msra.mxu0 0.0
        %6529 = vmatprep.subr.mxu0 0.0
        %6530 = vmatpush1.xpose.msra.mxu0 0.0
        %6531 = vmatprep.subr.mxu0 0.0
        %6532 = vmatpush1.xpose.msra.mxu0 0.0
        %6533 = vmatprep.subr.mxu0 0.0
        %6534 = vmatpush1.xpose.msra.mxu0 0.0
        %6535 = vmatprep.subr.mxu0 0.0
        %6536 = vmatpush1.xpose.msra.mxu0 0.0
        %6537 = vmatprep.subr.mxu0 0.0
        %6538 = vmatpush1.xpose.msra.mxu0 %v6505
        %6539 = vmatprep.subr.mxu0 0.0
        %6540 = vmatpush2.xpose.msra.mxu0 0.0
        %6541 = vmatprep.subr.mxu0 0.0
        %6542 = vmatpush2.xpose.msra.mxu0 0.0
        %6543 = vmatprep.subr.mxu0 0.0
        %6544 = vmatpush2.xpose.msra.mxu0 0.0
        %6545 = vmatprep.subr.mxu0 0.0
        %6546 = vmatpush2.xpose.msra.mxu0 0.0
        %6547 = vmatprep.subr.mxu0 0.0
        %6548 = vmatpush2.xpose.msra.mxu0 0.0
        %6549 = vmatprep.subr.mxu0 0.0
        %6550 = vmatpush2.xpose.msra.mxu0 0.0
        %6551 = vmatprep.subr.mxu0 0.0
        %6552 = vmatpush2.xpose.msra.mxu0 0.0
        %6553 = vmatprep.subr.mxu0 0.0
        %6554 = vmatpush2.xpose.msra.mxu0 0.0
        %6555 = vmatprep.subr.mxu0 0.0
        %6556 = vmatpush2.xpose.msra.mxu0 0.0
        %6557 = vmatprep.subr.mxu0 0.0
        %6558 = vmatpush2.xpose.msra.mxu0 0.0
        %6559 = vmatprep.subr.mxu0 0.0
        %6560 = vmatpush2.xpose.msra.mxu0 0.0
        %6561 = vmatprep.subr.mxu0 0.0
        %6562 = vmatpush2.xpose.msra.mxu0 0.0
        %6563 = vmatprep.subr.mxu0 0.0
        %6564 = vmatpush2.xpose.msra.mxu0 0.0
        %6565 = vmatprep.subr.mxu0 0.0
        %6566 = vmatpush2.xpose.msra.mxu0 0.0
        %6567 = vmatprep.subr.mxu0 0.0
        %6568 = vmatpush2.xpose.msra.mxu0 0.0
        %6569 = vmatprep.subr.mxu0 0.0
        %6570 = vmatpush2.xpose.msra.mxu0 0.0
        %6571 = vmatprep.mubr.f32.mxu0 0.0
        %6572 = vmatmul.mubr.f32.gmra.mxu0 %v6503
        %v6573 = vpop.f32.mrf.mxu0
        %v6574 = vadd.f32 %v570, %v6573
        %v6575 = vpop.f32.mrf.mxu0
        %6576 = vdwg.mxu0
        %v6577 = vsel %vm858, %v6574, -inf
        %6578 = vmax.xlane.f32.xlu0 %v6577
        %v6579 = vpop.xlane.xlu0 %6578
        %v6580 = vsub.f32 %v6574, %v6579
        %v6581 = vmul.f32 %v6580, 1.442695
        %v6582 = vpow.pop %v6581
        %v6583 = vsel %vm858, %v6582, 0.0
        %6584 = vadd.xlane.f32.xlu0 %v6583
        %v6585 = vpop.xlane.xlu0 %6584
        %v6586 = vrcp.pop %v6585
        %v6587 = vmul.f32 %v6582, %v6586
        %6588 = vrot.lane.b32.xlu0 %v6012, 48
        %v6589 = vpop.permute.xlu0 %6588
        %v6592 = vsel %vm858, %v6587, 0
        %6594 = vmatprep.subr.mxu0 0.0
        %6595 = vmatpush1.msra.mxu0 0.0
        %6596 = vmatprep.subr.mxu0 0.0
        %6597 = vmatpush1.msra.mxu0 0.0
        %6598 = vmatprep.subr.mxu0 0.0
        %6599 = vmatpush1.msra.mxu0 0.0
        %6600 = vmatprep.subr.mxu0 0.0
        %6601 = vmatpush1.msra.mxu0 0.0
        %6602 = vmatprep.subr.mxu0 0.0
        %6603 = vmatpush1.msra.mxu0 0.0
        %6604 = vmatprep.subr.mxu0 0.0
        %6605 = vmatpush1.msra.mxu0 0.0
        %6606 = vmatprep.subr.mxu0 0.0
        %6607 = vmatpush1.msra.mxu0 0.0
        %6608 = vmatprep.subr.mxu0 0.0
        %6609 = vmatpush1.msra.mxu0 0.0
        %6610 = vmatprep.subr.mxu0 0.0
        %6611 = vmatpush1.msra.mxu0 0.0
        %6612 = vmatprep.subr.mxu0 0.0
        %6613 = vmatpush1.msra.mxu0 0.0
        %6614 = vmatprep.subr.mxu0 0.0
        %6615 = vmatpush1.msra.mxu0 0.0
        %6616 = vmatprep.subr.mxu0 0.0
        %6617 = vmatpush1.msra.mxu0 0.0
        %6618 = vmatprep.subr.mxu0 0.0
        %6619 = vmatpush1.msra.mxu0 0.0
        %6620 = vmatprep.subr.mxu0 0.0
        %6621 = vmatpush1.msra.mxu0 0.0
        %6622 = vmatprep.subr.mxu0 0.0
        %6623 = vmatpush1.msra.mxu0 0.0
        %6624 = vmatprep.subr.mxu0 0.0
        %6625 = vmatpush1.msra.mxu0 %v6589
        %6626 = vmatprep.subr.mxu0 0.0
        %6627 = vmatpush2.msra.mxu0 0.0
        %6628 = vmatprep.subr.mxu0 0.0
        %6629 = vmatpush2.msra.mxu0 0.0
        %6630 = vmatprep.subr.mxu0 0.0
        %6631 = vmatpush2.msra.mxu0 0.0
        %6632 = vmatprep.subr.mxu0 0.0
        %6633 = vmatpush2.msra.mxu0 0.0
        %6634 = vmatprep.subr.mxu0 0.0
        %6635 = vmatpush2.msra.mxu0 0.0
        %6636 = vmatprep.subr.mxu0 0.0
        %6637 = vmatpush2.msra.mxu0 0.0
        %6638 = vmatprep.subr.mxu0 0.0
        %6639 = vmatpush2.msra.mxu0 0.0
        %6640 = vmatprep.subr.mxu0 0.0
        %6641 = vmatpush2.msra.mxu0 0.0
        %6642 = vmatprep.subr.mxu0 0.0
        %6643 = vmatpush2.msra.mxu0 0.0
        %6644 = vmatprep.subr.mxu0 0.0
        %6645 = vmatpush2.msra.mxu0 0.0
        %6646 = vmatprep.subr.mxu0 0.0
        %6647 = vmatpush2.msra.mxu0 0.0
        %6648 = vmatprep.subr.mxu0 0.0
        %6649 = vmatpush2.msra.mxu0 0.0
        %6650 = vmatprep.subr.mxu0 0.0
        %6651 = vmatpush2.msra.mxu0 0.0
        %6652 = vmatprep.subr.mxu0 0.0
        %6653 = vmatpush2.msra.mxu0 0.0
        %6654 = vmatprep.subr.mxu0 0.0
        %6655 = vmatpush2.msra.mxu0 0.0
        %6656 = vmatprep.subr.mxu0 0.0
        %6657 = vmatpush2.msra.mxu0 0.0
        %6658 = vmatprep.mubr.f32.mxu0 0.0
        %6659 = vmatmul.mubr.f32.gmra.mxu0 %v6592
        %v6660 = vpop.f32.mrf.mxu0
        %v6661 = vadd.f32 0.0, %v6660
        %v6662 = vpop.f32.mrf.mxu0
        %6663 = vdwg.mxu0
        %6665 = vrot.lane.b32.xlu0 %v5908, 32
        %v6666 = vpop.permute.xlu0 %6665
        %v6669 = vsel %vm858, %v6661, 0
        %6671 = vmatprep.subr.mxu0 0.0
        %6672 = vmatpush1.msra.mxu0 0.0
        %6673 = vmatprep.subr.mxu0 0.0
        %6674 = vmatpush1.msra.mxu0 0.0
        %6675 = vmatprep.subr.mxu0 0.0
        %6676 = vmatpush1.msra.mxu0 0.0
        %6677 = vmatprep.subr.mxu0 0.0
        %6678 = vmatpush1.msra.mxu0 0.0
        %6679 = vmatprep.subr.mxu0 0.0
        %6680 = vmatpush1.msra.mxu0 0.0
        %6681 = vmatprep.subr.mxu0 0.0
        %6682 = vmatpush1.msra.mxu0 0.0
        %6683 = vmatprep.subr.mxu0 0.0
        %6684 = vmatpush1.msra.mxu0 0.0
        %6685 = vmatprep.subr.mxu0 0.0
        %6686 = vmatpush1.msra.mxu0 0.0
        %6687 = vmatprep.subr.mxu0 0.0
        %6688 = vmatpush1.msra.mxu0 0.0
        %6689 = vmatprep.subr.mxu0 0.0
        %6690 = vmatpush1.msra.mxu0 0.0
        %6691 = vmatprep.subr.mxu0 0.0
        %6692 = vmatpush1.msra.mxu0 0.0
        %6693 = vmatprep.subr.mxu0 0.0
        %6694 = vmatpush1.msra.mxu0 0.0
        %6695 = vmatprep.subr.mxu0 0.0
        %6696 = vmatpush1.msra.mxu0 0.0
        %6697 = vmatprep.subr.mxu0 0.0
        %6698 = vmatpush1.msra.mxu0 0.0
        %6699 = vmatprep.subr.mxu0 0.0
        %6700 = vmatpush1.msra.mxu0 0.0
        %6701 = vmatprep.subr.mxu0 0.0
        %6702 = vmatpush1.msra.mxu0 %v6666
        %6703 = vmatprep.subr.mxu0 0.0
        %6704 = vmatpush2.msra.mxu0 0.0
        %6705 = vmatprep.subr.mxu0 0.0
        %6706 = vmatpush2.msra.mxu0 0.0
        %6707 = vmatprep.subr.mxu0 0.0
        %6708 = vmatpush2.msra.mxu0 0.0
        %6709 = vmatprep.subr.mxu0 0.0
        %6710 = vmatpush2.msra.mxu0 0.0
        %6711 = vmatprep.subr.mxu0 0.0
        %6712 = vmatpush2.msra.mxu0 0.0
        %6713 = vmatprep.subr.mxu0 0.0
        %6714 = vmatpush2.msra.mxu0 0.0
        %6715 = vmatprep.subr.mxu0 0.0
        %6716 = vmatpush2.msra.mxu0 0.0
        %6717 = vmatprep.subr.mxu0 0.0
        %6718 = vmatpush2.msra.mxu0 0.0
        %6719 = vmatprep.subr.mxu0 0.0
        %6720 = vmatpush2.msra.mxu0 0.0
        %6721 = vmatprep.subr.mxu0 0.0
        %6722 = vmatpush2.msra.mxu0 0.0
        %6723 = vmatprep.subr.mxu0 0.0
        %6724 = vmatpush2.msra.mxu0 0.0
        %6725 = vmatprep.subr.mxu0 0.0
        %6726 = vmatpush2.msra.mxu0 0.0
        %6727 = vmatprep.subr.mxu0 0.0
        %6728 = vmatpush2.msra.mxu0 0.0
        %6729 = vmatprep.subr.mxu0 0.0
        %6730 = vmatpush2.msra.mxu0 0.0
        %6731 = vmatprep.subr.mxu0 0.0
        %6732 = vmatpush2.msra.mxu0 0.0
        %6733 = vmatprep.subr.mxu0 0.0
        %6734 = vmatpush2.msra.mxu0 0.0
        %6735 = vmatprep.mubr.f32.mxu0 0.0
        %6736 = vmatmul.mubr.f32.gmra.mxu0 %v6669
        %v6737 = vpop.f32.mrf.mxu0
        %v6738 = vadd.f32 0.0, %v6737
        %v6739 = vpop.f32.mrf.mxu0
        %6740 = vdwg.mxu0
        %v6741 = vadd.f32 %v6496, %v6738
        %6742 = vrot.lane.b32.xlu0 %v6013, 104
        %v6743 = vpop.permute.xlu0 %6742
        %6744 = vrot.lane.b32.xlu0 %v6003, 72
        %v6745 = vpop.permute.xlu0 %6744
        %v6746 = vsel %vm858, %v6743, 0
        %v6748 = vsel %vm858, %v6745, 0
        %6750 = vmatprep.subr.mxu0 0.0
        %6751 = vmatpush1.xpose.msra.mxu0 0.0
        %6752 = vmatprep.subr.mxu0 0.0
        %6753 = vmatpush1.xpose.msra.mxu0 0.0
        %6754 = vmatprep.subr.mxu0 0.0
        %6755 = vmatpush1.xpose.msra.mxu0 0.0
        %6756 = vmatprep.subr.mxu0 0.0
        %6757 = vmatpush1.xpose.msra.mxu0 0.0
        %6758 = vmatprep.subr.mxu0 0.0
        %6759 = vmatpush1.xpose.msra.mxu0 0.0
        %6760 = vmatprep.subr.mxu0 0.0
        %6761 = vmatpush1.xpose.msra.mxu0 0.0
        %6762 = vmatprep.subr.mxu0 0.0
        %6763 = vmatpush1.xpose.msra.mxu0 0.0
        %6764 = vmatprep.subr.mxu0 0.0
        %6765 = vmatpush1.xpose.msra.mxu0 0.0
        %6766 = vmatprep.subr.mxu0 0.0
        %6767 = vmatpush1.xpose.msra.mxu0 0.0
        %6768 = vmatprep.subr.mxu0 0.0
        %6769 = vmatpush1.xpose.msra.mxu0 0.0
        %6770 = vmatprep.subr.mxu0 0.0
        %6771 = vmatpush1.xpose.msra.mxu0 0.0
        %6772 = vmatprep.subr.mxu0 0.0
        %6773 = vmatpush1.xpose.msra.mxu0 0.0
        %6774 = vmatprep.subr.mxu0 0.0
        %6775 = vmatpush1.xpose.msra.mxu0 0.0
        %6776 = vmatprep.subr.mxu0 0.0
        %6777 = vmatpush1.xpose.msra.mxu0 0.0
        %6778 = vmatprep.subr.mxu0 0.0
        %6779 = vmatpush1.xpose.msra.mxu0 0.0
        %6780 = vmatprep.subr.mxu0 0.0
        %6781 = vmatpush1.xpose.msra.mxu0 %v6748
        %6782 = vmatprep.subr.mxu0 0.0
        %6783 = vmatpush2.xpose.msra.mxu0 0.0
        %6784 = vmatprep.subr.mxu0 0.0
        %6785 = vmatpush2.xpose.msra.mxu0 0.0
        %6786 = vmatprep.subr.mxu0 0.0
        %6787 = vmatpush2.xpose.msra.mxu0 0.0
        %6788 = vmatprep.subr.mxu0 0.0
        %6789 = vmatpush2.xpose.msra.mxu0 0.0
        %6790 = vmatprep.subr.mxu0 0.0
        %6791 = vmatpush2.xpose.msra.mxu0 0.0
        %6792 = vmatprep.subr.mxu0 0.0
        %6793 = vmatpush2.xpose.msra.mxu0 0.0
        %6794 = vmatprep.subr.mxu0 0.0
        %6795 = vmatpush2.xpose.msra.mxu0 0.0
        %6796 = vmatprep.subr.mxu0 0.0
        %6797 = vmatpush2.xpose.msra.mxu0 0.0
        %6798 = vmatprep.subr.mxu0 0.0
        %6799 = vmatpush2.xpose.msra.mxu0 0.0
        %6800 = vmatprep.subr.mxu0 0.0
        %6801 = vmatpush2.xpose.msra.mxu0 0.0
        %6802 = vmatprep.subr.mxu0 0.0
        %6803 = vmatpush2.xpose.msra.mxu0 0.0
        %6804 = vmatprep.subr.mxu0 0.0
        %6805 = vmatpush2.xpose.msra.mxu0 0.0
        %6806 = vmatprep.subr.mxu0 0.0
        %6807 = vmatpush2.xpose.msra.mxu0 0.0
        %6808 = vmatprep.subr.mxu0 0.0
        %6809 = vmatpush2.xpose.msra.mxu0 0.0
        %6810 = vmatprep.subr.mxu0 0.0
        %6811 = vmatpush2.xpose.msra.mxu0 0.0
        %6812 = vmatprep.subr.mxu0 0.0
        %6813 = vmatpush2.xpose.msra.mxu0 0.0
        %6814 = vmatprep.mubr.f32.mxu0 0.0
        %6815 = vmatmul.mubr.f32.gmra.mxu0 %v6746
        %v6816 = vpop.f32.mrf.mxu0
        %v6817 = vadd.f32 %v570, %v6816
        %v6818 = vpop.f32.mrf.mxu0
        %6819 = vdwg.mxu0
        %v6820 = vsel %vm858, %v6817, -inf
        %6821 = vmax.xlane.f32.xlu0 %v6820
        %v6822 = vpop.xlane.xlu0 %6821
        %v6823 = vsub.f32 %v6817, %v6822
        %v6824 = vmul.f32 %v6823, 1.442695
        %v6825 = vpow.pop %v6824
        %v6826 = vsel %vm858, %v6825, 0.0
        %6827 = vadd.xlane.f32.xlu0 %v6826
        %v6828 = vpop.xlane.xlu0 %6827
        %v6829 = vrcp.pop %v6828
        %v6830 = vmul.f32 %v6825, %v6829
        %6831 = vrot.lane.b32.xlu0 %v6012, 40
        %v6832 = vpop.permute.xlu0 %6831
        %v6835 = vsel %vm858, %v6830, 0
        %6837 = vmatprep.subr.mxu0 0.0
        %6838 = vmatpush1.msra.mxu0 0.0
        %6839 = vmatprep.subr.mxu0 0.0
        %6840 = vmatpush1.msra.mxu0 0.0
        %6841 = vmatprep.subr.mxu0 0.0
        %6842 = vmatpush1.msra.mxu0 0.0
        %6843 = vmatprep.subr.mxu0 0.0
        %6844 = vmatpush1.msra.mxu0 0.0
        %6845 = vmatprep.subr.mxu0 0.0
        %6846 = vmatpush1.msra.mxu0 0.0
        %6847 = vmatprep.subr.mxu0 0.0
        %6848 = vmatpush1.msra.mxu0 0.0
        %6849 = vmatprep.subr.mxu0 0.0
        %6850 = vmatpush1.msra.mxu0 0.0
        %6851 = vmatprep.subr.mxu0 0.0
        %6852 = vmatpush1.msra.mxu0 0.0
        %6853 = vmatprep.subr.mxu0 0.0
        %6854 = vmatpush1.msra.mxu0 0.0
        %6855 = vmatprep.subr.mxu0 0.0
        %6856 = vmatpush1.msra.mxu0 0.0
        %6857 = vmatprep.subr.mxu0 0.0
        %6858 = vmatpush1.msra.mxu0 0.0
        %6859 = vmatprep.subr.mxu0 0.0
        %6860 = vmatpush1.msra.mxu0 0.0
        %6861 = vmatprep.subr.mxu0 0.0
        %6862 = vmatpush1.msra.mxu0 0.0
        %6863 = vmatprep.subr.mxu0 0.0
        %6864 = vmatpush1.msra.mxu0 0.0
        %6865 = vmatprep.subr.mxu0 0.0
        %6866 = vmatpush1.msra.mxu0 0.0
        %6867 = vmatprep.subr.mxu0 0.0
        %6868 = vmatpush1.msra.mxu0 %v6832
        %6869 = vmatprep.subr.mxu0 0.0
        %6870 = vmatpush2.msra.mxu0 0.0
        %6871 = vmatprep.subr.mxu0 0.0
        %6872 = vmatpush2.msra.mxu0 0.0
        %6873 = vmatprep.subr.mxu0 0.0
        %6874 = vmatpush2.msra.mxu0 0.0
        %6875 = vmatprep.subr.mxu0 0.0
        %6876 = vmatpush2.msra.mxu0 0.0
        %6877 = vmatprep.subr.mxu0 0.0
        %6878 = vmatpush2.msra.mxu0 0.0
        %6879 = vmatprep.subr.mxu0 0.0
        %6880 = vmatpush2.msra.mxu0 0.0
        %6881 = vmatprep.subr.mxu0 0.0
        %6882 = vmatpush2.msra.mxu0 0.0
        %6883 = vmatprep.subr.mxu0 0.0
        %6884 = vmatpush2.msra.mxu0 0.0
        %6885 = vmatprep.subr.mxu0 0.0
        %6886 = vmatpush2.msra.mxu0 0.0
        %6887 = vmatprep.subr.mxu0 0.0
        %6888 = vmatpush2.msra.mxu0 0.0
        %6889 = vmatprep.subr.mxu0 0.0
        %6890 = vmatpush2.msra.mxu0 0.0
        %6891 = vmatprep.subr.mxu0 0.0
        %6892 = vmatpush2.msra.mxu0 0.0
        %6893 = vmatprep.subr.mxu0 0.0
        %6894 = vmatpush2.msra.mxu0 0.0
        %6895 = vmatprep.subr.mxu0 0.0
        %6896 = vmatpush2.msra.mxu0 0.0
        %6897 = vmatprep.subr.mxu0 0.0
        %6898 = vmatpush2.msra.mxu0 0.0
        %6899 = vmatprep.subr.mxu0 0.0
        %6900 = vmatpush2.msra.mxu0 0.0
        %6901 = vmatprep.mubr.f32.mxu0 0.0
        %6902 = vmatmul.mubr.f32.gmra.mxu0 %v6835
        %v6903 = vpop.f32.mrf.mxu0
        %v6904 = vadd.f32 0.0, %v6903
        %v6905 = vpop.f32.mrf.mxu0
        %6906 = vdwg.mxu0
        %6908 = vrot.lane.b32.xlu0 %v5911, 32
        %v6909 = vpop.permute.xlu0 %6908
        %v6912 = vsel %vm858, %v6904, 0
        %6914 = vmatprep.subr.mxu0 0.0
        %6915 = vmatpush1.msra.mxu0 0.0
        %6916 = vmatprep.subr.mxu0 0.0
        %6917 = vmatpush1.msra.mxu0 0.0
        %6918 = vmatprep.subr.mxu0 0.0
        %6919 = vmatpush1.msra.mxu0 0.0
        %6920 = vmatprep.subr.mxu0 0.0
        %6921 = vmatpush1.msra.mxu0 0.0
        %6922 = vmatprep.subr.mxu0 0.0
        %6923 = vmatpush1.msra.mxu0 0.0
        %6924 = vmatprep.subr.mxu0 0.0
        %6925 = vmatpush1.msra.mxu0 0.0
        %6926 = vmatprep.subr.mxu0 0.0
        %6927 = vmatpush1.msra.mxu0 0.0
        %6928 = vmatprep.subr.mxu0 0.0
        %6929 = vmatpush1.msra.mxu0 0.0
        %6930 = vmatprep.subr.mxu0 0.0
        %6931 = vmatpush1.msra.mxu0 0.0
        %6932 = vmatprep.subr.mxu0 0.0
        %6933 = vmatpush1.msra.mxu0 0.0
        %6934 = vmatprep.subr.mxu0 0.0
        %6935 = vmatpush1.msra.mxu0 0.0
        %6936 = vmatprep.subr.mxu0 0.0
        %6937 = vmatpush1.msra.mxu0 0.0
        %6938 = vmatprep.subr.mxu0 0.0
        %6939 = vmatpush1.msra.mxu0 0.0
        %6940 = vmatprep.subr.mxu0 0.0
        %6941 = vmatpush1.msra.mxu0 0.0
        %6942 = vmatprep.subr.mxu0 0.0
        %6943 = vmatpush1.msra.mxu0 0.0
        %6944 = vmatprep.subr.mxu0 0.0
        %6945 = vmatpush1.msra.mxu0 %v6909
        %6946 = vmatprep.subr.mxu0 0.0
        %6947 = vmatpush2.msra.mxu0 0.0
        %6948 = vmatprep.subr.mxu0 0.0
        %6949 = vmatpush2.msra.mxu0 0.0
        %6950 = vmatprep.subr.mxu0 0.0
        %6951 = vmatpush2.msra.mxu0 0.0
        %6952 = vmatprep.subr.mxu0 0.0
        %6953 = vmatpush2.msra.mxu0 0.0
        %6954 = vmatprep.subr.mxu0 0.0
        %6955 = vmatpush2.msra.mxu0 0.0
        %6956 = vmatprep.subr.mxu0 0.0
        %6957 = vmatpush2.msra.mxu0 0.0
        %6958 = vmatprep.subr.mxu0 0.0
        %6959 = vmatpush2.msra.mxu0 0.0
        %6960 = vmatprep.subr.mxu0 0.0
        %6961 = vmatpush2.msra.mxu0 0.0
        %6962 = vmatprep.subr.mxu0 0.0
        %6963 = vmatpush2.msra.mxu0 0.0
        %6964 = vmatprep.subr.mxu0 0.0
        %6965 = vmatpush2.msra.mxu0 0.0
        %6966 = vmatprep.subr.mxu0 0.0
        %6967 = vmatpush2.msra.mxu0 0.0
        %6968 = vmatprep.subr.mxu0 0.0
        %6969 = vmatpush2.msra.mxu0 0.0
        %6970 = vmatprep.subr.mxu0 0.0
        %6971 = vmatpush2.msra.mxu0 0.0
        %6972 = vmatprep.subr.mxu0 0.0
        %6973 = vmatpush2.msra.mxu0 0.0
        %6974 = vmatprep.subr.mxu0 0.0
        %6975 = vmatpush2.msra.mxu0 0.0
        %6976 = vmatprep.subr.mxu0 0.0
        %6977 = vmatpush2.msra.mxu0 0.0
        %6978 = vmatprep.mubr.f32.mxu0 0.0
        %6979 = vmatmul.mubr.f32.gmra.mxu0 %v6912
        %v6980 = vpop.f32.mrf.mxu0
        %v6981 = vadd.f32 0.0, %v6980
        %v6982 = vpop.f32.mrf.mxu0
        %6983 = vdwg.mxu0
        %v6984 = vadd.f32 %v6741, %v6981
        %v6985 = vlaneseq
        %v6986 = vshrl.u32 %v6985, 7
        %v6987 = vsub.s32 3, %v6986
        %v6988 = vrot.slane %v5915, %v6987
        %v6989 = vadd.f32 %v6984, %v6988
        %v6990 = vadd.f32 %v6989, %v5900
        %v6991 = vsel %vm757, %v6990, 0.0
        %6992 = vadd.xlane.f32.xlu0 %v6991
        %v6993 = vpop.xlane.xlu0 %6992
        %v6994 = vmul.f32 %v6993, %v1836
        %v6995 = vsub.f32 %v6990, %v6994
        %v6996 = vmul.f32 %v6995, %v6995
        %v6997 = vsel %vm757, %v6996, 0.0
        %6998 = vadd.xlane.f32.xlu0 %v6997
        %v6999 = vpop.xlane.xlu0 %6998
        %v7000 = vmul.f32 %v6999, %v1836
        %v7001 = vadd.f32 %v7000, 1e-05
        %v7002 = vrsqrt.pop %v7001
        %v7003 = vmul.f32 %v6995, %v7002
        %v7004 = vlaneseq
        %v7005 = vshrl.u32 %v7004, 7
        %v7006 = vsub.s32 2, %v7005
        %v7007 = vrot.slane %v5916, %v7006
        %v7008 = vmul.f32 %v7003, %v7007
        %v7009 = vlaneseq
        %v7010 = vshrl.u32 %v7009, 7
        %v7011 = vsub.s32 3, %v7010
        %v7012 = vrot.slane %v5916, %v7011
        %v7013 = vadd.f32 %v7008, %v7012
        %v7014 = vlaneseq
        %v7015 = vshrl.u32 %v7014, 7
        %v7016 = vsub.s32 4, %v7015
        %v7017 = vrot.slane %v5915, %v7016
        %v7019 = vsel %vm757, %v7013, 0
        %7021 = vmatprep.subr.mxu0 0.0
        %7022 = vmatpush1.msra.mxu0 0.0
        %7023 = vmatprep.subr.mxu0 0.0
        %7024 = vmatpush1.msra.mxu0 0.0
        %7025 = vmatprep.subr.mxu0 0.0
        %7026 = vmatpush1.msra.mxu0 0.0
        %7027 = vmatprep.subr.mxu0 0.0
        %7028 = vmatpush1.msra.mxu0 0.0
        %7029 = vmatprep.subr.mxu0 0.0
        %7030 = vmatpush1.msra.mxu0 0.0
        %7031 = vmatprep.subr.mxu0 0.0
        %7032 = vmatpush1.msra.mxu0 0.0
        %7033 = vmatprep.subr.mxu0 0.0
        %7034 = vmatpush1.msra.mxu0 0.0
        %7035 = vmatprep.subr.mxu0 0.0
        %7036 = vmatpush1.msra.mxu0 0.0
        %7037 = vmatprep.subr.mxu0 0.0
        %7038 = vmatpush1.msra.mxu0 0.0
        %7039 = vmatprep.subr.mxu0 0.0
        %7040 = vmatpush1.msra.mxu0 0.0
        %7041 = vmatprep.subr.mxu0 0.0
        %7042 = vmatpush1.msra.mxu0 0.0
        %7043 = vmatprep.subr.mxu0 0.0
        %7044 = vmatpush1.msra.mxu0 0.0
        %7045 = vmatprep.subr.mxu0 0.0
        %7046 = vmatpush1.msra.mxu0 %v5912
        %7047 = vmatprep.subr.mxu0 0.0
        %7048 = vmatpush1.msra.mxu0 %v5909
        %7049 = vmatprep.subr.mxu0 0.0
        %7050 = vmatpush1.msra.mxu0 %v5906
        %7051 = vmatprep.subr.mxu0 0.0
        %7052 = vmatpush1.msra.mxu0 %v5903
        %7053 = vmatprep.subr.mxu0 0.0
        %7054 = vmatpush2.msra.mxu0 0.0
        %7055 = vmatprep.subr.mxu0 0.0
        %7056 = vmatpush2.msra.mxu0 0.0
        %7057 = vmatprep.subr.mxu0 0.0
        %7058 = vmatpush2.msra.mxu0 0.0
        %7059 = vmatprep.subr.mxu0 0.0
        %7060 = vmatpush2.msra.mxu0 0.0
        %7061 = vmatprep.subr.mxu0 0.0
        %7062 = vmatpush2.msra.mxu0 0.0
        %7063 = vmatprep.subr.mxu0 0.0
        %7064 = vmatpush2.msra.mxu0 0.0
        %7065 = vmatprep.subr.mxu0 0.0
        %7066 = vmatpush2.msra.mxu0 0.0
        %7067 = vmatprep.subr.mxu0 0.0
        %7068 = vmatpush2.msra.mxu0 0.0
        %7069 = vmatprep.subr.mxu0 0.0
        %7070 = vmatpush2.msra.mxu0 0.0
        %7071 = vmatprep.subr.mxu0 0.0
        %7072 = vmatpush2.msra.mxu0 0.0
        %7073 = vmatprep.subr.mxu0 0.0
        %7074 = vmatpush2.msra.mxu0 0.0
        %7075 = vmatprep.subr.mxu0 0.0
        %7076 = vmatpush2.msra.mxu0 0.0
        %7077 = vmatprep.subr.mxu0 0.0
        %7078 = vmatpush2.msra.mxu0 0.0
        %7079 = vmatprep.subr.mxu0 0.0
        %7080 = vmatpush2.msra.mxu0 0.0
        %7081 = vmatprep.subr.mxu0 0.0
        %7082 = vmatpush2.msra.mxu0 0.0
        %7083 = vmatprep.subr.mxu0 0.0
        %7084 = vmatpush2.msra.mxu0 0.0
        %7085 = vmatprep.mubr.f32.mxu0 0.0
        %7086 = vmatmul.mubr.f32.gmra.mxu0 %v7019
        %v7087 = vpop.f32.mrf.mxu0
        %v7088 = vadd.f32 %v7017, %v7087
        %v7089 = vpop.f32.mrf.mxu0
        %7090 = vdwg.mxu0
        %7095 = vrot.lane.b32.xlu0 %v5903, 96
        %v7096 = vpop.permute.xlu0 %7095
        %7097 = vrot.lane.b32.xlu0 %v5906, 96
        %v7098 = vpop.permute.xlu0 %7097
        %7099 = vrot.lane.b32.xlu0 %v5909, 96
        %v7100 = vpop.permute.xlu0 %7099
        %7101 = vrot.lane.b32.xlu0 %v5912, 96
        %v7102 = vpop.permute.xlu0 %7101
        %7107 = vmatprep.subr.mxu0 0.0
        %7108 = vmatpush1.msra.mxu0 0.0
        %7109 = vmatprep.subr.mxu0 0.0
        %7110 = vmatpush1.msra.mxu0 0.0
        %7111 = vmatprep.subr.mxu0 0.0
        %7112 = vmatpush1.msra.mxu0 0.0
        %7113 = vmatprep.subr.mxu0 0.0
        %7114 = vmatpush1.msra.mxu0 0.0
        %7115 = vmatprep.subr.mxu0 0.0
        %7116 = vmatpush1.msra.mxu0 0.0
        %7117 = vmatprep.subr.mxu0 0.0
        %7118 = vmatpush1.msra.mxu0 0.0
        %7119 = vmatprep.subr.mxu0 0.0
        %7120 = vmatpush1.msra.mxu0 0.0
        %7121 = vmatprep.subr.mxu0 0.0
        %7122 = vmatpush1.msra.mxu0 0.0
        %7123 = vmatprep.subr.mxu0 0.0
        %7124 = vmatpush1.msra.mxu0 0.0
        %7125 = vmatprep.subr.mxu0 0.0
        %7126 = vmatpush1.msra.mxu0 0.0
        %7127 = vmatprep.subr.mxu0 0.0
        %7128 = vmatpush1.msra.mxu0 0.0
        %7129 = vmatprep.subr.mxu0 0.0
        %7130 = vmatpush1.msra.mxu0 0.0
        %7131 = vmatprep.subr.mxu0 0.0
        %7132 = vmatpush1.msra.mxu0 %v7102
        %7133 = vmatprep.subr.mxu0 0.0
        %7134 = vmatpush1.msra.mxu0 %v7100
        %7135 = vmatprep.subr.mxu0 0.0
        %7136 = vmatpush1.msra.mxu0 %v7098
        %7137 = vmatprep.subr.mxu0 0.0
        %7138 = vmatpush1.msra.mxu0 %v7096
        %7139 = vmatprep.subr.mxu0 0.0
        %7140 = vmatpush2.msra.mxu0 0.0
        %7141 = vmatprep.subr.mxu0 0.0
        %7142 = vmatpush2.msra.mxu0 0.0
        %7143 = vmatprep.subr.mxu0 0.0
        %7144 = vmatpush2.msra.mxu0 0.0
        %7145 = vmatprep.subr.mxu0 0.0
        %7146 = vmatpush2.msra.mxu0 0.0
        %7147 = vmatprep.subr.mxu0 0.0
        %7148 = vmatpush2.msra.mxu0 0.0
        %7149 = vmatprep.subr.mxu0 0.0
        %7150 = vmatpush2.msra.mxu0 0.0
        %7151 = vmatprep.subr.mxu0 0.0
        %7152 = vmatpush2.msra.mxu0 0.0
        %7153 = vmatprep.subr.mxu0 0.0
        %7154 = vmatpush2.msra.mxu0 0.0
        %7155 = vmatprep.subr.mxu0 0.0
        %7156 = vmatpush2.msra.mxu0 0.0
        %7157 = vmatprep.subr.mxu0 0.0
        %7158 = vmatpush2.msra.mxu0 0.0
        %7159 = vmatprep.subr.mxu0 0.0
        %7160 = vmatpush2.msra.mxu0 0.0
        %7161 = vmatprep.subr.mxu0 0.0
        %7162 = vmatpush2.msra.mxu0 0.0
        %7163 = vmatprep.subr.mxu0 0.0
        %7164 = vmatpush2.msra.mxu0 0.0
        %7165 = vmatprep.subr.mxu0 0.0
        %7166 = vmatpush2.msra.mxu0 0.0
        %7167 = vmatprep.subr.mxu0 0.0
        %7168 = vmatpush2.msra.mxu0 0.0
        %7169 = vmatprep.subr.mxu0 0.0
        %7170 = vmatpush2.msra.mxu0 0.0
        %7171 = vmatprep.mubr.f32.mxu0 0.0
        %7172 = vmatmul.mubr.f32.gmra.mxu0 %v4648
        %v7173 = vpop.f32.mrf.mxu0
        %v7174 = vadd.f32 0.0, %v7173
        %v7175 = vpop.f32.mrf.mxu0
        %7176 = vdwg.mxu0
        %v7177 = vlaneseq
        %v7178 = vshrl.u32 %v7177, 7
        %v7179 = vsub.s32 5, %v7178
        %v7180 = vrot.slane %v5915, %v7179
        %v7181 = vadd.f32 %v7174, %v7180
        %v7182 = vlaneseq
        %v7183 = vshrl.u32 %v7182, 7
        %v7184 = vsub.s32 6, %v7183
        %v7185 = vrot.slane %v5915, %v7184
        %7187 = vrot.lane.b32.xlu0 %v7185, 32
        %v7188 = vpop.permute.xlu0 %7187
        %v7190 = vadd.f32 %v7174, %v7188
        %v7191 = vmul.f32 %v7088, 0.35355338
        %v7193 = vsel %vm858, %v7191, 0
        %v7196 = vsel %vm858, %v7181, 0
        %7198 = vmatprep.subr.mxu0 0.0
        %7199 = vmatpush1.xpose.msra.mxu0 0.0
        %7200 = vmatprep.subr.mxu0 0.0
        %7201 = vmatpush1.xpose.msra.mxu0 0.0
        %7202 = vmatprep.subr.mxu0 0.0
        %7203 = vmatpush1.xpose.msra.mxu0 0.0
        %7204 = vmatprep.subr.mxu0 0.0
        %7205 = vmatpush1.xpose.msra.mxu0 0.0
        %7206 = vmatprep.subr.mxu0 0.0
        %7207 = vmatpush1.xpose.msra.mxu0 0.0
        %7208 = vmatprep.subr.mxu0 0.0
        %7209 = vmatpush1.xpose.msra.mxu0 0.0
        %7210 = vmatprep.subr.mxu0 0.0
        %7211 = vmatpush1.xpose.msra.mxu0 0.0
        %7212 = vmatprep.subr.mxu0 0.0
        %7213 = vmatpush1.xpose.msra.mxu0 0.0
        %7214 = vmatprep.subr.mxu0 0.0
        %7215 = vmatpush1.xpose.msra.mxu0 0.0
        %7216 = vmatprep.subr.mxu0 0.0
        %7217 = vmatpush1.xpose.msra.mxu0 0.0
        %7218 = vmatprep.subr.mxu0 0.0
        %7219 = vmatpush1.xpose.msra.mxu0 0.0
        %7220 = vmatprep.subr.mxu0 0.0
        %7221 = vmatpush1.xpose.msra.mxu0 0.0
        %7222 = vmatprep.subr.mxu0 0.0
        %7223 = vmatpush1.xpose.msra.mxu0 0.0
        %7224 = vmatprep.subr.mxu0 0.0
        %7225 = vmatpush1.xpose.msra.mxu0 0.0
        %7226 = vmatprep.subr.mxu0 0.0
        %7227 = vmatpush1.xpose.msra.mxu0 0.0
        %7228 = vmatprep.subr.mxu0 0.0
        %7229 = vmatpush1.xpose.msra.mxu0 %v7196
        %7230 = vmatprep.subr.mxu0 0.0
        %7231 = vmatpush2.xpose.msra.mxu0 0.0
        %7232 = vmatprep.subr.mxu0 0.0
        %7233 = vmatpush2.xpose.msra.mxu0 0.0
        %7234 = vmatprep.subr.mxu0 0.0
        %7235 = vmatpush2.xpose.msra.mxu0 0.0
        %7236 = vmatprep.subr.mxu0 0.0
        %7237 = vmatpush2.xpose.msra.mxu0 0.0
        %7238 = vmatprep.subr.mxu0 0.0
        %7239 = vmatpush2.xpose.msra.mxu0 0.0
        %7240 = vmatprep.subr.mxu0 0.0
        %7241 = vmatpush2.xpose.msra.mxu0 0.0
        %7242 = vmatprep.subr.mxu0 0.0
        %7243 = vmatpush2.xpose.msra.mxu0 0.0
        %7244 = vmatprep.subr.mxu0 0.0
        %7245 = vmatpush2.xpose.msra.mxu0 0.0
        %7246 = vmatprep.subr.mxu0 0.0
        %7247 = vmatpush2.xpose.msra.mxu0 0.0
        %7248 = vmatprep.subr.mxu0 0.0
        %7249 = vmatpush2.xpose.msra.mxu0 0.0
        %7250 = vmatprep.subr.mxu0 0.0
        %7251 = vmatpush2.xpose.msra.mxu0 0.0
        %7252 = vmatprep.subr.mxu0 0.0
        %7253 = vmatpush2.xpose.msra.mxu0 0.0
        %7254 = vmatprep.subr.mxu0 0.0
        %7255 = vmatpush2.xpose.msra.mxu0 0.0
        %7256 = vmatprep.subr.mxu0 0.0
        %7257 = vmatpush2.xpose.msra.mxu0 0.0
        %7258 = vmatprep.subr.mxu0 0.0
        %7259 = vmatpush2.xpose.msra.mxu0 0.0
        %7260 = vmatprep.subr.mxu0 0.0
        %7261 = vmatpush2.xpose.msra.mxu0 0.0
        %7262 = vmatprep.mubr.f32.mxu0 0.0
        %7263 = vmatmul.mubr.f32.gmra.mxu0 %v7193
        %v7264 = vpop.f32.mrf.mxu0
        %v7265 = vadd.f32 %v570, %v7264
        %v7266 = vpop.f32.mrf.mxu0
        %7267 = vdwg.mxu0
        %v7268 = vsel %vm858, %v7265, -inf
        %7269 = vmax.xlane.f32.xlu0 %v7268
        %v7270 = vpop.xlane.xlu0 %7269
        %v7271 = vsub.f32 %v7265, %v7270
        %v7272 = vmul.f32 %v7271, 1.442695
        %v7273 = vpow.pop %v7272
        %v7274 = vsel %vm858, %v7273, 0.0
        %7275 = vadd.xlane.f32.xlu0 %v7274
        %v7276 = vpop.xlane.xlu0 %7275
        %v7277 = vrcp.pop %v7276
        %v7278 = vmul.f32 %v7273, %v7277
        %7280 = vrot.lane.b32.xlu0 %v7190, 96
        %v7281 = vpop.permute.xlu0 %7280
        %v7284 = vsel %vm858, %v7278, 0
        %7286 = vmatprep.subr.mxu0 0.0
        %7287 = vmatpush1.msra.mxu0 0.0
        %7288 = vmatprep.subr.mxu0 0.0
        %7289 = vmatpush1.msra.mxu0 0.0
        %7290 = vmatprep.subr.mxu0 0.0
        %7291 = vmatpush1.msra.mxu0 0.0
        %7292 = vmatprep.subr.mxu0 0.0
        %7293 = vmatpush1.msra.mxu0 0.0
        %7294 = vmatprep.subr.mxu0 0.0
        %7295 = vmatpush1.msra.mxu0 0.0
        %7296 = vmatprep.subr.mxu0 0.0
        %7297 = vmatpush1.msra.mxu0 0.0
        %7298 = vmatprep.subr.mxu0 0.0
        %7299 = vmatpush1.msra.mxu0 0.0
        %7300 = vmatprep.subr.mxu0 0.0
        %7301 = vmatpush1.msra.mxu0 0.0
        %7302 = vmatprep.subr.mxu0 0.0
        %7303 = vmatpush1.msra.mxu0 0.0
        %7304 = vmatprep.subr.mxu0 0.0
        %7305 = vmatpush1.msra.mxu0 0.0
        %7306 = vmatprep.subr.mxu0 0.0
        %7307 = vmatpush1.msra.mxu0 0.0
        %7308 = vmatprep.subr.mxu0 0.0
        %7309 = vmatpush1.msra.mxu0 0.0
        %7310 = vmatprep.subr.mxu0 0.0
        %7311 = vmatpush1.msra.mxu0 0.0
        %7312 = vmatprep.subr.mxu0 0.0
        %7313 = vmatpush1.msra.mxu0 0.0
        %7314 = vmatprep.subr.mxu0 0.0
        %7315 = vmatpush1.msra.mxu0 0.0
        %7316 = vmatprep.subr.mxu0 0.0
        %7317 = vmatpush1.msra.mxu0 %v7281
        %7318 = vmatprep.subr.mxu0 0.0
        %7319 = vmatpush2.msra.mxu0 0.0
        %7320 = vmatprep.subr.mxu0 0.0
        %7321 = vmatpush2.msra.mxu0 0.0
        %7322 = vmatprep.subr.mxu0 0.0
        %7323 = vmatpush2.msra.mxu0 0.0
        %7324 = vmatprep.subr.mxu0 0.0
        %7325 = vmatpush2.msra.mxu0 0.0
        %7326 = vmatprep.subr.mxu0 0.0
        %7327 = vmatpush2.msra.mxu0 0.0
        %7328 = vmatprep.subr.mxu0 0.0
        %7329 = vmatpush2.msra.mxu0 0.0
        %7330 = vmatprep.subr.mxu0 0.0
        %7331 = vmatpush2.msra.mxu0 0.0
        %7332 = vmatprep.subr.mxu0 0.0
        %7333 = vmatpush2.msra.mxu0 0.0
        %7334 = vmatprep.subr.mxu0 0.0
        %7335 = vmatpush2.msra.mxu0 0.0
        %7336 = vmatprep.subr.mxu0 0.0
        %7337 = vmatpush2.msra.mxu0 0.0
        %7338 = vmatprep.subr.mxu0 0.0
        %7339 = vmatpush2.msra.mxu0 0.0
        %7340 = vmatprep.subr.mxu0 0.0
        %7341 = vmatpush2.msra.mxu0 0.0
        %7342 = vmatprep.subr.mxu0 0.0
        %7343 = vmatpush2.msra.mxu0 0.0
        %7344 = vmatprep.subr.mxu0 0.0
        %7345 = vmatpush2.msra.mxu0 0.0
        %7346 = vmatprep.subr.mxu0 0.0
        %7347 = vmatpush2.msra.mxu0 0.0
        %7348 = vmatprep.subr.mxu0 0.0
        %7349 = vmatpush2.msra.mxu0 0.0
        %7350 = vmatprep.mubr.f32.mxu0 0.0
        %7351 = vmatmul.mubr.f32.gmra.mxu0 %v7284
        %v7352 = vpop.f32.mrf.mxu0
        %v7353 = vadd.f32 0.0, %v7352
        %v7354 = vpop.f32.mrf.mxu0
        %7355 = vdwg.mxu0
        %7356 = vrot.lane.b32.xlu0 %v7191, 120
        %v7357 = vpop.permute.xlu0 %7356
        %7358 = vrot.lane.b32.xlu0 %v7181, 120
        %v7359 = vpop.permute.xlu0 %7358
        %v7360 = vsel %vm858, %v7357, 0
        %v7362 = vsel %vm858, %v7359, 0
        %7364 = vmatprep.subr.mxu0 0.0
        %7365 = vmatpush1.xpose.msra.mxu0 0.0
        %7366 = vmatprep.subr.mxu0 0.0
        %7367 = vmatpush1.xpose.msra.mxu0 0.0
        %7368 = vmatprep.subr.mxu0 0.0
        %7369 = vmatpush1.xpose.msra.mxu0 0.0
        %7370 = vmatprep.subr.mxu0 0.0
        %7371 = vmatpush1.xpose.msra.mxu0 0.0
        %7372 = vmatprep.subr.mxu0 0.0
        %7373 = vmatpush1.xpose.msra.mxu0 0.0
        %7374 = vmatprep.subr.mxu0 0.0
        %7375 = vmatpush1.xpose.msra.mxu0 0.0
        %7376 = vmatprep.subr.mxu0 0.0
        %7377 = vmatpush1.xpose.msra.mxu0 0.0
        %7378 = vmatprep.subr.mxu0 0.0
        %7379 = vmatpush1.xpose.msra.mxu0 0.0
        %7380 = vmatprep.subr.mxu0 0.0
        %7381 = vmatpush1.xpose.msra.mxu0 0.0
        %7382 = vmatprep.subr.mxu0 0.0
        %7383 = vmatpush1.xpose.msra.mxu0 0.0
        %7384 = vmatprep.subr.mxu0 0.0
        %7385 = vmatpush1.xpose.msra.mxu0 0.0
        %7386 = vmatprep.subr.mxu0 0.0
        %7387 = vmatpush1.xpose.msra.mxu0 0.0
        %7388 = vmatprep.subr.mxu0 0.0
        %7389 = vmatpush1.xpose.msra.mxu0 0.0
        %7390 = vmatprep.subr.mxu0 0.0
        %7391 = vmatpush1.xpose.msra.mxu0 0.0
        %7392 = vmatprep.subr.mxu0 0.0
        %7393 = vmatpush1.xpose.msra.mxu0 0.0
        %7394 = vmatprep.subr.mxu0 0.0
        %7395 = vmatpush1.xpose.msra.mxu0 %v7362
        %7396 = vmatprep.subr.mxu0 0.0
        %7397 = vmatpush2.xpose.msra.mxu0 0.0
        %7398 = vmatprep.subr.mxu0 0.0
        %7399 = vmatpush2.xpose.msra.mxu0 0.0
        %7400 = vmatprep.subr.mxu0 0.0
        %7401 = vmatpush2.xpose.msra.mxu0 0.0
        %7402 = vmatprep.subr.mxu0 0.0
        %7403 = vmatpush2.xpose.msra.mxu0 0.0
        %7404 = vmatprep.subr.mxu0 0.0
        %7405 = vmatpush2.xpose.msra.mxu0 0.0
        %7406 = vmatprep.subr.mxu0 0.0
        %7407 = vmatpush2.xpose.msra.mxu0 0.0
        %7408 = vmatprep.subr.mxu0 0.0
        %7409 = vmatpush2.xpose.msra.mxu0 0.0
        %7410 = vmatprep.subr.mxu0 0.0
        %7411 = vmatpush2.xpose.msra.mxu0 0.0
        %7412 = vmatprep.subr.mxu0 0.0
        %7413 = vmatpush2.xpose.msra.mxu0 0.0
        %7414 = vmatprep.subr.mxu0 0.0
        %7415 = vmatpush2.xpose.msra.mxu0 0.0
        %7416 = vmatprep.subr.mxu0 0.0
        %7417 = vmatpush2.xpose.msra.mxu0 0.0
        %7418 = vmatprep.subr.mxu0 0.0
        %7419 = vmatpush2.xpose.msra.mxu0 0.0
        %7420 = vmatprep.subr.mxu0 0.0
        %7421 = vmatpush2.xpose.msra.mxu0 0.0
        %7422 = vmatprep.subr.mxu0 0.0
        %7423 = vmatpush2.xpose.msra.mxu0 0.0
        %7424 = vmatprep.subr.mxu0 0.0
        %7425 = vmatpush2.xpose.msra.mxu0 0.0
        %7426 = vmatprep.subr.mxu0 0.0
        %7427 = vmatpush2.xpose.msra.mxu0 0.0
        %7428 = vmatprep.mubr.f32.mxu0 0.0
        %7429 = vmatmul.mubr.f32.gmra.mxu0 %v7360
        %v7430 = vpop.f32.mrf.mxu0
        %v7431 = vadd.f32 %v570, %v7430
        %v7432 = vpop.f32.mrf.mxu0
        %7433 = vdwg.mxu0
        %v7434 = vsel %vm858, %v7431, -inf
        %7435 = vmax.xlane.f32.xlu0 %v7434
        %v7436 = vpop.xlane.xlu0 %7435
        %v7437 = vsub.f32 %v7431, %v7436
        %v7438 = vmul.f32 %v7437, 1.442695
        %v7439 = vpow.pop %v7438
        %v7440 = vsel %vm858, %v7439, 0.0
        %7441 = vadd.xlane.f32.xlu0 %v7440
        %v7442 = vpop.xlane.xlu0 %7441
        %v7443 = vrcp.pop %v7442
        %v7444 = vmul.f32 %v7439, %v7443
        %7445 = vrot.lane.b32.xlu0 %v7190, 88
        %v7446 = vpop.permute.xlu0 %7445
        %v7449 = vsel %vm858, %v7444, 0
        %7451 = vmatprep.subr.mxu0 0.0
        %7452 = vmatpush1.msra.mxu0 0.0
        %7453 = vmatprep.subr.mxu0 0.0
        %7454 = vmatpush1.msra.mxu0 0.0
        %7455 = vmatprep.subr.mxu0 0.0
        %7456 = vmatpush1.msra.mxu0 0.0
        %7457 = vmatprep.subr.mxu0 0.0
        %7458 = vmatpush1.msra.mxu0 0.0
        %7459 = vmatprep.subr.mxu0 0.0
        %7460 = vmatpush1.msra.mxu0 0.0
        %7461 = vmatprep.subr.mxu0 0.0
        %7462 = vmatpush1.msra.mxu0 0.0
        %7463 = vmatprep.subr.mxu0 0.0
        %7464 = vmatpush1.msra.mxu0 0.0
        %7465 = vmatprep.subr.mxu0 0.0
        %7466 = vmatpush1.msra.mxu0 0.0
        %7467 = vmatprep.subr.mxu0 0.0
        %7468 = vmatpush1.msra.mxu0 0.0
        %7469 = vmatprep.subr.mxu0 0.0
        %7470 = vmatpush1.msra.mxu0 0.0
        %7471 = vmatprep.subr.mxu0 0.0
        %7472 = vmatpush1.msra.mxu0 0.0
        %7473 = vmatprep.subr.mxu0 0.0
        %7474 = vmatpush1.msra.mxu0 0.0
        %7475 = vmatprep.subr.mxu0 0.0
        %7476 = vmatpush1.msra.mxu0 0.0
        %7477 = vmatprep.subr.mxu0 0.0
        %7478 = vmatpush1.msra.mxu0 0.0
        %7479 = vmatprep.subr.mxu0 0.0
        %7480 = vmatpush1.msra.mxu0 0.0
        %7481 = vmatprep.subr.mxu0 0.0
        %7482 = vmatpush1.msra.mxu0 %v7446
        %7483 = vmatprep.subr.mxu0 0.0
        %7484 = vmatpush2.msra.mxu0 0.0
        %7485 = vmatprep.subr.mxu0 0.0
        %7486 = vmatpush2.msra.mxu0 0.0
        %7487 = vmatprep.subr.mxu0 0.0
        %7488 = vmatpush2.msra.mxu0 0.0
        %7489 = vmatprep.subr.mxu0 0.0
        %7490 = vmatpush2.msra.mxu0 0.0
        %7491 = vmatprep.subr.mxu0 0.0
        %7492 = vmatpush2.msra.mxu0 0.0
        %7493 = vmatprep.subr.mxu0 0.0
        %7494 = vmatpush2.msra.mxu0 0.0
        %7495 = vmatprep.subr.mxu0 0.0
        %7496 = vmatpush2.msra.mxu0 0.0
        %7497 = vmatprep.subr.mxu0 0.0
        %7498 = vmatpush2.msra.mxu0 0.0
        %7499 = vmatprep.subr.mxu0 0.0
        %7500 = vmatpush2.msra.mxu0 0.0
        %7501 = vmatprep.subr.mxu0 0.0
        %7502 = vmatpush2.msra.mxu0 0.0
        %7503 = vmatprep.subr.mxu0 0.0
        %7504 = vmatpush2.msra.mxu0 0.0
        %7505 = vmatprep.subr.mxu0 0.0
        %7506 = vmatpush2.msra.mxu0 0.0
        %7507 = vmatprep.subr.mxu0 0.0
        %7508 = vmatpush2.msra.mxu0 0.0
        %7509 = vmatprep.subr.mxu0 0.0
        %7510 = vmatpush2.msra.mxu0 0.0
        %7511 = vmatprep.subr.mxu0 0.0
        %7512 = vmatpush2.msra.mxu0 0.0
        %7513 = vmatprep.subr.mxu0 0.0
        %7514 = vmatpush2.msra.mxu0 0.0
        %7515 = vmatprep.mubr.f32.mxu0 0.0
        %7516 = vmatmul.mubr.f32.gmra.mxu0 %v7449
        %v7517 = vpop.f32.mrf.mxu0
        %v7518 = vadd.f32 0.0, %v7517
        %v7519 = vpop.f32.mrf.mxu0
        %7520 = vdwg.mxu0
        %7521 = vrot.lane.b32.xlu0 %v5906, 32
        %v7522 = vpop.permute.xlu0 %7521
        %v7525 = vsel %vm858, %v7518, 0
        %7527 = vmatprep.subr.mxu0 0.0
        %7528 = vmatpush1.msra.mxu0 0.0
        %7529 = vmatprep.subr.mxu0 0.0
        %7530 = vmatpush1.msra.mxu0 0.0
        %7531 = vmatprep.subr.mxu0 0.0
        %7532 = vmatpush1.msra.mxu0 0.0
        %7533 = vmatprep.subr.mxu0 0.0
        %7534 = vmatpush1.msra.mxu0 0.0
        %7535 = vmatprep.subr.mxu0 0.0
        %7536 = vmatpush1.msra.mxu0 0.0
        %7537 = vmatprep.subr.mxu0 0.0
        %7538 = vmatpush1.msra.mxu0 0.0
        %7539 = vmatprep.subr.mxu0 0.0
        %7540 = vmatpush1.msra.mxu0 0.0
        %7541 = vmatprep.subr.mxu0 0.0
        %7542 = vmatpush1.msra.mxu0 0.0
        %7543 = vmatprep.subr.mxu0 0.0
        %7544 = vmatpush1.msra.mxu0 0.0
        %7545 = vmatprep.subr.mxu0 0.0
        %7546 = vmatpush1.msra.mxu0 0.0
        %7547 = vmatprep.subr.mxu0 0.0
        %7548 = vmatpush1.msra.mxu0 0.0
        %7549 = vmatprep.subr.mxu0 0.0
        %7550 = vmatpush1.msra.mxu0 0.0
        %7551 = vmatprep.subr.mxu0 0.0
        %7552 = vmatpush1.msra.mxu0 0.0
        %7553 = vmatprep.subr.mxu0 0.0
        %7554 = vmatpush1.msra.mxu0 0.0
        %7555 = vmatprep.subr.mxu0 0.0
        %7556 = vmatpush1.msra.mxu0 0.0
        %7557 = vmatprep.subr.mxu0 0.0
        %7558 = vmatpush1.msra.mxu0 %v7522
        %7559 = vmatprep.subr.mxu0 0.0
        %7560 = vmatpush2.msra.mxu0 0.0
        %7561 = vmatprep.subr.mxu0 0.0
        %7562 = vmatpush2.msra.mxu0 0.0
        %7563 = vmatprep.subr.mxu0 0.0
        %7564 = vmatpush2.msra.mxu0 0.0
        %7565 = vmatprep.subr.mxu0 0.0
        %7566 = vmatpush2.msra.mxu0 0.0
        %7567 = vmatprep.subr.mxu0 0.0
        %7568 = vmatpush2.msra.mxu0 0.0
        %7569 = vmatprep.subr.mxu0 0.0
        %7570 = vmatpush2.msra.mxu0 0.0
        %7571 = vmatprep.subr.mxu0 0.0
        %7572 = vmatpush2.msra.mxu0 0.0
        %7573 = vmatprep.subr.mxu0 0.0
        %7574 = vmatpush2.msra.mxu0 0.0
        %7575 = vmatprep.subr.mxu0 0.0
        %7576 = vmatpush2.msra.mxu0 0.0
        %7577 = vmatprep.subr.mxu0 0.0
        %7578 = vmatpush2.msra.mxu0 0.0
        %7579 = vmatprep.subr.mxu0 0.0
        %7580 = vmatpush2.msra.mxu0 0.0
        %7581 = vmatprep.subr.mxu0 0.0
        %7582 = vmatpush2.msra.mxu0 0.0
        %7583 = vmatprep.subr.mxu0 0.0
        %7584 = vmatpush2.msra.mxu0 0.0
        %7585 = vmatprep.subr.mxu0 0.0
        %7586 = vmatpush2.msra.mxu0 0.0
        %7587 = vmatprep.subr.mxu0 0.0
        %7588 = vmatpush2.msra.mxu0 0.0
        %7589 = vmatprep.subr.mxu0 0.0
        %7590 = vmatpush2.msra.mxu0 0.0
        %7591 = vmatprep.mubr.f32.mxu0 0.0
        %7592 = vmatmul.mubr.f32.gmra.mxu0 %v7525
        %v7593 = vpop.f32.mrf.mxu0
        %v7594 = vadd.f32 0.0, %v7593
        %v7595 = vpop.f32.mrf.mxu0
        %7596 = vdwg.mxu0
        %7597 = vrot.lane.b32.xlu0 %v5903, 32
        %v7598 = vpop.permute.xlu0 %7597
        %v7601 = vsel %vm858, %v7353, 0
        %7603 = vmatprep.subr.mxu0 0.0
        %7604 = vmatpush1.msra.mxu0 0.0
        %7605 = vmatprep.subr.mxu0 0.0
        %7606 = vmatpush1.msra.mxu0 0.0
        %7607 = vmatprep.subr.mxu0 0.0
        %7608 = vmatpush1.msra.mxu0 0.0
        %7609 = vmatprep.subr.mxu0 0.0
        %7610 = vmatpush1.msra.mxu0 0.0
        %7611 = vmatprep.subr.mxu0 0.0
        %7612 = vmatpush1.msra.mxu0 0.0
        %7613 = vmatprep.subr.mxu0 0.0
        %7614 = vmatpush1.msra.mxu0 0.0
        %7615 = vmatprep.subr.mxu0 0.0
        %7616 = vmatpush1.msra.mxu0 0.0
        %7617 = vmatprep.subr.mxu0 0.0
        %7618 = vmatpush1.msra.mxu0 0.0
        %7619 = vmatprep.subr.mxu0 0.0
        %7620 = vmatpush1.msra.mxu0 0.0
        %7621 = vmatprep.subr.mxu0 0.0
        %7622 = vmatpush1.msra.mxu0 0.0
        %7623 = vmatprep.subr.mxu0 0.0
        %7624 = vmatpush1.msra.mxu0 0.0
        %7625 = vmatprep.subr.mxu0 0.0
        %7626 = vmatpush1.msra.mxu0 0.0
        %7627 = vmatprep.subr.mxu0 0.0
        %7628 = vmatpush1.msra.mxu0 0.0
        %7629 = vmatprep.subr.mxu0 0.0
        %7630 = vmatpush1.msra.mxu0 0.0
        %7631 = vmatprep.subr.mxu0 0.0
        %7632 = vmatpush1.msra.mxu0 0.0
        %7633 = vmatprep.subr.mxu0 0.0
        %7634 = vmatpush1.msra.mxu0 %v7598
        %7635 = vmatprep.subr.mxu0 0.0
        %7636 = vmatpush2.msra.mxu0 0.0
        %7637 = vmatprep.subr.mxu0 0.0
        %7638 = vmatpush2.msra.mxu0 0.0
        %7639 = vmatprep.subr.mxu0 0.0
        %7640 = vmatpush2.msra.mxu0 0.0
        %7641 = vmatprep.subr.mxu0 0.0
        %7642 = vmatpush2.msra.mxu0 0.0
        %7643 = vmatprep.subr.mxu0 0.0
        %7644 = vmatpush2.msra.mxu0 0.0
        %7645 = vmatprep.subr.mxu0 0.0
        %7646 = vmatpush2.msra.mxu0 0.0
        %7647 = vmatprep.subr.mxu0 0.0
        %7648 = vmatpush2.msra.mxu0 0.0
        %7649 = vmatprep.subr.mxu0 0.0
        %7650 = vmatpush2.msra.mxu0 0.0
        %7651 = vmatprep.subr.mxu0 0.0
        %7652 = vmatpush2.msra.mxu0 0.0
        %7653 = vmatprep.subr.mxu0 0.0
        %7654 = vmatpush2.msra.mxu0 0.0
        %7655 = vmatprep.subr.mxu0 0.0
        %7656 = vmatpush2.msra.mxu0 0.0
        %7657 = vmatprep.subr.mxu0 0.0
        %7658 = vmatpush2.msra.mxu0 0.0
        %7659 = vmatprep.subr.mxu0 0.0
        %7660 = vmatpush2.msra.mxu0 0.0
        %7661 = vmatprep.subr.mxu0 0.0
        %7662 = vmatpush2.msra.mxu0 0.0
        %7663 = vmatprep.subr.mxu0 0.0
        %7664 = vmatpush2.msra.mxu0 0.0
        %7665 = vmatprep.subr.mxu0 0.0
        %7666 = vmatpush2.msra.mxu0 0.0
        %7667 = vmatprep.mubr.f32.mxu0 0.0
        %7668 = vmatmul.mubr.f32.gmra.mxu0 %v7601
        %v7669 = vpop.f32.mrf.mxu0
        %v7670 = vadd.f32 %v7594, %v7669
        %v7671 = vpop.f32.mrf.mxu0
        %7672 = vdwg.mxu0
        %7673 = vrot.lane.b32.xlu0 %v7191, 112
        %v7674 = vpop.permute.xlu0 %7673
        %7675 = vrot.lane.b32.xlu0 %v7181, 112
        %v7676 = vpop.permute.xlu0 %7675
        %v7677 = vsel %vm858, %v7674, 0
        %v7679 = vsel %vm858, %v7676, 0
        %7681 = vmatprep.subr.mxu0 0.0
        %7682 = vmatpush1.xpose.msra.mxu0 0.0
        %7683 = vmatprep.subr.mxu0 0.0
        %7684 = vmatpush1.xpose.msra.mxu0 0.0
        %7685 = vmatprep.subr.mxu0 0.0
        %7686 = vmatpush1.xpose.msra.mxu0 0.0
        %7687 = vmatprep.subr.mxu0 0.0
        %7688 = vmatpush1.xpose.msra.mxu0 0.0
        %7689 = vmatprep.subr.mxu0 0.0
        %7690 = vmatpush1.xpose.msra.mxu0 0.0
        %7691 = vmatprep.subr.mxu0 0.0
        %7692 = vmatpush1.xpose.msra.mxu0 0.0
        %7693 = vmatprep.subr.mxu0 0.0
        %7694 = vmatpush1.xpose.msra.mxu0 0.0
        %7695 = vmatprep.subr.mxu0 0.0
        %7696 = vmatpush1.xpose.msra.mxu0 0.0
        %7697 = vmatprep.subr.mxu0 0.0
        %7698 = vmatpush1.xpose.msra.mxu0 0.0
        %7699 = vmatprep.subr.mxu0 0.0
        %7700 = vmatpush1.xpose.msra.mxu0 0.0
        %7701 = vmatprep.subr.mxu0 0.0
        %7702 = vmatpush1.xpose.msra.mxu0 0.0
        %7703 = vmatprep.subr.mxu0 0.0
        %7704 = vmatpush1.xpose.msra.mxu0 0.0
        %7705 = vmatprep.subr.mxu0 0.0
        %7706 = vmatpush1.xpose.msra.mxu0 0.0
        %7707 = vmatprep.subr.mxu0 0.0
        %7708 = vmatpush1.xpose.msra.mxu0 0.0
        %7709 = vmatprep.subr.mxu0 0.0
        %7710 = vmatpush1.xpose.msra.mxu0 0.0
        %7711 = vmatprep.subr.mxu0 0.0
        %7712 = vmatpush1.xpose.msra.mxu0 %v7679
        %7713 = vmatprep.subr.mxu0 0.0
        %7714 = vmatpush2.xpose.msra.mxu0 0.0
        %7715 = vmatprep.subr.mxu0 0.0
        %7716 = vmatpush2.xpose.msra.mxu0 0.0
        %7717 = vmatprep.subr.mxu0 0.0
        %7718 = vmatpush2.xpose.msra.mxu0 0.0
        %7719 = vmatprep.subr.mxu0 0.0
        %7720 = vmatpush2.xpose.msra.mxu0 0.0
        %7721 = vmatprep.subr.mxu0 0.0
        %7722 = vmatpush2.xpose.msra.mxu0 0.0
        %7723 = vmatprep.subr.mxu0 0.0
        %7724 = vmatpush2.xpose.msra.mxu0 0.0
        %7725 = vmatprep.subr.mxu0 0.0
        %7726 = vmatpush2.xpose.msra.mxu0 0.0
        %7727 = vmatprep.subr.mxu0 0.0
        %7728 = vmatpush2.xpose.msra.mxu0 0.0
        %7729 = vmatprep.subr.mxu0 0.0
        %7730 = vmatpush2.xpose.msra.mxu0 0.0
        %7731 = vmatprep.subr.mxu0 0.0
        %7732 = vmatpush2.xpose.msra.mxu0 0.0
        %7733 = vmatprep.subr.mxu0 0.0
        %7734 = vmatpush2.xpose.msra.mxu0 0.0
        %7735 = vmatprep.subr.mxu0 0.0
        %7736 = vmatpush2.xpose.msra.mxu0 0.0
        %7737 = vmatprep.subr.mxu0 0.0
        %7738 = vmatpush2.xpose.msra.mxu0 0.0
        %7739 = vmatprep.subr.mxu0 0.0
        %7740 = vmatpush2.xpose.msra.mxu0 0.0
        %7741 = vmatprep.subr.mxu0 0.0
        %7742 = vmatpush2.xpose.msra.mxu0 0.0
        %7743 = vmatprep.subr.mxu0 0.0
        %7744 = vmatpush2.xpose.msra.mxu0 0.0
        %7745 = vmatprep.mubr.f32.mxu0 0.0
        %7746 = vmatmul.mubr.f32.gmra.mxu0 %v7677
        %v7747 = vpop.f32.mrf.mxu0
        %v7748 = vadd.f32 %v570, %v7747
        %v7749 = vpop.f32.mrf.mxu0
        %7750 = vdwg.mxu0
        %v7751 = vsel %vm858, %v7748, -inf
        %7752 = vmax.xlane.f32.xlu0 %v7751
        %v7753 = vpop.xlane.xlu0 %7752
        %v7754 = vsub.f32 %v7748, %v7753
        %v7755 = vmul.f32 %v7754, 1.442695
        %v7756 = vpow.pop %v7755
        %v7757 = vsel %vm858, %v7756, 0.0
        %7758 = vadd.xlane.f32.xlu0 %v7757
        %v7759 = vpop.xlane.xlu0 %7758
        %v7760 = vrcp.pop %v7759
        %v7761 = vmul.f32 %v7756, %v7760
        %7762 = vrot.lane.b32.xlu0 %v7190, 80
        %v7763 = vpop.permute.xlu0 %7762
        %v7766 = vsel %vm858, %v7761, 0
        %7768 = vmatprep.subr.mxu0 0.0
        %7769 = vmatpush1.msra.mxu0 0.0
        %7770 = vmatprep.subr.mxu0 0.0
        %7771 = vmatpush1.msra.mxu0 0.0
        %7772 = vmatprep.subr.mxu0 0.0
        %7773 = vmatpush1.msra.mxu0 0.0
        %7774 = vmatprep.subr.mxu0 0.0
        %7775 = vmatpush1.msra.mxu0 0.0
        %7776 = vmatprep.subr.mxu0 0.0
        %7777 = vmatpush1.msra.mxu0 0.0
        %7778 = vmatprep.subr.mxu0 0.0
        %7779 = vmatpush1.msra.mxu0 0.0
        %7780 = vmatprep.subr.mxu0 0.0
        %7781 = vmatpush1.msra.mxu0 0.0
        %7782 = vmatprep.subr.mxu0 0.0
        %7783 = vmatpush1.msra.mxu0 0.0
        %7784 = vmatprep.subr.mxu0 0.0
        %7785 = vmatpush1.msra.mxu0 0.0
        %7786 = vmatprep.subr.mxu0 0.0
        %7787 = vmatpush1.msra.mxu0 0.0
        %7788 = vmatprep.subr.mxu0 0.0
        %7789 = vmatpush1.msra.mxu0 0.0
        %7790 = vmatprep.subr.mxu0 0.0
        %7791 = vmatpush1.msra.mxu0 0.0
        %7792 = vmatprep.subr.mxu0 0.0
        %7793 = vmatpush1.msra.mxu0 0.0
        %7794 = vmatprep.subr.mxu0 0.0
        %7795 = vmatpush1.msra.mxu0 0.0
        %7796 = vmatprep.subr.mxu0 0.0
        %7797 = vmatpush1.msra.mxu0 0.0
        %7798 = vmatprep.subr.mxu0 0.0
        %7799 = vmatpush1.msra.mxu0 %v7763
        %7800 = vmatprep.subr.mxu0 0.0
        %7801 = vmatpush2.msra.mxu0 0.0
        %7802 = vmatprep.subr.mxu0 0.0
        %7803 = vmatpush2.msra.mxu0 0.0
        %7804 = vmatprep.subr.mxu0 0.0
        %7805 = vmatpush2.msra.mxu0 0.0
        %7806 = vmatprep.subr.mxu0 0.0
        %7807 = vmatpush2.msra.mxu0 0.0
        %7808 = vmatprep.subr.mxu0 0.0
        %7809 = vmatpush2.msra.mxu0 0.0
        %7810 = vmatprep.subr.mxu0 0.0
        %7811 = vmatpush2.msra.mxu0 0.0
        %7812 = vmatprep.subr.mxu0 0.0
        %7813 = vmatpush2.msra.mxu0 0.0
        %7814 = vmatprep.subr.mxu0 0.0
        %7815 = vmatpush2.msra.mxu0 0.0
        %7816 = vmatprep.subr.mxu0 0.0
        %7817 = vmatpush2.msra.mxu0 0.0
        %7818 = vmatprep.subr.mxu0 0.0
        %7819 = vmatpush2.msra.mxu0 0.0
        %7820 = vmatprep.subr.mxu0 0.0
        %7821 = vmatpush2.msra.mxu0 0.0
        %7822 = vmatprep.subr.mxu0 0.0
        %7823 = vmatpush2.msra.mxu0 0.0
        %7824 = vmatprep.subr.mxu0 0.0
        %7825 = vmatpush2.msra.mxu0 0.0
        %7826 = vmatprep.subr.mxu0 0.0
        %7827 = vmatpush2.msra.mxu0 0.0
        %7828 = vmatprep.subr.mxu0 0.0
        %7829 = vmatpush2.msra.mxu0 0.0
        %7830 = vmatprep.subr.mxu0 0.0
        %7831 = vmatpush2.msra.mxu0 0.0
        %7832 = vmatprep.mubr.f32.mxu0 0.0
        %7833 = vmatmul.mubr.f32.gmra.mxu0 %v7766
        %v7834 = vpop.f32.mrf.mxu0
        %v7835 = vadd.f32 0.0, %v7834
        %v7836 = vpop.f32.mrf.mxu0
        %7837 = vdwg.mxu0
        %7838 = vrot.lane.b32.xlu0 %v5909, 32
        %v7839 = vpop.permute.xlu0 %7838
        %v7842 = vsel %vm858, %v7835, 0
        %7844 = vmatprep.subr.mxu0 0.0
        %7845 = vmatpush1.msra.mxu0 0.0
        %7846 = vmatprep.subr.mxu0 0.0
        %7847 = vmatpush1.msra.mxu0 0.0
        %7848 = vmatprep.subr.mxu0 0.0
        %7849 = vmatpush1.msra.mxu0 0.0
        %7850 = vmatprep.subr.mxu0 0.0
        %7851 = vmatpush1.msra.mxu0 0.0
        %7852 = vmatprep.subr.mxu0 0.0
        %7853 = vmatpush1.msra.mxu0 0.0
        %7854 = vmatprep.subr.mxu0 0.0
        %7855 = vmatpush1.msra.mxu0 0.0
        %7856 = vmatprep.subr.mxu0 0.0
        %7857 = vmatpush1.msra.mxu0 0.0
        %7858 = vmatprep.subr.mxu0 0.0
        %7859 = vmatpush1.msra.mxu0 0.0
        %7860 = vmatprep.subr.mxu0 0.0
        %7861 = vmatpush1.msra.mxu0 0.0
        %7862 = vmatprep.subr.mxu0 0.0
        %7863 = vmatpush1.msra.mxu0 0.0
        %7864 = vmatprep.subr.mxu0 0.0
        %7865 = vmatpush1.msra.mxu0 0.0
        %7866 = vmatprep.subr.mxu0 0.0
        %7867 = vmatpush1.msra.mxu0 0.0
        %7868 = vmatprep.subr.mxu0 0.0
        %7869 = vmatpush1.msra.mxu0 0.0
        %7870 = vmatprep.subr.mxu0 0.0
        %7871 = vmatpush1.msra.mxu0 0.0
        %7872 = vmatprep.subr.mxu0 0.0
        %7873 = vmatpush1.msra.mxu0 0.0
        %7874 = vmatprep.subr.mxu0 0.0
        %7875 = vmatpush1.msra.mxu0 %v7839
        %7876 = vmatprep.subr.mxu0 0.0
        %7877 = vmatpush2.msra.mxu0 0.0
        %7878 = vmatprep.subr.mxu0 0.0
        %7879 = vmatpush2.msra.mxu0 0.0
        %7880 = vmatprep.subr.mxu0 0.0
        %7881 = vmatpush2.msra.mxu0 0.0
        %7882 = vmatprep.subr.mxu0 0.0
        %7883 = vmatpush2.msra.mxu0 0.0
        %7884 = vmatprep.subr.mxu0 0.0
        %7885 = vmatpush2.msra.mxu0 0.0
        %7886 = vmatprep.subr.mxu0 0.0
        %7887 = vmatpush2.msra.mxu0 0.0
        %7888 = vmatprep.subr.mxu0 0.0
        %7889 = vmatpush2.msra.mxu0 0.0
        %7890 = vmatprep.subr.mxu0 0.0
        %7891 = vmatpush2.msra.mxu0 0.0
        %7892 = vmatprep.subr.mxu0 0.0
        %7893 = vmatpush2.msra.mxu0 0.0
        %7894 = vmatprep.subr.mxu0 0.0
        %7895 = vmatpush2.msra.mxu0 0.0
        %7896 = vmatprep.subr.mxu0 0.0
        %7897 = vmatpush2.msra.mxu0 0.0
        %7898 = vmatprep.subr.mxu0 0.0
        %7899 = vmatpush2.msra.mxu0 0.0
        %7900 = vmatprep.subr.mxu0 0.0
        %7901 = vmatpush2.msra.mxu0 0.0
        %7902 = vmatprep.subr.mxu0 0.0
        %7903 = vmatpush2.msra.mxu0 0.0
        %7904 = vmatprep.subr.mxu0 0.0
        %7905 = vmatpush2.msra.mxu0 0.0
        %7906 = vmatprep.subr.mxu0 0.0
        %7907 = vmatpush2.msra.mxu0 0.0
        %7908 = vmatprep.mubr.f32.mxu0 0.0
        %7909 = vmatmul.mubr.f32.gmra.mxu0 %v7842
        %v7910 = vpop.f32.mrf.mxu0
        %v7911 = vadd.f32 0.0, %v7910
        %v7912 = vpop.f32.mrf.mxu0
        %7913 = vdwg.mxu0
        %v7914 = vadd.f32 %v7670, %v7911
        %7915 = vrot.lane.b32.xlu0 %v7191, 104
        %v7916 = vpop.permute.xlu0 %7915
        %7917 = vrot.lane.b32.xlu0 %v7181, 104
        %v7918 = vpop.permute.xlu0 %7917
        %v7919 = vsel %vm858, %v7916, 0
        %v7921 = vsel %vm858, %v7918, 0
        %7923 = vmatprep.subr.mxu0 0.0
        %7924 = vmatpush1.xpose.msra.mxu0 0.0
        %7925 = vmatprep.subr.mxu0 0.0
        %7926 = vmatpush1.xpose.msra.mxu0 0.0
        %7927 = vmatprep.subr.mxu0 0.0
        %7928 = vmatpush1.xpose.msra.mxu0 0.0
        %7929 = vmatprep.subr.mxu0 0.0
        %7930 = vmatpush1.xpose.msra.mxu0 0.0
        %7931 = vmatprep.subr.mxu0 0.0
        %7932 = vmatpush1.xpose.msra.mxu0 0.0
        %7933 = vmatprep.subr.mxu0 0.0
        %7934 = vmatpush1.xpose.msra.mxu0 0.0
        %7935 = vmatprep.subr.mxu0 0.0
        %7936 = vmatpush1.xpose.msra.mxu0 0.0
        %7937 = vmatprep.subr.mxu0 0.0
        %7938 = vmatpush1.xpose.msra.mxu0 0.0
        %7939 = vmatprep.subr.mxu0 0.0
        %7940 = vmatpush1.xpose.msra.mxu0 0.0
        %7941 = vmatprep.subr.mxu0 0.0
        %7942 = vmatpush1.xpose.msra.mxu0 0.0
        %7943 = vmatprep.subr.mxu0 0.0
        %7944 = vmatpush1.xpose.msra.mxu0 0.0
        %7945 = vmatprep.subr.mxu0 0.0
        %7946 = vmatpush1.xpose.msra.mxu0 0.0
        %7947 = vmatprep.subr.mxu0 0.0
        %7948 = vmatpush1.xpose.msra.mxu0 0.0
        %7949 = vmatprep.subr.mxu0 0.0
        %7950 = vmatpush1.xpose.msra.mxu0 0.0
        %7951 = vmatprep.subr.mxu0 0.0
        %7952 = vmatpush1.xpose.msra.mxu0 0.0
        %7953 = vmatprep.subr.mxu0 0.0
        %7954 = vmatpush1.xpose.msra.mxu0 %v7921
        %7955 = vmatprep.subr.mxu0 0.0
        %7956 = vmatpush2.xpose.msra.mxu0 0.0
        %7957 = vmatprep.subr.mxu0 0.0
        %7958 = vmatpush2.xpose.msra.mxu0 0.0
        %7959 = vmatprep.subr.mxu0 0.0
        %7960 = vmatpush2.xpose.msra.mxu0 0.0
        %7961 = vmatprep.subr.mxu0 0.0
        %7962 = vmatpush2.xpose.msra.mxu0 0.0
        %7963 = vmatprep.subr.mxu0 0.0
        %7964 = vmatpush2.xpose.msra.mxu0 0.0
        %7965 = vmatprep.subr.mxu0 0.0
        %7966 = vmatpush2.xpose.msra.mxu0 0.0
        %7967 = vmatprep.subr.mxu0 0.0
        %7968 = vmatpush2.xpose.msra.mxu0 0.0
        %7969 = vmatprep.subr.mxu0 0.0
        %7970 = vmatpush2.xpose.msra.mxu0 0.0
        %7971 = vmatprep.subr.mxu0 0.0
        %7972 = vmatpush2.xpose.msra.mxu0 0.0
        %7973 = vmatprep.subr.mxu0 0.0
        %7974 = vmatpush2.xpose.msra.mxu0 0.0
        %7975 = vmatprep.subr.mxu0 0.0
        %7976 = vmatpush2.xpose.msra.mxu0 0.0
        %7977 = vmatprep.subr.mxu0 0.0
        %7978 = vmatpush2.xpose.msra.mxu0 0.0
        %7979 = vmatprep.subr.mxu0 0.0
        %7980 = vmatpush2.xpose.msra.mxu0 0.0
        %7981 = vmatprep.subr.mxu0 0.0
        %7982 = vmatpush2.xpose.msra.mxu0 0.0
        %7983 = vmatprep.subr.mxu0 0.0
        %7984 = vmatpush2.xpose.msra.mxu0 0.0
        %7985 = vmatprep.subr.mxu0 0.0
        %7986 = vmatpush2.xpose.msra.mxu0 0.0
        %7987 = vmatprep.mubr.f32.mxu0 0.0
        %7988 = vmatmul.mubr.f32.gmra.mxu0 %v7919
        %v7989 = vpop.f32.mrf.mxu0
        %v7990 = vadd.f32 %v570, %v7989
        %v7991 = vpop.f32.mrf.mxu0
        %7992 = vdwg.mxu0
        %v7993 = vsel %vm858, %v7990, -inf
        %7994 = vmax.xlane.f32.xlu0 %v7993
        %v7995 = vpop.xlane.xlu0 %7994
        %v7996 = vsub.f32 %v7990, %v7995
        %v7997 = vmul.f32 %v7996, 1.442695
        %v7998 = vpow.pop %v7997
        %v7999 = vsel %vm858, %v7998, 0.0
        %8000 = vadd.xlane.f32.xlu0 %v7999
        %v8001 = vpop.xlane.xlu0 %8000
        %v8002 = vrcp.pop %v8001
        %v8003 = vmul.f32 %v7998, %v8002
        %8004 = vrot.lane.b32.xlu0 %v7190, 72
        %v8005 = vpop.permute.xlu0 %8004
        %v8008 = vsel %vm858, %v8003, 0
        %8010 = vmatprep.subr.mxu0 0.0
        %8011 = vmatpush1.msra.mxu0 0.0
        %8012 = vmatprep.subr.mxu0 0.0
        %8013 = vmatpush1.msra.mxu0 0.0
        %8014 = vmatprep.subr.mxu0 0.0
        %8015 = vmatpush1.msra.mxu0 0.0
        %8016 = vmatprep.subr.mxu0 0.0
        %8017 = vmatpush1.msra.mxu0 0.0
        %8018 = vmatprep.subr.mxu0 0.0
        %8019 = vmatpush1.msra.mxu0 0.0
        %8020 = vmatprep.subr.mxu0 0.0
        %8021 = vmatpush1.msra.mxu0 0.0
        %8022 = vmatprep.subr.mxu0 0.0
        %8023 = vmatpush1.msra.mxu0 0.0
        %8024 = vmatprep.subr.mxu0 0.0
        %8025 = vmatpush1.msra.mxu0 0.0
        %8026 = vmatprep.subr.mxu0 0.0
        %8027 = vmatpush1.msra.mxu0 0.0
        %8028 = vmatprep.subr.mxu0 0.0
        %8029 = vmatpush1.msra.mxu0 0.0
        %8030 = vmatprep.subr.mxu0 0.0
        %8031 = vmatpush1.msra.mxu0 0.0
        %8032 = vmatprep.subr.mxu0 0.0
        %8033 = vmatpush1.msra.mxu0 0.0
        %8034 = vmatprep.subr.mxu0 0.0
        %8035 = vmatpush1.msra.mxu0 0.0
        %8036 = vmatprep.subr.mxu0 0.0
        %8037 = vmatpush1.msra.mxu0 0.0
        %8038 = vmatprep.subr.mxu0 0.0
        %8039 = vmatpush1.msra.mxu0 0.0
        %8040 = vmatprep.subr.mxu0 0.0
        %8041 = vmatpush1.msra.mxu0 %v8005
        %8042 = vmatprep.subr.mxu0 0.0
        %8043 = vmatpush2.msra.mxu0 0.0
        %8044 = vmatprep.subr.mxu0 0.0
        %8045 = vmatpush2.msra.mxu0 0.0
        %8046 = vmatprep.subr.mxu0 0.0
        %8047 = vmatpush2.msra.mxu0 0.0
        %8048 = vmatprep.subr.mxu0 0.0
        %8049 = vmatpush2.msra.mxu0 0.0
        %8050 = vmatprep.subr.mxu0 0.0
        %8051 = vmatpush2.msra.mxu0 0.0
        %8052 = vmatprep.subr.mxu0 0.0
        %8053 = vmatpush2.msra.mxu0 0.0
        %8054 = vmatprep.subr.mxu0 0.0
        %8055 = vmatpush2.msra.mxu0 0.0
        %8056 = vmatprep.subr.mxu0 0.0
        %8057 = vmatpush2.msra.mxu0 0.0
        %8058 = vmatprep.subr.mxu0 0.0
        %8059 = vmatpush2.msra.mxu0 0.0
        %8060 = vmatprep.subr.mxu0 0.0
        %8061 = vmatpush2.msra.mxu0 0.0
        %8062 = vmatprep.subr.mxu0 0.0
        %8063 = vmatpush2.msra.mxu0 0.0
        %8064 = vmatprep.subr.mxu0 0.0
        %8065 = vmatpush2.msra.mxu0 0.0
        %8066 = vmatprep.subr.mxu0 0.0
        %8067 = vmatpush2.msra.mxu0 0.0
        %8068 = vmatprep.subr.mxu0 0.0
        %8069 = vmatpush2.msra.mxu0 0.0
        %8070 = vmatprep.subr.mxu0 0.0
        %8071 = vmatpush2.msra.mxu0 0.0
        %8072 = vmatprep.subr.mxu0 0.0
        %8073 = vmatpush2.msra.mxu0 0.0
        %8074 = vmatprep.mubr.f32.mxu0 0.0
        %8075 = vmatmul.mubr.f32.gmra.mxu0 %v8008
        %v8076 = vpop.f32.mrf.mxu0
        %v8077 = vadd.f32 0.0, %v8076
        %v8078 = vpop.f32.mrf.mxu0
        %8079 = vdwg.mxu0
        %8080 = vrot.lane.b32.xlu0 %v5912, 32
        %v8081 = vpop.permute.xlu0 %8080
        %v8084 = vsel %vm858, %v8077, 0
        %8086 = vmatprep.subr.mxu0 0.0
        %8087 = vmatpush1.msra.mxu0 0.0
        %8088 = vmatprep.subr.mxu0 0.0
        %8089 = vmatpush1.msra.mxu0 0.0
        %8090 = vmatprep.subr.mxu0 0.0
        %8091 = vmatpush1.msra.mxu0 0.0
        %8092 = vmatprep.subr.mxu0 0.0
        %8093 = vmatpush1.msra.mxu0 0.0
        %8094 = vmatprep.subr.mxu0 0.0
        %8095 = vmatpush1.msra.mxu0 0.0
        %8096 = vmatprep.subr.mxu0 0.0
        %8097 = vmatpush1.msra.mxu0 0.0
        %8098 = vmatprep.subr.mxu0 0.0
        %8099 = vmatpush1.msra.mxu0 0.0
        %8100 = vmatprep.subr.mxu0 0.0
        %8101 = vmatpush1.msra.mxu0 0.0
        %8102 = vmatprep.subr.mxu0 0.0
        %8103 = vmatpush1.msra.mxu0 0.0
        %8104 = vmatprep.subr.mxu0 0.0
        %8105 = vmatpush1.msra.mxu0 0.0
        %8106 = vmatprep.subr.mxu0 0.0
        %8107 = vmatpush1.msra.mxu0 0.0
        %8108 = vmatprep.subr.mxu0 0.0
        %8109 = vmatpush1.msra.mxu0 0.0
        %8110 = vmatprep.subr.mxu0 0.0
        %8111 = vmatpush1.msra.mxu0 0.0
        %8112 = vmatprep.subr.mxu0 0.0
        %8113 = vmatpush1.msra.mxu0 0.0
        %8114 = vmatprep.subr.mxu0 0.0
        %8115 = vmatpush1.msra.mxu0 0.0
        %8116 = vmatprep.subr.mxu0 0.0
        %8117 = vmatpush1.msra.mxu0 %v8081
        %8118 = vmatprep.subr.mxu0 0.0
        %8119 = vmatpush2.msra.mxu0 0.0
        %8120 = vmatprep.subr.mxu0 0.0
        %8121 = vmatpush2.msra.mxu0 0.0
        %8122 = vmatprep.subr.mxu0 0.0
        %8123 = vmatpush2.msra.mxu0 0.0
        %8124 = vmatprep.subr.mxu0 0.0
        %8125 = vmatpush2.msra.mxu0 0.0
        %8126 = vmatprep.subr.mxu0 0.0
        %8127 = vmatpush2.msra.mxu0 0.0
        %8128 = vmatprep.subr.mxu0 0.0
        %8129 = vmatpush2.msra.mxu0 0.0
        %8130 = vmatprep.subr.mxu0 0.0
        %8131 = vmatpush2.msra.mxu0 0.0
        %8132 = vmatprep.subr.mxu0 0.0
        %8133 = vmatpush2.msra.mxu0 0.0
        %8134 = vmatprep.subr.mxu0 0.0
        %8135 = vmatpush2.msra.mxu0 0.0
        %8136 = vmatprep.subr.mxu0 0.0
        %8137 = vmatpush2.msra.mxu0 0.0
        %8138 = vmatprep.subr.mxu0 0.0
        %8139 = vmatpush2.msra.mxu0 0.0
        %8140 = vmatprep.subr.mxu0 0.0
        %8141 = vmatpush2.msra.mxu0 0.0
        %8142 = vmatprep.subr.mxu0 0.0
        %8143 = vmatpush2.msra.mxu0 0.0
        %8144 = vmatprep.subr.mxu0 0.0
        %8145 = vmatpush2.msra.mxu0 0.0
        %8146 = vmatprep.subr.mxu0 0.0
        %8147 = vmatpush2.msra.mxu0 0.0
        %8148 = vmatprep.subr.mxu0 0.0
        %8149 = vmatpush2.msra.mxu0 0.0
        %8150 = vmatprep.mubr.f32.mxu0 0.0
        %8151 = vmatmul.mubr.f32.gmra.mxu0 %v8084
        %v8152 = vpop.f32.mrf.mxu0
        %v8153 = vadd.f32 0.0, %v8152
        %v8154 = vpop.f32.mrf.mxu0
        %8155 = vdwg.mxu0
        %v8156 = vadd.f32 %v7914, %v8153
        %v8157 = vlaneseq
        %v8158 = vshrl.u32 %v8157, 7
        %v8159 = vsub.s32 7, %v8158
        %v8160 = vrot.slane %v5915, %v8159
        %v8161 = vadd.f32 %v8156, %v8160
        %v8162 = vadd.f32 %v8161, %v7013
        %v8163 = vlaneseq
        %v8164 = vshrl.u32 %v8163, 7
        %v8165 = vsub.s32 0, %v8164
        %v8166 = vrot.slane %v5916, %v8165
        %v8168 = vsel %vm757, %v8162, 0
        %8170 = vmatprep.subr.mxu0 0.0
        %8171 = vmatpush1.msra.mxu0 0.0
        %8172 = vmatprep.subr.mxu0 0.0
        %8173 = vmatpush1.msra.mxu0 0.0
        %8174 = vmatprep.subr.mxu0 0.0
        %8175 = vmatpush1.msra.mxu0 0.0
        %8176 = vmatprep.subr.mxu0 0.0
        %8177 = vmatpush1.msra.mxu0 0.0
        %8178 = vmatprep.subr.mxu0 0.0
        %8179 = vmatpush1.msra.mxu0 0.0
        %8180 = vmatprep.subr.mxu0 0.0
        %8181 = vmatpush1.msra.mxu0 0.0
        %8182 = vmatprep.subr.mxu0 0.0
        %8183 = vmatpush1.msra.mxu0 0.0
        %8184 = vmatprep.subr.mxu0 0.0
        %8185 = vmatpush1.msra.mxu0 0.0
        %8186 = vmatprep.subr.mxu0 0.0
        %8187 = vmatpush1.msra.mxu0 0.0
        %8188 = vmatprep.subr.mxu0 0.0
        %8189 = vmatpush1.msra.mxu0 0.0
        %8190 = vmatprep.subr.mxu0 0.0
        %8191 = vmatpush1.msra.mxu0 0.0
        %8192 = vmatprep.subr.mxu0 0.0
        %8193 = vmatpush1.msra.mxu0 0.0
        %8194 = vmatprep.subr.mxu0 0.0
        %8195 = vmatpush1.msra.mxu0 %v5913
        %8196 = vmatprep.subr.mxu0 0.0
        %8197 = vmatpush1.msra.mxu0 %v5910
        %8198 = vmatprep.subr.mxu0 0.0
        %8199 = vmatpush1.msra.mxu0 %v5907
        %8200 = vmatprep.subr.mxu0 0.0
        %8201 = vmatpush1.msra.mxu0 %v5904
        %8202 = vmatprep.subr.mxu0 0.0
        %8203 = vmatpush2.msra.mxu0 0.0
        %8204 = vmatprep.subr.mxu0 0.0
        %8205 = vmatpush2.msra.mxu0 0.0
        %8206 = vmatprep.subr.mxu0 0.0
        %8207 = vmatpush2.msra.mxu0 0.0
        %8208 = vmatprep.subr.mxu0 0.0
        %8209 = vmatpush2.msra.mxu0 0.0
        %8210 = vmatprep.subr.mxu0 0.0
        %8211 = vmatpush2.msra.mxu0 0.0
        %8212 = vmatprep.subr.mxu0 0.0
        %8213 = vmatpush2.msra.mxu0 0.0
        %8214 = vmatprep.subr.mxu0 0.0
        %8215 = vmatpush2.msra.mxu0 0.0
        %8216 = vmatprep.subr.mxu0 0.0
        %8217 = vmatpush2.msra.mxu0 0.0
        %8218 = vmatprep.subr.mxu0 0.0
        %8219 = vmatpush2.msra.mxu0 0.0
        %8220 = vmatprep.subr.mxu0 0.0
        %8221 = vmatpush2.msra.mxu0 0.0
        %8222 = vmatprep.subr.mxu0 0.0
        %8223 = vmatpush2.msra.mxu0 0.0
        %8224 = vmatprep.subr.mxu0 0.0
        %8225 = vmatpush2.msra.mxu0 0.0
        %8226 = vmatprep.subr.mxu0 0.0
        %8227 = vmatpush2.msra.mxu0 0.0
        %8228 = vmatprep.subr.mxu0 0.0
        %8229 = vmatpush2.msra.mxu0 0.0
        %8230 = vmatprep.subr.mxu0 0.0
        %8231 = vmatpush2.msra.mxu0 0.0
        %8232 = vmatprep.subr.mxu0 0.0
        %8233 = vmatpush2.msra.mxu0 0.0
        %8234 = vmatprep.mubr.f32.mxu0 0.0
        %8235 = vmatmul.mubr.f32.gmra.mxu0 %v8168
        %v8236 = vpop.f32.mrf.mxu0
        %v8237 = vadd.f32 %v8166, %v8236
        %v8238 = vpop.f32.mrf.mxu0
        %8239 = vdwg.mxu0
        %v8240 = vmax.f32 %v8237, 0.0
        %v8241 = vlaneseq
        %v8242 = vshrl.u32 %v8241, 7
        %v8243 = vsub.s32 1, %v8242
        %v8244 = vrot.slane %v5916, %v8243
        %8249 = vrot.lane.b32.xlu0 %v5904, 96
        %v8250 = vpop.permute.xlu0 %8249
        %8251 = vrot.lane.b32.xlu0 %v5907, 96
        %v8252 = vpop.permute.xlu0 %8251
        %8253 = vrot.lane.b32.xlu0 %v5910, 96
        %v8254 = vpop.permute.xlu0 %8253
        %8255 = vrot.lane.b32.xlu0 %v5913, 96
        %v8256 = vpop.permute.xlu0 %8255
        %v8262 = vsel %vm757, %v8240, 0
        %8264 = vmatprep.subr.mxu0 0.0
        %8265 = vmatpush1.msra.mxu0 0.0
        %8266 = vmatprep.subr.mxu0 0.0
        %8267 = vmatpush1.msra.mxu0 0.0
        %8268 = vmatprep.subr.mxu0 0.0
        %8269 = vmatpush1.msra.mxu0 0.0
        %8270 = vmatprep.subr.mxu0 0.0
        %8271 = vmatpush1.msra.mxu0 0.0
        %8272 = vmatprep.subr.mxu0 0.0
        %8273 = vmatpush1.msra.mxu0 0.0
        %8274 = vmatprep.subr.mxu0 0.0
        %8275 = vmatpush1.msra.mxu0 0.0
        %8276 = vmatprep.subr.mxu0 0.0
        %8277 = vmatpush1.msra.mxu0 0.0
        %8278 = vmatprep.subr.mxu0 0.0
        %8279 = vmatpush1.msra.mxu0 0.0
        %8280 = vmatprep.subr.mxu0 0.0
        %8281 = vmatpush1.msra.mxu0 0.0
        %8282 = vmatprep.subr.mxu0 0.0
        %8283 = vmatpush1.msra.mxu0 0.0
        %8284 = vmatprep.subr.mxu0 0.0
        %8285 = vmatpush1.msra.mxu0 0.0
        %8286 = vmatprep.subr.mxu0 0.0
        %8287 = vmatpush1.msra.mxu0 0.0
        %8288 = vmatprep.subr.mxu0 0.0
        %8289 = vmatpush1.msra.mxu0 %v8256
        %8290 = vmatprep.subr.mxu0 0.0
        %8291 = vmatpush1.msra.mxu0 %v8254
        %8292 = vmatprep.subr.mxu0 0.0
        %8293 = vmatpush1.msra.mxu0 %v8252
        %8294 = vmatprep.subr.mxu0 0.0
        %8295 = vmatpush1.msra.mxu0 %v8250
        %8296 = vmatprep.subr.mxu0 0.0
        %8297 = vmatpush2.msra.mxu0 0.0
        %8298 = vmatprep.subr.mxu0 0.0
        %8299 = vmatpush2.msra.mxu0 0.0
        %8300 = vmatprep.subr.mxu0 0.0
        %8301 = vmatpush2.msra.mxu0 0.0
        %8302 = vmatprep.subr.mxu0 0.0
        %8303 = vmatpush2.msra.mxu0 0.0
        %8304 = vmatprep.subr.mxu0 0.0
        %8305 = vmatpush2.msra.mxu0 0.0
        %8306 = vmatprep.subr.mxu0 0.0
        %8307 = vmatpush2.msra.mxu0 0.0
        %8308 = vmatprep.subr.mxu0 0.0
        %8309 = vmatpush2.msra.mxu0 0.0
        %8310 = vmatprep.subr.mxu0 0.0
        %8311 = vmatpush2.msra.mxu0 0.0
        %8312 = vmatprep.subr.mxu0 0.0
        %8313 = vmatpush2.msra.mxu0 0.0
        %8314 = vmatprep.subr.mxu0 0.0
        %8315 = vmatpush2.msra.mxu0 0.0
        %8316 = vmatprep.subr.mxu0 0.0
        %8317 = vmatpush2.msra.mxu0 0.0
        %8318 = vmatprep.subr.mxu0 0.0
        %8319 = vmatpush2.msra.mxu0 0.0
        %8320 = vmatprep.subr.mxu0 0.0
        %8321 = vmatpush2.msra.mxu0 0.0
        %8322 = vmatprep.subr.mxu0 0.0
        %8323 = vmatpush2.msra.mxu0 0.0
        %8324 = vmatprep.subr.mxu0 0.0
        %8325 = vmatpush2.msra.mxu0 0.0
        %8326 = vmatprep.subr.mxu0 0.0
        %8327 = vmatpush2.msra.mxu0 0.0
        %8328 = vmatprep.mubr.f32.mxu0 0.0
        %8329 = vmatmul.mubr.f32.gmra.mxu0 %v8262
        %v8330 = vpop.f32.mrf.mxu0
        %v8331 = vadd.f32 %v8244, %v8330
        %v8332 = vpop.f32.mrf.mxu0
        %8333 = vdwg.mxu0
        %v8334 = vadd.f32 %v8331, %v8162
        %v8335 = vsel %vm757, %v8334, 0.0
        %8336 = vadd.xlane.f32.xlu0 %v8335
        %v8337 = vpop.xlane.xlu0 %8336
        %v8338 = vmul.f32 %v8337, %v1836
        %v8339 = vsub.f32 %v8334, %v8338
        %v8340 = vmul.f32 %v8339, %v8339
        %v8341 = vsel %vm757, %v8340, 0.0
        %8342 = vadd.xlane.f32.xlu0 %v8341
        %v8343 = vpop.xlane.xlu0 %8342
        %v8344 = vmul.f32 %v8343, %v1836
        %v8345 = vadd.f32 %v8344, 1e-05
        %v8346 = vrsqrt.pop %v8345
        %v8347 = vmul.f32 %v8339, %v8346
        %v8348 = vlaneseq
        %v8349 = vshrl.u32 %v8348, 7
        %v8350 = vsub.s32 4, %v8349
        %v8351 = vrot.slane %v5916, %v8350
        %v8352 = vmul.f32 %v8347, %v8351
        %v8353 = vlaneseq
        %v8354 = vshrl.u32 %v8353, 7
        %v8355 = vsub.s32 5, %v8354
        %v8356 = vrot.slane %v5916, %v8355
        %v8357 = vadd.f32 %v8352, %v8356
        %v8358 = vld [vmem:[%s11] sm:$0xff]
        %v8359 = vld [vmem:[%s11 + $0x8] sm:$0xff]
        %v8360 = vld [vmem:[%s11 + $0x10] sm:$0xff]
        %v8361 = vld [vmem:[%s11 + $0x18] sm:$0xff]
        %v8362 = vld [vmem:[%s12] sm:$0x1]
        %v8364 = vlaneseq
        %v8365 = vshrl.u32 %v8364, 7
        %v8366 = vsub.s32 0, %v8365
        %v8367 = vrot.slane %v8362, %v8366
        %v8370 = vsel %vm757, %v8357, 0
        %8372 = vmatprep.subr.mxu0 0.0
        %8373 = vmatpush1.msra.mxu0 0.0
        %8374 = vmatprep.subr.mxu0 0.0
        %8375 = vmatpush1.msra.mxu0 0.0
        %8376 = vmatprep.subr.mxu0 0.0
        %8377 = vmatpush1.msra.mxu0 0.0
        %8378 = vmatprep.subr.mxu0 0.0
        %8379 = vmatpush1.msra.mxu0 0.0
        %8380 = vmatprep.subr.mxu0 0.0
        %8381 = vmatpush1.msra.mxu0 0.0
        %8382 = vmatprep.subr.mxu0 0.0
        %8383 = vmatpush1.msra.mxu0 0.0
        %8384 = vmatprep.subr.mxu0 0.0
        %8385 = vmatpush1.msra.mxu0 0.0
        %8386 = vmatprep.subr.mxu0 0.0
        %8387 = vmatpush1.msra.mxu0 0.0
        %8388 = vmatprep.subr.mxu0 0.0
        %8389 = vmatpush1.msra.mxu0 0.0
        %8390 = vmatprep.subr.mxu0 0.0
        %8391 = vmatpush1.msra.mxu0 0.0
        %8392 = vmatprep.subr.mxu0 0.0
        %8393 = vmatpush1.msra.mxu0 0.0
        %8394 = vmatprep.subr.mxu0 0.0
        %8395 = vmatpush1.msra.mxu0 0.0
        %8396 = vmatprep.subr.mxu0 0.0
        %8397 = vmatpush1.msra.mxu0 %v8361
        %8398 = vmatprep.subr.mxu0 0.0
        %8399 = vmatpush1.msra.mxu0 %v8360
        %8400 = vmatprep.subr.mxu0 0.0
        %8401 = vmatpush1.msra.mxu0 %v8359
        %8402 = vmatprep.subr.mxu0 0.0
        %8403 = vmatpush1.msra.mxu0 %v8358
        %8404 = vmatprep.subr.mxu0 0.0
        %8405 = vmatpush2.msra.mxu0 0.0
        %8406 = vmatprep.subr.mxu0 0.0
        %8407 = vmatpush2.msra.mxu0 0.0
        %8408 = vmatprep.subr.mxu0 0.0
        %8409 = vmatpush2.msra.mxu0 0.0
        %8410 = vmatprep.subr.mxu0 0.0
        %8411 = vmatpush2.msra.mxu0 0.0
        %8412 = vmatprep.subr.mxu0 0.0
        %8413 = vmatpush2.msra.mxu0 0.0
        %8414 = vmatprep.subr.mxu0 0.0
        %8415 = vmatpush2.msra.mxu0 0.0
        %8416 = vmatprep.subr.mxu0 0.0
        %8417 = vmatpush2.msra.mxu0 0.0
        %8418 = vmatprep.subr.mxu0 0.0
        %8419 = vmatpush2.msra.mxu0 0.0
        %8420 = vmatprep.subr.mxu0 0.0
        %8421 = vmatpush2.msra.mxu0 0.0
        %8422 = vmatprep.subr.mxu0 0.0
        %8423 = vmatpush2.msra.mxu0 0.0
        %8424 = vmatprep.subr.mxu0 0.0
        %8425 = vmatpush2.msra.mxu0 0.0
        %8426 = vmatprep.subr.mxu0 0.0
        %8427 = vmatpush2.msra.mxu0 0.0
        %8428 = vmatprep.subr.mxu0 0.0
        %8429 = vmatpush2.msra.mxu0 0.0
        %8430 = vmatprep.subr.mxu0 0.0
        %8431 = vmatpush2.msra.mxu0 0.0
        %8432 = vmatprep.subr.mxu0 0.0
        %8433 = vmatpush2.msra.mxu0 0.0
        %8434 = vmatprep.subr.mxu0 0.0
        %8435 = vmatpush2.msra.mxu0 0.0
        %8436 = vmatprep.mubr.f32.mxu0 0.0
        %8437 = vmatmul.mubr.f32.gmra.mxu0 %v8370
        %v8438 = vpop.f32.mrf.mxu0
        %v8439 = vadd.f32 %v8367, %v8438
        %v8440 = vpop.f32.mrf.mxu0
        %8441 = vdwg.mxu0
        %v8442 = vsub.f32 0.0, %v8439
        %v8443 = vmul.f32 %v8442, 1.442695
        %v8444 = vpow.pop %v8443
        %v8445 = vadd.f32 %v8444, 1.0
        %v8446 = vrcp.pop %v8445
        %v8447 = vmul.f32 1.0, %v8446
        %8448 = vst [vmem:[%s552] sm:$0xff] %v8447
        %s8449 = sand.u32 %s333, 1
        %s8450 = scalar_lea.sflag [#allocation4], %s8449
        %s8451 = sand.u32 %s333, 1
        %s8452 = smul.addr %s8451, 8
        %s8453 = scalar_lea.vmem [#allocation11], %s8452
        // Predicated region
        $region93: #{tpu_custom_call.1} parent=71 // pred_check
          %p8454 = pneg %p343
        $region94: #{tpu_custom_call.1} parent=71 // pred_check_branch
          %8456 = sbr.rel (%p8454) target = $region96
        $region95: #{tpu_custom_call.1} parent=71 // pred_region
          %s8458 = ssub.s32 128, 128
          %8459 = vsyncadd %s8450, %s8458
          %s8460 = smul.addr %s32, 128
          %s8461 = scalar_lea.hbm %s13, %s8460
          %s8463 = sshll.u32 %s8453, 4
          %s8464 = int_to_ptr.vmem [resolvable:$true] %s8463
          %8466 = dma.vmem_to_hbm [thread:$0]  %s8464, 128, %s8461, %s8450
        $region96: #{tpu_custom_call.1} parent=71 // pred_fallthru
          _
      $region72: #{tpu_custom_call.1} parent=5 // pred_fallthru
        _
      %p8467 = scmp.le.s32.totalorder 2, %s27
      // Predicated region
      $region97: #{tpu_custom_call.1} parent=5 // pred_check
        %p8468 = pneg %p8467
      $region98: #{tpu_custom_call.1} parent=5 // pred_check_branch
        %8470 = sbr.rel (%p8468) target = $region100
      $region99: #{tpu_custom_call.1} parent=5 // pred_region
        %s8471 = ssub.s32 %s27, 2
        // Predicated region
        $region101: #{tpu_custom_call.1} parent=99 // pred_check
          %p8472 = pneg %p349
        $region102: #{tpu_custom_call.1} parent=99 // pred_check_branch
          %8474 = sbr.rel (%p8472) target = $region104
        $region103: #{tpu_custom_call.1} parent=99 // pred_region
          %s8475 = sand.u32 %s334, 1
          %s8476 = scalar_lea.sflag [#allocation4], %s8475
          %s8477 = sand.u32 %s334, 1
          %s8478 = smul.addr %s8477, 8
          %s8479 = scalar_lea.vmem [#allocation11], %s8478
          %8480 = dma.done %s8476, 128
        $region104: #{tpu_custom_call.1} parent=99 // pred_fallthru
          _
      $region100: #{tpu_custom_call.1} parent=5 // pred_fallthru
        _
    $region6: #{tpu_custom_call.1} parent=1 // loop_footer
      %s31 = sadd.s32 1, %s27
    $region7: #{tpu_custom_call.1} parent=1 // loop_footer_branch
      %26 = sbr.rel target = $region3
    $region8: #{tpu_custom_call.1} parent=1 // loop_exit
      _
    %8481 = vsyncpa [#allocation3], 1
    %s8482 = scalar_lea.sflag [#allocation3], 1
    %8483 = vsyncpa %s8482, 1
    %8484 = vsyncpa [#allocation6], 1
    %8485 = vsyncpa [#allocation9], 1
    %8486 = vsyncpa [#allocation4], 1
    %s8487 = scalar_lea.sflag [#allocation4], 1
    %8488 = vsyncpa %s8487, 1

</llo_original>
